<compile_context>
chip_gen: v5e
topology: v5e:2x2
jax: 0.10.0
libtpu: 0.0.40
codegen_flags: <defaults>
</compile_context>

<pallas_src>
import jax
import jax.numpy as jnp
from jax.experimental import pallas as pl
from jax.experimental.pallas import tpu as pltpu

EPS = 1e-5
IN_DIM = 28 * 28
LATENT = 2
LATENT_PAD = 128            # lane-dense width for the latent / encoded output

ENC_DIMS = [(IN_DIM, 256), (256, 128), (128, 64), (64, LATENT)]
DEC_DIMS = [(LATENT, 64), (64, 128), (128, 256), (256, IN_DIM)]
BN_AFTER = {0, 1, 2, 4, 5, 6}   # layer indices followed by BatchNorm1d

# Output dtypes: bf16 halves the two output DMAs (review item). Set to
# jnp.float32 if PyTorch-exact f32 outputs are required downstream.
ENC_DTYPE = jnp.bfloat16
DEC_DTYPE = jnp.bfloat16

# ------------------- packed small-vector layout (1 DMA) ---------------------
# Every vector gets a 128-lane-aligned slot so in-kernel slices are static and
# lane-aligned.  Order: per layer bias, then gamma/beta where BN follows.
_VEC_LAYOUT = [
    ("b1", 256), ("g1", 256), ("t1", 256),
    ("b2", 128), ("g2", 128), ("t2", 128),
    ("b3", 64), ("g3", 64), ("t3", 64),
    ("b4", LATENT_PAD),                       # already lane-padded latent bias
    ("b5", 64), ("g4", 64), ("t4", 64),
    ("b6", 128), ("g5", 128), ("t5", 128),
    ("b7", 256), ("g6", 256), ("t6", 256),
    ("b8", IN_DIM),
]


def _build_vec_offsets():
    offsets, off = {}, 0
    for name, width in _VEC_LAYOUT:
        offsets[name] = (off, width)
        off += ((width + 127) // 128) * 128   # keep every slot 128-aligned
    return offsets, off


VEC_OFFSETS, VEC_TOTAL = _build_vec_offsets()   # VEC_TOTAL == 4096


# --------------------------------- kernel -----------------------------------

def ae_kernel(x_ref,
              w1, w2, w3, w4, w5, w6, w7, w8,
              vec_ref,
              enc_ref, dec_ref):
    inv_b = 1.0 / x_ref.shape[0]          # static at trace time

    def vec(name):
        off, n = VEC_OFFSETS[name]
        return vec_ref[:, off:off + n]    # [1, n] f32, static lane-aligned slice

    def linear(h, w_ref, bias_name):
        # bf16 operands on the MXU, f32 accumulation, f32 bias add.
        # (astype is a no-op for the first layer: x arrives as bf16.)
        return jnp.dot(h.astype(jnp.bfloat16), w_ref[...],
                       preferred_element_type=jnp.float32) + vec(bias_name)

    def bn_train(h, g_name, t_name):
        # Training-mode BatchNorm1d, single reduction pass:
        #   mean = sum(h)/B ; var = E[h^2]-mean^2 (biased) ;
        #   fold gamma*rsqrt(var+eps) into one per-column scale/shift.
        s1 = jnp.sum(h, axis=0, keepdims=True)
        s2 = jnp.sum(h * h, axis=0, keepdims=True)
        mean = s1 * inv_b
        var = jnp.maximum(s2 * inv_b - mean * mean, 0.0)
        scale = vec(g_name) * jax.lax.rsqrt(var + EPS)
        shift = vec(t_name) - mean * scale
        return h * scale + shift

    x = x_ref[...]                        # [B, 784] bf16 (cast in the wrapper)

    # ---- encoder ----
    h = bn_train(jnp.maximum(linear(x, w1, "b1"), 0.0), "g1", "t1")
    h = bn_train(jnp.maximum(linear(h, w2, "b2"), 0.0), "g2", "t2")
    h = bn_train(jnp.maximum(linear(h, w3, "b3"), 0.0), "g3", "t3")
    # w4/b4 are zero-padded to 128 output columns -> lanes [2:128] are exactly
    # 0 and the store below is a full-width, unmasked vst.
    enc = linear(h, w4, "b4")                        # [B, 128] f32
    enc_ref[...] = enc.astype(enc_ref.dtype)

    # ---- decoder ----
    # w5 rows [2:128] are zero, so the padded latent lanes contribute nothing.
    h = bn_train(jnp.maximum(linear(enc, w5, "b5"), 0.0), "g4", "t4")
    h = bn_train(jnp.maximum(linear(h, w6, "b6"), 0.0), "g5", "t5")
    h = bn_train(jnp.maximum(linear(h, w7, "b7"), 0.0), "g6", "t6")
    dec_ref[...] = jax.nn.sigmoid(linear(h, w8, "b8")).astype(dec_ref.dtype)


# --------------------------- params / packing -------------------------------

def init_params(key):
    """PyTorch-default-style init; logical (un-padded) f32 params.

    Layout (28 arrays): per layer w [in,out], b [1,out]; plus gamma/beta
    [1,out] after every layer that is followed by BatchNorm1d.
    """
    params = []
    for i, (fan_in, fan_out) in enumerate(ENC_DIMS + DEC_DIMS):
        key, kw, kb = jax.random.split(key, 3)
        bound = 1.0 / float(fan_in) ** 0.5
        w = jax.random.uniform(kw, (fan_in, fan_out), jnp.float32, -bound, bound)
        b = jax.random.uniform(kb, (1, fan_out), jnp.float32, -bound, bound)
        params += [w, b]
        if i in BN_AFTER:
            params += [jnp.ones((1, fan_out), jnp.float32),    # gamma
                       jnp.zeros((1, fan_out), jnp.float32)]   # beta
    return params


def pack_params(params):
    """Kernel-ready params.

    Returns:
      weights: 8 bf16 matrices (w4 padded to [64,128], w5 to [128,64]).
      vec:     one (1, 4096) f32 array holding every bias/gamma/beta at a
               128-aligned static offset (single HBM->VMEM DMA).
    """
    (w1, b1, g1, t1, w2, b2, g2, t2, w3, b3, g3, t3, w4, b4,
     w5, b5, g4, t4, w6, b6, g5, t5, w7, b7, g6, t6, w8, b8) = params

    pad = LATENT_PAD - LATENT
    w4 = jnp.pad(w4, ((0, 0), (0, pad)))   # [64, 2]  -> [64, 128]
    b4 = jnp.pad(b4, ((0, 0), (0, pad)))   # [1, 2]   -> [1, 128]
    w5 = jnp.pad(w5, ((0, pad), (0, 0)))   # [2, 64]  -> [128, 64]

    weights = [w.astype(jnp.bfloat16)
               for w in (w1, w2, w3, w4, w5, w6, w7, w8)]

    named = dict(b1=b1, g1=g1, t1=t1, b2=b2, g2=g2, t2=t2,
                 b3=b3, g3=g3, t3=t3, b4=b4,
                 b5=b5, g4=g4, t4=t4, b6=b6, g5=g5, t5=t5,
                 b7=b7, g6=g6, t6=t6, b8=b8)
    vec = jnp.zeros((1, VEC_TOTAL), jnp.float32)
    for name, (off, n) in VEC_OFFSETS.items():
        vec = vec.at[:, off:off + n].set(named[name])
    return weights, vec


# --------------------------------- wrapper ----------------------------------

@jax.jit
def autoencoder_forward(x, weights, vec):
    B = x.shape[0]
    x_bf16 = x.astype(jnp.bfloat16)        # halve the largest input DMA

    flops = 2 * B * sum(fi * fo for fi, fo in ENC_DIMS + DEC_DIMS)
    bytes_accessed = (
        int(x_bf16.size) * 2
        + sum(int(w.size) * w.dtype.itemsize for w in weights)
        + int(vec.size) * 4
        + B * LATENT_PAD * jnp.dtype(ENC_DTYPE).itemsize
        + B * IN_DIM * jnp.dtype(DEC_DTYPE).itemsize)

    vmem = pl.BlockSpec(memory_space=pltpu.MemorySpace.VMEM)
    n_in = 1 + len(weights) + 1            # x + 8 weights + packed vectors

    enc_pad, dec = pl.pallas_call(
        ae_kernel,
        out_shape=(
            jax.ShapeDtypeStruct((B, LATENT_PAD), ENC_DTYPE),
            jax.ShapeDtypeStruct((B, IN_DIM), DEC_DTYPE),
        ),
        in_specs=[vmem] * n_in,
        out_specs=(vmem, vmem),
        cost_estimate=pl.CostEstimate(
            flops=flops,
            transcendentals=B * IN_DIM,    # sigmoid; rsqrt count negligible
            bytes_accessed=bytes_accessed),
    )(x_bf16, *weights, vec)

    return enc_pad[:, :LATENT].astype(jnp.float32), dec


# ------------------------- pure-JAX reference -------------------------------

@jax.jit
def ref_forward(x, weights, vec):
    w1, w2, w3, w4, w5, w6, w7, w8 = weights

    def get(name):
        off, n = VEC_OFFSETS[name]
        return vec[:, off:off + n]

    def lin(h, w, bname):
        return jnp.dot(h.astype(jnp.bfloat16), w,
                       preferred_element_type=jnp.float32) + get(bname)

    def bn(h, gname, tname):
        m = jnp.mean(h, axis=0, keepdims=True)
        v = jnp.maximum(jnp.mean(h * h, axis=0, keepdims=True) - m * m, 0.0)
        s = get(gname) * jax.lax.rsqrt(v + EPS)
        return h * s + (get(tname) - m * s)

    h = x.astype(jnp.bfloat16)
    h = bn(jnp.maximum(lin(h, w1, "b1"), 0.0), "g1", "t1")
    h = bn(jnp.maximum(lin(h, w2, "b2"), 0.0), "g2", "t2")
    h = bn(jnp.maximum(lin(h, w3, "b3"), 0.0), "g3", "t3")
    enc = lin(h, w4, "b4")
    h = bn(jnp.maximum(lin(enc, w5, "b5"), 0.0), "g4", "t4")
    h = bn(jnp.maximum(lin(h, w6, "b6"), 0.0), "g5", "t5")
    h = bn(jnp.maximum(lin(h, w7, "b7"), 0.0), "g6", "t6")
    dec = jax.nn.sigmoid(lin(h, w8, "b8"))
    return enc[:, :LATENT], dec


# ----------------------------------- main -----------------------------------

if __name__ == "__main__":
    key = jax.random.PRNGKey(0)
    key, kx = jax.random.split(key)

    # B is the only MXU-occupancy lever (M dim); keep it a multiple of 128
    # (>= 512 recommended on v6e/v7x when the caller can batch).
    B = 256
    x = jax.random.uniform(kx, (B, IN_DIM), jnp.float32)   # MNIST-like pixels

    params = init_params(key)
    weights, vec = pack_params(params)

    encoded, decoded = autoencoder_forward(x, weights, vec)
    jax.block_until_ready((encoded, decoded))

    # shape / sanity checks
    assert encoded.shape == (B, LATENT) and decoded.shape == (B, IN_DIM)
    assert bool(jnp.all(jnp.isfinite(encoded)))
    assert bool(jnp.all(jnp.isfinite(decoded.astype(jnp.float32))))
    assert bool(jnp.all(decoded >= 0.0)) and bool(jnp.all(decoded <= 1.0))

    # numerical check against a pure-JAX reference using the same bf16-weight /
    # f32-accumulation arithmetic (tolerance covers bf16 output rounding)
    enc_ref, dec_ref = ref_forward(x, weights, vec)
    assert bool(jnp.allclose(encoded, enc_ref, atol=2e-2, rtol=2e-2))
    assert bool(jnp.allclose(decoded.astype(jnp.float32), dec_ref,
                             atol=2e-2, rtol=2e-2))

    print("KERNEL_OK")
</pallas_src>

<mosaic_0001>
module attributes {stable_mosaic.version = 11 : i64} {
  func.func @ae_kernel(%arg0: memref<256x784xbf16, #tpu.memory_space<vmem>>, %arg1: memref<784x256xbf16, #tpu.memory_space<vmem>>, %arg2: memref<256x128xbf16, #tpu.memory_space<vmem>>, %arg3: memref<128x64xbf16, #tpu.memory_space<vmem>>, %arg4: memref<64x128xbf16, #tpu.memory_space<vmem>>, %arg5: memref<128x64xbf16, #tpu.memory_space<vmem>>, %arg6: memref<64x128xbf16, #tpu.memory_space<vmem>>, %arg7: memref<128x256xbf16, #tpu.memory_space<vmem>>, %arg8: memref<256x784xbf16, #tpu.memory_space<vmem>>, %arg9: memref<1x4096xf32, #tpu.memory_space<vmem>>, %arg10: memref<256x128xbf16, #tpu.memory_space<vmem>>, %arg11: memref<256x784xbf16, #tpu.memory_space<vmem>>) attributes {dimension_semantics = [], scalar_prefetch = 0 : i64, scratch_operands = 0 : i64, tpu.core_type = #tpu.core_type<tc>} {
    %c0 = arith.constant 0 : index
    %c0_0 = arith.constant 0 : index
    %0 = vector.load %arg0[%c0, %c0_0] : memref<256x784xbf16, #tpu.memory_space<vmem>>, vector<256x784xbf16>
    %c0_1 = arith.constant 0 : index
    %c0_2 = arith.constant 0 : index
    %1 = vector.load %arg1[%c0_1, %c0_2] : memref<784x256xbf16, #tpu.memory_space<vmem>>, vector<784x256xbf16>
    %cst = arith.constant dense<0.000000e+00> : vector<256x256xf32>
    %2 = tpu.matmul %0, %1, %cst {dimension_numbers = #tpu.dot_dimension_numbers<[1], [0], [0], [1], [0, 0, 1, 1], [], []>} : vector<256x784xbf16>, vector<784x256xbf16>, vector<256x256xf32> -> vector<256x256xf32>
    %c0_3 = arith.constant 0 : index
    %c0_4 = arith.constant 0 : index
    %3 = vector.load %arg9[%c0_3, %c0_4] : memref<1x4096xf32, #tpu.memory_space<vmem>>, vector<1x256xf32>
    %4 = vector.broadcast %3 : vector<1x256xf32> to vector<256x256xf32>
    %5 = arith.addf %2, %4 : vector<256x256xf32>
    %cst_5 = arith.constant 0.000000e+00 : f32
    %6 = vector.broadcast %cst_5 : f32 to vector<256x256xf32>
    %7 = arith.maximumf %5, %6 : vector<256x256xf32>
    %cst_6 = arith.constant dense<0.000000e+00> : vector<256xf32>
    %8 = vector.multi_reduction <add>, %7, %cst_6 [0] : vector<256x256xf32> to vector<256xf32>
    %9 = vector.shape_cast %8 : vector<256xf32> to vector<1x256xf32>
    %10 = arith.mulf %7, %7 : vector<256x256xf32>
    %cst_7 = arith.constant dense<0.000000e+00> : vector<256xf32>
    %11 = vector.multi_reduction <add>, %10, %cst_7 [0] : vector<256x256xf32> to vector<256xf32>
    %12 = vector.shape_cast %11 : vector<256xf32> to vector<1x256xf32>
    %cst_8 = arith.constant 3.906250e-03 : f32
    %13 = vector.broadcast %cst_8 : f32 to vector<1x256xf32>
    %14 = arith.mulf %9, %13 : vector<1x256xf32>
    %cst_9 = arith.constant 3.906250e-03 : f32
    %15 = vector.broadcast %cst_9 : f32 to vector<1x256xf32>
    %16 = arith.mulf %12, %15 : vector<1x256xf32>
    %17 = arith.mulf %14, %14 : vector<1x256xf32>
    %18 = arith.subf %16, %17 : vector<1x256xf32>
    %cst_10 = arith.constant 0.000000e+00 : f32
    %19 = vector.broadcast %cst_10 : f32 to vector<1x256xf32>
    %20 = arith.maximumf %18, %19 : vector<1x256xf32>
    %c0_11 = arith.constant 0 : index
    %c256 = arith.constant 256 : index
    %21 = vector.load %arg9[%c0_11, %c256] : memref<1x4096xf32, #tpu.memory_space<vmem>>, vector<1x256xf32>
    %cst_12 = arith.constant 9.99999974E-6 : f32
    %22 = vector.broadcast %cst_12 : f32 to vector<1x256xf32>
    %23 = arith.addf %20, %22 : vector<1x256xf32>
    %24 = math.rsqrt %23 : vector<1x256xf32>
    %25 = arith.mulf %21, %24 : vector<1x256xf32>
    %c0_13 = arith.constant 0 : index
    %c512 = arith.constant 512 : index
    %26 = vector.load %arg9[%c0_13, %c512] : memref<1x4096xf32, #tpu.memory_space<vmem>>, vector<1x256xf32>
    %27 = arith.mulf %14, %25 : vector<1x256xf32>
    %28 = arith.subf %26, %27 : vector<1x256xf32>
    %29 = vector.broadcast %25 : vector<1x256xf32> to vector<256x256xf32>
    %30 = arith.mulf %7, %29 : vector<256x256xf32>
    %31 = vector.broadcast %28 : vector<1x256xf32> to vector<256x256xf32>
    %32 = arith.addf %30, %31 : vector<256x256xf32>
    %33 = arith.truncf %32 : vector<256x256xf32> to vector<256x256xbf16>
    %c0_14 = arith.constant 0 : index
    %c0_15 = arith.constant 0 : index
    %34 = vector.load %arg2[%c0_14, %c0_15] : memref<256x128xbf16, #tpu.memory_space<vmem>>, vector<256x128xbf16>
    %cst_16 = arith.constant dense<0.000000e+00> : vector<256x128xf32>
    %35 = tpu.matmul %33, %34, %cst_16 {dimension_numbers = #tpu.dot_dimension_numbers<[1], [0], [0], [1], [0, 0, 1, 1], [], []>} : vector<256x256xbf16>, vector<256x128xbf16>, vector<256x128xf32> -> vector<256x128xf32>
    %c0_17 = arith.constant 0 : index
    %c768 = arith.constant 768 : index
    %36 = vector.load %arg9[%c0_17, %c768] : memref<1x4096xf32, #tpu.memory_space<vmem>>, vector<1x128xf32>
    %37 = vector.broadcast %36 : vector<1x128xf32> to vector<256x128xf32>
    %38 = arith.addf %35, %37 : vector<256x128xf32>
    %cst_18 = arith.constant 0.000000e+00 : f32
    %39 = vector.broadcast %cst_18 : f32 to vector<256x128xf32>
    %40 = arith.maximumf %38, %39 : vector<256x128xf32>
    %cst_19 = arith.constant dense<0.000000e+00> : vector<128xf32>
    %41 = vector.multi_reduction <add>, %40, %cst_19 [0] : vector<256x128xf32> to vector<128xf32>
    %42 = vector.shape_cast %41 : vector<128xf32> to vector<1x128xf32>
    %43 = arith.mulf %40, %40 : vector<256x128xf32>
    %cst_20 = arith.constant dense<0.000000e+00> : vector<128xf32>
    %44 = vector.multi_reduction <add>, %43, %cst_20 [0] : vector<256x128xf32> to vector<128xf32>
    %45 = vector.shape_cast %44 : vector<128xf32> to vector<1x128xf32>
    %cst_21 = arith.constant 3.906250e-03 : f32
    %46 = vector.broadcast %cst_21 : f32 to vector<1x128xf32>
    %47 = arith.mulf %42, %46 : vector<1x128xf32>
    %cst_22 = arith.constant 3.906250e-03 : f32
    %48 = vector.broadcast %cst_22 : f32 to vector<1x128xf32>
    %49 = arith.mulf %45, %48 : vector<1x128xf32>
    %50 = arith.mulf %47, %47 : vector<1x128xf32>
    %51 = arith.subf %49, %50 : vector<1x128xf32>
    %cst_23 = arith.constant 0.000000e+00 : f32
    %52 = vector.broadcast %cst_23 : f32 to vector<1x128xf32>
    %53 = arith.maximumf %51, %52 : vector<1x128xf32>
    %c0_24 = arith.constant 0 : index
    %c896 = arith.constant 896 : index
    %54 = vector.load %arg9[%c0_24, %c896] : memref<1x4096xf32, #tpu.memory_space<vmem>>, vector<1x128xf32>
    %cst_25 = arith.constant 9.99999974E-6 : f32
    %55 = vector.broadcast %cst_25 : f32 to vector<1x128xf32>
    %56 = arith.addf %53, %55 : vector<1x128xf32>
    %57 = math.rsqrt %56 : vector<1x128xf32>
    %58 = arith.mulf %54, %57 : vector<1x128xf32>
    %c0_26 = arith.constant 0 : index
    %c1024 = arith.constant 1024 : index
    %59 = vector.load %arg9[%c0_26, %c1024] : memref<1x4096xf32, #tpu.memory_space<vmem>>, vector<1x128xf32>
    %60 = arith.mulf %47, %58 : vector<1x128xf32>
    %61 = arith.subf %59, %60 : vector<1x128xf32>
    %62 = vector.broadcast %58 : vector<1x128xf32> to vector<256x128xf32>
    %63 = arith.mulf %40, %62 : vector<256x128xf32>
    %64 = vector.broadcast %61 : vector<1x128xf32> to vector<256x128xf32>
    %65 = arith.addf %63, %64 : vector<256x128xf32>
    %66 = arith.truncf %65 : vector<256x128xf32> to vector<256x128xbf16>
    %c0_27 = arith.constant 0 : index
    %c0_28 = arith.constant 0 : index
    %67 = vector.load %arg3[%c0_27, %c0_28] : memref<128x64xbf16, #tpu.memory_space<vmem>>, vector<128x64xbf16>
    %cst_29 = arith.constant dense<0.000000e+00> : vector<256x64xf32>
    %68 = tpu.matmul %66, %67, %cst_29 {dimension_numbers = #tpu.dot_dimension_numbers<[1], [0], [0], [1], [0, 0, 1, 1], [], []>} : vector<256x128xbf16>, vector<128x64xbf16>, vector<256x64xf32> -> vector<256x64xf32>
    %c0_30 = arith.constant 0 : index
    %c1152 = arith.constant 1152 : index
    %69 = vector.load %arg9[%c0_30, %c1152] : memref<1x4096xf32, #tpu.memory_space<vmem>>, vector<1x64xf32>
    %70 = vector.broadcast %69 : vector<1x64xf32> to vector<256x64xf32>
    %71 = arith.addf %68, %70 : vector<256x64xf32>
    %cst_31 = arith.constant 0.000000e+00 : f32
    %72 = vector.broadcast %cst_31 : f32 to vector<256x64xf32>
    %73 = arith.maximumf %71, %72 : vector<256x64xf32>
    %cst_32 = arith.constant dense<0.000000e+00> : vector<64xf32>
    %74 = vector.multi_reduction <add>, %73, %cst_32 [0] : vector<256x64xf32> to vector<64xf32>
    %75 = vector.shape_cast %74 : vector<64xf32> to vector<1x64xf32>
    %76 = arith.mulf %73, %73 : vector<256x64xf32>
    %cst_33 = arith.constant dense<0.000000e+00> : vector<64xf32>
    %77 = vector.multi_reduction <add>, %76, %cst_33 [0] : vector<256x64xf32> to vector<64xf32>
    %78 = vector.shape_cast %77 : vector<64xf32> to vector<1x64xf32>
    %cst_34 = arith.constant 3.906250e-03 : f32
    %79 = vector.broadcast %cst_34 : f32 to vector<1x64xf32>
    %80 = arith.mulf %75, %79 : vector<1x64xf32>
    %cst_35 = arith.constant 3.906250e-03 : f32
    %81 = vector.broadcast %cst_35 : f32 to vector<1x64xf32>
    %82 = arith.mulf %78, %81 : vector<1x64xf32>
    %83 = arith.mulf %80, %80 : vector<1x64xf32>
    %84 = arith.subf %82, %83 : vector<1x64xf32>
    %cst_36 = arith.constant 0.000000e+00 : f32
    %85 = vector.broadcast %cst_36 : f32 to vector<1x64xf32>
    %86 = arith.maximumf %84, %85 : vector<1x64xf32>
    %c0_37 = arith.constant 0 : index
    %c1280 = arith.constant 1280 : index
    %87 = vector.load %arg9[%c0_37, %c1280] : memref<1x4096xf32, #tpu.memory_space<vmem>>, vector<1x64xf32>
    %cst_38 = arith.constant 9.99999974E-6 : f32
    %88 = vector.broadcast %cst_38 : f32 to vector<1x64xf32>
    %89 = arith.addf %86, %88 : vector<1x64xf32>
    %90 = math.rsqrt %89 : vector<1x64xf32>
    %91 = arith.mulf %87, %90 : vector<1x64xf32>
    %c0_39 = arith.constant 0 : index
    %c1408 = arith.constant 1408 : index
    %92 = vector.load %arg9[%c0_39, %c1408] : memref<1x4096xf32, #tpu.memory_space<vmem>>, vector<1x64xf32>
    %93 = arith.mulf %80, %91 : vector<1x64xf32>
    %94 = arith.subf %92, %93 : vector<1x64xf32>
    %95 = vector.broadcast %91 : vector<1x64xf32> to vector<256x64xf32>
    %96 = arith.mulf %73, %95 : vector<256x64xf32>
    %97 = vector.broadcast %94 : vector<1x64xf32> to vector<256x64xf32>
    %98 = arith.addf %96, %97 : vector<256x64xf32>
    %99 = arith.truncf %98 : vector<256x64xf32> to vector<256x64xbf16>
    %c0_40 = arith.constant 0 : index
    %c0_41 = arith.constant 0 : index
    %100 = vector.load %arg4[%c0_40, %c0_41] : memref<64x128xbf16, #tpu.memory_space<vmem>>, vector<64x128xbf16>
    %cst_42 = arith.constant dense<0.000000e+00> : vector<256x128xf32>
    %101 = tpu.matmul %99, %100, %cst_42 {dimension_numbers = #tpu.dot_dimension_numbers<[1], [0], [0], [1], [0, 0, 1, 1], [], []>} : vector<256x64xbf16>, vector<64x128xbf16>, vector<256x128xf32> -> vector<256x128xf32>
    %c0_43 = arith.constant 0 : index
    %c1536 = arith.constant 1536 : index
    %102 = vector.load %arg9[%c0_43, %c1536] : memref<1x4096xf32, #tpu.memory_space<vmem>>, vector<1x128xf32>
    %103 = vector.broadcast %102 : vector<1x128xf32> to vector<256x128xf32>
    %104 = arith.addf %101, %103 : vector<256x128xf32>
    %105 = arith.truncf %104 : vector<256x128xf32> to vector<256x128xbf16>
    %c0_44 = arith.constant 0 : index
    %c0_45 = arith.constant 0 : index
    %106 = vector.load %arg10[%c0_44, %c0_45] : memref<256x128xbf16, #tpu.memory_space<vmem>>, vector<256x128xbf16>
    tpu.vector_store %arg10[%c0_44, %c0_45], %105 {strides = array<i32>} : memref<256x128xbf16, #tpu.memory_space<vmem>>, vector<256x128xbf16>,
    %107 = arith.truncf %104 : vector<256x128xf32> to vector<256x128xbf16>
    %c0_46 = arith.constant 0 : index
    %c0_47 = arith.constant 0 : index
    %108 = vector.load %arg5[%c0_46, %c0_47] : memref<128x64xbf16, #tpu.memory_space<vmem>>, vector<128x64xbf16>
    %cst_48 = arith.constant dense<0.000000e+00> : vector<256x64xf32>
    %109 = tpu.matmul %107, %108, %cst_48 {dimension_numbers = #tpu.dot_dimension_numbers<[1], [0], [0], [1], [0, 0, 1, 1], [], []>} : vector<256x128xbf16>, vector<128x64xbf16>, vector<256x64xf32> -> vector<256x64xf32>
    %c0_49 = arith.constant 0 : index
    %c1664 = arith.constant 1664 : index
    %110 = vector.load %arg9[%c0_49, %c1664] : memref<1x4096xf32, #tpu.memory_space<vmem>>, vector<1x64xf32>
    %111 = vector.broadcast %110 : vector<1x64xf32> to vector<256x64xf32>
    %112 = arith.addf %109, %111 : vector<256x64xf32>
    %cst_50 = arith.constant 0.000000e+00 : f32
    %113 = vector.broadcast %cst_50 : f32 to vector<256x64xf32>
    %114 = arith.maximumf %112, %113 : vector<256x64xf32>
    %cst_51 = arith.constant dense<0.000000e+00> : vector<64xf32>
    %115 = vector.multi_reduction <add>, %114, %cst_51 [0] : vector<256x64xf32> to vector<64xf32>
    %116 = vector.shape_cast %115 : vector<64xf32> to vector<1x64xf32>
    %117 = arith.mulf %114, %114 : vector<256x64xf32>
    %cst_52 = arith.constant dense<0.000000e+00> : vector<64xf32>
    %118 = vector.multi_reduction <add>, %117, %cst_52 [0] : vector<256x64xf32> to vector<64xf32>
    %119 = vector.shape_cast %118 : vector<64xf32> to vector<1x64xf32>
    %cst_53 = arith.constant 3.906250e-03 : f32
    %120 = vector.broadcast %cst_53 : f32 to vector<1x64xf32>
    %121 = arith.mulf %116, %120 : vector<1x64xf32>
    %cst_54 = arith.constant 3.906250e-03 : f32
    %122 = vector.broadcast %cst_54 : f32 to vector<1x64xf32>
    %123 = arith.mulf %119, %122 : vector<1x64xf32>
    %124 = arith.mulf %121, %121 : vector<1x64xf32>
    %125 = arith.subf %123, %124 : vector<1x64xf32>
    %cst_55 = arith.constant 0.000000e+00 : f32
    %126 = vector.broadcast %cst_55 : f32 to vector<1x64xf32>
    %127 = arith.maximumf %125, %126 : vector<1x64xf32>
    %c0_56 = arith.constant 0 : index
    %c1792 = arith.constant 1792 : index
    %128 = vector.load %arg9[%c0_56, %c1792] : memref<1x4096xf32, #tpu.memory_space<vmem>>, vector<1x64xf32>
    %cst_57 = arith.constant 9.99999974E-6 : f32
    %129 = vector.broadcast %cst_57 : f32 to vector<1x64xf32>
    %130 = arith.addf %127, %129 : vector<1x64xf32>
    %131 = math.rsqrt %130 : vector<1x64xf32>
    %132 = arith.mulf %128, %131 : vector<1x64xf32>
    %c0_58 = arith.constant 0 : index
    %c1920 = arith.constant 1920 : index
    %133 = vector.load %arg9[%c0_58, %c1920] : memref<1x4096xf32, #tpu.memory_space<vmem>>, vector<1x64xf32>
    %134 = arith.mulf %121, %132 : vector<1x64xf32>
    %135 = arith.subf %133, %134 : vector<1x64xf32>
    %136 = vector.broadcast %132 : vector<1x64xf32> to vector<256x64xf32>
    %137 = arith.mulf %114, %136 : vector<256x64xf32>
    %138 = vector.broadcast %135 : vector<1x64xf32> to vector<256x64xf32>
    %139 = arith.addf %137, %138 : vector<256x64xf32>
    %140 = arith.truncf %139 : vector<256x64xf32> to vector<256x64xbf16>
    %c0_59 = arith.constant 0 : index
    %c0_60 = arith.constant 0 : index
    %141 = vector.load %arg6[%c0_59, %c0_60] : memref<64x128xbf16, #tpu.memory_space<vmem>>, vector<64x128xbf16>
    %cst_61 = arith.constant dense<0.000000e+00> : vector<256x128xf32>
    %142 = tpu.matmul %140, %141, %cst_61 {dimension_numbers = #tpu.dot_dimension_numbers<[1], [0], [0], [1], [0, 0, 1, 1], [], []>} : vector<256x64xbf16>, vector<64x128xbf16>, vector<256x128xf32> -> vector<256x128xf32>
    %c0_62 = arith.constant 0 : index
    %c2048 = arith.constant 2048 : index
    %143 = vector.load %arg9[%c0_62, %c2048] : memref<1x4096xf32, #tpu.memory_space<vmem>>, vector<1x128xf32>
    %144 = vector.broadcast %143 : vector<1x128xf32> to vector<256x128xf32>
    %145 = arith.addf %142, %144 : vector<256x128xf32>
    %cst_63 = arith.constant 0.000000e+00 : f32
    %146 = vector.broadcast %cst_63 : f32 to vector<256x128xf32>
    %147 = arith.maximumf %145, %146 : vector<256x128xf32>
    %cst_64 = arith.constant dense<0.000000e+00> : vector<128xf32>
    %148 = vector.multi_reduction <add>, %147, %cst_64 [0] : vector<256x128xf32> to vector<128xf32>
    %149 = vector.shape_cast %148 : vector<128xf32> to vector<1x128xf32>
    %150 = arith.mulf %147, %147 : vector<256x128xf32>
    %cst_65 = arith.constant dense<0.000000e+00> : vector<128xf32>
    %151 = vector.multi_reduction <add>, %150, %cst_65 [0] : vector<256x128xf32> to vector<128xf32>
    %152 = vector.shape_cast %151 : vector<128xf32> to vector<1x128xf32>
    %cst_66 = arith.constant 3.906250e-03 : f32
    %153 = vector.broadcast %cst_66 : f32 to vector<1x128xf32>
    %154 = arith.mulf %149, %153 : vector<1x128xf32>
    %cst_67 = arith.constant 3.906250e-03 : f32
    %155 = vector.broadcast %cst_67 : f32 to vector<1x128xf32>
    %156 = arith.mulf %152, %155 : vector<1x128xf32>
    %157 = arith.mulf %154, %154 : vector<1x128xf32>
    %158 = arith.subf %156, %157 : vector<1x128xf32>
    %cst_68 = arith.constant 0.000000e+00 : f32
    %159 = vector.broadcast %cst_68 : f32 to vector<1x128xf32>
    %160 = arith.maximumf %158, %159 : vector<1x128xf32>
    %c0_69 = arith.constant 0 : index
    %c2176 = arith.constant 2176 : index
    %161 = vector.load %arg9[%c0_69, %c2176] : memref<1x4096xf32, #tpu.memory_space<vmem>>, vector<1x128xf32>
    %cst_70 = arith.constant 9.99999974E-6 : f32
    %162 = vector.broadcast %cst_70 : f32 to vector<1x128xf32>
    %163 = arith.addf %160, %162 : vector<1x128xf32>
    %164 = math.rsqrt %163 : vector<1x128xf32>
    %165 = arith.mulf %161, %164 : vector<1x128xf32>
    %c0_71 = arith.constant 0 : index
    %c2304 = arith.constant 2304 : index
    %166 = vector.load %arg9[%c0_71, %c2304] : memref<1x4096xf32, #tpu.memory_space<vmem>>, vector<1x128xf32>
    %167 = arith.mulf %154, %165 : vector<1x128xf32>
    %168 = arith.subf %166, %167 : vector<1x128xf32>
    %169 = vector.broadcast %165 : vector<1x128xf32> to vector<256x128xf32>
    %170 = arith.mulf %147, %169 : vector<256x128xf32>
    %171 = vector.broadcast %168 : vector<1x128xf32> to vector<256x128xf32>
    %172 = arith.addf %170, %171 : vector<256x128xf32>
    %173 = arith.truncf %172 : vector<256x128xf32> to vector<256x128xbf16>
    %c0_72 = arith.constant 0 : index
    %c0_73 = arith.constant 0 : index
    %174 = vector.load %arg7[%c0_72, %c0_73] : memref<128x256xbf16, #tpu.memory_space<vmem>>, vector<128x256xbf16>
    %cst_74 = arith.constant dense<0.000000e+00> : vector<256x256xf32>
    %175 = tpu.matmul %173, %174, %cst_74 {dimension_numbers = #tpu.dot_dimension_numbers<[1], [0], [0], [1], [0, 0, 1, 1], [], []>} : vector<256x128xbf16>, vector<128x256xbf16>, vector<256x256xf32> -> vector<256x256xf32>
    %c0_75 = arith.constant 0 : index
    %c2432 = arith.constant 2432 : index
    %176 = vector.load %arg9[%c0_75, %c2432] : memref<1x4096xf32, #tpu.memory_space<vmem>>, vector<1x256xf32>
    %177 = vector.broadcast %176 : vector<1x256xf32> to vector<256x256xf32>
    %178 = arith.addf %175, %177 : vector<256x256xf32>
    %cst_76 = arith.constant 0.000000e+00 : f32
    %179 = vector.broadcast %cst_76 : f32 to vector<256x256xf32>
    %180 = arith.maximumf %178, %179 : vector<256x256xf32>
    %cst_77 = arith.constant dense<0.000000e+00> : vector<256xf32>
    %181 = vector.multi_reduction <add>, %180, %cst_77 [0] : vector<256x256xf32> to vector<256xf32>
    %182 = vector.shape_cast %181 : vector<256xf32> to vector<1x256xf32>
    %183 = arith.mulf %180, %180 : vector<256x256xf32>
    %cst_78 = arith.constant dense<0.000000e+00> : vector<256xf32>
    %184 = vector.multi_reduction <add>, %183, %cst_78 [0] : vector<256x256xf32> to vector<256xf32>
    %185 = vector.shape_cast %184 : vector<256xf32> to vector<1x256xf32>
    %cst_79 = arith.constant 3.906250e-03 : f32
    %186 = vector.broadcast %cst_79 : f32 to vector<1x256xf32>
    %187 = arith.mulf %182, %186 : vector<1x256xf32>
    %cst_80 = arith.constant 3.906250e-03 : f32
    %188 = vector.broadcast %cst_80 : f32 to vector<1x256xf32>
    %189 = arith.mulf %185, %188 : vector<1x256xf32>
    %190 = arith.mulf %187, %187 : vector<1x256xf32>
    %191 = arith.subf %189, %190 : vector<1x256xf32>
    %cst_81 = arith.constant 0.000000e+00 : f32
    %192 = vector.broadcast %cst_81 : f32 to vector<1x256xf32>
    %193 = arith.maximumf %191, %192 : vector<1x256xf32>
    %c0_82 = arith.constant 0 : index
    %c2688 = arith.constant 2688 : index
    %194 = vector.load %arg9[%c0_82, %c2688] : memref<1x4096xf32, #tpu.memory_space<vmem>>, vector<1x256xf32>
    %cst_83 = arith.constant 9.99999974E-6 : f32
    %195 = vector.broadcast %cst_83 : f32 to vector<1x256xf32>
    %196 = arith.addf %193, %195 : vector<1x256xf32>
    %197 = math.rsqrt %196 : vector<1x256xf32>
    %198 = arith.mulf %194, %197 : vector<1x256xf32>
    %c0_84 = arith.constant 0 : index
    %c2944 = arith.constant 2944 : index
    %199 = vector.load %arg9[%c0_84, %c2944] : memref<1x4096xf32, #tpu.memory_space<vmem>>, vector<1x256xf32>
    %200 = arith.mulf %187, %198 : vector<1x256xf32>
    %201 = arith.subf %199, %200 : vector<1x256xf32>
    %202 = vector.broadcast %198 : vector<1x256xf32> to vector<256x256xf32>
    %203 = arith.mulf %180, %202 : vector<256x256xf32>
    %204 = vector.broadcast %201 : vector<1x256xf32> to vector<256x256xf32>
    %205 = arith.addf %203, %204 : vector<256x256xf32>
    %206 = arith.truncf %205 : vector<256x256xf32> to vector<256x256xbf16>
    %c0_85 = arith.constant 0 : index
    %c0_86 = arith.constant 0 : index
    %207 = vector.load %arg8[%c0_85, %c0_86] : memref<256x784xbf16, #tpu.memory_space<vmem>>, vector<256x784xbf16>
    %cst_87 = arith.constant dense<0.000000e+00> : vector<256x784xf32>
    %208 = tpu.matmul %206, %207, %cst_87 {dimension_numbers = #tpu.dot_dimension_numbers<[1], [0], [0], [1], [0, 0, 1, 1], [], []>} : vector<256x256xbf16>, vector<256x784xbf16>, vector<256x784xf32> -> vector<256x784xf32>
    %c0_88 = arith.constant 0 : index
    %c3200 = arith.constant 3200 : index
    %209 = vector.load %arg9[%c0_88, %c3200] : memref<1x4096xf32, #tpu.memory_space<vmem>>, vector<1x784xf32>
    %210 = vector.broadcast %209 : vector<1x784xf32> to vector<256x784xf32>
    %211 = arith.addf %208, %210 : vector<256x784xf32>
    %212 = arith.negf %211 : vector<256x784xf32>
    %213 = math.exp %212 : vector<256x784xf32>
    %cst_89 = arith.constant 1.000000e+00 : f32
    %214 = vector.broadcast %cst_89 : f32 to vector<256x784xf32>
    %215 = arith.addf %214, %213 : vector<256x784xf32>
    %216 = arith.divf %214, %215 : vector<256x784xf32>
    %217 = arith.truncf %216 : vector<256x784xf32> to vector<256x784xbf16>
    %c0_90 = arith.constant 0 : index
    %c0_91 = arith.constant 0 : index
    %218 = vector.load %arg11[%c0_90, %c0_91] : memref<256x784xbf16, #tpu.memory_space<vmem>>, vector<256x784xbf16>
    tpu.vector_store %arg11[%c0_90, %c0_91], %217 {strides = array<i32>} : memref<256x784xbf16, #tpu.memory_space<vmem>>, vector<256x784xbf16>,
    return
  }
}

</mosaic_0001>

<llo_original>
// kernel: autoencoder_forward.1
$region0: #{autoencoder_forward.1}
  #allocation0 [shape = 'u32[]', space=smem, size = 0x4, offset = 0x4, fixed_abs, tag = 'smem constant byte address 0x4 - core index']
  #allocation1 [shape = 'u32[72,128]{1,0:T(1,128)}', space=vmem, size = 0x9000, scoped, tag = 'internal scratch']
  %s0 = inlined_call_operand.vmem [shape: bf16[256,784], index: 0, kind: input, shape index: {}]
  %s1 = inlined_call_operand.vmem [shape: bf16[784,256], index: 1, kind: input, shape index: {}]
  %s2 = inlined_call_operand.vmem [shape: bf16[256,128], index: 2, kind: input, shape index: {}]
  %s3 = inlined_call_operand.vmem [shape: bf16[128,64], index: 3, kind: input, shape index: {}]
  %s4 = inlined_call_operand.vmem [shape: bf16[64,128], index: 4, kind: input, shape index: {}]
  %s5 = inlined_call_operand.vmem [shape: bf16[128,64], index: 5, kind: input, shape index: {}]
  %s6 = inlined_call_operand.vmem [shape: bf16[64,128], index: 6, kind: input, shape index: {}]
  %s7 = inlined_call_operand.vmem [shape: bf16[128,256], index: 7, kind: input, shape index: {}]
  %s8 = inlined_call_operand.vmem [shape: bf16[256,784], index: 8, kind: input, shape index: {}]
  %s9 = inlined_call_operand.vmem [shape: f32[1,4096], index: 9, kind: input, shape index: {}]
  %s10 = inlined_call_operand.vmem [shape: bf16[256,128], index: 10, kind: output, shape index: {0}]
  %s11 = inlined_call_operand.vmem [shape: bf16[256,784], index: 11, kind: output, shape index: {1}]
  %12 = xla_tuple %s10, %s11
  %s13 = sld [smem:[#allocation0]]
  $region58: #{autoencoder_forward.1} parent=0
    _
  %s15 = ssub.s32 1, %s13
  %s16 = scalar_select 0, %s15, %s13
  // Predicated region
  $region2: #{autoencoder_forward.1} parent=0 // pred_check
    _
  $region3: #{autoencoder_forward.1} parent=0 // pred_check_branch
    %18 = sbr.rel (0) target = $region5
  $region4: #{autoencoder_forward.1} parent=0 // pred_region
    _
  $region5: #{autoencoder_forward.1} parent=0 // pred_fallthru
    _
  // Predicated region
  $region6: #{autoencoder_forward.1} parent=0 // pred_check
    _
  $region7: #{autoencoder_forward.1} parent=0 // pred_check_branch
    %20 = sbr.rel (0) target = $region9
  $region8: #{autoencoder_forward.1} parent=0 // pred_region
    _
  $region9: #{autoencoder_forward.1} parent=0 // pred_fallthru
    _
  // Predicated region
  $region10: #{autoencoder_forward.1} parent=0 // pred_check
    _
  $region11: #{autoencoder_forward.1} parent=0 // pred_check_branch
    %22 = sbr.rel (0) target = $region13
  $region12: #{autoencoder_forward.1} parent=0 // pred_region
    _
  $region13: #{autoencoder_forward.1} parent=0 // pred_fallthru
    _
  // Predicated region
  $region14: #{autoencoder_forward.1} parent=0 // pred_check
    _
  $region15: #{autoencoder_forward.1} parent=0 // pred_check_branch
    %24 = sbr.rel (0) target = $region17
  $region16: #{autoencoder_forward.1} parent=0 // pred_region
    _
  $region17: #{autoencoder_forward.1} parent=0 // pred_fallthru
    _
  // Predicated region
  $region18: #{autoencoder_forward.1} parent=0 // pred_check
    _
  $region19: #{autoencoder_forward.1} parent=0 // pred_check_branch
    %26 = sbr.rel (0) target = $region21
  $region20: #{autoencoder_forward.1} parent=0 // pred_region
    _
  $region21: #{autoencoder_forward.1} parent=0 // pred_fallthru
    _
  // Predicated region
  $region22: #{autoencoder_forward.1} parent=0 // pred_check
    _
  $region23: #{autoencoder_forward.1} parent=0 // pred_check_branch
    %28 = sbr.rel (0) target = $region25
  $region24: #{autoencoder_forward.1} parent=0 // pred_region
    _
  $region25: #{autoencoder_forward.1} parent=0 // pred_fallthru
    _
  // Predicated region
  $region26: #{autoencoder_forward.1} parent=0 // pred_check
    _
  $region27: #{autoencoder_forward.1} parent=0 // pred_check_branch
    %30 = sbr.rel (0) target = $region29
  $region28: #{autoencoder_forward.1} parent=0 // pred_region
    _
  $region29: #{autoencoder_forward.1} parent=0 // pred_fallthru
    _
  // Predicated region
  $region30: #{autoencoder_forward.1} parent=0 // pred_check
    _
  $region31: #{autoencoder_forward.1} parent=0 // pred_check_branch
    %32 = sbr.rel (0) target = $region33
  $region32: #{autoencoder_forward.1} parent=0 // pred_region
    _
  $region33: #{autoencoder_forward.1} parent=0 // pred_fallthru
    _
  // Predicated region
  $region34: #{autoencoder_forward.1} parent=0 // pred_check
    _
  $region35: #{autoencoder_forward.1} parent=0 // pred_check_branch
    %34 = sbr.rel (0) target = $region37
  $region36: #{autoencoder_forward.1} parent=0 // pred_region
    _
  $region37: #{autoencoder_forward.1} parent=0 // pred_fallthru
    _
  // Predicated region
  $region38: #{autoencoder_forward.1} parent=0 // pred_check
    _
  $region39: #{autoencoder_forward.1} parent=0 // pred_check_branch
    %36 = sbr.rel (0) target = $region41
  $region40: #{autoencoder_forward.1} parent=0 // pred_region
    _
  $region41: #{autoencoder_forward.1} parent=0 // pred_fallthru
    _
  %v38 = vld [vmem:[%s0] sm:$0xff]
  %v39 = vld [vmem:[%s0 + $0x8] sm:$0xff]
  %v40 = vld [vmem:[%s0 + $0x10] sm:$0xff]
  %v41 = vld [vmem:[%s0 + $0x18] sm:$0xf]
  %v42 = vld [vmem:[%s0 + $0x1c] sm:$0xff]
  %v43 = vld [vmem:[%s0 + $0x24] sm:$0xff]
  %v44 = vld [vmem:[%s0 + $0x2c] sm:$0xff]
  %v45 = vld [vmem:[%s0 + $0x34] sm:$0xf]
  %v46 = vld [vmem:[%s0 + $0x38] sm:$0xff]
  %v47 = vld [vmem:[%s0 + $0x40] sm:$0xff]
  %v48 = vld [vmem:[%s0 + $0x48] sm:$0xff]
  %v49 = vld [vmem:[%s0 + $0x50] sm:$0xf]
  %v50 = vld [vmem:[%s0 + $0x54] sm:$0xff]
  %v51 = vld [vmem:[%s0 + $0x5c] sm:$0xff]
  %v52 = vld [vmem:[%s0 + $0x64] sm:$0xff]
  %v53 = vld [vmem:[%s0 + $0x6c] sm:$0xf]
  %v54 = vld [vmem:[%s0 + $0x70] sm:$0xff]
  %v55 = vld [vmem:[%s0 + $0x78] sm:$0xff]
  %v56 = vld [vmem:[%s0 + $0x80] sm:$0xff]
  %v57 = vld [vmem:[%s0 + $0x88] sm:$0xf]
  %v58 = vld [vmem:[%s0 + $0x8c] sm:$0xff]
  %v59 = vld [vmem:[%s0 + $0x94] sm:$0xff]
  %v60 = vld [vmem:[%s0 + $0x9c] sm:$0xff]
  %v61 = vld [vmem:[%s0 + $0xa4] sm:$0xf]
  %v62 = vld [vmem:[%s0 + $0xa8] sm:$0xff]
  %v63 = vld [vmem:[%s0 + $0xb0] sm:$0xff]
  %v64 = vld [vmem:[%s0 + $0xb8] sm:$0xff]
  %v65 = vld [vmem:[%s0 + $0xc0] sm:$0xf]
  %v66 = vld [vmem:[%s0 + $0xc4] sm:$0xff]
  %v67 = vld [vmem:[%s0 + $0xcc] sm:$0xff]
  %v68 = vld [vmem:[%s0 + $0xd4] sm:$0xff]
  %v69 = vld [vmem:[%s0 + $0xdc] sm:$0xf]
  %v70 = vld [vmem:[%s0 + $0xe0] sm:$0xff]
  %v71 = vld [vmem:[%s0 + $0xe8] sm:$0xff]
  %v72 = vld [vmem:[%s0 + $0xf0] sm:$0xff]
  %v73 = vld [vmem:[%s0 + $0xf8] sm:$0xf]
  %v74 = vld [vmem:[%s0 + $0xfc] sm:$0xff]
  %v75 = vld [vmem:[%s0 + $0x104] sm:$0xff]
  %v76 = vld [vmem:[%s0 + $0x10c] sm:$0xff]
  %v77 = vld [vmem:[%s0 + $0x114] sm:$0xf]
  %v78 = vld [vmem:[%s0 + $0x118] sm:$0xff]
  %v79 = vld [vmem:[%s0 + $0x120] sm:$0xff]
  %v80 = vld [vmem:[%s0 + $0x128] sm:$0xff]
  %v81 = vld [vmem:[%s0 + $0x130] sm:$0xf]
  %v82 = vld [vmem:[%s0 + $0x134] sm:$0xff]
  %v83 = vld [vmem:[%s0 + $0x13c] sm:$0xff]
  %v84 = vld [vmem:[%s0 + $0x144] sm:$0xff]
  %v85 = vld [vmem:[%s0 + $0x14c] sm:$0xf]
  %v86 = vld [vmem:[%s0 + $0x150] sm:$0xff]
  %v87 = vld [vmem:[%s0 + $0x158] sm:$0xff]
  %v88 = vld [vmem:[%s0 + $0x160] sm:$0xff]
  %v89 = vld [vmem:[%s0 + $0x168] sm:$0xf]
  %v90 = vld [vmem:[%s0 + $0x16c] sm:$0xff]
  %v91 = vld [vmem:[%s0 + $0x174] sm:$0xff]
  %v92 = vld [vmem:[%s0 + $0x17c] sm:$0xff]
  %v93 = vld [vmem:[%s0 + $0x184] sm:$0xf]
  %v94 = vld [vmem:[%s0 + $0x188] sm:$0xff]
  %v95 = vld [vmem:[%s0 + $0x190] sm:$0xff]
  %v96 = vld [vmem:[%s0 + $0x198] sm:$0xff]
  %v97 = vld [vmem:[%s0 + $0x1a0] sm:$0xf]
  %v98 = vld [vmem:[%s0 + $0x1a4] sm:$0xff]
  %v99 = vld [vmem:[%s0 + $0x1ac] sm:$0xff]
  %v100 = vld [vmem:[%s0 + $0x1b4] sm:$0xff]
  %v101 = vld [vmem:[%s0 + $0x1bc] sm:$0xf]
  %v102 = vld [vmem:[%s0 + $0x1c0] sm:$0xff]
  %v103 = vld [vmem:[%s0 + $0x1c8] sm:$0xff]
  %v104 = vld [vmem:[%s0 + $0x1d0] sm:$0xff]
  %v105 = vld [vmem:[%s0 + $0x1d8] sm:$0xf]
  %v106 = vld [vmem:[%s0 + $0x1dc] sm:$0xff]
  %v107 = vld [vmem:[%s0 + $0x1e4] sm:$0xff]
  %v108 = vld [vmem:[%s0 + $0x1ec] sm:$0xff]
  %v109 = vld [vmem:[%s0 + $0x1f4] sm:$0xf]
  %v110 = vld [vmem:[%s0 + $0x1f8] sm:$0xff]
  %v111 = vld [vmem:[%s0 + $0x200] sm:$0xff]
  %v112 = vld [vmem:[%s0 + $0x208] sm:$0xff]
  %v113 = vld [vmem:[%s0 + $0x210] sm:$0xf]
  %v114 = vld [vmem:[%s0 + $0x214] sm:$0xff]
  %v115 = vld [vmem:[%s0 + $0x21c] sm:$0xff]
  %v116 = vld [vmem:[%s0 + $0x224] sm:$0xff]
  %v117 = vld [vmem:[%s0 + $0x22c] sm:$0xf]
  %v118 = vld [vmem:[%s0 + $0x230] sm:$0xff]
  %v119 = vld [vmem:[%s0 + $0x238] sm:$0xff]
  %v120 = vld [vmem:[%s0 + $0x240] sm:$0xff]
  %v121 = vld [vmem:[%s0 + $0x248] sm:$0xf]
  %v122 = vld [vmem:[%s0 + $0x24c] sm:$0xff]
  %v123 = vld [vmem:[%s0 + $0x254] sm:$0xff]
  %v124 = vld [vmem:[%s0 + $0x25c] sm:$0xff]
  %v125 = vld [vmem:[%s0 + $0x264] sm:$0xf]
  %v126 = vld [vmem:[%s0 + $0x268] sm:$0xff]
  %v127 = vld [vmem:[%s0 + $0x270] sm:$0xff]
  %v128 = vld [vmem:[%s0 + $0x278] sm:$0xff]
  %v129 = vld [vmem:[%s0 + $0x280] sm:$0xf]
  %v130 = vld [vmem:[%s0 + $0x284] sm:$0xff]
  %v131 = vld [vmem:[%s0 + $0x28c] sm:$0xff]
  %v132 = vld [vmem:[%s0 + $0x294] sm:$0xff]
  %v133 = vld [vmem:[%s0 + $0x29c] sm:$0xf]
  %v134 = vld [vmem:[%s0 + $0x2a0] sm:$0xff]
  %v135 = vld [vmem:[%s0 + $0x2a8] sm:$0xff]
  %v136 = vld [vmem:[%s0 + $0x2b0] sm:$0xff]
  %v137 = vld [vmem:[%s0 + $0x2b8] sm:$0xf]
  %v138 = vld [vmem:[%s0 + $0x2bc] sm:$0xff]
  %v139 = vld [vmem:[%s0 + $0x2c4] sm:$0xff]
  %v140 = vld [vmem:[%s0 + $0x2cc] sm:$0xff]
  %v141 = vld [vmem:[%s0 + $0x2d4] sm:$0xf]
  %v142 = vld [vmem:[%s0 + $0x2d8] sm:$0xff]
  %v143 = vld [vmem:[%s0 + $0x2e0] sm:$0xff]
  %v144 = vld [vmem:[%s0 + $0x2e8] sm:$0xff]
  %v145 = vld [vmem:[%s0 + $0x2f0] sm:$0xf]
  %v146 = vld [vmem:[%s0 + $0x2f4] sm:$0xff]
  %v147 = vld [vmem:[%s0 + $0x2fc] sm:$0xff]
  %v148 = vld [vmem:[%s0 + $0x304] sm:$0xff]
  %v149 = vld [vmem:[%s0 + $0x30c] sm:$0xf]
  %v150 = vld [vmem:[%s0 + $0x310] sm:$0xff]
  %v151 = vld [vmem:[%s0 + $0x318] sm:$0xff]
  %v152 = vld [vmem:[%s0 + $0x320] sm:$0xff]
  %v153 = vld [vmem:[%s0 + $0x328] sm:$0xf]
  %v154 = vld [vmem:[%s0 + $0x32c] sm:$0xff]
  %v155 = vld [vmem:[%s0 + $0x334] sm:$0xff]
  %v156 = vld [vmem:[%s0 + $0x33c] sm:$0xff]
  %v157 = vld [vmem:[%s0 + $0x344] sm:$0xf]
  %v158 = vld [vmem:[%s0 + $0x348] sm:$0xff]
  %v159 = vld [vmem:[%s0 + $0x350] sm:$0xff]
  %v160 = vld [vmem:[%s0 + $0x358] sm:$0xff]
  %v161 = vld [vmem:[%s0 + $0x360] sm:$0xf]
  %v162 = vld [vmem:[%s0 + $0x364] sm:$0xff]
  %v163 = vld [vmem:[%s0 + $0x36c] sm:$0xff]
  %v164 = vld [vmem:[%s0 + $0x374] sm:$0xff]
  %v165 = vld [vmem:[%s0 + $0x37c] sm:$0xf]
  %v166 = vld [vmem:[%s1] sm:$0xff]
  %v167 = vld [vmem:[%s1 + $0x8] sm:$0xff]
  %v168 = vld [vmem:[%s1 + $0x10] sm:$0xff]
  %v169 = vld [vmem:[%s1 + $0x18] sm:$0xff]
  %v170 = vld [vmem:[%s1 + $0x20] sm:$0xff]
  %v171 = vld [vmem:[%s1 + $0x28] sm:$0xff]
  %v172 = vld [vmem:[%s1 + $0x30] sm:$0xff]
  %v173 = vld [vmem:[%s1 + $0x38] sm:$0xff]
  %v174 = vld [vmem:[%s1 + $0x40] sm:$0xff]
  %v175 = vld [vmem:[%s1 + $0x48] sm:$0xff]
  %v176 = vld [vmem:[%s1 + $0x50] sm:$0xff]
  %v177 = vld [vmem:[%s1 + $0x58] sm:$0xff]
  %v178 = vld [vmem:[%s1 + $0x60] sm:$0xff]
  %v179 = vld [vmem:[%s1 + $0x68] sm:$0xff]
  %v180 = vld [vmem:[%s1 + $0x70] sm:$0xff]
  %v181 = vld [vmem:[%s1 + $0x78] sm:$0xff]
  %v182 = vld [vmem:[%s1 + $0x80] sm:$0xff]
  %v183 = vld [vmem:[%s1 + $0x88] sm:$0xff]
  %v184 = vld [vmem:[%s1 + $0x90] sm:$0xff]
  %v185 = vld [vmem:[%s1 + $0x98] sm:$0xff]
  %v186 = vld [vmem:[%s1 + $0xa0] sm:$0xff]
  %v187 = vld [vmem:[%s1 + $0xa8] sm:$0xff]
  %v188 = vld [vmem:[%s1 + $0xb0] sm:$0xff]
  %v189 = vld [vmem:[%s1 + $0xb8] sm:$0xff]
  %v190 = vld [vmem:[%s1 + $0xc0] sm:$0xff]
  %v191 = vld [vmem:[%s1 + $0xc8] sm:$0xff]
  %v192 = vld [vmem:[%s1 + $0xd0] sm:$0xff]
  %v193 = vld [vmem:[%s1 + $0xd8] sm:$0xff]
  %v194 = vld [vmem:[%s1 + $0xe0] sm:$0xff]
  %v195 = vld [vmem:[%s1 + $0xe8] sm:$0xff]
  %v196 = vld [vmem:[%s1 + $0xf0] sm:$0xff]
  %v197 = vld [vmem:[%s1 + $0xf8] sm:$0xff]
  %v198 = vld [vmem:[%s1 + $0x100] sm:$0xff]
  %v199 = vld [vmem:[%s1 + $0x108] sm:$0xff]
  %v200 = vld [vmem:[%s1 + $0x110] sm:$0xff]
  %v201 = vld [vmem:[%s1 + $0x118] sm:$0xff]
  %v202 = vld [vmem:[%s1 + $0x120] sm:$0xff]
  %v203 = vld [vmem:[%s1 + $0x128] sm:$0xff]
  %v204 = vld [vmem:[%s1 + $0x130] sm:$0xff]
  %v205 = vld [vmem:[%s1 + $0x138] sm:$0xff]
  %v206 = vld [vmem:[%s1 + $0x140] sm:$0xff]
  %v207 = vld [vmem:[%s1 + $0x148] sm:$0xff]
  %v208 = vld [vmem:[%s1 + $0x150] sm:$0xff]
  %v209 = vld [vmem:[%s1 + $0x158] sm:$0xff]
  %v210 = vld [vmem:[%s1 + $0x160] sm:$0xff]
  %v211 = vld [vmem:[%s1 + $0x168] sm:$0xff]
  %v212 = vld [vmem:[%s1 + $0x170] sm:$0xff]
  %v213 = vld [vmem:[%s1 + $0x178] sm:$0xff]
  %v214 = vld [vmem:[%s1 + $0x180] sm:$0xff]
  %v215 = vld [vmem:[%s1 + $0x188] sm:$0xff]
  %v216 = vld [vmem:[%s1 + $0x190] sm:$0xff]
  %v217 = vld [vmem:[%s1 + $0x198] sm:$0xff]
  %v218 = vld [vmem:[%s1 + $0x1a0] sm:$0xff]
  %v219 = vld [vmem:[%s1 + $0x1a8] sm:$0xff]
  %v220 = vld [vmem:[%s1 + $0x1b0] sm:$0xff]
  %v221 = vld [vmem:[%s1 + $0x1b8] sm:$0xff]
  %v222 = vld [vmem:[%s1 + $0x1c0] sm:$0xff]
  %v223 = vld [vmem:[%s1 + $0x1c8] sm:$0xff]
  %v224 = vld [vmem:[%s1 + $0x1d0] sm:$0xff]
  %v225 = vld [vmem:[%s1 + $0x1d8] sm:$0xff]
  %v226 = vld [vmem:[%s1 + $0x1e0] sm:$0xff]
  %v227 = vld [vmem:[%s1 + $0x1e8] sm:$0xff]
  %v228 = vld [vmem:[%s1 + $0x1f0] sm:$0xff]
  %v229 = vld [vmem:[%s1 + $0x1f8] sm:$0xff]
  %v230 = vld [vmem:[%s1 + $0x200] sm:$0xff]
  %v231 = vld [vmem:[%s1 + $0x208] sm:$0xff]
  %v232 = vld [vmem:[%s1 + $0x210] sm:$0xff]
  %v233 = vld [vmem:[%s1 + $0x218] sm:$0xff]
  %v234 = vld [vmem:[%s1 + $0x220] sm:$0xff]
  %v235 = vld [vmem:[%s1 + $0x228] sm:$0xff]
  %v236 = vld [vmem:[%s1 + $0x230] sm:$0xff]
  %v237 = vld [vmem:[%s1 + $0x238] sm:$0xff]
  %v238 = vld [vmem:[%s1 + $0x240] sm:$0xff]
  %v239 = vld [vmem:[%s1 + $0x248] sm:$0xff]
  %v240 = vld [vmem:[%s1 + $0x250] sm:$0xff]
  %v241 = vld [vmem:[%s1 + $0x258] sm:$0xff]
  %v242 = vld [vmem:[%s1 + $0x260] sm:$0xff]
  %v243 = vld [vmem:[%s1 + $0x268] sm:$0xff]
  %v244 = vld [vmem:[%s1 + $0x270] sm:$0xff]
  %v245 = vld [vmem:[%s1 + $0x278] sm:$0xff]
  %v246 = vld [vmem:[%s1 + $0x280] sm:$0xff]
  %v247 = vld [vmem:[%s1 + $0x288] sm:$0xff]
  %v248 = vld [vmem:[%s1 + $0x290] sm:$0xff]
  %v249 = vld [vmem:[%s1 + $0x298] sm:$0xff]
  %v250 = vld [vmem:[%s1 + $0x2a0] sm:$0xff]
  %v251 = vld [vmem:[%s1 + $0x2a8] sm:$0xff]
  %v252 = vld [vmem:[%s1 + $0x2b0] sm:$0xff]
  %v253 = vld [vmem:[%s1 + $0x2b8] sm:$0xff]
  %v254 = vld [vmem:[%s1 + $0x2c0] sm:$0xff]
  %v255 = vld [vmem:[%s1 + $0x2c8] sm:$0xff]
  %v256 = vld [vmem:[%s1 + $0x2d0] sm:$0xff]
  %v257 = vld [vmem:[%s1 + $0x2d8] sm:$0xff]
  %v258 = vld [vmem:[%s1 + $0x2e0] sm:$0xff]
  %v259 = vld [vmem:[%s1 + $0x2e8] sm:$0xff]
  %v260 = vld [vmem:[%s1 + $0x2f0] sm:$0xff]
  %v261 = vld [vmem:[%s1 + $0x2f8] sm:$0xff]
  %v262 = vld [vmem:[%s1 + $0x300] sm:$0xff]
  %v263 = vld [vmem:[%s1 + $0x308] sm:$0xff]
  %v264 = vld [vmem:[%s9] sm:$0x3]
  %v266 = vperm.slane %v264, 0
  %v267 = vperm.slane %v264, 1
  %v398 = vunpack.c.l.b16 %v38
  %v399 = vunpack.c.h.b16 %v38
  %v400 = vunpack.c.l.b16 %v39
  %v401 = vunpack.c.h.b16 %v39
  %v402 = vunpack.c.l.b16 %v40
  %v403 = vunpack.c.h.b16 %v40
  %v404 = vunpack.c.l.b16 %v41
  %v405 = vunpack.c.l.b16 %v42
  %v406 = vunpack.c.h.b16 %v42
  %v407 = vunpack.c.l.b16 %v43
  %v408 = vunpack.c.h.b16 %v43
  %v409 = vunpack.c.l.b16 %v44
  %v410 = vunpack.c.h.b16 %v44
  %v411 = vunpack.c.l.b16 %v45
  %v412 = vunpack.c.l.b16 %v46
  %v413 = vunpack.c.h.b16 %v46
  %v414 = vunpack.c.l.b16 %v47
  %v415 = vunpack.c.h.b16 %v47
  %v416 = vunpack.c.l.b16 %v48
  %v417 = vunpack.c.h.b16 %v48
  %v418 = vunpack.c.l.b16 %v49
  %v419 = vunpack.c.l.b16 %v50
  %v420 = vunpack.c.h.b16 %v50
  %v421 = vunpack.c.l.b16 %v51
  %v422 = vunpack.c.h.b16 %v51
  %v423 = vunpack.c.l.b16 %v52
  %v424 = vunpack.c.h.b16 %v52
  %v425 = vunpack.c.l.b16 %v53
  %v426 = vunpack.c.l.b16 %v54
  %v427 = vunpack.c.h.b16 %v54
  %v428 = vunpack.c.l.b16 %v55
  %v429 = vunpack.c.h.b16 %v55
  %v430 = vunpack.c.l.b16 %v56
  %v431 = vunpack.c.h.b16 %v56
  %v432 = vunpack.c.l.b16 %v57
  %v433 = vunpack.c.l.b16 %v58
  %v434 = vunpack.c.h.b16 %v58
  %v435 = vunpack.c.l.b16 %v59
  %v436 = vunpack.c.h.b16 %v59
  %v437 = vunpack.c.l.b16 %v60
  %v438 = vunpack.c.h.b16 %v60
  %v439 = vunpack.c.l.b16 %v61
  %v440 = vunpack.c.l.b16 %v62
  %v441 = vunpack.c.h.b16 %v62
  %v442 = vunpack.c.l.b16 %v63
  %v443 = vunpack.c.h.b16 %v63
  %v444 = vunpack.c.l.b16 %v64
  %v445 = vunpack.c.h.b16 %v64
  %v446 = vunpack.c.l.b16 %v65
  %v447 = vunpack.c.l.b16 %v66
  %v448 = vunpack.c.h.b16 %v66
  %v449 = vunpack.c.l.b16 %v67
  %v450 = vunpack.c.h.b16 %v67
  %v451 = vunpack.c.l.b16 %v68
  %v452 = vunpack.c.h.b16 %v68
  %v453 = vunpack.c.l.b16 %v69
  %v454 = vunpack.c.l.b16 %v70
  %v455 = vunpack.c.h.b16 %v70
  %v456 = vunpack.c.l.b16 %v71
  %v457 = vunpack.c.h.b16 %v71
  %v458 = vunpack.c.l.b16 %v72
  %v459 = vunpack.c.h.b16 %v72
  %v460 = vunpack.c.l.b16 %v73
  %v461 = vunpack.c.l.b16 %v74
  %v462 = vunpack.c.h.b16 %v74
  %v463 = vunpack.c.l.b16 %v75
  %v464 = vunpack.c.h.b16 %v75
  %v465 = vunpack.c.l.b16 %v76
  %v466 = vunpack.c.h.b16 %v76
  %v467 = vunpack.c.l.b16 %v77
  %v468 = vunpack.c.l.b16 %v78
  %v469 = vunpack.c.h.b16 %v78
  %v470 = vunpack.c.l.b16 %v79
  %v471 = vunpack.c.h.b16 %v79
  %v472 = vunpack.c.l.b16 %v80
  %v473 = vunpack.c.h.b16 %v80
  %v474 = vunpack.c.l.b16 %v81
  %v475 = vunpack.c.l.b16 %v82
  %v476 = vunpack.c.h.b16 %v82
  %v477 = vunpack.c.l.b16 %v83
  %v478 = vunpack.c.h.b16 %v83
  %v479 = vunpack.c.l.b16 %v84
  %v480 = vunpack.c.h.b16 %v84
  %v481 = vunpack.c.l.b16 %v85
  %v482 = vunpack.c.l.b16 %v86
  %v483 = vunpack.c.h.b16 %v86
  %v484 = vunpack.c.l.b16 %v87
  %v485 = vunpack.c.h.b16 %v87
  %v486 = vunpack.c.l.b16 %v88
  %v487 = vunpack.c.h.b16 %v88
  %v488 = vunpack.c.l.b16 %v89
  %v489 = vunpack.c.l.b16 %v90
  %v490 = vunpack.c.h.b16 %v90
  %v491 = vunpack.c.l.b16 %v91
  %v492 = vunpack.c.h.b16 %v91
  %v493 = vunpack.c.l.b16 %v92
  %v494 = vunpack.c.h.b16 %v92
  %v495 = vunpack.c.l.b16 %v93
  %v496 = vunpack.c.l.b16 %v94
  %v497 = vunpack.c.h.b16 %v94
  %v498 = vunpack.c.l.b16 %v95
  %v499 = vunpack.c.h.b16 %v95
  %v500 = vunpack.c.l.b16 %v96
  %v501 = vunpack.c.h.b16 %v96
  %v502 = vunpack.c.l.b16 %v97
  %v503 = vunpack.c.l.b16 %v98
  %v504 = vunpack.c.h.b16 %v98
  %v505 = vunpack.c.l.b16 %v99
  %v506 = vunpack.c.h.b16 %v99
  %v507 = vunpack.c.l.b16 %v100
  %v508 = vunpack.c.h.b16 %v100
  %v509 = vunpack.c.l.b16 %v101
  %v510 = vunpack.c.l.b16 %v102
  %v511 = vunpack.c.h.b16 %v102
  %v512 = vunpack.c.l.b16 %v103
  %v513 = vunpack.c.h.b16 %v103
  %v514 = vunpack.c.l.b16 %v104
  %v515 = vunpack.c.h.b16 %v104
  %v516 = vunpack.c.l.b16 %v105
  %v517 = vunpack.c.l.b16 %v106
  %v518 = vunpack.c.h.b16 %v106
  %v519 = vunpack.c.l.b16 %v107
  %v520 = vunpack.c.h.b16 %v107
  %v521 = vunpack.c.l.b16 %v108
  %v522 = vunpack.c.h.b16 %v108
  %v523 = vunpack.c.l.b16 %v109
  %v524 = vunpack.c.l.b16 %v110
  %v525 = vunpack.c.h.b16 %v110
  %v526 = vunpack.c.l.b16 %v111
  %v527 = vunpack.c.h.b16 %v111
  %v528 = vunpack.c.l.b16 %v112
  %v529 = vunpack.c.h.b16 %v112
  %v530 = vunpack.c.l.b16 %v113
  %v531 = vunpack.c.l.b16 %v114
  %v532 = vunpack.c.h.b16 %v114
  %v533 = vunpack.c.l.b16 %v115
  %v534 = vunpack.c.h.b16 %v115
  %v535 = vunpack.c.l.b16 %v116
  %v536 = vunpack.c.h.b16 %v116
  %v537 = vunpack.c.l.b16 %v117
  %v538 = vunpack.c.l.b16 %v118
  %v539 = vunpack.c.h.b16 %v118
  %v540 = vunpack.c.l.b16 %v119
  %v541 = vunpack.c.h.b16 %v119
  %v542 = vunpack.c.l.b16 %v120
  %v543 = vunpack.c.h.b16 %v120
  %v544 = vunpack.c.l.b16 %v121
  %v545 = vunpack.c.l.b16 %v122
  %v546 = vunpack.c.h.b16 %v122
  %v547 = vunpack.c.l.b16 %v123
  %v548 = vunpack.c.h.b16 %v123
  %v549 = vunpack.c.l.b16 %v124
  %v550 = vunpack.c.h.b16 %v124
  %v551 = vunpack.c.l.b16 %v125
  %v552 = vunpack.c.l.b16 %v126
  %v553 = vunpack.c.h.b16 %v126
  %v554 = vunpack.c.l.b16 %v127
  %v555 = vunpack.c.h.b16 %v127
  %v556 = vunpack.c.l.b16 %v128
  %v557 = vunpack.c.h.b16 %v128
  %v558 = vunpack.c.l.b16 %v129
  %v559 = vunpack.c.l.b16 %v130
  %v560 = vunpack.c.h.b16 %v130
  %v561 = vunpack.c.l.b16 %v131
  %v562 = vunpack.c.h.b16 %v131
  %v563 = vunpack.c.l.b16 %v132
  %v564 = vunpack.c.h.b16 %v132
  %v565 = vunpack.c.l.b16 %v133
  %v566 = vunpack.c.l.b16 %v134
  %v567 = vunpack.c.h.b16 %v134
  %v568 = vunpack.c.l.b16 %v135
  %v569 = vunpack.c.h.b16 %v135
  %v570 = vunpack.c.l.b16 %v136
  %v571 = vunpack.c.h.b16 %v136
  %v572 = vunpack.c.l.b16 %v137
  %v573 = vunpack.c.l.b16 %v138
  %v574 = vunpack.c.h.b16 %v138
  %v575 = vunpack.c.l.b16 %v139
  %v576 = vunpack.c.h.b16 %v139
  %v577 = vunpack.c.l.b16 %v140
  %v578 = vunpack.c.h.b16 %v140
  %v579 = vunpack.c.l.b16 %v141
  %v580 = vunpack.c.l.b16 %v142
  %v581 = vunpack.c.h.b16 %v142
  %v582 = vunpack.c.l.b16 %v143
  %v583 = vunpack.c.h.b16 %v143
  %v584 = vunpack.c.l.b16 %v144
  %v585 = vunpack.c.h.b16 %v144
  %v586 = vunpack.c.l.b16 %v145
  %v587 = vunpack.c.l.b16 %v146
  %v588 = vunpack.c.h.b16 %v146
  %v589 = vunpack.c.l.b16 %v147
  %v590 = vunpack.c.h.b16 %v147
  %v591 = vunpack.c.l.b16 %v148
  %v592 = vunpack.c.h.b16 %v148
  %v593 = vunpack.c.l.b16 %v149
  %v594 = vunpack.c.l.b16 %v150
  %v595 = vunpack.c.h.b16 %v150
  %v596 = vunpack.c.l.b16 %v151
  %v597 = vunpack.c.h.b16 %v151
  %v598 = vunpack.c.l.b16 %v152
  %v599 = vunpack.c.h.b16 %v152
  %v600 = vunpack.c.l.b16 %v153
  %v601 = vunpack.c.l.b16 %v154
  %v602 = vunpack.c.h.b16 %v154
  %v603 = vunpack.c.l.b16 %v155
  %v604 = vunpack.c.h.b16 %v155
  %v605 = vunpack.c.l.b16 %v156
  %v606 = vunpack.c.h.b16 %v156
  %v607 = vunpack.c.l.b16 %v157
  %v608 = vunpack.c.l.b16 %v158
  %v609 = vunpack.c.h.b16 %v158
  %v610 = vunpack.c.l.b16 %v159
  %v611 = vunpack.c.h.b16 %v159
  %v612 = vunpack.c.l.b16 %v160
  %v613 = vunpack.c.h.b16 %v160
  %v614 = vunpack.c.l.b16 %v161
  %v615 = vunpack.c.l.b16 %v162
  %v616 = vunpack.c.h.b16 %v162
  %v617 = vunpack.c.l.b16 %v163
  %v618 = vunpack.c.h.b16 %v163
  %v619 = vunpack.c.l.b16 %v164
  %v620 = vunpack.c.h.b16 %v164
  %v621 = vunpack.c.l.b16 %v165
  %v622 = vpack.c.b16 %v405, %v398
  %v623 = vpack.c.b16 %v406, %v399
  %v624 = vpack.c.b16 %v407, %v400
  %v625 = vpack.c.b16 %v408, %v401
  %v626 = vpack.c.b16 %v409, %v402
  %v627 = vpack.c.b16 %v410, %v403
  %v628 = vpack.c.b16 %v411, %v404
  %v629 = vpack.c.b16 %v419, %v412
  %v630 = vpack.c.b16 %v420, %v413
  %v631 = vpack.c.b16 %v421, %v414
  %v632 = vpack.c.b16 %v422, %v415
  %v633 = vpack.c.b16 %v423, %v416
  %v634 = vpack.c.b16 %v424, %v417
  %v635 = vpack.c.b16 %v425, %v418
  %v636 = vpack.c.b16 %v433, %v426
  %v637 = vpack.c.b16 %v434, %v427
  %v638 = vpack.c.b16 %v435, %v428
  %v639 = vpack.c.b16 %v436, %v429
  %v640 = vpack.c.b16 %v437, %v430
  %v641 = vpack.c.b16 %v438, %v431
  %v642 = vpack.c.b16 %v439, %v432
  %v643 = vpack.c.b16 %v447, %v440
  %v644 = vpack.c.b16 %v448, %v441
  %v645 = vpack.c.b16 %v449, %v442
  %v646 = vpack.c.b16 %v450, %v443
  %v647 = vpack.c.b16 %v451, %v444
  %v648 = vpack.c.b16 %v452, %v445
  %v649 = vpack.c.b16 %v453, %v446
  %v650 = vpack.c.b16 %v461, %v454
  %v651 = vpack.c.b16 %v462, %v455
  %v652 = vpack.c.b16 %v463, %v456
  %v653 = vpack.c.b16 %v464, %v457
  %v654 = vpack.c.b16 %v465, %v458
  %v655 = vpack.c.b16 %v466, %v459
  %v656 = vpack.c.b16 %v467, %v460
  %v657 = vpack.c.b16 %v475, %v468
  %v658 = vpack.c.b16 %v476, %v469
  %v659 = vpack.c.b16 %v477, %v470
  %v660 = vpack.c.b16 %v478, %v471
  %v661 = vpack.c.b16 %v479, %v472
  %v662 = vpack.c.b16 %v480, %v473
  %v663 = vpack.c.b16 %v481, %v474
  %v664 = vpack.c.b16 %v489, %v482
  %v665 = vpack.c.b16 %v490, %v483
  %v666 = vpack.c.b16 %v491, %v484
  %v667 = vpack.c.b16 %v492, %v485
  %v668 = vpack.c.b16 %v493, %v486
  %v669 = vpack.c.b16 %v494, %v487
  %v670 = vpack.c.b16 %v495, %v488
  %v671 = vpack.c.b16 %v503, %v496
  %v672 = vpack.c.b16 %v504, %v497
  %v673 = vpack.c.b16 %v505, %v498
  %v674 = vpack.c.b16 %v506, %v499
  %v675 = vpack.c.b16 %v507, %v500
  %v676 = vpack.c.b16 %v508, %v501
  %v677 = vpack.c.b16 %v509, %v502
  %v678 = vpack.c.b16 %v517, %v510
  %v679 = vpack.c.b16 %v518, %v511
  %v680 = vpack.c.b16 %v519, %v512
  %v681 = vpack.c.b16 %v520, %v513
  %v682 = vpack.c.b16 %v521, %v514
  %v683 = vpack.c.b16 %v522, %v515
  %v684 = vpack.c.b16 %v523, %v516
  %v685 = vpack.c.b16 %v531, %v524
  %v686 = vpack.c.b16 %v532, %v525
  %v687 = vpack.c.b16 %v533, %v526
  %v688 = vpack.c.b16 %v534, %v527
  %v689 = vpack.c.b16 %v535, %v528
  %v690 = vpack.c.b16 %v536, %v529
  %v691 = vpack.c.b16 %v537, %v530
  %v692 = vpack.c.b16 %v545, %v538
  %v693 = vpack.c.b16 %v546, %v539
  %v694 = vpack.c.b16 %v547, %v540
  %v695 = vpack.c.b16 %v548, %v541
  %v696 = vpack.c.b16 %v549, %v542
  %v697 = vpack.c.b16 %v550, %v543
  %v698 = vpack.c.b16 %v551, %v544
  %v699 = vpack.c.b16 %v559, %v552
  %v700 = vpack.c.b16 %v560, %v553
  %v701 = vpack.c.b16 %v561, %v554
  %v702 = vpack.c.b16 %v562, %v555
  %v703 = vpack.c.b16 %v563, %v556
  %v704 = vpack.c.b16 %v564, %v557
  %v705 = vpack.c.b16 %v565, %v558
  %v706 = vpack.c.b16 %v573, %v566
  %v707 = vpack.c.b16 %v574, %v567
  %v708 = vpack.c.b16 %v575, %v568
  %v709 = vpack.c.b16 %v576, %v569
  %v710 = vpack.c.b16 %v577, %v570
  %v711 = vpack.c.b16 %v578, %v571
  %v712 = vpack.c.b16 %v579, %v572
  %v713 = vpack.c.b16 %v587, %v580
  %v714 = vpack.c.b16 %v588, %v581
  %v715 = vpack.c.b16 %v589, %v582
  %v716 = vpack.c.b16 %v590, %v583
  %v717 = vpack.c.b16 %v591, %v584
  %v718 = vpack.c.b16 %v592, %v585
  %v719 = vpack.c.b16 %v593, %v586
  %v720 = vpack.c.b16 %v601, %v594
  %v721 = vpack.c.b16 %v602, %v595
  %v722 = vpack.c.b16 %v603, %v596
  %v723 = vpack.c.b16 %v604, %v597
  %v724 = vpack.c.b16 %v605, %v598
  %v725 = vpack.c.b16 %v606, %v599
  %v726 = vpack.c.b16 %v607, %v600
  %v727 = vpack.c.b16 %v615, %v608
  %v728 = vpack.c.b16 %v616, %v609
  %v729 = vpack.c.b16 %v617, %v610
  %v730 = vpack.c.b16 %v618, %v611
  %v731 = vpack.c.b16 %v619, %v612
  %v732 = vpack.c.b16 %v620, %v613
  %v733 = vpack.c.b16 %v621, %v614
  %v928 = vunpack.c.l.b16 %v166
  %v929 = vunpack.c.h.b16 %v166
  %v930 = vunpack.c.l.b16 %v167
  %v931 = vunpack.c.h.b16 %v167
  %v932 = vunpack.c.l.b16 %v168
  %v933 = vunpack.c.h.b16 %v168
  %v934 = vunpack.c.l.b16 %v169
  %v935 = vunpack.c.h.b16 %v169
  %v936 = vunpack.c.l.b16 %v170
  %v937 = vunpack.c.h.b16 %v170
  %v938 = vunpack.c.l.b16 %v171
  %v939 = vunpack.c.h.b16 %v171
  %v940 = vunpack.c.l.b16 %v172
  %v941 = vunpack.c.h.b16 %v172
  %v942 = vunpack.c.l.b16 %v173
  %v943 = vunpack.c.h.b16 %v173
  %v944 = vunpack.c.l.b16 %v174
  %v945 = vunpack.c.h.b16 %v174
  %v946 = vunpack.c.l.b16 %v175
  %v947 = vunpack.c.h.b16 %v175
  %v948 = vunpack.c.l.b16 %v176
  %v949 = vunpack.c.h.b16 %v176
  %v950 = vunpack.c.l.b16 %v177
  %v951 = vunpack.c.h.b16 %v177
  %v952 = vunpack.c.l.b16 %v178
  %v953 = vunpack.c.h.b16 %v178
  %v954 = vunpack.c.l.b16 %v179
  %v955 = vunpack.c.h.b16 %v179
  %v956 = vunpack.c.l.b16 %v180
  %v957 = vunpack.c.h.b16 %v180
  %v958 = vunpack.c.l.b16 %v181
  %v959 = vunpack.c.h.b16 %v181
  %v960 = vunpack.c.l.b16 %v182
  %v961 = vunpack.c.h.b16 %v182
  %v962 = vunpack.c.l.b16 %v183
  %v963 = vunpack.c.h.b16 %v183
  %v964 = vunpack.c.l.b16 %v184
  %v965 = vunpack.c.h.b16 %v184
  %v966 = vunpack.c.l.b16 %v185
  %v967 = vunpack.c.h.b16 %v185
  %v968 = vunpack.c.l.b16 %v186
  %v969 = vunpack.c.h.b16 %v186
  %v970 = vunpack.c.l.b16 %v187
  %v971 = vunpack.c.h.b16 %v187
  %v972 = vunpack.c.l.b16 %v188
  %v973 = vunpack.c.h.b16 %v188
  %v974 = vunpack.c.l.b16 %v189
  %v975 = vunpack.c.h.b16 %v189
  %v976 = vunpack.c.l.b16 %v190
  %v977 = vunpack.c.h.b16 %v190
  %v978 = vunpack.c.l.b16 %v191
  %v979 = vunpack.c.h.b16 %v191
  %v980 = vunpack.c.l.b16 %v192
  %v981 = vunpack.c.h.b16 %v192
  %v982 = vunpack.c.l.b16 %v193
  %v983 = vunpack.c.h.b16 %v193
  %v984 = vunpack.c.l.b16 %v194
  %v985 = vunpack.c.h.b16 %v194
  %v986 = vunpack.c.l.b16 %v195
  %v987 = vunpack.c.h.b16 %v195
  %v988 = vunpack.c.l.b16 %v196
  %v989 = vunpack.c.h.b16 %v196
  %v990 = vunpack.c.l.b16 %v197
  %v991 = vunpack.c.h.b16 %v197
  %v992 = vunpack.c.l.b16 %v198
  %v993 = vunpack.c.h.b16 %v198
  %v994 = vunpack.c.l.b16 %v199
  %v995 = vunpack.c.h.b16 %v199
  %v996 = vunpack.c.l.b16 %v200
  %v997 = vunpack.c.h.b16 %v200
  %v998 = vunpack.c.l.b16 %v201
  %v999 = vunpack.c.h.b16 %v201
  %v1000 = vunpack.c.l.b16 %v202
  %v1001 = vunpack.c.h.b16 %v202
  %v1002 = vunpack.c.l.b16 %v203
  %v1003 = vunpack.c.h.b16 %v203
  %v1004 = vunpack.c.l.b16 %v204
  %v1005 = vunpack.c.h.b16 %v204
  %v1006 = vunpack.c.l.b16 %v205
  %v1007 = vunpack.c.h.b16 %v205
  %v1008 = vunpack.c.l.b16 %v206
  %v1009 = vunpack.c.h.b16 %v206
  %v1010 = vunpack.c.l.b16 %v207
  %v1011 = vunpack.c.h.b16 %v207
  %v1012 = vunpack.c.l.b16 %v208
  %v1013 = vunpack.c.h.b16 %v208
  %v1014 = vunpack.c.l.b16 %v209
  %v1015 = vunpack.c.h.b16 %v209
  %v1016 = vunpack.c.l.b16 %v210
  %v1017 = vunpack.c.h.b16 %v210
  %v1018 = vunpack.c.l.b16 %v211
  %v1019 = vunpack.c.h.b16 %v211
  %v1020 = vunpack.c.l.b16 %v212
  %v1021 = vunpack.c.h.b16 %v212
  %v1022 = vunpack.c.l.b16 %v213
  %v1023 = vunpack.c.h.b16 %v213
  %v1024 = vunpack.c.l.b16 %v214
  %v1025 = vunpack.c.h.b16 %v214
  %v1026 = vunpack.c.l.b16 %v215
  %v1027 = vunpack.c.h.b16 %v215
  %v1028 = vunpack.c.l.b16 %v216
  %v1029 = vunpack.c.h.b16 %v216
  %v1030 = vunpack.c.l.b16 %v217
  %v1031 = vunpack.c.h.b16 %v217
  %v1032 = vunpack.c.l.b16 %v218
  %v1033 = vunpack.c.h.b16 %v218
  %v1034 = vunpack.c.l.b16 %v219
  %v1035 = vunpack.c.h.b16 %v219
  %v1036 = vunpack.c.l.b16 %v220
  %v1037 = vunpack.c.h.b16 %v220
  %v1038 = vunpack.c.l.b16 %v221
  %v1039 = vunpack.c.h.b16 %v221
  %v1040 = vunpack.c.l.b16 %v222
  %v1041 = vunpack.c.h.b16 %v222
  %v1042 = vunpack.c.l.b16 %v223
  %v1043 = vunpack.c.h.b16 %v223
  %v1044 = vunpack.c.l.b16 %v224
  %v1045 = vunpack.c.h.b16 %v224
  %v1046 = vunpack.c.l.b16 %v225
  %v1047 = vunpack.c.h.b16 %v225
  %v1048 = vunpack.c.l.b16 %v226
  %v1049 = vunpack.c.h.b16 %v226
  %v1050 = vunpack.c.l.b16 %v227
  %v1051 = vunpack.c.h.b16 %v227
  %v1052 = vunpack.c.l.b16 %v228
  %v1053 = vunpack.c.h.b16 %v228
  %v1054 = vunpack.c.l.b16 %v229
  %v1055 = vunpack.c.h.b16 %v229
  %v1056 = vunpack.c.l.b16 %v230
  %v1057 = vunpack.c.h.b16 %v230
  %v1058 = vunpack.c.l.b16 %v231
  %v1059 = vunpack.c.h.b16 %v231
  %v1060 = vunpack.c.l.b16 %v232
  %v1061 = vunpack.c.h.b16 %v232
  %v1062 = vunpack.c.l.b16 %v233
  %v1063 = vunpack.c.h.b16 %v233
  %v1064 = vunpack.c.l.b16 %v234
  %v1065 = vunpack.c.h.b16 %v234
  %v1066 = vunpack.c.l.b16 %v235
  %v1067 = vunpack.c.h.b16 %v235
  %v1068 = vunpack.c.l.b16 %v236
  %v1069 = vunpack.c.h.b16 %v236
  %v1070 = vunpack.c.l.b16 %v237
  %v1071 = vunpack.c.h.b16 %v237
  %v1072 = vunpack.c.l.b16 %v238
  %v1073 = vunpack.c.h.b16 %v238
  %v1074 = vunpack.c.l.b16 %v239
  %v1075 = vunpack.c.h.b16 %v239
  %v1076 = vunpack.c.l.b16 %v240
  %v1077 = vunpack.c.h.b16 %v240
  %v1078 = vunpack.c.l.b16 %v241
  %v1079 = vunpack.c.h.b16 %v241
  %v1080 = vunpack.c.l.b16 %v242
  %v1081 = vunpack.c.h.b16 %v242
  %v1082 = vunpack.c.l.b16 %v243
  %v1083 = vunpack.c.h.b16 %v243
  %v1084 = vunpack.c.l.b16 %v244
  %v1085 = vunpack.c.h.b16 %v244
  %v1086 = vunpack.c.l.b16 %v245
  %v1087 = vunpack.c.h.b16 %v245
  %v1088 = vunpack.c.l.b16 %v246
  %v1089 = vunpack.c.h.b16 %v246
  %v1090 = vunpack.c.l.b16 %v247
  %v1091 = vunpack.c.h.b16 %v247
  %v1092 = vunpack.c.l.b16 %v248
  %v1093 = vunpack.c.h.b16 %v248
  %v1094 = vunpack.c.l.b16 %v249
  %v1095 = vunpack.c.h.b16 %v249
  %v1096 = vunpack.c.l.b16 %v250
  %v1097 = vunpack.c.h.b16 %v250
  %v1098 = vunpack.c.l.b16 %v251
  %v1099 = vunpack.c.h.b16 %v251
  %v1100 = vunpack.c.l.b16 %v252
  %v1101 = vunpack.c.h.b16 %v252
  %v1102 = vunpack.c.l.b16 %v253
  %v1103 = vunpack.c.h.b16 %v253
  %v1104 = vunpack.c.l.b16 %v254
  %v1105 = vunpack.c.h.b16 %v254
  %v1106 = vunpack.c.l.b16 %v255
  %v1107 = vunpack.c.h.b16 %v255
  %v1108 = vunpack.c.l.b16 %v256
  %v1109 = vunpack.c.h.b16 %v256
  %v1110 = vunpack.c.l.b16 %v257
  %v1111 = vunpack.c.h.b16 %v257
  %v1112 = vunpack.c.l.b16 %v258
  %v1113 = vunpack.c.h.b16 %v258
  %v1114 = vunpack.c.l.b16 %v259
  %v1115 = vunpack.c.h.b16 %v259
  %v1116 = vunpack.c.l.b16 %v260
  %v1117 = vunpack.c.h.b16 %v260
  %v1118 = vunpack.c.l.b16 %v261
  %v1119 = vunpack.c.h.b16 %v261
  %v1120 = vunpack.c.l.b16 %v262
  %v1121 = vunpack.c.h.b16 %v262
  %v1122 = vunpack.c.l.b16 %v263
  %v1123 = vunpack.c.h.b16 %v263
  %v1124 = vpack.c.b16 %v930, %v928
  %v1125 = vpack.c.b16 %v931, %v929
  %v1126 = vpack.c.b16 %v934, %v932
  %v1127 = vpack.c.b16 %v935, %v933
  %v1128 = vpack.c.b16 %v938, %v936
  %v1129 = vpack.c.b16 %v939, %v937
  %v1130 = vpack.c.b16 %v942, %v940
  %v1131 = vpack.c.b16 %v943, %v941
  %v1132 = vpack.c.b16 %v946, %v944
  %v1133 = vpack.c.b16 %v947, %v945
  %v1134 = vpack.c.b16 %v950, %v948
  %v1135 = vpack.c.b16 %v951, %v949
  %v1136 = vpack.c.b16 %v954, %v952
  %v1137 = vpack.c.b16 %v955, %v953
  %v1138 = vpack.c.b16 %v958, %v956
  %v1139 = vpack.c.b16 %v959, %v957
  %v1140 = vpack.c.b16 %v962, %v960
  %v1141 = vpack.c.b16 %v963, %v961
  %v1142 = vpack.c.b16 %v966, %v964
  %v1143 = vpack.c.b16 %v967, %v965
  %v1144 = vpack.c.b16 %v970, %v968
  %v1145 = vpack.c.b16 %v971, %v969
  %v1146 = vpack.c.b16 %v974, %v972
  %v1147 = vpack.c.b16 %v975, %v973
  %v1148 = vpack.c.b16 %v978, %v976
  %v1149 = vpack.c.b16 %v979, %v977
  %v1150 = vpack.c.b16 %v982, %v980
  %v1151 = vpack.c.b16 %v983, %v981
  %v1152 = vpack.c.b16 %v986, %v984
  %v1153 = vpack.c.b16 %v987, %v985
  %v1154 = vpack.c.b16 %v990, %v988
  %v1155 = vpack.c.b16 %v991, %v989
  %v1156 = vpack.c.b16 %v994, %v992
  %v1157 = vpack.c.b16 %v995, %v993
  %v1158 = vpack.c.b16 %v998, %v996
  %v1159 = vpack.c.b16 %v999, %v997
  %v1160 = vpack.c.b16 %v1002, %v1000
  %v1161 = vpack.c.b16 %v1003, %v1001
  %v1162 = vpack.c.b16 %v1006, %v1004
  %v1163 = vpack.c.b16 %v1007, %v1005
  %v1164 = vpack.c.b16 %v1010, %v1008
  %v1165 = vpack.c.b16 %v1011, %v1009
  %v1166 = vpack.c.b16 %v1014, %v1012
  %v1167 = vpack.c.b16 %v1015, %v1013
  %v1168 = vpack.c.b16 %v1018, %v1016
  %v1169 = vpack.c.b16 %v1019, %v1017
  %v1170 = vpack.c.b16 %v1022, %v1020
  %v1171 = vpack.c.b16 %v1023, %v1021
  %v1172 = vpack.c.b16 %v1026, %v1024
  %v1173 = vpack.c.b16 %v1027, %v1025
  %v1174 = vpack.c.b16 %v1030, %v1028
  %v1175 = vpack.c.b16 %v1031, %v1029
  %v1176 = vpack.c.b16 %v1034, %v1032
  %v1177 = vpack.c.b16 %v1035, %v1033
  %v1178 = vpack.c.b16 %v1038, %v1036
  %v1179 = vpack.c.b16 %v1039, %v1037
  %v1180 = vpack.c.b16 %v1042, %v1040
  %v1181 = vpack.c.b16 %v1043, %v1041
  %v1182 = vpack.c.b16 %v1046, %v1044
  %v1183 = vpack.c.b16 %v1047, %v1045
  %v1184 = vpack.c.b16 %v1050, %v1048
  %v1185 = vpack.c.b16 %v1051, %v1049
  %v1186 = vpack.c.b16 %v1054, %v1052
  %v1187 = vpack.c.b16 %v1055, %v1053
  %v1188 = vpack.c.b16 %v1058, %v1056
  %v1189 = vpack.c.b16 %v1059, %v1057
  %v1190 = vpack.c.b16 %v1062, %v1060
  %v1191 = vpack.c.b16 %v1063, %v1061
  %v1192 = vpack.c.b16 %v1066, %v1064
  %v1193 = vpack.c.b16 %v1067, %v1065
  %v1194 = vpack.c.b16 %v1070, %v1068
  %v1195 = vpack.c.b16 %v1071, %v1069
  %v1196 = vpack.c.b16 %v1074, %v1072
  %v1197 = vpack.c.b16 %v1075, %v1073
  %v1198 = vpack.c.b16 %v1078, %v1076
  %v1199 = vpack.c.b16 %v1079, %v1077
  %v1200 = vpack.c.b16 %v1082, %v1080
  %v1201 = vpack.c.b16 %v1083, %v1081
  %v1202 = vpack.c.b16 %v1086, %v1084
  %v1203 = vpack.c.b16 %v1087, %v1085
  %v1204 = vpack.c.b16 %v1090, %v1088
  %v1205 = vpack.c.b16 %v1091, %v1089
  %v1206 = vpack.c.b16 %v1094, %v1092
  %v1207 = vpack.c.b16 %v1095, %v1093
  %v1208 = vpack.c.b16 %v1098, %v1096
  %v1209 = vpack.c.b16 %v1099, %v1097
  %v1210 = vpack.c.b16 %v1102, %v1100
  %v1211 = vpack.c.b16 %v1103, %v1101
  %v1212 = vpack.c.b16 %v1106, %v1104
  %v1213 = vpack.c.b16 %v1107, %v1105
  %v1214 = vpack.c.b16 %v1110, %v1108
  %v1215 = vpack.c.b16 %v1111, %v1109
  %v1216 = vpack.c.b16 %v1114, %v1112
  %v1217 = vpack.c.b16 %v1115, %v1113
  %v1218 = vpack.c.b16 %v1118, %v1116
  %v1219 = vpack.c.b16 %v1119, %v1117
  %v1220 = vpack.c.b16 %v1122, %v1120
  %v1221 = vpack.c.b16 %v1123, %v1121
  %vm1320 = vcmask 130048
  %v1322 = vsel %vm1320, %v628, 0
  %v1325 = vsel %vm1320, %v635, 0
  %v1328 = vsel %vm1320, %v642, 0
  %v1331 = vsel %vm1320, %v649, 0
  %v1334 = vsel %vm1320, %v656, 0
  %v1337 = vsel %vm1320, %v663, 0
  %v1340 = vsel %vm1320, %v670, 0
  %v1343 = vsel %vm1320, %v677, 0
  %v1346 = vsel %vm1320, %v684, 0
  %v1349 = vsel %vm1320, %v691, 0
  %v1352 = vsel %vm1320, %v698, 0
  %v1355 = vsel %vm1320, %v705, 0
  %v1358 = vsel %vm1320, %v712, 0
  %v1361 = vsel %vm1320, %v719, 0
  %v1364 = vsel %vm1320, %v726, 0
  %v1367 = vsel %vm1320, %v733, 0
  %1369 = vmatpush.bf16.msra.mxu0 %v1138
  %1370 = vmatpush.bf16.msra.mxu0 %v1136
  %1371 = vmatpush.bf16.msra.mxu0 %v1134
  %1372 = vmatpush.bf16.msra.mxu0 %v1132
  %1373 = vmatpush.bf16.msra.mxu0 %v1130
  %1374 = vmatpush.bf16.msra.mxu0 %v1128
  %1375 = vmatpush.bf16.msra.mxu0 %v1126
  %1376 = vmatpush.bf16.msra.mxu0 %v1124
  %1377 = vmatmul.bf16.gmra.mxu0 %v622
  %v1378 = vpop.f32.mrf.mxu0
  %v1379 = vadd.f32 %v266, %v1378
  %v1380 = vpop.f32.mrf.mxu0
  %v1381 = vadd.f32 %v266, %v1380
  %1382 = vmatmul.bf16.gmra.mxu0 %v629
  %v1383 = vpop.f32.mrf.mxu0
  %v1384 = vadd.f32 %v266, %v1383
  %v1385 = vpop.f32.mrf.mxu0
  %v1386 = vadd.f32 %v266, %v1385
  %1387 = vmatmul.bf16.gmra.mxu0 %v636
  %v1388 = vpop.f32.mrf.mxu0
  %v1389 = vadd.f32 %v266, %v1388
  %v1390 = vpop.f32.mrf.mxu0
  %v1391 = vadd.f32 %v266, %v1390
  %1392 = vmatmul.bf16.gmra.mxu0 %v643
  %v1393 = vpop.f32.mrf.mxu0
  %v1394 = vadd.f32 %v266, %v1393
  %v1395 = vpop.f32.mrf.mxu0
  %v1396 = vadd.f32 %v266, %v1395
  %1397 = vmatmul.bf16.gmra.mxu0 %v650
  %v1398 = vpop.f32.mrf.mxu0
  %v1399 = vadd.f32 %v266, %v1398
  %v1400 = vpop.f32.mrf.mxu0
  %v1401 = vadd.f32 %v266, %v1400
  %1402 = vmatmul.bf16.gmra.mxu0 %v657
  %v1403 = vpop.f32.mrf.mxu0
  %v1404 = vadd.f32 %v266, %v1403
  %v1405 = vpop.f32.mrf.mxu0
  %v1406 = vadd.f32 %v266, %v1405
  %1407 = vmatmul.bf16.gmra.mxu0 %v664
  %v1408 = vpop.f32.mrf.mxu0
  %v1409 = vadd.f32 %v266, %v1408
  %v1410 = vpop.f32.mrf.mxu0
  %v1411 = vadd.f32 %v266, %v1410
  %1412 = vmatmul.bf16.gmra.mxu0 %v671
  %v1413 = vpop.f32.mrf.mxu0
  %v1414 = vadd.f32 %v266, %v1413
  %v1415 = vpop.f32.mrf.mxu0
  %v1416 = vadd.f32 %v266, %v1415
  %1417 = vmatmul.bf16.gmra.mxu0 %v678
  %v1418 = vpop.f32.mrf.mxu0
  %v1419 = vadd.f32 %v266, %v1418
  %v1420 = vpop.f32.mrf.mxu0
  %v1421 = vadd.f32 %v266, %v1420
  %1422 = vmatmul.bf16.gmra.mxu0 %v685
  %v1423 = vpop.f32.mrf.mxu0
  %v1424 = vadd.f32 %v266, %v1423
  %v1425 = vpop.f32.mrf.mxu0
  %v1426 = vadd.f32 %v266, %v1425
  %1427 = vmatmul.bf16.gmra.mxu0 %v692
  %v1428 = vpop.f32.mrf.mxu0
  %v1429 = vadd.f32 %v266, %v1428
  %v1430 = vpop.f32.mrf.mxu0
  %v1431 = vadd.f32 %v266, %v1430
  %1432 = vmatmul.bf16.gmra.mxu0 %v699
  %v1433 = vpop.f32.mrf.mxu0
  %v1434 = vadd.f32 %v266, %v1433
  %v1435 = vpop.f32.mrf.mxu0
  %v1436 = vadd.f32 %v266, %v1435
  %1437 = vmatmul.bf16.gmra.mxu0 %v706
  %v1438 = vpop.f32.mrf.mxu0
  %v1439 = vadd.f32 %v266, %v1438
  %v1440 = vpop.f32.mrf.mxu0
  %v1441 = vadd.f32 %v266, %v1440
  %1442 = vmatmul.bf16.gmra.mxu0 %v713
  %v1443 = vpop.f32.mrf.mxu0
  %v1444 = vadd.f32 %v266, %v1443
  %v1445 = vpop.f32.mrf.mxu0
  %v1446 = vadd.f32 %v266, %v1445
  %1447 = vmatmul.bf16.gmra.mxu0 %v720
  %v1448 = vpop.f32.mrf.mxu0
  %v1449 = vadd.f32 %v266, %v1448
  %v1450 = vpop.f32.mrf.mxu0
  %v1451 = vadd.f32 %v266, %v1450
  %1452 = vmatmul.bf16.gmra.mxu0 %v727
  %v1453 = vpop.f32.mrf.mxu0
  %v1454 = vadd.f32 %v266, %v1453
  %v1455 = vpop.f32.mrf.mxu0
  %v1456 = vadd.f32 %v266, %v1455
  %1457 = vdwg.mxu0
  %1458 = vmatpush.bf16.msra.mxu0 %v1154
  %1459 = vmatpush.bf16.msra.mxu0 %v1152
  %1460 = vmatpush.bf16.msra.mxu0 %v1150
  %1461 = vmatpush.bf16.msra.mxu0 %v1148
  %1462 = vmatpush.bf16.msra.mxu0 %v1146
  %1463 = vmatpush.bf16.msra.mxu0 %v1144
  %1464 = vmatpush.bf16.msra.mxu0 %v1142
  %1465 = vmatpush.bf16.msra.mxu0 %v1140
  %1466 = vmatmul.bf16.gmra.mxu0 %v623
  %v1467 = vpop.f32.mrf.mxu0
  %v1468 = vadd.f32 %v1379, %v1467
  %v1469 = vpop.f32.mrf.mxu0
  %v1470 = vadd.f32 %v1381, %v1469
  %1471 = vmatmul.bf16.gmra.mxu0 %v630
  %v1472 = vpop.f32.mrf.mxu0
  %v1473 = vadd.f32 %v1384, %v1472
  %v1474 = vpop.f32.mrf.mxu0
  %v1475 = vadd.f32 %v1386, %v1474
  %1476 = vmatmul.bf16.gmra.mxu0 %v637
  %v1477 = vpop.f32.mrf.mxu0
  %v1478 = vadd.f32 %v1389, %v1477
  %v1479 = vpop.f32.mrf.mxu0
  %v1480 = vadd.f32 %v1391, %v1479
  %1481 = vmatmul.bf16.gmra.mxu0 %v644
  %v1482 = vpop.f32.mrf.mxu0
  %v1483 = vadd.f32 %v1394, %v1482
  %v1484 = vpop.f32.mrf.mxu0
  %v1485 = vadd.f32 %v1396, %v1484
  %1486 = vmatmul.bf16.gmra.mxu0 %v651
  %v1487 = vpop.f32.mrf.mxu0
  %v1488 = vadd.f32 %v1399, %v1487
  %v1489 = vpop.f32.mrf.mxu0
  %v1490 = vadd.f32 %v1401, %v1489
  %1491 = vmatmul.bf16.gmra.mxu0 %v658
  %v1492 = vpop.f32.mrf.mxu0
  %v1493 = vadd.f32 %v1404, %v1492
  %v1494 = vpop.f32.mrf.mxu0
  %v1495 = vadd.f32 %v1406, %v1494
  %1496 = vmatmul.bf16.gmra.mxu0 %v665
  %v1497 = vpop.f32.mrf.mxu0
  %v1498 = vadd.f32 %v1409, %v1497
  %v1499 = vpop.f32.mrf.mxu0
  %v1500 = vadd.f32 %v1411, %v1499
  %1501 = vmatmul.bf16.gmra.mxu0 %v672
  %v1502 = vpop.f32.mrf.mxu0
  %v1503 = vadd.f32 %v1414, %v1502
  %v1504 = vpop.f32.mrf.mxu0
  %v1505 = vadd.f32 %v1416, %v1504
  %1506 = vmatmul.bf16.gmra.mxu0 %v679
  %v1507 = vpop.f32.mrf.mxu0
  %v1508 = vadd.f32 %v1419, %v1507
  %v1509 = vpop.f32.mrf.mxu0
  %v1510 = vadd.f32 %v1421, %v1509
  %1511 = vmatmul.bf16.gmra.mxu0 %v686
  %v1512 = vpop.f32.mrf.mxu0
  %v1513 = vadd.f32 %v1424, %v1512
  %v1514 = vpop.f32.mrf.mxu0
  %v1515 = vadd.f32 %v1426, %v1514
  %1516 = vmatmul.bf16.gmra.mxu0 %v693
  %v1517 = vpop.f32.mrf.mxu0
  %v1518 = vadd.f32 %v1429, %v1517
  %v1519 = vpop.f32.mrf.mxu0
  %v1520 = vadd.f32 %v1431, %v1519
  %1521 = vmatmul.bf16.gmra.mxu0 %v700
  %v1522 = vpop.f32.mrf.mxu0
  %v1523 = vadd.f32 %v1434, %v1522
  %v1524 = vpop.f32.mrf.mxu0
  %v1525 = vadd.f32 %v1436, %v1524
  %1526 = vmatmul.bf16.gmra.mxu0 %v707
  %v1527 = vpop.f32.mrf.mxu0
  %v1528 = vadd.f32 %v1439, %v1527
  %v1529 = vpop.f32.mrf.mxu0
  %v1530 = vadd.f32 %v1441, %v1529
  %1531 = vmatmul.bf16.gmra.mxu0 %v714
  %v1532 = vpop.f32.mrf.mxu0
  %v1533 = vadd.f32 %v1444, %v1532
  %v1534 = vpop.f32.mrf.mxu0
  %v1535 = vadd.f32 %v1446, %v1534
  %1536 = vmatmul.bf16.gmra.mxu0 %v721
  %v1537 = vpop.f32.mrf.mxu0
  %v1538 = vadd.f32 %v1449, %v1537
  %v1539 = vpop.f32.mrf.mxu0
  %v1540 = vadd.f32 %v1451, %v1539
  %1541 = vmatmul.bf16.gmra.mxu0 %v728
  %v1542 = vpop.f32.mrf.mxu0
  %v1543 = vadd.f32 %v1454, %v1542
  %v1544 = vpop.f32.mrf.mxu0
  %v1545 = vadd.f32 %v1456, %v1544
  %1546 = vdwg.mxu0
  %1547 = vmatpush.bf16.msra.mxu0 %v1170
  %1548 = vmatpush.bf16.msra.mxu0 %v1168
  %1549 = vmatpush.bf16.msra.mxu0 %v1166
  %1550 = vmatpush.bf16.msra.mxu0 %v1164
  %1551 = vmatpush.bf16.msra.mxu0 %v1162
  %1552 = vmatpush.bf16.msra.mxu0 %v1160
  %1553 = vmatpush.bf16.msra.mxu0 %v1158
  %1554 = vmatpush.bf16.msra.mxu0 %v1156
  %1555 = vmatmul.bf16.gmra.mxu0 %v624
  %v1556 = vpop.f32.mrf.mxu0
  %v1557 = vadd.f32 %v1468, %v1556
  %v1558 = vpop.f32.mrf.mxu0
  %v1559 = vadd.f32 %v1470, %v1558
  %1560 = vmatmul.bf16.gmra.mxu0 %v631
  %v1561 = vpop.f32.mrf.mxu0
  %v1562 = vadd.f32 %v1473, %v1561
  %v1563 = vpop.f32.mrf.mxu0
  %v1564 = vadd.f32 %v1475, %v1563
  %1565 = vmatmul.bf16.gmra.mxu0 %v638
  %v1566 = vpop.f32.mrf.mxu0
  %v1567 = vadd.f32 %v1478, %v1566
  %v1568 = vpop.f32.mrf.mxu0
  %v1569 = vadd.f32 %v1480, %v1568
  %1570 = vmatmul.bf16.gmra.mxu0 %v645
  %v1571 = vpop.f32.mrf.mxu0
  %v1572 = vadd.f32 %v1483, %v1571
  %v1573 = vpop.f32.mrf.mxu0
  %v1574 = vadd.f32 %v1485, %v1573
  %1575 = vmatmul.bf16.gmra.mxu0 %v652
  %v1576 = vpop.f32.mrf.mxu0
  %v1577 = vadd.f32 %v1488, %v1576
  %v1578 = vpop.f32.mrf.mxu0
  %v1579 = vadd.f32 %v1490, %v1578
  %1580 = vmatmul.bf16.gmra.mxu0 %v659
  %v1581 = vpop.f32.mrf.mxu0
  %v1582 = vadd.f32 %v1493, %v1581
  %v1583 = vpop.f32.mrf.mxu0
  %v1584 = vadd.f32 %v1495, %v1583
  %1585 = vmatmul.bf16.gmra.mxu0 %v666
  %v1586 = vpop.f32.mrf.mxu0
  %v1587 = vadd.f32 %v1498, %v1586
  %v1588 = vpop.f32.mrf.mxu0
  %v1589 = vadd.f32 %v1500, %v1588
  %1590 = vmatmul.bf16.gmra.mxu0 %v673
  %v1591 = vpop.f32.mrf.mxu0
  %v1592 = vadd.f32 %v1503, %v1591
  %v1593 = vpop.f32.mrf.mxu0
  %v1594 = vadd.f32 %v1505, %v1593
  %1595 = vmatmul.bf16.gmra.mxu0 %v680
  %v1596 = vpop.f32.mrf.mxu0
  %v1597 = vadd.f32 %v1508, %v1596
  %v1598 = vpop.f32.mrf.mxu0
  %v1599 = vadd.f32 %v1510, %v1598
  %1600 = vmatmul.bf16.gmra.mxu0 %v687
  %v1601 = vpop.f32.mrf.mxu0
  %v1602 = vadd.f32 %v1513, %v1601
  %v1603 = vpop.f32.mrf.mxu0
  %v1604 = vadd.f32 %v1515, %v1603
  %1605 = vmatmul.bf16.gmra.mxu0 %v694
  %v1606 = vpop.f32.mrf.mxu0
  %v1607 = vadd.f32 %v1518, %v1606
  %v1608 = vpop.f32.mrf.mxu0
  %v1609 = vadd.f32 %v1520, %v1608
  %1610 = vmatmul.bf16.gmra.mxu0 %v701
  %v1611 = vpop.f32.mrf.mxu0
  %v1612 = vadd.f32 %v1523, %v1611
  %v1613 = vpop.f32.mrf.mxu0
  %v1614 = vadd.f32 %v1525, %v1613
  %1615 = vmatmul.bf16.gmra.mxu0 %v708
  %v1616 = vpop.f32.mrf.mxu0
  %v1617 = vadd.f32 %v1528, %v1616
  %v1618 = vpop.f32.mrf.mxu0
  %v1619 = vadd.f32 %v1530, %v1618
  %1620 = vmatmul.bf16.gmra.mxu0 %v715
  %v1621 = vpop.f32.mrf.mxu0
  %v1622 = vadd.f32 %v1533, %v1621
  %v1623 = vpop.f32.mrf.mxu0
  %v1624 = vadd.f32 %v1535, %v1623
  %1625 = vmatmul.bf16.gmra.mxu0 %v722
  %v1626 = vpop.f32.mrf.mxu0
  %v1627 = vadd.f32 %v1538, %v1626
  %v1628 = vpop.f32.mrf.mxu0
  %v1629 = vadd.f32 %v1540, %v1628
  %1630 = vmatmul.bf16.gmra.mxu0 %v729
  %v1631 = vpop.f32.mrf.mxu0
  %v1632 = vadd.f32 %v1543, %v1631
  %v1633 = vpop.f32.mrf.mxu0
  %v1634 = vadd.f32 %v1545, %v1633
  %1635 = vdwg.mxu0
  %1636 = vmatpush.bf16.msra.mxu0 %v1186
  %1637 = vmatpush.bf16.msra.mxu0 %v1184
  %1638 = vmatpush.bf16.msra.mxu0 %v1182
  %1639 = vmatpush.bf16.msra.mxu0 %v1180
  %1640 = vmatpush.bf16.msra.mxu0 %v1178
  %1641 = vmatpush.bf16.msra.mxu0 %v1176
  %1642 = vmatpush.bf16.msra.mxu0 %v1174
  %1643 = vmatpush.bf16.msra.mxu0 %v1172
  %1644 = vmatmul.bf16.gmra.mxu0 %v625
  %v1645 = vpop.f32.mrf.mxu0
  %v1646 = vadd.f32 %v1557, %v1645
  %v1647 = vpop.f32.mrf.mxu0
  %v1648 = vadd.f32 %v1559, %v1647
  %1649 = vmatmul.bf16.gmra.mxu0 %v632
  %v1650 = vpop.f32.mrf.mxu0
  %v1651 = vadd.f32 %v1562, %v1650
  %v1652 = vpop.f32.mrf.mxu0
  %v1653 = vadd.f32 %v1564, %v1652
  %1654 = vmatmul.bf16.gmra.mxu0 %v639
  %v1655 = vpop.f32.mrf.mxu0
  %v1656 = vadd.f32 %v1567, %v1655
  %v1657 = vpop.f32.mrf.mxu0
  %v1658 = vadd.f32 %v1569, %v1657
  %1659 = vmatmul.bf16.gmra.mxu0 %v646
  %v1660 = vpop.f32.mrf.mxu0
  %v1661 = vadd.f32 %v1572, %v1660
  %v1662 = vpop.f32.mrf.mxu0
  %v1663 = vadd.f32 %v1574, %v1662
  %1664 = vmatmul.bf16.gmra.mxu0 %v653
  %v1665 = vpop.f32.mrf.mxu0
  %v1666 = vadd.f32 %v1577, %v1665
  %v1667 = vpop.f32.mrf.mxu0
  %v1668 = vadd.f32 %v1579, %v1667
  %1669 = vmatmul.bf16.gmra.mxu0 %v660
  %v1670 = vpop.f32.mrf.mxu0
  %v1671 = vadd.f32 %v1582, %v1670
  %v1672 = vpop.f32.mrf.mxu0
  %v1673 = vadd.f32 %v1584, %v1672
  %1674 = vmatmul.bf16.gmra.mxu0 %v667
  %v1675 = vpop.f32.mrf.mxu0
  %v1676 = vadd.f32 %v1587, %v1675
  %v1677 = vpop.f32.mrf.mxu0
  %v1678 = vadd.f32 %v1589, %v1677
  %1679 = vmatmul.bf16.gmra.mxu0 %v674
  %v1680 = vpop.f32.mrf.mxu0
  %v1681 = vadd.f32 %v1592, %v1680
  %v1682 = vpop.f32.mrf.mxu0
  %v1683 = vadd.f32 %v1594, %v1682
  %1684 = vmatmul.bf16.gmra.mxu0 %v681
  %v1685 = vpop.f32.mrf.mxu0
  %v1686 = vadd.f32 %v1597, %v1685
  %v1687 = vpop.f32.mrf.mxu0
  %v1688 = vadd.f32 %v1599, %v1687
  %1689 = vmatmul.bf16.gmra.mxu0 %v688
  %v1690 = vpop.f32.mrf.mxu0
  %v1691 = vadd.f32 %v1602, %v1690
  %v1692 = vpop.f32.mrf.mxu0
  %v1693 = vadd.f32 %v1604, %v1692
  %1694 = vmatmul.bf16.gmra.mxu0 %v695
  %v1695 = vpop.f32.mrf.mxu0
  %v1696 = vadd.f32 %v1607, %v1695
  %v1697 = vpop.f32.mrf.mxu0
  %v1698 = vadd.f32 %v1609, %v1697
  %1699 = vmatmul.bf16.gmra.mxu0 %v702
  %v1700 = vpop.f32.mrf.mxu0
  %v1701 = vadd.f32 %v1612, %v1700
  %v1702 = vpop.f32.mrf.mxu0
  %v1703 = vadd.f32 %v1614, %v1702
  %1704 = vmatmul.bf16.gmra.mxu0 %v709
  %v1705 = vpop.f32.mrf.mxu0
  %v1706 = vadd.f32 %v1617, %v1705
  %v1707 = vpop.f32.mrf.mxu0
  %v1708 = vadd.f32 %v1619, %v1707
  %1709 = vmatmul.bf16.gmra.mxu0 %v716
  %v1710 = vpop.f32.mrf.mxu0
  %v1711 = vadd.f32 %v1622, %v1710
  %v1712 = vpop.f32.mrf.mxu0
  %v1713 = vadd.f32 %v1624, %v1712
  %1714 = vmatmul.bf16.gmra.mxu0 %v723
  %v1715 = vpop.f32.mrf.mxu0
  %v1716 = vadd.f32 %v1627, %v1715
  %v1717 = vpop.f32.mrf.mxu0
  %v1718 = vadd.f32 %v1629, %v1717
  %1719 = vmatmul.bf16.gmra.mxu0 %v730
  %v1720 = vpop.f32.mrf.mxu0
  %v1721 = vadd.f32 %v1632, %v1720
  %v1722 = vpop.f32.mrf.mxu0
  %v1723 = vadd.f32 %v1634, %v1722
  %1724 = vdwg.mxu0
  %1725 = vmatpush.bf16.msra.mxu0 %v1202
  %1726 = vmatpush.bf16.msra.mxu0 %v1200
  %1727 = vmatpush.bf16.msra.mxu0 %v1198
  %1728 = vmatpush.bf16.msra.mxu0 %v1196
  %1729 = vmatpush.bf16.msra.mxu0 %v1194
  %1730 = vmatpush.bf16.msra.mxu0 %v1192
  %1731 = vmatpush.bf16.msra.mxu0 %v1190
  %1732 = vmatpush.bf16.msra.mxu0 %v1188
  %1733 = vmatmul.bf16.gmra.mxu0 %v626
  %v1734 = vpop.f32.mrf.mxu0
  %v1735 = vadd.f32 %v1646, %v1734
  %v1736 = vpop.f32.mrf.mxu0
  %v1737 = vadd.f32 %v1648, %v1736
  %1738 = vmatmul.bf16.gmra.mxu0 %v633
  %v1739 = vpop.f32.mrf.mxu0
  %v1740 = vadd.f32 %v1651, %v1739
  %v1741 = vpop.f32.mrf.mxu0
  %v1742 = vadd.f32 %v1653, %v1741
  %1743 = vmatmul.bf16.gmra.mxu0 %v640
  %v1744 = vpop.f32.mrf.mxu0
  %v1745 = vadd.f32 %v1656, %v1744
  %v1746 = vpop.f32.mrf.mxu0
  %v1747 = vadd.f32 %v1658, %v1746
  %1748 = vmatmul.bf16.gmra.mxu0 %v647
  %v1749 = vpop.f32.mrf.mxu0
  %v1750 = vadd.f32 %v1661, %v1749
  %v1751 = vpop.f32.mrf.mxu0
  %v1752 = vadd.f32 %v1663, %v1751
  %1753 = vmatmul.bf16.gmra.mxu0 %v654
  %v1754 = vpop.f32.mrf.mxu0
  %v1755 = vadd.f32 %v1666, %v1754
  %v1756 = vpop.f32.mrf.mxu0
  %v1757 = vadd.f32 %v1668, %v1756
  %1758 = vmatmul.bf16.gmra.mxu0 %v661
  %v1759 = vpop.f32.mrf.mxu0
  %v1760 = vadd.f32 %v1671, %v1759
  %v1761 = vpop.f32.mrf.mxu0
  %v1762 = vadd.f32 %v1673, %v1761
  %1763 = vmatmul.bf16.gmra.mxu0 %v668
  %v1764 = vpop.f32.mrf.mxu0
  %v1765 = vadd.f32 %v1676, %v1764
  %v1766 = vpop.f32.mrf.mxu0
  %v1767 = vadd.f32 %v1678, %v1766
  %1768 = vmatmul.bf16.gmra.mxu0 %v675
  %v1769 = vpop.f32.mrf.mxu0
  %v1770 = vadd.f32 %v1681, %v1769
  %v1771 = vpop.f32.mrf.mxu0
  %v1772 = vadd.f32 %v1683, %v1771
  %1773 = vmatmul.bf16.gmra.mxu0 %v682
  %v1774 = vpop.f32.mrf.mxu0
  %v1775 = vadd.f32 %v1686, %v1774
  %v1776 = vpop.f32.mrf.mxu0
  %v1777 = vadd.f32 %v1688, %v1776
  %1778 = vmatmul.bf16.gmra.mxu0 %v689
  %v1779 = vpop.f32.mrf.mxu0
  %v1780 = vadd.f32 %v1691, %v1779
  %v1781 = vpop.f32.mrf.mxu0
  %v1782 = vadd.f32 %v1693, %v1781
  %1783 = vmatmul.bf16.gmra.mxu0 %v696
  %v1784 = vpop.f32.mrf.mxu0
  %v1785 = vadd.f32 %v1696, %v1784
  %v1786 = vpop.f32.mrf.mxu0
  %v1787 = vadd.f32 %v1698, %v1786
  %1788 = vmatmul.bf16.gmra.mxu0 %v703
  %v1789 = vpop.f32.mrf.mxu0
  %v1790 = vadd.f32 %v1701, %v1789
  %v1791 = vpop.f32.mrf.mxu0
  %v1792 = vadd.f32 %v1703, %v1791
  %1793 = vmatmul.bf16.gmra.mxu0 %v710
  %v1794 = vpop.f32.mrf.mxu0
  %v1795 = vadd.f32 %v1706, %v1794
  %v1796 = vpop.f32.mrf.mxu0
  %v1797 = vadd.f32 %v1708, %v1796
  %1798 = vmatmul.bf16.gmra.mxu0 %v717
  %v1799 = vpop.f32.mrf.mxu0
  %v1800 = vadd.f32 %v1711, %v1799
  %v1801 = vpop.f32.mrf.mxu0
  %v1802 = vadd.f32 %v1713, %v1801
  %1803 = vmatmul.bf16.gmra.mxu0 %v724
  %v1804 = vpop.f32.mrf.mxu0
  %v1805 = vadd.f32 %v1716, %v1804
  %v1806 = vpop.f32.mrf.mxu0
  %v1807 = vadd.f32 %v1718, %v1806
  %1808 = vmatmul.bf16.gmra.mxu0 %v731
  %v1809 = vpop.f32.mrf.mxu0
  %v1810 = vadd.f32 %v1721, %v1809
  %v1811 = vpop.f32.mrf.mxu0
  %v1812 = vadd.f32 %v1723, %v1811
  %1813 = vdwg.mxu0
  %1814 = vmatpush.bf16.msra.mxu0 %v1218
  %1815 = vmatpush.bf16.msra.mxu0 %v1216
  %1816 = vmatpush.bf16.msra.mxu0 %v1214
  %1817 = vmatpush.bf16.msra.mxu0 %v1212
  %1818 = vmatpush.bf16.msra.mxu0 %v1210
  %1819 = vmatpush.bf16.msra.mxu0 %v1208
  %1820 = vmatpush.bf16.msra.mxu0 %v1206
  %1821 = vmatpush.bf16.msra.mxu0 %v1204
  %1822 = vmatmul.bf16.gmra.mxu0 %v627
  %v1823 = vpop.f32.mrf.mxu0
  %v1824 = vadd.f32 %v1735, %v1823
  %v1825 = vpop.f32.mrf.mxu0
  %v1826 = vadd.f32 %v1737, %v1825
  %1827 = vmatmul.bf16.gmra.mxu0 %v634
  %v1828 = vpop.f32.mrf.mxu0
  %v1829 = vadd.f32 %v1740, %v1828
  %v1830 = vpop.f32.mrf.mxu0
  %v1831 = vadd.f32 %v1742, %v1830
  %1832 = vmatmul.bf16.gmra.mxu0 %v641
  %v1833 = vpop.f32.mrf.mxu0
  %v1834 = vadd.f32 %v1745, %v1833
  %v1835 = vpop.f32.mrf.mxu0
  %v1836 = vadd.f32 %v1747, %v1835
  %1837 = vmatmul.bf16.gmra.mxu0 %v648
  %v1838 = vpop.f32.mrf.mxu0
  %v1839 = vadd.f32 %v1750, %v1838
  %v1840 = vpop.f32.mrf.mxu0
  %v1841 = vadd.f32 %v1752, %v1840
  %1842 = vmatmul.bf16.gmra.mxu0 %v655
  %v1843 = vpop.f32.mrf.mxu0
  %v1844 = vadd.f32 %v1755, %v1843
  %v1845 = vpop.f32.mrf.mxu0
  %v1846 = vadd.f32 %v1757, %v1845
  %1847 = vmatmul.bf16.gmra.mxu0 %v662
  %v1848 = vpop.f32.mrf.mxu0
  %v1849 = vadd.f32 %v1760, %v1848
  %v1850 = vpop.f32.mrf.mxu0
  %v1851 = vadd.f32 %v1762, %v1850
  %1852 = vmatmul.bf16.gmra.mxu0 %v669
  %v1853 = vpop.f32.mrf.mxu0
  %v1854 = vadd.f32 %v1765, %v1853
  %v1855 = vpop.f32.mrf.mxu0
  %v1856 = vadd.f32 %v1767, %v1855
  %1857 = vmatmul.bf16.gmra.mxu0 %v676
  %v1858 = vpop.f32.mrf.mxu0
  %v1859 = vadd.f32 %v1770, %v1858
  %v1860 = vpop.f32.mrf.mxu0
  %v1861 = vadd.f32 %v1772, %v1860
  %1862 = vmatmul.bf16.gmra.mxu0 %v683
  %v1863 = vpop.f32.mrf.mxu0
  %v1864 = vadd.f32 %v1775, %v1863
  %v1865 = vpop.f32.mrf.mxu0
  %v1866 = vadd.f32 %v1777, %v1865
  %1867 = vmatmul.bf16.gmra.mxu0 %v690
  %v1868 = vpop.f32.mrf.mxu0
  %v1869 = vadd.f32 %v1780, %v1868
  %v1870 = vpop.f32.mrf.mxu0
  %v1871 = vadd.f32 %v1782, %v1870
  %1872 = vmatmul.bf16.gmra.mxu0 %v697
  %v1873 = vpop.f32.mrf.mxu0
  %v1874 = vadd.f32 %v1785, %v1873
  %v1875 = vpop.f32.mrf.mxu0
  %v1876 = vadd.f32 %v1787, %v1875
  %1877 = vmatmul.bf16.gmra.mxu0 %v704
  %v1878 = vpop.f32.mrf.mxu0
  %v1879 = vadd.f32 %v1790, %v1878
  %v1880 = vpop.f32.mrf.mxu0
  %v1881 = vadd.f32 %v1792, %v1880
  %1882 = vmatmul.bf16.gmra.mxu0 %v711
  %v1883 = vpop.f32.mrf.mxu0
  %v1884 = vadd.f32 %v1795, %v1883
  %v1885 = vpop.f32.mrf.mxu0
  %v1886 = vadd.f32 %v1797, %v1885
  %1887 = vmatmul.bf16.gmra.mxu0 %v718
  %v1888 = vpop.f32.mrf.mxu0
  %v1889 = vadd.f32 %v1800, %v1888
  %v1890 = vpop.f32.mrf.mxu0
  %v1891 = vadd.f32 %v1802, %v1890
  %1892 = vmatmul.bf16.gmra.mxu0 %v725
  %v1893 = vpop.f32.mrf.mxu0
  %v1894 = vadd.f32 %v1805, %v1893
  %v1895 = vpop.f32.mrf.mxu0
  %v1896 = vadd.f32 %v1807, %v1895
  %1897 = vmatmul.bf16.gmra.mxu0 %v732
  %v1898 = vpop.f32.mrf.mxu0
  %v1899 = vadd.f32 %v1810, %v1898
  %v1900 = vpop.f32.mrf.mxu0
  %v1901 = vadd.f32 %v1812, %v1900
  %1902 = vdwg.mxu0
  %1903 = vmatpush.bf16.msra.mxu0 0
  %1904 = vmatpush.bf16.msra.mxu0 0
  %1905 = vmatpush.bf16.msra.mxu0 0
  %1906 = vmatpush.bf16.msra.mxu0 0
  %1907 = vmatpush.bf16.msra.mxu0 0
  %1908 = vmatpush.bf16.msra.mxu0 0
  %1909 = vmatpush.bf16.msra.mxu0 0
  %1910 = vmatpush.bf16.msra.mxu0 %v1220
  %1911 = vmatmul.bf16.gmra.mxu0 %v1322
  %v1912 = vpop.f32.mrf.mxu0
  %v1913 = vadd.f32 %v1824, %v1912
  %v1914 = vpop.f32.mrf.mxu0
  %v1915 = vadd.f32 %v1826, %v1914
  %1916 = vmatmul.bf16.gmra.mxu0 %v1325
  %v1917 = vpop.f32.mrf.mxu0
  %v1918 = vadd.f32 %v1829, %v1917
  %v1919 = vpop.f32.mrf.mxu0
  %v1920 = vadd.f32 %v1831, %v1919
  %1921 = vmatmul.bf16.gmra.mxu0 %v1328
  %v1922 = vpop.f32.mrf.mxu0
  %v1923 = vadd.f32 %v1834, %v1922
  %v1924 = vpop.f32.mrf.mxu0
  %v1925 = vadd.f32 %v1836, %v1924
  %1926 = vmatmul.bf16.gmra.mxu0 %v1331
  %v1927 = vpop.f32.mrf.mxu0
  %v1928 = vadd.f32 %v1839, %v1927
  %v1929 = vpop.f32.mrf.mxu0
  %v1930 = vadd.f32 %v1841, %v1929
  %1931 = vmatmul.bf16.gmra.mxu0 %v1334
  %v1932 = vpop.f32.mrf.mxu0
  %v1933 = vadd.f32 %v1844, %v1932
  %v1934 = vpop.f32.mrf.mxu0
  %v1935 = vadd.f32 %v1846, %v1934
  %1936 = vmatmul.bf16.gmra.mxu0 %v1337
  %v1937 = vpop.f32.mrf.mxu0
  %v1938 = vadd.f32 %v1849, %v1937
  %v1939 = vpop.f32.mrf.mxu0
  %v1940 = vadd.f32 %v1851, %v1939
  %1941 = vmatmul.bf16.gmra.mxu0 %v1340
  %v1942 = vpop.f32.mrf.mxu0
  %v1943 = vadd.f32 %v1854, %v1942
  %v1944 = vpop.f32.mrf.mxu0
  %v1945 = vadd.f32 %v1856, %v1944
  %1946 = vmatmul.bf16.gmra.mxu0 %v1343
  %v1947 = vpop.f32.mrf.mxu0
  %v1948 = vadd.f32 %v1859, %v1947
  %v1949 = vpop.f32.mrf.mxu0
  %v1950 = vadd.f32 %v1861, %v1949
  %1951 = vmatmul.bf16.gmra.mxu0 %v1346
  %v1952 = vpop.f32.mrf.mxu0
  %v1953 = vadd.f32 %v1864, %v1952
  %v1954 = vpop.f32.mrf.mxu0
  %v1955 = vadd.f32 %v1866, %v1954
  %1956 = vmatmul.bf16.gmra.mxu0 %v1349
  %v1957 = vpop.f32.mrf.mxu0
  %v1958 = vadd.f32 %v1869, %v1957
  %v1959 = vpop.f32.mrf.mxu0
  %v1960 = vadd.f32 %v1871, %v1959
  %1961 = vmatmul.bf16.gmra.mxu0 %v1352
  %v1962 = vpop.f32.mrf.mxu0
  %v1963 = vadd.f32 %v1874, %v1962
  %v1964 = vpop.f32.mrf.mxu0
  %v1965 = vadd.f32 %v1876, %v1964
  %1966 = vmatmul.bf16.gmra.mxu0 %v1355
  %v1967 = vpop.f32.mrf.mxu0
  %v1968 = vadd.f32 %v1879, %v1967
  %v1969 = vpop.f32.mrf.mxu0
  %v1970 = vadd.f32 %v1881, %v1969
  %1971 = vmatmul.bf16.gmra.mxu0 %v1358
  %v1972 = vpop.f32.mrf.mxu0
  %v1973 = vadd.f32 %v1884, %v1972
  %v1974 = vpop.f32.mrf.mxu0
  %v1975 = vadd.f32 %v1886, %v1974
  %1976 = vmatmul.bf16.gmra.mxu0 %v1361
  %v1977 = vpop.f32.mrf.mxu0
  %v1978 = vadd.f32 %v1889, %v1977
  %v1979 = vpop.f32.mrf.mxu0
  %v1980 = vadd.f32 %v1891, %v1979
  %1981 = vmatmul.bf16.gmra.mxu0 %v1364
  %v1982 = vpop.f32.mrf.mxu0
  %v1983 = vadd.f32 %v1894, %v1982
  %v1984 = vpop.f32.mrf.mxu0
  %v1985 = vadd.f32 %v1896, %v1984
  %1986 = vmatmul.bf16.gmra.mxu0 %v1367
  %v1987 = vpop.f32.mrf.mxu0
  %v1988 = vadd.f32 %v1899, %v1987
  %v1989 = vpop.f32.mrf.mxu0
  %v1990 = vadd.f32 %v1901, %v1989
  %1991 = vdwg.mxu0
  %1992 = vmatpush.bf16.msra.mxu0 %v1139
  %1993 = vmatpush.bf16.msra.mxu0 %v1137
  %1994 = vmatpush.bf16.msra.mxu0 %v1135
  %1995 = vmatpush.bf16.msra.mxu0 %v1133
  %1996 = vmatpush.bf16.msra.mxu0 %v1131
  %1997 = vmatpush.bf16.msra.mxu0 %v1129
  %1998 = vmatpush.bf16.msra.mxu0 %v1127
  %1999 = vmatpush.bf16.msra.mxu0 %v1125
  %2000 = vmatmul.bf16.gmra.mxu0 %v622
  %v2001 = vpop.f32.mrf.mxu0
  %v2002 = vadd.f32 %v267, %v2001
  %v2003 = vpop.f32.mrf.mxu0
  %v2004 = vadd.f32 %v267, %v2003
  %2005 = vmatmul.bf16.gmra.mxu0 %v629
  %v2006 = vpop.f32.mrf.mxu0
  %v2007 = vadd.f32 %v267, %v2006
  %v2008 = vpop.f32.mrf.mxu0
  %v2009 = vadd.f32 %v267, %v2008
  %2010 = vmatmul.bf16.gmra.mxu0 %v636
  %v2011 = vpop.f32.mrf.mxu0
  %v2012 = vadd.f32 %v267, %v2011
  %v2013 = vpop.f32.mrf.mxu0
  %v2014 = vadd.f32 %v267, %v2013
  %2015 = vmatmul.bf16.gmra.mxu0 %v643
  %v2016 = vpop.f32.mrf.mxu0
  %v2017 = vadd.f32 %v267, %v2016
  %v2018 = vpop.f32.mrf.mxu0
  %v2019 = vadd.f32 %v267, %v2018
  %2020 = vmatmul.bf16.gmra.mxu0 %v650
  %v2021 = vpop.f32.mrf.mxu0
  %v2022 = vadd.f32 %v267, %v2021
  %v2023 = vpop.f32.mrf.mxu0
  %v2024 = vadd.f32 %v267, %v2023
  %2025 = vmatmul.bf16.gmra.mxu0 %v657
  %v2026 = vpop.f32.mrf.mxu0
  %v2027 = vadd.f32 %v267, %v2026
  %v2028 = vpop.f32.mrf.mxu0
  %v2029 = vadd.f32 %v267, %v2028
  %2030 = vmatmul.bf16.gmra.mxu0 %v664
  %v2031 = vpop.f32.mrf.mxu0
  %v2032 = vadd.f32 %v267, %v2031
  %v2033 = vpop.f32.mrf.mxu0
  %v2034 = vadd.f32 %v267, %v2033
  %2035 = vmatmul.bf16.gmra.mxu0 %v671
  %v2036 = vpop.f32.mrf.mxu0
  %v2037 = vadd.f32 %v267, %v2036
  %v2038 = vpop.f32.mrf.mxu0
  %v2039 = vadd.f32 %v267, %v2038
  %2040 = vmatmul.bf16.gmra.mxu0 %v678
  %v2041 = vpop.f32.mrf.mxu0
  %v2042 = vadd.f32 %v267, %v2041
  %v2043 = vpop.f32.mrf.mxu0
  %v2044 = vadd.f32 %v267, %v2043
  %2045 = vmatmul.bf16.gmra.mxu0 %v685
  %v2046 = vpop.f32.mrf.mxu0
  %v2047 = vadd.f32 %v267, %v2046
  %v2048 = vpop.f32.mrf.mxu0
  %v2049 = vadd.f32 %v267, %v2048
  %2050 = vmatmul.bf16.gmra.mxu0 %v692
  %v2051 = vpop.f32.mrf.mxu0
  %v2052 = vadd.f32 %v267, %v2051
  %v2053 = vpop.f32.mrf.mxu0
  %v2054 = vadd.f32 %v267, %v2053
  %2055 = vmatmul.bf16.gmra.mxu0 %v699
  %v2056 = vpop.f32.mrf.mxu0
  %v2057 = vadd.f32 %v267, %v2056
  %v2058 = vpop.f32.mrf.mxu0
  %v2059 = vadd.f32 %v267, %v2058
  %2060 = vmatmul.bf16.gmra.mxu0 %v706
  %v2061 = vpop.f32.mrf.mxu0
  %v2062 = vadd.f32 %v267, %v2061
  %v2063 = vpop.f32.mrf.mxu0
  %v2064 = vadd.f32 %v267, %v2063
  %2065 = vmatmul.bf16.gmra.mxu0 %v713
  %v2066 = vpop.f32.mrf.mxu0
  %v2067 = vadd.f32 %v267, %v2066
  %v2068 = vpop.f32.mrf.mxu0
  %v2069 = vadd.f32 %v267, %v2068
  %2070 = vmatmul.bf16.gmra.mxu0 %v720
  %v2071 = vpop.f32.mrf.mxu0
  %v2072 = vadd.f32 %v267, %v2071
  %v2073 = vpop.f32.mrf.mxu0
  %v2074 = vadd.f32 %v267, %v2073
  %2075 = vmatmul.bf16.gmra.mxu0 %v727
  %v2076 = vpop.f32.mrf.mxu0
  %v2077 = vadd.f32 %v267, %v2076
  %v2078 = vpop.f32.mrf.mxu0
  %v2079 = vadd.f32 %v267, %v2078
  %2080 = vdwg.mxu0
  %2081 = vmatpush.bf16.msra.mxu0 %v1155
  %2082 = vmatpush.bf16.msra.mxu0 %v1153
  %2083 = vmatpush.bf16.msra.mxu0 %v1151
  %2084 = vmatpush.bf16.msra.mxu0 %v1149
  %2085 = vmatpush.bf16.msra.mxu0 %v1147
  %2086 = vmatpush.bf16.msra.mxu0 %v1145
  %2087 = vmatpush.bf16.msra.mxu0 %v1143
  %2088 = vmatpush.bf16.msra.mxu0 %v1141
  %2089 = vmatmul.bf16.gmra.mxu0 %v623
  %v2090 = vpop.f32.mrf.mxu0
  %v2091 = vadd.f32 %v2002, %v2090
  %v2092 = vpop.f32.mrf.mxu0
  %v2093 = vadd.f32 %v2004, %v2092
  %2094 = vmatmul.bf16.gmra.mxu0 %v630
  %v2095 = vpop.f32.mrf.mxu0
  %v2096 = vadd.f32 %v2007, %v2095
  %v2097 = vpop.f32.mrf.mxu0
  %v2098 = vadd.f32 %v2009, %v2097
  %2099 = vmatmul.bf16.gmra.mxu0 %v637
  %v2100 = vpop.f32.mrf.mxu0
  %v2101 = vadd.f32 %v2012, %v2100
  %v2102 = vpop.f32.mrf.mxu0
  %v2103 = vadd.f32 %v2014, %v2102
  %2104 = vmatmul.bf16.gmra.mxu0 %v644
  %v2105 = vpop.f32.mrf.mxu0
  %v2106 = vadd.f32 %v2017, %v2105
  %v2107 = vpop.f32.mrf.mxu0
  %v2108 = vadd.f32 %v2019, %v2107
  %2109 = vmatmul.bf16.gmra.mxu0 %v651
  %v2110 = vpop.f32.mrf.mxu0
  %v2111 = vadd.f32 %v2022, %v2110
  %v2112 = vpop.f32.mrf.mxu0
  %v2113 = vadd.f32 %v2024, %v2112
  %2114 = vmatmul.bf16.gmra.mxu0 %v658
  %v2115 = vpop.f32.mrf.mxu0
  %v2116 = vadd.f32 %v2027, %v2115
  %v2117 = vpop.f32.mrf.mxu0
  %v2118 = vadd.f32 %v2029, %v2117
  %2119 = vmatmul.bf16.gmra.mxu0 %v665
  %v2120 = vpop.f32.mrf.mxu0
  %v2121 = vadd.f32 %v2032, %v2120
  %v2122 = vpop.f32.mrf.mxu0
  %v2123 = vadd.f32 %v2034, %v2122
  %2124 = vmatmul.bf16.gmra.mxu0 %v672
  %v2125 = vpop.f32.mrf.mxu0
  %v2126 = vadd.f32 %v2037, %v2125
  %v2127 = vpop.f32.mrf.mxu0
  %v2128 = vadd.f32 %v2039, %v2127
  %2129 = vmatmul.bf16.gmra.mxu0 %v679
  %v2130 = vpop.f32.mrf.mxu0
  %v2131 = vadd.f32 %v2042, %v2130
  %v2132 = vpop.f32.mrf.mxu0
  %v2133 = vadd.f32 %v2044, %v2132
  %2134 = vmatmul.bf16.gmra.mxu0 %v686
  %v2135 = vpop.f32.mrf.mxu0
  %v2136 = vadd.f32 %v2047, %v2135
  %v2137 = vpop.f32.mrf.mxu0
  %v2138 = vadd.f32 %v2049, %v2137
  %2139 = vmatmul.bf16.gmra.mxu0 %v693
  %v2140 = vpop.f32.mrf.mxu0
  %v2141 = vadd.f32 %v2052, %v2140
  %v2142 = vpop.f32.mrf.mxu0
  %v2143 = vadd.f32 %v2054, %v2142
  %2144 = vmatmul.bf16.gmra.mxu0 %v700
  %v2145 = vpop.f32.mrf.mxu0
  %v2146 = vadd.f32 %v2057, %v2145
  %v2147 = vpop.f32.mrf.mxu0
  %v2148 = vadd.f32 %v2059, %v2147
  %2149 = vmatmul.bf16.gmra.mxu0 %v707
  %v2150 = vpop.f32.mrf.mxu0
  %v2151 = vadd.f32 %v2062, %v2150
  %v2152 = vpop.f32.mrf.mxu0
  %v2153 = vadd.f32 %v2064, %v2152
  %2154 = vmatmul.bf16.gmra.mxu0 %v714
  %v2155 = vpop.f32.mrf.mxu0
  %v2156 = vadd.f32 %v2067, %v2155
  %v2157 = vpop.f32.mrf.mxu0
  %v2158 = vadd.f32 %v2069, %v2157
  %2159 = vmatmul.bf16.gmra.mxu0 %v721
  %v2160 = vpop.f32.mrf.mxu0
  %v2161 = vadd.f32 %v2072, %v2160
  %v2162 = vpop.f32.mrf.mxu0
  %v2163 = vadd.f32 %v2074, %v2162
  %2164 = vmatmul.bf16.gmra.mxu0 %v728
  %v2165 = vpop.f32.mrf.mxu0
  %v2166 = vadd.f32 %v2077, %v2165
  %v2167 = vpop.f32.mrf.mxu0
  %v2168 = vadd.f32 %v2079, %v2167
  %2169 = vdwg.mxu0
  %2170 = vmatpush.bf16.msra.mxu0 %v1171
  %2171 = vmatpush.bf16.msra.mxu0 %v1169
  %2172 = vmatpush.bf16.msra.mxu0 %v1167
  %2173 = vmatpush.bf16.msra.mxu0 %v1165
  %2174 = vmatpush.bf16.msra.mxu0 %v1163
  %2175 = vmatpush.bf16.msra.mxu0 %v1161
  %2176 = vmatpush.bf16.msra.mxu0 %v1159
  %2177 = vmatpush.bf16.msra.mxu0 %v1157
  %2178 = vmatmul.bf16.gmra.mxu0 %v624
  %v2179 = vpop.f32.mrf.mxu0
  %v2180 = vadd.f32 %v2091, %v2179
  %v2181 = vpop.f32.mrf.mxu0
  %v2182 = vadd.f32 %v2093, %v2181
  %2183 = vmatmul.bf16.gmra.mxu0 %v631
  %v2184 = vpop.f32.mrf.mxu0
  %v2185 = vadd.f32 %v2096, %v2184
  %v2186 = vpop.f32.mrf.mxu0
  %v2187 = vadd.f32 %v2098, %v2186
  %2188 = vmatmul.bf16.gmra.mxu0 %v638
  %v2189 = vpop.f32.mrf.mxu0
  %v2190 = vadd.f32 %v2101, %v2189
  %v2191 = vpop.f32.mrf.mxu0
  %v2192 = vadd.f32 %v2103, %v2191
  %2193 = vmatmul.bf16.gmra.mxu0 %v645
  %v2194 = vpop.f32.mrf.mxu0
  %v2195 = vadd.f32 %v2106, %v2194
  %v2196 = vpop.f32.mrf.mxu0
  %v2197 = vadd.f32 %v2108, %v2196
  %2198 = vmatmul.bf16.gmra.mxu0 %v652
  %v2199 = vpop.f32.mrf.mxu0
  %v2200 = vadd.f32 %v2111, %v2199
  %v2201 = vpop.f32.mrf.mxu0
  %v2202 = vadd.f32 %v2113, %v2201
  %2203 = vmatmul.bf16.gmra.mxu0 %v659
  %v2204 = vpop.f32.mrf.mxu0
  %v2205 = vadd.f32 %v2116, %v2204
  %v2206 = vpop.f32.mrf.mxu0
  %v2207 = vadd.f32 %v2118, %v2206
  %2208 = vmatmul.bf16.gmra.mxu0 %v666
  %v2209 = vpop.f32.mrf.mxu0
  %v2210 = vadd.f32 %v2121, %v2209
  %v2211 = vpop.f32.mrf.mxu0
  %v2212 = vadd.f32 %v2123, %v2211
  %2213 = vmatmul.bf16.gmra.mxu0 %v673
  %v2214 = vpop.f32.mrf.mxu0
  %v2215 = vadd.f32 %v2126, %v2214
  %v2216 = vpop.f32.mrf.mxu0
  %v2217 = vadd.f32 %v2128, %v2216
  %2218 = vmatmul.bf16.gmra.mxu0 %v680
  %v2219 = vpop.f32.mrf.mxu0
  %v2220 = vadd.f32 %v2131, %v2219
  %v2221 = vpop.f32.mrf.mxu0
  %v2222 = vadd.f32 %v2133, %v2221
  %2223 = vmatmul.bf16.gmra.mxu0 %v687
  %v2224 = vpop.f32.mrf.mxu0
  %v2225 = vadd.f32 %v2136, %v2224
  %v2226 = vpop.f32.mrf.mxu0
  %v2227 = vadd.f32 %v2138, %v2226
  %2228 = vmatmul.bf16.gmra.mxu0 %v694
  %v2229 = vpop.f32.mrf.mxu0
  %v2230 = vadd.f32 %v2141, %v2229
  %v2231 = vpop.f32.mrf.mxu0
  %v2232 = vadd.f32 %v2143, %v2231
  %2233 = vmatmul.bf16.gmra.mxu0 %v701
  %v2234 = vpop.f32.mrf.mxu0
  %v2235 = vadd.f32 %v2146, %v2234
  %v2236 = vpop.f32.mrf.mxu0
  %v2237 = vadd.f32 %v2148, %v2236
  %2238 = vmatmul.bf16.gmra.mxu0 %v708
  %v2239 = vpop.f32.mrf.mxu0
  %v2240 = vadd.f32 %v2151, %v2239
  %v2241 = vpop.f32.mrf.mxu0
  %v2242 = vadd.f32 %v2153, %v2241
  %2243 = vmatmul.bf16.gmra.mxu0 %v715
  %v2244 = vpop.f32.mrf.mxu0
  %v2245 = vadd.f32 %v2156, %v2244
  %v2246 = vpop.f32.mrf.mxu0
  %v2247 = vadd.f32 %v2158, %v2246
  %2248 = vmatmul.bf16.gmra.mxu0 %v722
  %v2249 = vpop.f32.mrf.mxu0
  %v2250 = vadd.f32 %v2161, %v2249
  %v2251 = vpop.f32.mrf.mxu0
  %v2252 = vadd.f32 %v2163, %v2251
  %2253 = vmatmul.bf16.gmra.mxu0 %v729
  %v2254 = vpop.f32.mrf.mxu0
  %v2255 = vadd.f32 %v2166, %v2254
  %v2256 = vpop.f32.mrf.mxu0
  %v2257 = vadd.f32 %v2168, %v2256
  %2258 = vdwg.mxu0
  %2259 = vmatpush.bf16.msra.mxu0 %v1187
  %2260 = vmatpush.bf16.msra.mxu0 %v1185
  %2261 = vmatpush.bf16.msra.mxu0 %v1183
  %2262 = vmatpush.bf16.msra.mxu0 %v1181
  %2263 = vmatpush.bf16.msra.mxu0 %v1179
  %2264 = vmatpush.bf16.msra.mxu0 %v1177
  %2265 = vmatpush.bf16.msra.mxu0 %v1175
  %2266 = vmatpush.bf16.msra.mxu0 %v1173
  %2267 = vmatmul.bf16.gmra.mxu0 %v625
  %v2268 = vpop.f32.mrf.mxu0
  %v2269 = vadd.f32 %v2180, %v2268
  %v2270 = vpop.f32.mrf.mxu0
  %v2271 = vadd.f32 %v2182, %v2270
  %2272 = vmatmul.bf16.gmra.mxu0 %v632
  %v2273 = vpop.f32.mrf.mxu0
  %v2274 = vadd.f32 %v2185, %v2273
  %v2275 = vpop.f32.mrf.mxu0
  %v2276 = vadd.f32 %v2187, %v2275
  %2277 = vmatmul.bf16.gmra.mxu0 %v639
  %v2278 = vpop.f32.mrf.mxu0
  %v2279 = vadd.f32 %v2190, %v2278
  %v2280 = vpop.f32.mrf.mxu0
  %v2281 = vadd.f32 %v2192, %v2280
  %2282 = vmatmul.bf16.gmra.mxu0 %v646
  %v2283 = vpop.f32.mrf.mxu0
  %v2284 = vadd.f32 %v2195, %v2283
  %v2285 = vpop.f32.mrf.mxu0
  %v2286 = vadd.f32 %v2197, %v2285
  %2287 = vmatmul.bf16.gmra.mxu0 %v653
  %v2288 = vpop.f32.mrf.mxu0
  %v2289 = vadd.f32 %v2200, %v2288
  %v2290 = vpop.f32.mrf.mxu0
  %v2291 = vadd.f32 %v2202, %v2290
  %2292 = vmatmul.bf16.gmra.mxu0 %v660
  %v2293 = vpop.f32.mrf.mxu0
  %v2294 = vadd.f32 %v2205, %v2293
  %v2295 = vpop.f32.mrf.mxu0
  %v2296 = vadd.f32 %v2207, %v2295
  %2297 = vmatmul.bf16.gmra.mxu0 %v667
  %v2298 = vpop.f32.mrf.mxu0
  %v2299 = vadd.f32 %v2210, %v2298
  %v2300 = vpop.f32.mrf.mxu0
  %v2301 = vadd.f32 %v2212, %v2300
  %2302 = vmatmul.bf16.gmra.mxu0 %v674
  %v2303 = vpop.f32.mrf.mxu0
  %v2304 = vadd.f32 %v2215, %v2303
  %v2305 = vpop.f32.mrf.mxu0
  %v2306 = vadd.f32 %v2217, %v2305
  %2307 = vmatmul.bf16.gmra.mxu0 %v681
  %v2308 = vpop.f32.mrf.mxu0
  %v2309 = vadd.f32 %v2220, %v2308
  %v2310 = vpop.f32.mrf.mxu0
  %v2311 = vadd.f32 %v2222, %v2310
  %2312 = vmatmul.bf16.gmra.mxu0 %v688
  %v2313 = vpop.f32.mrf.mxu0
  %v2314 = vadd.f32 %v2225, %v2313
  %v2315 = vpop.f32.mrf.mxu0
  %v2316 = vadd.f32 %v2227, %v2315
  %2317 = vmatmul.bf16.gmra.mxu0 %v695
  %v2318 = vpop.f32.mrf.mxu0
  %v2319 = vadd.f32 %v2230, %v2318
  %v2320 = vpop.f32.mrf.mxu0
  %v2321 = vadd.f32 %v2232, %v2320
  %2322 = vmatmul.bf16.gmra.mxu0 %v702
  %v2323 = vpop.f32.mrf.mxu0
  %v2324 = vadd.f32 %v2235, %v2323
  %v2325 = vpop.f32.mrf.mxu0
  %v2326 = vadd.f32 %v2237, %v2325
  %2327 = vmatmul.bf16.gmra.mxu0 %v709
  %v2328 = vpop.f32.mrf.mxu0
  %v2329 = vadd.f32 %v2240, %v2328
  %v2330 = vpop.f32.mrf.mxu0
  %v2331 = vadd.f32 %v2242, %v2330
  %2332 = vmatmul.bf16.gmra.mxu0 %v716
  %v2333 = vpop.f32.mrf.mxu0
  %v2334 = vadd.f32 %v2245, %v2333
  %v2335 = vpop.f32.mrf.mxu0
  %v2336 = vadd.f32 %v2247, %v2335
  %2337 = vmatmul.bf16.gmra.mxu0 %v723
  %v2338 = vpop.f32.mrf.mxu0
  %v2339 = vadd.f32 %v2250, %v2338
  %v2340 = vpop.f32.mrf.mxu0
  %v2341 = vadd.f32 %v2252, %v2340
  %2342 = vmatmul.bf16.gmra.mxu0 %v730
  %v2343 = vpop.f32.mrf.mxu0
  %v2344 = vadd.f32 %v2255, %v2343
  %v2345 = vpop.f32.mrf.mxu0
  %v2346 = vadd.f32 %v2257, %v2345
  %2347 = vdwg.mxu0
  %2348 = vmatpush.bf16.msra.mxu0 %v1203
  %2349 = vmatpush.bf16.msra.mxu0 %v1201
  %2350 = vmatpush.bf16.msra.mxu0 %v1199
  %2351 = vmatpush.bf16.msra.mxu0 %v1197
  %2352 = vmatpush.bf16.msra.mxu0 %v1195
  %2353 = vmatpush.bf16.msra.mxu0 %v1193
  %2354 = vmatpush.bf16.msra.mxu0 %v1191
  %2355 = vmatpush.bf16.msra.mxu0 %v1189
  %2356 = vmatmul.bf16.gmra.mxu0 %v626
  %v2357 = vpop.f32.mrf.mxu0
  %v2358 = vadd.f32 %v2269, %v2357
  %v2359 = vpop.f32.mrf.mxu0
  %v2360 = vadd.f32 %v2271, %v2359
  %2361 = vmatmul.bf16.gmra.mxu0 %v633
  %v2362 = vpop.f32.mrf.mxu0
  %v2363 = vadd.f32 %v2274, %v2362
  %v2364 = vpop.f32.mrf.mxu0
  %v2365 = vadd.f32 %v2276, %v2364
  %2366 = vmatmul.bf16.gmra.mxu0 %v640
  %v2367 = vpop.f32.mrf.mxu0
  %v2368 = vadd.f32 %v2279, %v2367
  %v2369 = vpop.f32.mrf.mxu0
  %v2370 = vadd.f32 %v2281, %v2369
  %2371 = vmatmul.bf16.gmra.mxu0 %v647
  %v2372 = vpop.f32.mrf.mxu0
  %v2373 = vadd.f32 %v2284, %v2372
  %v2374 = vpop.f32.mrf.mxu0
  %v2375 = vadd.f32 %v2286, %v2374
  %2376 = vmatmul.bf16.gmra.mxu0 %v654
  %v2377 = vpop.f32.mrf.mxu0
  %v2378 = vadd.f32 %v2289, %v2377
  %v2379 = vpop.f32.mrf.mxu0
  %v2380 = vadd.f32 %v2291, %v2379
  %2381 = vmatmul.bf16.gmra.mxu0 %v661
  %v2382 = vpop.f32.mrf.mxu0
  %v2383 = vadd.f32 %v2294, %v2382
  %v2384 = vpop.f32.mrf.mxu0
  %v2385 = vadd.f32 %v2296, %v2384
  %2386 = vmatmul.bf16.gmra.mxu0 %v668
  %v2387 = vpop.f32.mrf.mxu0
  %v2388 = vadd.f32 %v2299, %v2387
  %v2389 = vpop.f32.mrf.mxu0
  %v2390 = vadd.f32 %v2301, %v2389
  %2391 = vmatmul.bf16.gmra.mxu0 %v675
  %v2392 = vpop.f32.mrf.mxu0
  %v2393 = vadd.f32 %v2304, %v2392
  %v2394 = vpop.f32.mrf.mxu0
  %v2395 = vadd.f32 %v2306, %v2394
  %2396 = vmatmul.bf16.gmra.mxu0 %v682
  %v2397 = vpop.f32.mrf.mxu0
  %v2398 = vadd.f32 %v2309, %v2397
  %v2399 = vpop.f32.mrf.mxu0
  %v2400 = vadd.f32 %v2311, %v2399
  %2401 = vmatmul.bf16.gmra.mxu0 %v689
  %v2402 = vpop.f32.mrf.mxu0
  %v2403 = vadd.f32 %v2314, %v2402
  %v2404 = vpop.f32.mrf.mxu0
  %v2405 = vadd.f32 %v2316, %v2404
  %2406 = vmatmul.bf16.gmra.mxu0 %v696
  %v2407 = vpop.f32.mrf.mxu0
  %v2408 = vadd.f32 %v2319, %v2407
  %v2409 = vpop.f32.mrf.mxu0
  %v2410 = vadd.f32 %v2321, %v2409
  %2411 = vmatmul.bf16.gmra.mxu0 %v703
  %v2412 = vpop.f32.mrf.mxu0
  %v2413 = vadd.f32 %v2324, %v2412
  %v2414 = vpop.f32.mrf.mxu0
  %v2415 = vadd.f32 %v2326, %v2414
  %2416 = vmatmul.bf16.gmra.mxu0 %v710
  %v2417 = vpop.f32.mrf.mxu0
  %v2418 = vadd.f32 %v2329, %v2417
  %v2419 = vpop.f32.mrf.mxu0
  %v2420 = vadd.f32 %v2331, %v2419
  %2421 = vmatmul.bf16.gmra.mxu0 %v717
  %v2422 = vpop.f32.mrf.mxu0
  %v2423 = vadd.f32 %v2334, %v2422
  %v2424 = vpop.f32.mrf.mxu0
  %v2425 = vadd.f32 %v2336, %v2424
  %2426 = vmatmul.bf16.gmra.mxu0 %v724
  %v2427 = vpop.f32.mrf.mxu0
  %v2428 = vadd.f32 %v2339, %v2427
  %v2429 = vpop.f32.mrf.mxu0
  %v2430 = vadd.f32 %v2341, %v2429
  %2431 = vmatmul.bf16.gmra.mxu0 %v731
  %v2432 = vpop.f32.mrf.mxu0
  %v2433 = vadd.f32 %v2344, %v2432
  %v2434 = vpop.f32.mrf.mxu0
  %v2435 = vadd.f32 %v2346, %v2434
  %2436 = vdwg.mxu0
  %2437 = vmatpush.bf16.msra.mxu0 %v1219
  %2438 = vmatpush.bf16.msra.mxu0 %v1217
  %2439 = vmatpush.bf16.msra.mxu0 %v1215
  %2440 = vmatpush.bf16.msra.mxu0 %v1213
  %2441 = vmatpush.bf16.msra.mxu0 %v1211
  %2442 = vmatpush.bf16.msra.mxu0 %v1209
  %2443 = vmatpush.bf16.msra.mxu0 %v1207
  %2444 = vmatpush.bf16.msra.mxu0 %v1205
  %2445 = vmatmul.bf16.gmra.mxu0 %v627
  %v2446 = vpop.f32.mrf.mxu0
  %v2447 = vadd.f32 %v2358, %v2446
  %v2448 = vpop.f32.mrf.mxu0
  %v2449 = vadd.f32 %v2360, %v2448
  %2450 = vmatmul.bf16.gmra.mxu0 %v634
  %v2451 = vpop.f32.mrf.mxu0
  %v2452 = vadd.f32 %v2363, %v2451
  %v2453 = vpop.f32.mrf.mxu0
  %v2454 = vadd.f32 %v2365, %v2453
  %2455 = vmatmul.bf16.gmra.mxu0 %v641
  %v2456 = vpop.f32.mrf.mxu0
  %v2457 = vadd.f32 %v2368, %v2456
  %v2458 = vpop.f32.mrf.mxu0
  %v2459 = vadd.f32 %v2370, %v2458
  %2460 = vmatmul.bf16.gmra.mxu0 %v648
  %v2461 = vpop.f32.mrf.mxu0
  %v2462 = vadd.f32 %v2373, %v2461
  %v2463 = vpop.f32.mrf.mxu0
  %v2464 = vadd.f32 %v2375, %v2463
  %2465 = vmatmul.bf16.gmra.mxu0 %v655
  %v2466 = vpop.f32.mrf.mxu0
  %v2467 = vadd.f32 %v2378, %v2466
  %v2468 = vpop.f32.mrf.mxu0
  %v2469 = vadd.f32 %v2380, %v2468
  %2470 = vmatmul.bf16.gmra.mxu0 %v662
  %v2471 = vpop.f32.mrf.mxu0
  %v2472 = vadd.f32 %v2383, %v2471
  %v2473 = vpop.f32.mrf.mxu0
  %v2474 = vadd.f32 %v2385, %v2473
  %2475 = vmatmul.bf16.gmra.mxu0 %v669
  %v2476 = vpop.f32.mrf.mxu0
  %v2477 = vadd.f32 %v2388, %v2476
  %v2478 = vpop.f32.mrf.mxu0
  %v2479 = vadd.f32 %v2390, %v2478
  %2480 = vmatmul.bf16.gmra.mxu0 %v676
  %v2481 = vpop.f32.mrf.mxu0
  %v2482 = vadd.f32 %v2393, %v2481
  %v2483 = vpop.f32.mrf.mxu0
  %v2484 = vadd.f32 %v2395, %v2483
  %2485 = vmatmul.bf16.gmra.mxu0 %v683
  %v2486 = vpop.f32.mrf.mxu0
  %v2487 = vadd.f32 %v2398, %v2486
  %v2488 = vpop.f32.mrf.mxu0
  %v2489 = vadd.f32 %v2400, %v2488
  %2490 = vmatmul.bf16.gmra.mxu0 %v690
  %v2491 = vpop.f32.mrf.mxu0
  %v2492 = vadd.f32 %v2403, %v2491
  %v2493 = vpop.f32.mrf.mxu0
  %v2494 = vadd.f32 %v2405, %v2493
  %2495 = vmatmul.bf16.gmra.mxu0 %v697
  %v2496 = vpop.f32.mrf.mxu0
  %v2497 = vadd.f32 %v2408, %v2496
  %v2498 = vpop.f32.mrf.mxu0
  %v2499 = vadd.f32 %v2410, %v2498
  %2500 = vmatmul.bf16.gmra.mxu0 %v704
  %v2501 = vpop.f32.mrf.mxu0
  %v2502 = vadd.f32 %v2413, %v2501
  %v2503 = vpop.f32.mrf.mxu0
  %v2504 = vadd.f32 %v2415, %v2503
  %2505 = vmatmul.bf16.gmra.mxu0 %v711
  %v2506 = vpop.f32.mrf.mxu0
  %v2507 = vadd.f32 %v2418, %v2506
  %v2508 = vpop.f32.mrf.mxu0
  %v2509 = vadd.f32 %v2420, %v2508
  %2510 = vmatmul.bf16.gmra.mxu0 %v718
  %v2511 = vpop.f32.mrf.mxu0
  %v2512 = vadd.f32 %v2423, %v2511
  %v2513 = vpop.f32.mrf.mxu0
  %v2514 = vadd.f32 %v2425, %v2513
  %2515 = vmatmul.bf16.gmra.mxu0 %v725
  %v2516 = vpop.f32.mrf.mxu0
  %v2517 = vadd.f32 %v2428, %v2516
  %v2518 = vpop.f32.mrf.mxu0
  %v2519 = vadd.f32 %v2430, %v2518
  %2520 = vmatmul.bf16.gmra.mxu0 %v732
  %v2521 = vpop.f32.mrf.mxu0
  %v2522 = vadd.f32 %v2433, %v2521
  %v2523 = vpop.f32.mrf.mxu0
  %v2524 = vadd.f32 %v2435, %v2523
  %2525 = vdwg.mxu0
  %2526 = vmatpush.bf16.msra.mxu0 0
  %2527 = vmatpush.bf16.msra.mxu0 0
  %2528 = vmatpush.bf16.msra.mxu0 0
  %2529 = vmatpush.bf16.msra.mxu0 0
  %2530 = vmatpush.bf16.msra.mxu0 0
  %2531 = vmatpush.bf16.msra.mxu0 0
  %2532 = vmatpush.bf16.msra.mxu0 0
  %2533 = vmatpush.bf16.msra.mxu0 %v1221
  %2534 = vmatmul.bf16.gmra.mxu0 %v1322
  %v2535 = vpop.f32.mrf.mxu0
  %v2536 = vadd.f32 %v2447, %v2535
  %v2537 = vpop.f32.mrf.mxu0
  %v2538 = vadd.f32 %v2449, %v2537
  %2539 = vmatmul.bf16.gmra.mxu0 %v1325
  %v2540 = vpop.f32.mrf.mxu0
  %v2541 = vadd.f32 %v2452, %v2540
  %v2542 = vpop.f32.mrf.mxu0
  %v2543 = vadd.f32 %v2454, %v2542
  %2544 = vmatmul.bf16.gmra.mxu0 %v1328
  %v2545 = vpop.f32.mrf.mxu0
  %v2546 = vadd.f32 %v2457, %v2545
  %v2547 = vpop.f32.mrf.mxu0
  %v2548 = vadd.f32 %v2459, %v2547
  %2549 = vmatmul.bf16.gmra.mxu0 %v1331
  %v2550 = vpop.f32.mrf.mxu0
  %v2551 = vadd.f32 %v2462, %v2550
  %v2552 = vpop.f32.mrf.mxu0
  %v2553 = vadd.f32 %v2464, %v2552
  %2554 = vmatmul.bf16.gmra.mxu0 %v1334
  %v2555 = vpop.f32.mrf.mxu0
  %v2556 = vadd.f32 %v2467, %v2555
  %v2557 = vpop.f32.mrf.mxu0
  %v2558 = vadd.f32 %v2469, %v2557
  %2559 = vmatmul.bf16.gmra.mxu0 %v1337
  %v2560 = vpop.f32.mrf.mxu0
  %v2561 = vadd.f32 %v2472, %v2560
  %v2562 = vpop.f32.mrf.mxu0
  %v2563 = vadd.f32 %v2474, %v2562
  %2564 = vmatmul.bf16.gmra.mxu0 %v1340
  %v2565 = vpop.f32.mrf.mxu0
  %v2566 = vadd.f32 %v2477, %v2565
  %v2567 = vpop.f32.mrf.mxu0
  %v2568 = vadd.f32 %v2479, %v2567
  %2569 = vmatmul.bf16.gmra.mxu0 %v1343
  %v2570 = vpop.f32.mrf.mxu0
  %v2571 = vadd.f32 %v2482, %v2570
  %v2572 = vpop.f32.mrf.mxu0
  %v2573 = vadd.f32 %v2484, %v2572
  %2574 = vmatmul.bf16.gmra.mxu0 %v1346
  %v2575 = vpop.f32.mrf.mxu0
  %v2576 = vadd.f32 %v2487, %v2575
  %v2577 = vpop.f32.mrf.mxu0
  %v2578 = vadd.f32 %v2489, %v2577
  %2579 = vmatmul.bf16.gmra.mxu0 %v1349
  %v2580 = vpop.f32.mrf.mxu0
  %v2581 = vadd.f32 %v2492, %v2580
  %v2582 = vpop.f32.mrf.mxu0
  %v2583 = vadd.f32 %v2494, %v2582
  %2584 = vmatmul.bf16.gmra.mxu0 %v1352
  %v2585 = vpop.f32.mrf.mxu0
  %v2586 = vadd.f32 %v2497, %v2585
  %v2587 = vpop.f32.mrf.mxu0
  %v2588 = vadd.f32 %v2499, %v2587
  %2589 = vmatmul.bf16.gmra.mxu0 %v1355
  %v2590 = vpop.f32.mrf.mxu0
  %v2591 = vadd.f32 %v2502, %v2590
  %v2592 = vpop.f32.mrf.mxu0
  %v2593 = vadd.f32 %v2504, %v2592
  %2594 = vmatmul.bf16.gmra.mxu0 %v1358
  %v2595 = vpop.f32.mrf.mxu0
  %v2596 = vadd.f32 %v2507, %v2595
  %v2597 = vpop.f32.mrf.mxu0
  %v2598 = vadd.f32 %v2509, %v2597
  %2599 = vmatmul.bf16.gmra.mxu0 %v1361
  %v2600 = vpop.f32.mrf.mxu0
  %v2601 = vadd.f32 %v2512, %v2600
  %v2602 = vpop.f32.mrf.mxu0
  %v2603 = vadd.f32 %v2514, %v2602
  %2604 = vmatmul.bf16.gmra.mxu0 %v1364
  %v2605 = vpop.f32.mrf.mxu0
  %v2606 = vadd.f32 %v2517, %v2605
  %v2607 = vpop.f32.mrf.mxu0
  %v2608 = vadd.f32 %v2519, %v2607
  %2609 = vmatmul.bf16.gmra.mxu0 %v1367
  %v2610 = vpop.f32.mrf.mxu0
  %v2611 = vadd.f32 %v2522, %v2610
  %v2612 = vpop.f32.mrf.mxu0
  %v2613 = vadd.f32 %v2524, %v2612
  %2614 = vdwg.mxu0
  %v2615 = vmax.f32 %v1913, 0.0
  %v2616 = vmax.f32 %v2536, 0.0
  %v2617 = vmax.f32 %v1915, 0.0
  %v2618 = vmax.f32 %v2538, 0.0
  %v2619 = vmax.f32 %v1918, 0.0
  %v2620 = vmax.f32 %v2541, 0.0
  %v2621 = vmax.f32 %v1920, 0.0
  %v2622 = vmax.f32 %v2543, 0.0
  %v2623 = vmax.f32 %v1923, 0.0
  %v2624 = vmax.f32 %v2546, 0.0
  %v2625 = vmax.f32 %v1925, 0.0
  %v2626 = vmax.f32 %v2548, 0.0
  %v2627 = vmax.f32 %v1928, 0.0
  %v2628 = vmax.f32 %v2551, 0.0
  %v2629 = vmax.f32 %v1930, 0.0
  %v2630 = vmax.f32 %v2553, 0.0
  %v2631 = vmax.f32 %v1933, 0.0
  %v2632 = vmax.f32 %v2556, 0.0
  %v2633 = vmax.f32 %v1935, 0.0
  %v2634 = vmax.f32 %v2558, 0.0
  %v2635 = vmax.f32 %v1938, 0.0
  %v2636 = vmax.f32 %v2561, 0.0
  %v2637 = vmax.f32 %v1940, 0.0
  %v2638 = vmax.f32 %v2563, 0.0
  %v2639 = vmax.f32 %v1943, 0.0
  %v2640 = vmax.f32 %v2566, 0.0
  %v2641 = vmax.f32 %v1945, 0.0
  %v2642 = vmax.f32 %v2568, 0.0
  %v2643 = vmax.f32 %v1948, 0.0
  %v2644 = vmax.f32 %v2571, 0.0
  %v2645 = vmax.f32 %v1950, 0.0
  %v2646 = vmax.f32 %v2573, 0.0
  %v2647 = vmax.f32 %v1953, 0.0
  %v2648 = vmax.f32 %v2576, 0.0
  %v2649 = vmax.f32 %v1955, 0.0
  %v2650 = vmax.f32 %v2578, 0.0
  %v2651 = vmax.f32 %v1958, 0.0
  %v2652 = vmax.f32 %v2581, 0.0
  %v2653 = vmax.f32 %v1960, 0.0
  %v2654 = vmax.f32 %v2583, 0.0
  %v2655 = vmax.f32 %v1963, 0.0
  %v2656 = vmax.f32 %v2586, 0.0
  %v2657 = vmax.f32 %v1965, 0.0
  %v2658 = vmax.f32 %v2588, 0.0
  %v2659 = vmax.f32 %v1968, 0.0
  %v2660 = vmax.f32 %v2591, 0.0
  %v2661 = vmax.f32 %v1970, 0.0
  %v2662 = vmax.f32 %v2593, 0.0
  %v2663 = vmax.f32 %v1973, 0.0
  %v2664 = vmax.f32 %v2596, 0.0
  %v2665 = vmax.f32 %v1975, 0.0
  %v2666 = vmax.f32 %v2598, 0.0
  %v2667 = vmax.f32 %v1978, 0.0
  %v2668 = vmax.f32 %v2601, 0.0
  %v2669 = vmax.f32 %v1980, 0.0
  %v2670 = vmax.f32 %v2603, 0.0
  %v2671 = vmax.f32 %v1983, 0.0
  %v2672 = vmax.f32 %v2606, 0.0
  %v2673 = vmax.f32 %v1985, 0.0
  %v2674 = vmax.f32 %v2608, 0.0
  %v2675 = vmax.f32 %v1988, 0.0
  %v2676 = vmax.f32 %v2611, 0.0
  %v2677 = vmax.f32 %v1990, 0.0
  %v2678 = vmax.f32 %v2613, 0.0
  %v2679 = vadd.f32 %v2615, %v2617
  %v2680 = vadd.f32 %v2679, %v2619
  %v2681 = vadd.f32 %v2680, %v2621
  %v2682 = vadd.f32 %v2681, %v2623
  %v2683 = vadd.f32 %v2682, %v2625
  %v2684 = vadd.f32 %v2683, %v2627
  %v2685 = vadd.f32 %v2684, %v2629
  %v2686 = vadd.f32 %v2685, %v2631
  %v2687 = vadd.f32 %v2686, %v2633
  %v2688 = vadd.f32 %v2687, %v2635
  %v2689 = vadd.f32 %v2688, %v2637
  %v2690 = vadd.f32 %v2689, %v2639
  %v2691 = vadd.f32 %v2690, %v2641
  %v2692 = vadd.f32 %v2691, %v2643
  %v2693 = vadd.f32 %v2692, %v2645
  %v2694 = vadd.f32 %v2693, %v2647
  %v2695 = vadd.f32 %v2694, %v2649
  %v2696 = vadd.f32 %v2695, %v2651
  %v2697 = vadd.f32 %v2696, %v2653
  %v2698 = vadd.f32 %v2697, %v2655
  %v2699 = vadd.f32 %v2698, %v2657
  %v2700 = vadd.f32 %v2699, %v2659
  %v2701 = vadd.f32 %v2700, %v2661
  %v2702 = vadd.f32 %v2701, %v2663
  %v2703 = vadd.f32 %v2702, %v2665
  %v2704 = vadd.f32 %v2703, %v2667
  %v2705 = vadd.f32 %v2704, %v2669
  %v2706 = vadd.f32 %v2705, %v2671
  %v2707 = vadd.f32 %v2706, %v2673
  %v2708 = vadd.f32 %v2707, %v2675
  %v2709 = vadd.f32 %v2708, %v2677
  %v2710 = vrot.slane %v2709, 4
  %v2711 = vadd.f32 %v2709, %v2710
  %v2712 = vrot.slane %v2711, 2
  %v2713 = vadd.f32 %v2711, %v2712
  %v2714 = vrot.slane %v2713, 1
  %v2715 = vadd.f32 %v2713, %v2714
  %v2716 = vadd.f32 %v2616, %v2618
  %v2717 = vadd.f32 %v2716, %v2620
  %v2718 = vadd.f32 %v2717, %v2622
  %v2719 = vadd.f32 %v2718, %v2624
  %v2720 = vadd.f32 %v2719, %v2626
  %v2721 = vadd.f32 %v2720, %v2628
  %v2722 = vadd.f32 %v2721, %v2630
  %v2723 = vadd.f32 %v2722, %v2632
  %v2724 = vadd.f32 %v2723, %v2634
  %v2725 = vadd.f32 %v2724, %v2636
  %v2726 = vadd.f32 %v2725, %v2638
  %v2727 = vadd.f32 %v2726, %v2640
  %v2728 = vadd.f32 %v2727, %v2642
  %v2729 = vadd.f32 %v2728, %v2644
  %v2730 = vadd.f32 %v2729, %v2646
  %v2731 = vadd.f32 %v2730, %v2648
  %v2732 = vadd.f32 %v2731, %v2650
  %v2733 = vadd.f32 %v2732, %v2652
  %v2734 = vadd.f32 %v2733, %v2654
  %v2735 = vadd.f32 %v2734, %v2656
  %v2736 = vadd.f32 %v2735, %v2658
  %v2737 = vadd.f32 %v2736, %v2660
  %v2738 = vadd.f32 %v2737, %v2662
  %v2739 = vadd.f32 %v2738, %v2664
  %v2740 = vadd.f32 %v2739, %v2666
  %v2741 = vadd.f32 %v2740, %v2668
  %v2742 = vadd.f32 %v2741, %v2670
  %v2743 = vadd.f32 %v2742, %v2672
  %v2744 = vadd.f32 %v2743, %v2674
  %v2745 = vadd.f32 %v2744, %v2676
  %v2746 = vadd.f32 %v2745, %v2678
  %v2747 = vrot.slane %v2746, 4
  %v2748 = vadd.f32 %v2746, %v2747
  %v2749 = vrot.slane %v2748, 2
  %v2750 = vadd.f32 %v2748, %v2749
  %v2751 = vrot.slane %v2750, 1
  %v2752 = vadd.f32 %v2750, %v2751
  %v2753 = vmul.f32 %v2615, %v2615
  %v2754 = vmul.f32 %v2616, %v2616
  %v2755 = vmul.f32 %v2617, %v2617
  %v2756 = vmul.f32 %v2618, %v2618
  %v2757 = vmul.f32 %v2619, %v2619
  %v2758 = vmul.f32 %v2620, %v2620
  %v2759 = vmul.f32 %v2621, %v2621
  %v2760 = vmul.f32 %v2622, %v2622
  %v2761 = vmul.f32 %v2623, %v2623
  %v2762 = vmul.f32 %v2624, %v2624
  %v2763 = vmul.f32 %v2625, %v2625
  %v2764 = vmul.f32 %v2626, %v2626
  %v2765 = vmul.f32 %v2627, %v2627
  %v2766 = vmul.f32 %v2628, %v2628
  %v2767 = vmul.f32 %v2629, %v2629
  %v2768 = vmul.f32 %v2630, %v2630
  %v2769 = vmul.f32 %v2631, %v2631
  %v2770 = vmul.f32 %v2632, %v2632
  %v2771 = vmul.f32 %v2633, %v2633
  %v2772 = vmul.f32 %v2634, %v2634
  %v2773 = vmul.f32 %v2635, %v2635
  %v2774 = vmul.f32 %v2636, %v2636
  %v2775 = vmul.f32 %v2637, %v2637
  %v2776 = vmul.f32 %v2638, %v2638
  %v2777 = vmul.f32 %v2639, %v2639
  %v2778 = vmul.f32 %v2640, %v2640
  %v2779 = vmul.f32 %v2641, %v2641
  %v2780 = vmul.f32 %v2642, %v2642
  %v2781 = vmul.f32 %v2643, %v2643
  %v2782 = vmul.f32 %v2644, %v2644
  %v2783 = vmul.f32 %v2645, %v2645
  %v2784 = vmul.f32 %v2646, %v2646
  %v2785 = vmul.f32 %v2647, %v2647
  %v2786 = vmul.f32 %v2648, %v2648
  %v2787 = vmul.f32 %v2649, %v2649
  %v2788 = vmul.f32 %v2650, %v2650
  %v2789 = vmul.f32 %v2651, %v2651
  %v2790 = vmul.f32 %v2652, %v2652
  %v2791 = vmul.f32 %v2653, %v2653
  %v2792 = vmul.f32 %v2654, %v2654
  %v2793 = vmul.f32 %v2655, %v2655
  %v2794 = vmul.f32 %v2656, %v2656
  %v2795 = vmul.f32 %v2657, %v2657
  %v2796 = vmul.f32 %v2658, %v2658
  %v2797 = vmul.f32 %v2659, %v2659
  %v2798 = vmul.f32 %v2660, %v2660
  %v2799 = vmul.f32 %v2661, %v2661
  %v2800 = vmul.f32 %v2662, %v2662
  %v2801 = vmul.f32 %v2663, %v2663
  %v2802 = vmul.f32 %v2664, %v2664
  %v2803 = vmul.f32 %v2665, %v2665
  %v2804 = vmul.f32 %v2666, %v2666
  %v2805 = vmul.f32 %v2667, %v2667
  %v2806 = vmul.f32 %v2668, %v2668
  %v2807 = vmul.f32 %v2669, %v2669
  %v2808 = vmul.f32 %v2670, %v2670
  %v2809 = vmul.f32 %v2671, %v2671
  %v2810 = vmul.f32 %v2672, %v2672
  %v2811 = vmul.f32 %v2673, %v2673
  %v2812 = vmul.f32 %v2674, %v2674
  %v2813 = vmul.f32 %v2675, %v2675
  %v2814 = vmul.f32 %v2676, %v2676
  %v2815 = vmul.f32 %v2677, %v2677
  %v2816 = vmul.f32 %v2678, %v2678
  %v2817 = vadd.f32 %v2753, %v2755
  %v2818 = vadd.f32 %v2817, %v2757
  %v2819 = vadd.f32 %v2818, %v2759
  %v2820 = vadd.f32 %v2819, %v2761
  %v2821 = vadd.f32 %v2820, %v2763
  %v2822 = vadd.f32 %v2821, %v2765
  %v2823 = vadd.f32 %v2822, %v2767
  %v2824 = vadd.f32 %v2823, %v2769
  %v2825 = vadd.f32 %v2824, %v2771
  %v2826 = vadd.f32 %v2825, %v2773
  %v2827 = vadd.f32 %v2826, %v2775
  %v2828 = vadd.f32 %v2827, %v2777
  %v2829 = vadd.f32 %v2828, %v2779
  %v2830 = vadd.f32 %v2829, %v2781
  %v2831 = vadd.f32 %v2830, %v2783
  %v2832 = vadd.f32 %v2831, %v2785
  %v2833 = vadd.f32 %v2832, %v2787
  %v2834 = vadd.f32 %v2833, %v2789
  %v2835 = vadd.f32 %v2834, %v2791
  %v2836 = vadd.f32 %v2835, %v2793
  %v2837 = vadd.f32 %v2836, %v2795
  %v2838 = vadd.f32 %v2837, %v2797
  %v2839 = vadd.f32 %v2838, %v2799
  %v2840 = vadd.f32 %v2839, %v2801
  %v2841 = vadd.f32 %v2840, %v2803
  %v2842 = vadd.f32 %v2841, %v2805
  %v2843 = vadd.f32 %v2842, %v2807
  %v2844 = vadd.f32 %v2843, %v2809
  %v2845 = vadd.f32 %v2844, %v2811
  %v2846 = vadd.f32 %v2845, %v2813
  %v2847 = vadd.f32 %v2846, %v2815
  %v2848 = vrot.slane %v2847, 4
  %v2849 = vadd.f32 %v2847, %v2848
  %v2850 = vrot.slane %v2849, 2
  %v2851 = vadd.f32 %v2849, %v2850
  %v2852 = vrot.slane %v2851, 1
  %v2853 = vadd.f32 %v2851, %v2852
  %v2854 = vadd.f32 %v2754, %v2756
  %v2855 = vadd.f32 %v2854, %v2758
  %v2856 = vadd.f32 %v2855, %v2760
  %v2857 = vadd.f32 %v2856, %v2762
  %v2858 = vadd.f32 %v2857, %v2764
  %v2859 = vadd.f32 %v2858, %v2766
  %v2860 = vadd.f32 %v2859, %v2768
  %v2861 = vadd.f32 %v2860, %v2770
  %v2862 = vadd.f32 %v2861, %v2772
  %v2863 = vadd.f32 %v2862, %v2774
  %v2864 = vadd.f32 %v2863, %v2776
  %v2865 = vadd.f32 %v2864, %v2778
  %v2866 = vadd.f32 %v2865, %v2780
  %v2867 = vadd.f32 %v2866, %v2782
  %v2868 = vadd.f32 %v2867, %v2784
  %v2869 = vadd.f32 %v2868, %v2786
  %v2870 = vadd.f32 %v2869, %v2788
  %v2871 = vadd.f32 %v2870, %v2790
  %v2872 = vadd.f32 %v2871, %v2792
  %v2873 = vadd.f32 %v2872, %v2794
  %v2874 = vadd.f32 %v2873, %v2796
  %v2875 = vadd.f32 %v2874, %v2798
  %v2876 = vadd.f32 %v2875, %v2800
  %v2877 = vadd.f32 %v2876, %v2802
  %v2878 = vadd.f32 %v2877, %v2804
  %v2879 = vadd.f32 %v2878, %v2806
  %v2880 = vadd.f32 %v2879, %v2808
  %v2881 = vadd.f32 %v2880, %v2810
  %v2882 = vadd.f32 %v2881, %v2812
  %v2883 = vadd.f32 %v2882, %v2814
  %v2884 = vadd.f32 %v2883, %v2816
  %v2885 = vrot.slane %v2884, 4
  %v2886 = vadd.f32 %v2884, %v2885
  %v2887 = vrot.slane %v2886, 2
  %v2888 = vadd.f32 %v2886, %v2887
  %v2889 = vrot.slane %v2888, 1
  %v2890 = vadd.f32 %v2888, %v2889
  %v2891 = vmul.f32 %v2715, 0.00390625
  %v2892 = vmul.f32 %v2752, 0.00390625
  %v2893 = vmul.f32 %v2853, 0.00390625
  %v2894 = vmul.f32 %v2890, 0.00390625
  %v2895 = vmul.f32 %v2891, %v2891
  %v2896 = vmul.f32 %v2892, %v2892
  %v2897 = vsub.f32 %v2893, %v2895
  %v2898 = vsub.f32 %v2894, %v2896
  %v2899 = vmax.f32 %v2897, 0.0
  %v2900 = vmax.f32 %v2898, 0.0
  %v2901 = vld [vmem:[%s9 + $0x2] sm:$0x3]
  %v2902 = vadd.f32 %v2899, 1e-05
  %v2903 = vadd.f32 %v2900, 1e-05
  %v2904 = vrsqrt.pop %v2902
  %v2905 = vmul.f32 %v2904, %v2902
  %v2906 = vmul.f32 %v2905, %v2904
  %v2907 = vmul.f32 0.5, %v2906
  %v2908 = vsub.f32 1.5, %v2907
  %v2909 = vmul.f32 %v2904, %v2908
  %vm2910 = vweird.f32 %v2902
  %vm2911 = vweird.f32 %v2904
  %vm2912 = vmor %vm2910, %vm2911
  %v2913 = vsel %vm2912, %v2904, %v2909
  %v2914 = vrsqrt.pop %v2903
  %v2915 = vmul.f32 %v2914, %v2903
  %v2916 = vmul.f32 %v2915, %v2914
  %v2917 = vmul.f32 0.5, %v2916
  %v2918 = vsub.f32 1.5, %v2917
  %v2919 = vmul.f32 %v2914, %v2918
  %vm2920 = vweird.f32 %v2903
  %vm2921 = vweird.f32 %v2914
  %vm2922 = vmor %vm2920, %vm2921
  %v2923 = vsel %vm2922, %v2914, %v2919
  %v2926 = vrot.slane %v2923, 7
  %vm2927 = vcmask 1040384
  %v2928 = vsel %vm2927, %v2913, %v2926
  %v2930 = vmul.f32 %v2901, %v2928
  %v2931 = vld [vmem:[%s9 + $0x4] sm:$0x3]
  %v2933 = vperm.slane %v2930, 0
  %v2934 = vperm.slane %v2930, 1
  %v2937 = vmul.f32 %v2891, %v2933
  %v2938 = vmul.f32 %v2892, %v2934
  %v2941 = vrot.slane %v2938, 7
  %v2942 = vsel %vm2927, %v2937, %v2941
  %v2944 = vsub.f32 %v2931, %v2942
  %v2945 = vmul.f32 %v2615, %v2933
  %v2946 = vmul.f32 %v2616, %v2934
  %v2947 = vmul.f32 %v2617, %v2933
  %v2948 = vmul.f32 %v2618, %v2934
  %v2949 = vmul.f32 %v2619, %v2933
  %v2950 = vmul.f32 %v2620, %v2934
  %v2951 = vmul.f32 %v2621, %v2933
  %v2952 = vmul.f32 %v2622, %v2934
  %v2953 = vmul.f32 %v2623, %v2933
  %v2954 = vmul.f32 %v2624, %v2934
  %v2955 = vmul.f32 %v2625, %v2933
  %v2956 = vmul.f32 %v2626, %v2934
  %v2957 = vmul.f32 %v2627, %v2933
  %v2958 = vmul.f32 %v2628, %v2934
  %v2959 = vmul.f32 %v2629, %v2933
  %v2960 = vmul.f32 %v2630, %v2934
  %v2961 = vmul.f32 %v2631, %v2933
  %v2962 = vmul.f32 %v2632, %v2934
  %v2963 = vmul.f32 %v2633, %v2933
  %v2964 = vmul.f32 %v2634, %v2934
  %v2965 = vmul.f32 %v2635, %v2933
  %v2966 = vmul.f32 %v2636, %v2934
  %v2967 = vmul.f32 %v2637, %v2933
  %v2968 = vmul.f32 %v2638, %v2934
  %v2969 = vmul.f32 %v2639, %v2933
  %v2970 = vmul.f32 %v2640, %v2934
  %v2971 = vmul.f32 %v2641, %v2933
  %v2972 = vmul.f32 %v2642, %v2934
  %v2973 = vmul.f32 %v2643, %v2933
  %v2974 = vmul.f32 %v2644, %v2934
  %v2975 = vmul.f32 %v2645, %v2933
  %v2976 = vmul.f32 %v2646, %v2934
  %v2977 = vmul.f32 %v2647, %v2933
  %v2978 = vmul.f32 %v2648, %v2934
  %v2979 = vmul.f32 %v2649, %v2933
  %v2980 = vmul.f32 %v2650, %v2934
  %v2981 = vmul.f32 %v2651, %v2933
  %v2982 = vmul.f32 %v2652, %v2934
  %v2983 = vmul.f32 %v2653, %v2933
  %v2984 = vmul.f32 %v2654, %v2934
  %v2985 = vmul.f32 %v2655, %v2933
  %v2986 = vmul.f32 %v2656, %v2934
  %v2987 = vmul.f32 %v2657, %v2933
  %v2988 = vmul.f32 %v2658, %v2934
  %v2989 = vmul.f32 %v2659, %v2933
  %v2990 = vmul.f32 %v2660, %v2934
  %v2991 = vmul.f32 %v2661, %v2933
  %v2992 = vmul.f32 %v2662, %v2934
  %v2993 = vmul.f32 %v2663, %v2933
  %v2994 = vmul.f32 %v2664, %v2934
  %v2995 = vmul.f32 %v2665, %v2933
  %v2996 = vmul.f32 %v2666, %v2934
  %v2997 = vmul.f32 %v2667, %v2933
  %v2998 = vmul.f32 %v2668, %v2934
  %v2999 = vmul.f32 %v2669, %v2933
  %v3000 = vmul.f32 %v2670, %v2934
  %v3001 = vmul.f32 %v2671, %v2933
  %v3002 = vmul.f32 %v2672, %v2934
  %v3003 = vmul.f32 %v2673, %v2933
  %v3004 = vmul.f32 %v2674, %v2934
  %v3005 = vmul.f32 %v2675, %v2933
  %v3006 = vmul.f32 %v2676, %v2934
  %v3007 = vmul.f32 %v2677, %v2933
  %v3008 = vmul.f32 %v2678, %v2934
  %v3010 = vperm.slane %v2944, 0
  %v3011 = vperm.slane %v2944, 1
  %v3014 = vadd.f32 %v2945, %v3010
  %v3015 = vadd.f32 %v2946, %v3011
  %v3016 = vadd.f32 %v2947, %v3010
  %v3017 = vadd.f32 %v2948, %v3011
  %v3018 = vadd.f32 %v2949, %v3010
  %v3019 = vadd.f32 %v2950, %v3011
  %v3020 = vadd.f32 %v2951, %v3010
  %v3021 = vadd.f32 %v2952, %v3011
  %v3022 = vadd.f32 %v2953, %v3010
  %v3023 = vadd.f32 %v2954, %v3011
  %v3024 = vadd.f32 %v2955, %v3010
  %v3025 = vadd.f32 %v2956, %v3011
  %v3026 = vadd.f32 %v2957, %v3010
  %v3027 = vadd.f32 %v2958, %v3011
  %v3028 = vadd.f32 %v2959, %v3010
  %v3029 = vadd.f32 %v2960, %v3011
  %v3030 = vadd.f32 %v2961, %v3010
  %v3031 = vadd.f32 %v2962, %v3011
  %v3032 = vadd.f32 %v2963, %v3010
  %v3033 = vadd.f32 %v2964, %v3011
  %v3034 = vadd.f32 %v2965, %v3010
  %v3035 = vadd.f32 %v2966, %v3011
  %v3036 = vadd.f32 %v2967, %v3010
  %v3037 = vadd.f32 %v2968, %v3011
  %v3038 = vadd.f32 %v2969, %v3010
  %v3039 = vadd.f32 %v2970, %v3011
  %v3040 = vadd.f32 %v2971, %v3010
  %v3041 = vadd.f32 %v2972, %v3011
  %v3042 = vadd.f32 %v2973, %v3010
  %v3043 = vadd.f32 %v2974, %v3011
  %v3044 = vadd.f32 %v2975, %v3010
  %v3045 = vadd.f32 %v2976, %v3011
  %v3046 = vadd.f32 %v2977, %v3010
  %v3047 = vadd.f32 %v2978, %v3011
  %v3048 = vadd.f32 %v2979, %v3010
  %v3049 = vadd.f32 %v2980, %v3011
  %v3050 = vadd.f32 %v2981, %v3010
  %v3051 = vadd.f32 %v2982, %v3011
  %v3052 = vadd.f32 %v2983, %v3010
  %v3053 = vadd.f32 %v2984, %v3011
  %v3054 = vadd.f32 %v2985, %v3010
  %v3055 = vadd.f32 %v2986, %v3011
  %v3056 = vadd.f32 %v2987, %v3010
  %v3057 = vadd.f32 %v2988, %v3011
  %v3058 = vadd.f32 %v2989, %v3010
  %v3059 = vadd.f32 %v2990, %v3011
  %v3060 = vadd.f32 %v2991, %v3010
  %v3061 = vadd.f32 %v2992, %v3011
  %v3062 = vadd.f32 %v2993, %v3010
  %v3063 = vadd.f32 %v2994, %v3011
  %v3064 = vadd.f32 %v2995, %v3010
  %v3065 = vadd.f32 %v2996, %v3011
  %v3066 = vadd.f32 %v2997, %v3010
  %v3067 = vadd.f32 %v2998, %v3011
  %v3068 = vadd.f32 %v2999, %v3010
  %v3069 = vadd.f32 %v3000, %v3011
  %v3070 = vadd.f32 %v3001, %v3010
  %v3071 = vadd.f32 %v3002, %v3011
  %v3072 = vadd.f32 %v3003, %v3010
  %v3073 = vadd.f32 %v3004, %v3011
  %v3074 = vadd.f32 %v3005, %v3010
  %v3075 = vadd.f32 %v3006, %v3011
  %v3076 = vadd.f32 %v3007, %v3010
  %v3077 = vadd.f32 %v3008, %v3011
  %v3078 = vpack.c.bf16 %v3016, %v3014
  %v3079 = vpack.c.bf16 %v3017, %v3015
  %v3080 = vpack.c.bf16 %v3020, %v3018
  %v3081 = vpack.c.bf16 %v3021, %v3019
  %v3082 = vpack.c.bf16 %v3024, %v3022
  %v3083 = vpack.c.bf16 %v3025, %v3023
  %v3084 = vpack.c.bf16 %v3028, %v3026
  %v3085 = vpack.c.bf16 %v3029, %v3027
  %v3086 = vpack.c.bf16 %v3032, %v3030
  %v3087 = vpack.c.bf16 %v3033, %v3031
  %v3088 = vpack.c.bf16 %v3036, %v3034
  %v3089 = vpack.c.bf16 %v3037, %v3035
  %v3090 = vpack.c.bf16 %v3040, %v3038
  %v3091 = vpack.c.bf16 %v3041, %v3039
  %v3092 = vpack.c.bf16 %v3044, %v3042
  %v3093 = vpack.c.bf16 %v3045, %v3043
  %v3094 = vpack.c.bf16 %v3048, %v3046
  %v3095 = vpack.c.bf16 %v3049, %v3047
  %v3096 = vpack.c.bf16 %v3052, %v3050
  %v3097 = vpack.c.bf16 %v3053, %v3051
  %v3098 = vpack.c.bf16 %v3056, %v3054
  %v3099 = vpack.c.bf16 %v3057, %v3055
  %v3100 = vpack.c.bf16 %v3060, %v3058
  %v3101 = vpack.c.bf16 %v3061, %v3059
  %v3102 = vpack.c.bf16 %v3064, %v3062
  %v3103 = vpack.c.bf16 %v3065, %v3063
  %v3104 = vpack.c.bf16 %v3068, %v3066
  %v3105 = vpack.c.bf16 %v3069, %v3067
  %v3106 = vpack.c.bf16 %v3072, %v3070
  %v3107 = vpack.c.bf16 %v3073, %v3071
  %v3108 = vpack.c.bf16 %v3076, %v3074
  %v3109 = vpack.c.bf16 %v3077, %v3075
  %v3110 = vld [vmem:[%s2] sm:$0xf]
  %v3111 = vld [vmem:[%s2 + $0x4] sm:$0xf]
  %v3112 = vld [vmem:[%s2 + $0x8] sm:$0xf]
  %v3113 = vld [vmem:[%s2 + $0xc] sm:$0xf]
  %v3114 = vld [vmem:[%s2 + $0x10] sm:$0xf]
  %v3115 = vld [vmem:[%s2 + $0x14] sm:$0xf]
  %v3116 = vld [vmem:[%s2 + $0x18] sm:$0xf]
  %v3117 = vld [vmem:[%s2 + $0x1c] sm:$0xf]
  %v3118 = vld [vmem:[%s2 + $0x20] sm:$0xf]
  %v3119 = vld [vmem:[%s2 + $0x24] sm:$0xf]
  %v3120 = vld [vmem:[%s2 + $0x28] sm:$0xf]
  %v3121 = vld [vmem:[%s2 + $0x2c] sm:$0xf]
  %v3122 = vld [vmem:[%s2 + $0x30] sm:$0xf]
  %v3123 = vld [vmem:[%s2 + $0x34] sm:$0xf]
  %v3124 = vld [vmem:[%s2 + $0x38] sm:$0xf]
  %v3125 = vld [vmem:[%s2 + $0x3c] sm:$0xf]
  %v3126 = vld [vmem:[%s2 + $0x40] sm:$0xf]
  %v3127 = vld [vmem:[%s2 + $0x44] sm:$0xf]
  %v3128 = vld [vmem:[%s2 + $0x48] sm:$0xf]
  %v3129 = vld [vmem:[%s2 + $0x4c] sm:$0xf]
  %v3130 = vld [vmem:[%s2 + $0x50] sm:$0xf]
  %v3131 = vld [vmem:[%s2 + $0x54] sm:$0xf]
  %v3132 = vld [vmem:[%s2 + $0x58] sm:$0xf]
  %v3133 = vld [vmem:[%s2 + $0x5c] sm:$0xf]
  %v3134 = vld [vmem:[%s2 + $0x60] sm:$0xf]
  %v3135 = vld [vmem:[%s2 + $0x64] sm:$0xf]
  %v3136 = vld [vmem:[%s2 + $0x68] sm:$0xf]
  %v3137 = vld [vmem:[%s2 + $0x6c] sm:$0xf]
  %v3138 = vld [vmem:[%s2 + $0x70] sm:$0xf]
  %v3139 = vld [vmem:[%s2 + $0x74] sm:$0xf]
  %v3140 = vld [vmem:[%s2 + $0x78] sm:$0xf]
  %v3141 = vld [vmem:[%s2 + $0x7c] sm:$0xf]
  %v3142 = vld [vmem:[%s9 + $0x6] sm:$0x1]
  %v3144 = vperm.slane %v3142, 0
  %v3178 = vunpack.c.l.b16 %v3110
  %v3179 = vunpack.c.l.b16 %v3111
  %v3180 = vunpack.c.l.b16 %v3112
  %v3181 = vunpack.c.l.b16 %v3113
  %v3182 = vunpack.c.l.b16 %v3114
  %v3183 = vunpack.c.l.b16 %v3115
  %v3184 = vunpack.c.l.b16 %v3116
  %v3185 = vunpack.c.l.b16 %v3117
  %v3186 = vunpack.c.l.b16 %v3118
  %v3187 = vunpack.c.l.b16 %v3119
  %v3188 = vunpack.c.l.b16 %v3120
  %v3189 = vunpack.c.l.b16 %v3121
  %v3190 = vunpack.c.l.b16 %v3122
  %v3191 = vunpack.c.l.b16 %v3123
  %v3192 = vunpack.c.l.b16 %v3124
  %v3193 = vunpack.c.l.b16 %v3125
  %v3194 = vunpack.c.l.b16 %v3126
  %v3195 = vunpack.c.l.b16 %v3127
  %v3196 = vunpack.c.l.b16 %v3128
  %v3197 = vunpack.c.l.b16 %v3129
  %v3198 = vunpack.c.l.b16 %v3130
  %v3199 = vunpack.c.l.b16 %v3131
  %v3200 = vunpack.c.l.b16 %v3132
  %v3201 = vunpack.c.l.b16 %v3133
  %v3202 = vunpack.c.l.b16 %v3134
  %v3203 = vunpack.c.l.b16 %v3135
  %v3204 = vunpack.c.l.b16 %v3136
  %v3205 = vunpack.c.l.b16 %v3137
  %v3206 = vunpack.c.l.b16 %v3138
  %v3207 = vunpack.c.l.b16 %v3139
  %v3208 = vunpack.c.l.b16 %v3140
  %v3209 = vunpack.c.l.b16 %v3141
  %v3210 = vpack.c.b16 %v3179, %v3178
  %v3211 = vpack.c.b16 %v3181, %v3180
  %v3212 = vpack.c.b16 %v3183, %v3182
  %v3213 = vpack.c.b16 %v3185, %v3184
  %v3214 = vpack.c.b16 %v3187, %v3186
  %v3215 = vpack.c.b16 %v3189, %v3188
  %v3216 = vpack.c.b16 %v3191, %v3190
  %v3217 = vpack.c.b16 %v3193, %v3192
  %v3218 = vpack.c.b16 %v3195, %v3194
  %v3219 = vpack.c.b16 %v3197, %v3196
  %v3220 = vpack.c.b16 %v3199, %v3198
  %v3221 = vpack.c.b16 %v3201, %v3200
  %v3222 = vpack.c.b16 %v3203, %v3202
  %v3223 = vpack.c.b16 %v3205, %v3204
  %v3224 = vpack.c.b16 %v3207, %v3206
  %v3225 = vpack.c.b16 %v3209, %v3208
  %3242 = vmatpush.bf16.msra.mxu0 %v3217
  %3243 = vmatpush.bf16.msra.mxu0 %v3216
  %3244 = vmatpush.bf16.msra.mxu0 %v3215
  %3245 = vmatpush.bf16.msra.mxu0 %v3214
  %3246 = vmatpush.bf16.msra.mxu0 %v3213
  %3247 = vmatpush.bf16.msra.mxu0 %v3212
  %3248 = vmatpush.bf16.msra.mxu0 %v3211
  %3249 = vmatpush.bf16.msra.mxu0 %v3210
  %3250 = vmatmul.bf16.gmra.mxu0 %v3078
  %v3251 = vpop.f32.mrf.mxu0
  %v3252 = vadd.f32 %v3144, %v3251
  %v3253 = vpop.f32.mrf.mxu0
  %v3254 = vadd.f32 %v3144, %v3253
  %3255 = vmatmul.bf16.gmra.mxu0 %v3080
  %v3256 = vpop.f32.mrf.mxu0
  %v3257 = vadd.f32 %v3144, %v3256
  %v3258 = vpop.f32.mrf.mxu0
  %v3259 = vadd.f32 %v3144, %v3258
  %3260 = vmatmul.bf16.gmra.mxu0 %v3082
  %v3261 = vpop.f32.mrf.mxu0
  %v3262 = vadd.f32 %v3144, %v3261
  %v3263 = vpop.f32.mrf.mxu0
  %v3264 = vadd.f32 %v3144, %v3263
  %3265 = vmatmul.bf16.gmra.mxu0 %v3084
  %v3266 = vpop.f32.mrf.mxu0
  %v3267 = vadd.f32 %v3144, %v3266
  %v3268 = vpop.f32.mrf.mxu0
  %v3269 = vadd.f32 %v3144, %v3268
  %3270 = vmatmul.bf16.gmra.mxu0 %v3086
  %v3271 = vpop.f32.mrf.mxu0
  %v3272 = vadd.f32 %v3144, %v3271
  %v3273 = vpop.f32.mrf.mxu0
  %v3274 = vadd.f32 %v3144, %v3273
  %3275 = vmatmul.bf16.gmra.mxu0 %v3088
  %v3276 = vpop.f32.mrf.mxu0
  %v3277 = vadd.f32 %v3144, %v3276
  %v3278 = vpop.f32.mrf.mxu0
  %v3279 = vadd.f32 %v3144, %v3278
  %3280 = vmatmul.bf16.gmra.mxu0 %v3090
  %v3281 = vpop.f32.mrf.mxu0
  %v3282 = vadd.f32 %v3144, %v3281
  %v3283 = vpop.f32.mrf.mxu0
  %v3284 = vadd.f32 %v3144, %v3283
  %3285 = vmatmul.bf16.gmra.mxu0 %v3092
  %v3286 = vpop.f32.mrf.mxu0
  %v3287 = vadd.f32 %v3144, %v3286
  %v3288 = vpop.f32.mrf.mxu0
  %v3289 = vadd.f32 %v3144, %v3288
  %3290 = vmatmul.bf16.gmra.mxu0 %v3094
  %v3291 = vpop.f32.mrf.mxu0
  %v3292 = vadd.f32 %v3144, %v3291
  %v3293 = vpop.f32.mrf.mxu0
  %v3294 = vadd.f32 %v3144, %v3293
  %3295 = vmatmul.bf16.gmra.mxu0 %v3096
  %v3296 = vpop.f32.mrf.mxu0
  %v3297 = vadd.f32 %v3144, %v3296
  %v3298 = vpop.f32.mrf.mxu0
  %v3299 = vadd.f32 %v3144, %v3298
  %3300 = vmatmul.bf16.gmra.mxu0 %v3098
  %v3301 = vpop.f32.mrf.mxu0
  %v3302 = vadd.f32 %v3144, %v3301
  %v3303 = vpop.f32.mrf.mxu0
  %v3304 = vadd.f32 %v3144, %v3303
  %3305 = vmatmul.bf16.gmra.mxu0 %v3100
  %v3306 = vpop.f32.mrf.mxu0
  %v3307 = vadd.f32 %v3144, %v3306
  %v3308 = vpop.f32.mrf.mxu0
  %v3309 = vadd.f32 %v3144, %v3308
  %3310 = vmatmul.bf16.gmra.mxu0 %v3102
  %v3311 = vpop.f32.mrf.mxu0
  %v3312 = vadd.f32 %v3144, %v3311
  %v3313 = vpop.f32.mrf.mxu0
  %v3314 = vadd.f32 %v3144, %v3313
  %3315 = vmatmul.bf16.gmra.mxu0 %v3104
  %v3316 = vpop.f32.mrf.mxu0
  %v3317 = vadd.f32 %v3144, %v3316
  %v3318 = vpop.f32.mrf.mxu0
  %v3319 = vadd.f32 %v3144, %v3318
  %3320 = vmatmul.bf16.gmra.mxu0 %v3106
  %v3321 = vpop.f32.mrf.mxu0
  %v3322 = vadd.f32 %v3144, %v3321
  %v3323 = vpop.f32.mrf.mxu0
  %v3324 = vadd.f32 %v3144, %v3323
  %3325 = vmatmul.bf16.gmra.mxu0 %v3108
  %v3326 = vpop.f32.mrf.mxu0
  %v3327 = vadd.f32 %v3144, %v3326
  %v3328 = vpop.f32.mrf.mxu0
  %v3329 = vadd.f32 %v3144, %v3328
  %3330 = vdwg.mxu0
  %3331 = vmatpush.bf16.msra.mxu0 %v3225
  %3332 = vmatpush.bf16.msra.mxu0 %v3224
  %3333 = vmatpush.bf16.msra.mxu0 %v3223
  %3334 = vmatpush.bf16.msra.mxu0 %v3222
  %3335 = vmatpush.bf16.msra.mxu0 %v3221
  %3336 = vmatpush.bf16.msra.mxu0 %v3220
  %3337 = vmatpush.bf16.msra.mxu0 %v3219
  %3338 = vmatpush.bf16.msra.mxu0 %v3218
  %3339 = vmatmul.bf16.gmra.mxu0 %v3079
  %v3340 = vpop.f32.mrf.mxu0
  %v3341 = vadd.f32 %v3252, %v3340
  %v3342 = vpop.f32.mrf.mxu0
  %v3343 = vadd.f32 %v3254, %v3342
  %3344 = vmatmul.bf16.gmra.mxu0 %v3081
  %v3345 = vpop.f32.mrf.mxu0
  %v3346 = vadd.f32 %v3257, %v3345
  %v3347 = vpop.f32.mrf.mxu0
  %v3348 = vadd.f32 %v3259, %v3347
  %3349 = vmatmul.bf16.gmra.mxu0 %v3083
  %v3350 = vpop.f32.mrf.mxu0
  %v3351 = vadd.f32 %v3262, %v3350
  %v3352 = vpop.f32.mrf.mxu0
  %v3353 = vadd.f32 %v3264, %v3352
  %3354 = vmatmul.bf16.gmra.mxu0 %v3085
  %v3355 = vpop.f32.mrf.mxu0
  %v3356 = vadd.f32 %v3267, %v3355
  %v3357 = vpop.f32.mrf.mxu0
  %v3358 = vadd.f32 %v3269, %v3357
  %3359 = vmatmul.bf16.gmra.mxu0 %v3087
  %v3360 = vpop.f32.mrf.mxu0
  %v3361 = vadd.f32 %v3272, %v3360
  %v3362 = vpop.f32.mrf.mxu0
  %v3363 = vadd.f32 %v3274, %v3362
  %3364 = vmatmul.bf16.gmra.mxu0 %v3089
  %v3365 = vpop.f32.mrf.mxu0
  %v3366 = vadd.f32 %v3277, %v3365
  %v3367 = vpop.f32.mrf.mxu0
  %v3368 = vadd.f32 %v3279, %v3367
  %3369 = vmatmul.bf16.gmra.mxu0 %v3091
  %v3370 = vpop.f32.mrf.mxu0
  %v3371 = vadd.f32 %v3282, %v3370
  %v3372 = vpop.f32.mrf.mxu0
  %v3373 = vadd.f32 %v3284, %v3372
  %3374 = vmatmul.bf16.gmra.mxu0 %v3093
  %v3375 = vpop.f32.mrf.mxu0
  %v3376 = vadd.f32 %v3287, %v3375
  %v3377 = vpop.f32.mrf.mxu0
  %v3378 = vadd.f32 %v3289, %v3377
  %3379 = vmatmul.bf16.gmra.mxu0 %v3095
  %v3380 = vpop.f32.mrf.mxu0
  %v3381 = vadd.f32 %v3292, %v3380
  %v3382 = vpop.f32.mrf.mxu0
  %v3383 = vadd.f32 %v3294, %v3382
  %3384 = vmatmul.bf16.gmra.mxu0 %v3097
  %v3385 = vpop.f32.mrf.mxu0
  %v3386 = vadd.f32 %v3297, %v3385
  %v3387 = vpop.f32.mrf.mxu0
  %v3388 = vadd.f32 %v3299, %v3387
  %3389 = vmatmul.bf16.gmra.mxu0 %v3099
  %v3390 = vpop.f32.mrf.mxu0
  %v3391 = vadd.f32 %v3302, %v3390
  %v3392 = vpop.f32.mrf.mxu0
  %v3393 = vadd.f32 %v3304, %v3392
  %3394 = vmatmul.bf16.gmra.mxu0 %v3101
  %v3395 = vpop.f32.mrf.mxu0
  %v3396 = vadd.f32 %v3307, %v3395
  %v3397 = vpop.f32.mrf.mxu0
  %v3398 = vadd.f32 %v3309, %v3397
  %3399 = vmatmul.bf16.gmra.mxu0 %v3103
  %v3400 = vpop.f32.mrf.mxu0
  %v3401 = vadd.f32 %v3312, %v3400
  %v3402 = vpop.f32.mrf.mxu0
  %v3403 = vadd.f32 %v3314, %v3402
  %3404 = vmatmul.bf16.gmra.mxu0 %v3105
  %v3405 = vpop.f32.mrf.mxu0
  %v3406 = vadd.f32 %v3317, %v3405
  %v3407 = vpop.f32.mrf.mxu0
  %v3408 = vadd.f32 %v3319, %v3407
  %3409 = vmatmul.bf16.gmra.mxu0 %v3107
  %v3410 = vpop.f32.mrf.mxu0
  %v3411 = vadd.f32 %v3322, %v3410
  %v3412 = vpop.f32.mrf.mxu0
  %v3413 = vadd.f32 %v3324, %v3412
  %3414 = vmatmul.bf16.gmra.mxu0 %v3109
  %v3415 = vpop.f32.mrf.mxu0
  %v3416 = vadd.f32 %v3327, %v3415
  %v3417 = vpop.f32.mrf.mxu0
  %v3418 = vadd.f32 %v3329, %v3417
  %3419 = vdwg.mxu0
  %v3420 = vmax.f32 %v3341, 0.0
  %v3421 = vmax.f32 %v3343, 0.0
  %v3422 = vmax.f32 %v3346, 0.0
  %v3423 = vmax.f32 %v3348, 0.0
  %v3424 = vmax.f32 %v3351, 0.0
  %v3425 = vmax.f32 %v3353, 0.0
  %v3426 = vmax.f32 %v3356, 0.0
  %v3427 = vmax.f32 %v3358, 0.0
  %v3428 = vmax.f32 %v3361, 0.0
  %v3429 = vmax.f32 %v3363, 0.0
  %v3430 = vmax.f32 %v3366, 0.0
  %v3431 = vmax.f32 %v3368, 0.0
  %v3432 = vmax.f32 %v3371, 0.0
  %v3433 = vmax.f32 %v3373, 0.0
  %v3434 = vmax.f32 %v3376, 0.0
  %v3435 = vmax.f32 %v3378, 0.0
  %v3436 = vmax.f32 %v3381, 0.0
  %v3437 = vmax.f32 %v3383, 0.0
  %v3438 = vmax.f32 %v3386, 0.0
  %v3439 = vmax.f32 %v3388, 0.0
  %v3440 = vmax.f32 %v3391, 0.0
  %v3441 = vmax.f32 %v3393, 0.0
  %v3442 = vmax.f32 %v3396, 0.0
  %v3443 = vmax.f32 %v3398, 0.0
  %v3444 = vmax.f32 %v3401, 0.0
  %v3445 = vmax.f32 %v3403, 0.0
  %v3446 = vmax.f32 %v3406, 0.0
  %v3447 = vmax.f32 %v3408, 0.0
  %v3448 = vmax.f32 %v3411, 0.0
  %v3449 = vmax.f32 %v3413, 0.0
  %v3450 = vmax.f32 %v3416, 0.0
  %v3451 = vmax.f32 %v3418, 0.0
  %v3452 = vadd.f32 %v3420, %v3421
  %v3453 = vadd.f32 %v3452, %v3422
  %v3454 = vadd.f32 %v3453, %v3423
  %v3455 = vadd.f32 %v3454, %v3424
  %v3456 = vadd.f32 %v3455, %v3425
  %v3457 = vadd.f32 %v3456, %v3426
  %v3458 = vadd.f32 %v3457, %v3427
  %v3459 = vadd.f32 %v3458, %v3428
  %v3460 = vadd.f32 %v3459, %v3429
  %v3461 = vadd.f32 %v3460, %v3430
  %v3462 = vadd.f32 %v3461, %v3431
  %v3463 = vadd.f32 %v3462, %v3432
  %v3464 = vadd.f32 %v3463, %v3433
  %v3465 = vadd.f32 %v3464, %v3434
  %v3466 = vadd.f32 %v3465, %v3435
  %v3467 = vadd.f32 %v3466, %v3436
  %v3468 = vadd.f32 %v3467, %v3437
  %v3469 = vadd.f32 %v3468, %v3438
  %v3470 = vadd.f32 %v3469, %v3439
  %v3471 = vadd.f32 %v3470, %v3440
  %v3472 = vadd.f32 %v3471, %v3441
  %v3473 = vadd.f32 %v3472, %v3442
  %v3474 = vadd.f32 %v3473, %v3443
  %v3475 = vadd.f32 %v3474, %v3444
  %v3476 = vadd.f32 %v3475, %v3445
  %v3477 = vadd.f32 %v3476, %v3446
  %v3478 = vadd.f32 %v3477, %v3447
  %v3479 = vadd.f32 %v3478, %v3448
  %v3480 = vadd.f32 %v3479, %v3449
  %v3481 = vadd.f32 %v3480, %v3450
  %v3482 = vadd.f32 %v3481, %v3451
  %v3483 = vrot.slane %v3482, 4
  %v3484 = vadd.f32 %v3482, %v3483
  %v3485 = vrot.slane %v3484, 2
  %v3486 = vadd.f32 %v3484, %v3485
  %v3487 = vrot.slane %v3486, 1
  %v3488 = vadd.f32 %v3486, %v3487
  %v3489 = vmul.f32 %v3420, %v3420
  %v3490 = vmul.f32 %v3421, %v3421
  %v3491 = vmul.f32 %v3422, %v3422
  %v3492 = vmul.f32 %v3423, %v3423
  %v3493 = vmul.f32 %v3424, %v3424
  %v3494 = vmul.f32 %v3425, %v3425
  %v3495 = vmul.f32 %v3426, %v3426
  %v3496 = vmul.f32 %v3427, %v3427
  %v3497 = vmul.f32 %v3428, %v3428
  %v3498 = vmul.f32 %v3429, %v3429
  %v3499 = vmul.f32 %v3430, %v3430
  %v3500 = vmul.f32 %v3431, %v3431
  %v3501 = vmul.f32 %v3432, %v3432
  %v3502 = vmul.f32 %v3433, %v3433
  %v3503 = vmul.f32 %v3434, %v3434
  %v3504 = vmul.f32 %v3435, %v3435
  %v3505 = vmul.f32 %v3436, %v3436
  %v3506 = vmul.f32 %v3437, %v3437
  %v3507 = vmul.f32 %v3438, %v3438
  %v3508 = vmul.f32 %v3439, %v3439
  %v3509 = vmul.f32 %v3440, %v3440
  %v3510 = vmul.f32 %v3441, %v3441
  %v3511 = vmul.f32 %v3442, %v3442
  %v3512 = vmul.f32 %v3443, %v3443
  %v3513 = vmul.f32 %v3444, %v3444
  %v3514 = vmul.f32 %v3445, %v3445
  %v3515 = vmul.f32 %v3446, %v3446
  %v3516 = vmul.f32 %v3447, %v3447
  %v3517 = vmul.f32 %v3448, %v3448
  %v3518 = vmul.f32 %v3449, %v3449
  %v3519 = vmul.f32 %v3450, %v3450
  %v3520 = vmul.f32 %v3451, %v3451
  %v3521 = vadd.f32 %v3489, %v3490
  %v3522 = vadd.f32 %v3521, %v3491
  %v3523 = vadd.f32 %v3522, %v3492
  %v3524 = vadd.f32 %v3523, %v3493
  %v3525 = vadd.f32 %v3524, %v3494
  %v3526 = vadd.f32 %v3525, %v3495
  %v3527 = vadd.f32 %v3526, %v3496
  %v3528 = vadd.f32 %v3527, %v3497
  %v3529 = vadd.f32 %v3528, %v3498
  %v3530 = vadd.f32 %v3529, %v3499
  %v3531 = vadd.f32 %v3530, %v3500
  %v3532 = vadd.f32 %v3531, %v3501
  %v3533 = vadd.f32 %v3532, %v3502
  %v3534 = vadd.f32 %v3533, %v3503
  %v3535 = vadd.f32 %v3534, %v3504
  %v3536 = vadd.f32 %v3535, %v3505
  %v3537 = vadd.f32 %v3536, %v3506
  %v3538 = vadd.f32 %v3537, %v3507
  %v3539 = vadd.f32 %v3538, %v3508
  %v3540 = vadd.f32 %v3539, %v3509
  %v3541 = vadd.f32 %v3540, %v3510
  %v3542 = vadd.f32 %v3541, %v3511
  %v3543 = vadd.f32 %v3542, %v3512
  %v3544 = vadd.f32 %v3543, %v3513
  %v3545 = vadd.f32 %v3544, %v3514
  %v3546 = vadd.f32 %v3545, %v3515
  %v3547 = vadd.f32 %v3546, %v3516
  %v3548 = vadd.f32 %v3547, %v3517
  %v3549 = vadd.f32 %v3548, %v3518
  %v3550 = vadd.f32 %v3549, %v3519
  %v3551 = vadd.f32 %v3550, %v3520
  %v3552 = vrot.slane %v3551, 4
  %v3553 = vadd.f32 %v3551, %v3552
  %v3554 = vrot.slane %v3553, 2
  %v3555 = vadd.f32 %v3553, %v3554
  %v3556 = vrot.slane %v3555, 1
  %v3557 = vadd.f32 %v3555, %v3556
  %v3558 = vmul.f32 %v3488, 0.00390625
  %v3559 = vmul.f32 %v3557, 0.00390625
  %v3560 = vmul.f32 %v3558, %v3558
  %v3561 = vsub.f32 %v3559, %v3560
  %v3562 = vmax.f32 %v3561, 0.0
  %v3563 = vld [vmem:[%s9 + $0x7] sm:$0x1]
  %v3564 = vadd.f32 %v3562, 1e-05
  %v3565 = vrsqrt.pop %v3564
  %v3566 = vmul.f32 %v3565, %v3564
  %v3567 = vmul.f32 %v3566, %v3565
  %v3568 = vmul.f32 0.5, %v3567
  %v3569 = vsub.f32 1.5, %v3568
  %v3570 = vmul.f32 %v3565, %v3569
  %vm3571 = vweird.f32 %v3564
  %vm3572 = vweird.f32 %v3565
  %vm3573 = vmor %vm3571, %vm3572
  %v3574 = vsel %vm3573, %v3565, %v3570
  %v3575 = vmul.f32 %v3563, %v3574
  %v3576 = vld [vmem:[%s9 + $0x8] sm:$0x1]
  %v3577 = vmul.f32 %v3558, %v3575
  %v3578 = vsub.f32 %v3576, %v3577
  %v3580 = vperm.slane %v3575, 0
  %v3582 = vmul.f32 %v3420, %v3580
  %v3583 = vmul.f32 %v3421, %v3580
  %v3584 = vmul.f32 %v3422, %v3580
  %v3585 = vmul.f32 %v3423, %v3580
  %v3586 = vmul.f32 %v3424, %v3580
  %v3587 = vmul.f32 %v3425, %v3580
  %v3588 = vmul.f32 %v3426, %v3580
  %v3589 = vmul.f32 %v3427, %v3580
  %v3590 = vmul.f32 %v3428, %v3580
  %v3591 = vmul.f32 %v3429, %v3580
  %v3592 = vmul.f32 %v3430, %v3580
  %v3593 = vmul.f32 %v3431, %v3580
  %v3594 = vmul.f32 %v3432, %v3580
  %v3595 = vmul.f32 %v3433, %v3580
  %v3596 = vmul.f32 %v3434, %v3580
  %v3597 = vmul.f32 %v3435, %v3580
  %v3598 = vmul.f32 %v3436, %v3580
  %v3599 = vmul.f32 %v3437, %v3580
  %v3600 = vmul.f32 %v3438, %v3580
  %v3601 = vmul.f32 %v3439, %v3580
  %v3602 = vmul.f32 %v3440, %v3580
  %v3603 = vmul.f32 %v3441, %v3580
  %v3604 = vmul.f32 %v3442, %v3580
  %v3605 = vmul.f32 %v3443, %v3580
  %v3606 = vmul.f32 %v3444, %v3580
  %v3607 = vmul.f32 %v3445, %v3580
  %v3608 = vmul.f32 %v3446, %v3580
  %v3609 = vmul.f32 %v3447, %v3580
  %v3610 = vmul.f32 %v3448, %v3580
  %v3611 = vmul.f32 %v3449, %v3580
  %v3612 = vmul.f32 %v3450, %v3580
  %v3613 = vmul.f32 %v3451, %v3580
  %v3615 = vperm.slane %v3578, 0
  %v3617 = vadd.f32 %v3582, %v3615
  %v3618 = vadd.f32 %v3583, %v3615
  %v3619 = vadd.f32 %v3584, %v3615
  %v3620 = vadd.f32 %v3585, %v3615
  %v3621 = vadd.f32 %v3586, %v3615
  %v3622 = vadd.f32 %v3587, %v3615
  %v3623 = vadd.f32 %v3588, %v3615
  %v3624 = vadd.f32 %v3589, %v3615
  %v3625 = vadd.f32 %v3590, %v3615
  %v3626 = vadd.f32 %v3591, %v3615
  %v3627 = vadd.f32 %v3592, %v3615
  %v3628 = vadd.f32 %v3593, %v3615
  %v3629 = vadd.f32 %v3594, %v3615
  %v3630 = vadd.f32 %v3595, %v3615
  %v3631 = vadd.f32 %v3596, %v3615
  %v3632 = vadd.f32 %v3597, %v3615
  %v3633 = vadd.f32 %v3598, %v3615
  %v3634 = vadd.f32 %v3599, %v3615
  %v3635 = vadd.f32 %v3600, %v3615
  %v3636 = vadd.f32 %v3601, %v3615
  %v3637 = vadd.f32 %v3602, %v3615
  %v3638 = vadd.f32 %v3603, %v3615
  %v3639 = vadd.f32 %v3604, %v3615
  %v3640 = vadd.f32 %v3605, %v3615
  %v3641 = vadd.f32 %v3606, %v3615
  %v3642 = vadd.f32 %v3607, %v3615
  %v3643 = vadd.f32 %v3608, %v3615
  %v3644 = vadd.f32 %v3609, %v3615
  %v3645 = vadd.f32 %v3610, %v3615
  %v3646 = vadd.f32 %v3611, %v3615
  %v3647 = vadd.f32 %v3612, %v3615
  %v3648 = vadd.f32 %v3613, %v3615
  %v3649 = vpack.c.bf16 %v3618, %v3617
  %v3650 = vpack.c.bf16 %v3620, %v3619
  %v3651 = vpack.c.bf16 %v3622, %v3621
  %v3652 = vpack.c.bf16 %v3624, %v3623
  %v3653 = vpack.c.bf16 %v3626, %v3625
  %v3654 = vpack.c.bf16 %v3628, %v3627
  %v3655 = vpack.c.bf16 %v3630, %v3629
  %v3656 = vpack.c.bf16 %v3632, %v3631
  %v3657 = vpack.c.bf16 %v3634, %v3633
  %v3658 = vpack.c.bf16 %v3636, %v3635
  %v3659 = vpack.c.bf16 %v3638, %v3637
  %v3660 = vpack.c.bf16 %v3640, %v3639
  %v3661 = vpack.c.bf16 %v3642, %v3641
  %v3662 = vpack.c.bf16 %v3644, %v3643
  %v3663 = vpack.c.bf16 %v3646, %v3645
  %v3664 = vpack.c.bf16 %v3648, %v3647
  %v3665 = vld [vmem:[%s3] sm:$0xf]
  %v3666 = vld [vmem:[%s3 + $0x4] sm:$0xf]
  %v3667 = vld [vmem:[%s3 + $0x8] sm:$0xf]
  %v3668 = vld [vmem:[%s3 + $0xc] sm:$0xf]
  %v3669 = vld [vmem:[%s3 + $0x10] sm:$0xf]
  %v3670 = vld [vmem:[%s3 + $0x14] sm:$0xf]
  %v3671 = vld [vmem:[%s3 + $0x18] sm:$0xf]
  %v3672 = vld [vmem:[%s3 + $0x1c] sm:$0xf]
  %v3673 = vld [vmem:[%s3 + $0x20] sm:$0xf]
  %v3674 = vld [vmem:[%s3 + $0x24] sm:$0xf]
  %v3675 = vld [vmem:[%s3 + $0x28] sm:$0xf]
  %v3676 = vld [vmem:[%s3 + $0x2c] sm:$0xf]
  %v3677 = vld [vmem:[%s3 + $0x30] sm:$0xf]
  %v3678 = vld [vmem:[%s3 + $0x34] sm:$0xf]
  %v3679 = vld [vmem:[%s3 + $0x38] sm:$0xf]
  %v3680 = vld [vmem:[%s3 + $0x3c] sm:$0xf]
  %v3681 = vld [vmem:[%s9 + $0x9] sm:$0x1]
  %v3683 = vperm.slane %v3681, 0
  %v3701 = vunpack.c.l.b16 %v3665
  %v3702 = vunpack.c.l.b16 %v3666
  %v3703 = vunpack.c.l.b16 %v3667
  %v3704 = vunpack.c.l.b16 %v3668
  %v3705 = vunpack.c.l.b16 %v3669
  %v3706 = vunpack.c.l.b16 %v3670
  %v3707 = vunpack.c.l.b16 %v3671
  %v3708 = vunpack.c.l.b16 %v3672
  %v3709 = vunpack.c.l.b16 %v3673
  %v3710 = vunpack.c.l.b16 %v3674
  %v3711 = vunpack.c.l.b16 %v3675
  %v3712 = vunpack.c.l.b16 %v3676
  %v3713 = vunpack.c.l.b16 %v3677
  %v3714 = vunpack.c.l.b16 %v3678
  %v3715 = vunpack.c.l.b16 %v3679
  %v3716 = vunpack.c.l.b16 %v3680
  %v3717 = vpack.c.b16 %v3702, %v3701
  %v3718 = vpack.c.b16 %v3704, %v3703
  %v3719 = vpack.c.b16 %v3706, %v3705
  %v3720 = vpack.c.b16 %v3708, %v3707
  %v3721 = vpack.c.b16 %v3710, %v3709
  %v3722 = vpack.c.b16 %v3712, %v3711
  %v3723 = vpack.c.b16 %v3714, %v3713
  %v3724 = vpack.c.b16 %v3716, %v3715
  %3733 = vmatpush.bf16.msra.mxu0 %v3724
  %3734 = vmatpush.bf16.msra.mxu0 %v3723
  %3735 = vmatpush.bf16.msra.mxu0 %v3722
  %3736 = vmatpush.bf16.msra.mxu0 %v3721
  %3737 = vmatpush.bf16.msra.mxu0 %v3720
  %3738 = vmatpush.bf16.msra.mxu0 %v3719
  %3739 = vmatpush.bf16.msra.mxu0 %v3718
  %3740 = vmatpush.bf16.msra.mxu0 %v3717
  %3741 = vmatmul.bf16.gmra.mxu0 %v3649
  %v3742 = vpop.f32.mrf.mxu0
  %v3743 = vadd.f32 %v3683, %v3742
  %v3744 = vpop.f32.mrf.mxu0
  %v3745 = vadd.f32 %v3683, %v3744
  %3746 = vmatmul.bf16.gmra.mxu0 %v3650
  %v3747 = vpop.f32.mrf.mxu0
  %v3748 = vadd.f32 %v3683, %v3747
  %v3749 = vpop.f32.mrf.mxu0
  %v3750 = vadd.f32 %v3683, %v3749
  %3751 = vmatmul.bf16.gmra.mxu0 %v3651
  %v3752 = vpop.f32.mrf.mxu0
  %v3753 = vadd.f32 %v3683, %v3752
  %v3754 = vpop.f32.mrf.mxu0
  %v3755 = vadd.f32 %v3683, %v3754
  %3756 = vmatmul.bf16.gmra.mxu0 %v3652
  %v3757 = vpop.f32.mrf.mxu0
  %v3758 = vadd.f32 %v3683, %v3757
  %v3759 = vpop.f32.mrf.mxu0
  %v3760 = vadd.f32 %v3683, %v3759
  %3761 = vmatmul.bf16.gmra.mxu0 %v3653
  %v3762 = vpop.f32.mrf.mxu0
  %v3763 = vadd.f32 %v3683, %v3762
  %v3764 = vpop.f32.mrf.mxu0
  %v3765 = vadd.f32 %v3683, %v3764
  %3766 = vmatmul.bf16.gmra.mxu0 %v3654
  %v3767 = vpop.f32.mrf.mxu0
  %v3768 = vadd.f32 %v3683, %v3767
  %v3769 = vpop.f32.mrf.mxu0
  %v3770 = vadd.f32 %v3683, %v3769
  %3771 = vmatmul.bf16.gmra.mxu0 %v3655
  %v3772 = vpop.f32.mrf.mxu0
  %v3773 = vadd.f32 %v3683, %v3772
  %v3774 = vpop.f32.mrf.mxu0
  %v3775 = vadd.f32 %v3683, %v3774
  %3776 = vmatmul.bf16.gmra.mxu0 %v3656
  %v3777 = vpop.f32.mrf.mxu0
  %v3778 = vadd.f32 %v3683, %v3777
  %v3779 = vpop.f32.mrf.mxu0
  %v3780 = vadd.f32 %v3683, %v3779
  %3781 = vmatmul.bf16.gmra.mxu0 %v3657
  %v3782 = vpop.f32.mrf.mxu0
  %v3783 = vadd.f32 %v3683, %v3782
  %v3784 = vpop.f32.mrf.mxu0
  %v3785 = vadd.f32 %v3683, %v3784
  %3786 = vmatmul.bf16.gmra.mxu0 %v3658
  %v3787 = vpop.f32.mrf.mxu0
  %v3788 = vadd.f32 %v3683, %v3787
  %v3789 = vpop.f32.mrf.mxu0
  %v3790 = vadd.f32 %v3683, %v3789
  %3791 = vmatmul.bf16.gmra.mxu0 %v3659
  %v3792 = vpop.f32.mrf.mxu0
  %v3793 = vadd.f32 %v3683, %v3792
  %v3794 = vpop.f32.mrf.mxu0
  %v3795 = vadd.f32 %v3683, %v3794
  %3796 = vmatmul.bf16.gmra.mxu0 %v3660
  %v3797 = vpop.f32.mrf.mxu0
  %v3798 = vadd.f32 %v3683, %v3797
  %v3799 = vpop.f32.mrf.mxu0
  %v3800 = vadd.f32 %v3683, %v3799
  %3801 = vmatmul.bf16.gmra.mxu0 %v3661
  %v3802 = vpop.f32.mrf.mxu0
  %v3803 = vadd.f32 %v3683, %v3802
  %v3804 = vpop.f32.mrf.mxu0
  %v3805 = vadd.f32 %v3683, %v3804
  %3806 = vmatmul.bf16.gmra.mxu0 %v3662
  %v3807 = vpop.f32.mrf.mxu0
  %v3808 = vadd.f32 %v3683, %v3807
  %v3809 = vpop.f32.mrf.mxu0
  %v3810 = vadd.f32 %v3683, %v3809
  %3811 = vmatmul.bf16.gmra.mxu0 %v3663
  %v3812 = vpop.f32.mrf.mxu0
  %v3813 = vadd.f32 %v3683, %v3812
  %v3814 = vpop.f32.mrf.mxu0
  %v3815 = vadd.f32 %v3683, %v3814
  %3816 = vmatmul.bf16.gmra.mxu0 %v3664
  %v3817 = vpop.f32.mrf.mxu0
  %v3818 = vadd.f32 %v3683, %v3817
  %v3819 = vpop.f32.mrf.mxu0
  %v3820 = vadd.f32 %v3683, %v3819
  %3821 = vdwg.mxu0
  %v3822 = vmax.f32 %v3743, 0.0
  %v3823 = vmax.f32 %v3745, 0.0
  %v3824 = vmax.f32 %v3748, 0.0
  %v3825 = vmax.f32 %v3750, 0.0
  %v3826 = vmax.f32 %v3753, 0.0
  %v3827 = vmax.f32 %v3755, 0.0
  %v3828 = vmax.f32 %v3758, 0.0
  %v3829 = vmax.f32 %v3760, 0.0
  %v3830 = vmax.f32 %v3763, 0.0
  %v3831 = vmax.f32 %v3765, 0.0
  %v3832 = vmax.f32 %v3768, 0.0
  %v3833 = vmax.f32 %v3770, 0.0
  %v3834 = vmax.f32 %v3773, 0.0
  %v3835 = vmax.f32 %v3775, 0.0
  %v3836 = vmax.f32 %v3778, 0.0
  %v3837 = vmax.f32 %v3780, 0.0
  %v3838 = vmax.f32 %v3783, 0.0
  %v3839 = vmax.f32 %v3785, 0.0
  %v3840 = vmax.f32 %v3788, 0.0
  %v3841 = vmax.f32 %v3790, 0.0
  %v3842 = vmax.f32 %v3793, 0.0
  %v3843 = vmax.f32 %v3795, 0.0
  %v3844 = vmax.f32 %v3798, 0.0
  %v3845 = vmax.f32 %v3800, 0.0
  %v3846 = vmax.f32 %v3803, 0.0
  %v3847 = vmax.f32 %v3805, 0.0
  %v3848 = vmax.f32 %v3808, 0.0
  %v3849 = vmax.f32 %v3810, 0.0
  %v3850 = vmax.f32 %v3813, 0.0
  %v3851 = vmax.f32 %v3815, 0.0
  %v3852 = vmax.f32 %v3818, 0.0
  %v3853 = vmax.f32 %v3820, 0.0
  %vm3854 = vcmask 523264
  %v3855 = vsel %vm3854, %v3822, 0.0
  %v3856 = vsel %vm3854, %v3823, 0.0
  %v3857 = vadd.f32 %v3855, %v3856
  %v3858 = vsel %vm3854, %v3824, 0.0
  %v3859 = vadd.f32 %v3857, %v3858
  %v3860 = vsel %vm3854, %v3825, 0.0
  %v3861 = vadd.f32 %v3859, %v3860
  %v3862 = vsel %vm3854, %v3826, 0.0
  %v3863 = vadd.f32 %v3861, %v3862
  %v3864 = vsel %vm3854, %v3827, 0.0
  %v3865 = vadd.f32 %v3863, %v3864
  %v3866 = vsel %vm3854, %v3828, 0.0
  %v3867 = vadd.f32 %v3865, %v3866
  %v3868 = vsel %vm3854, %v3829, 0.0
  %v3869 = vadd.f32 %v3867, %v3868
  %v3870 = vsel %vm3854, %v3830, 0.0
  %v3871 = vadd.f32 %v3869, %v3870
  %v3872 = vsel %vm3854, %v3831, 0.0
  %v3873 = vadd.f32 %v3871, %v3872
  %v3874 = vsel %vm3854, %v3832, 0.0
  %v3875 = vadd.f32 %v3873, %v3874
  %v3876 = vsel %vm3854, %v3833, 0.0
  %v3877 = vadd.f32 %v3875, %v3876
  %v3878 = vsel %vm3854, %v3834, 0.0
  %v3879 = vadd.f32 %v3877, %v3878
  %v3880 = vsel %vm3854, %v3835, 0.0
  %v3881 = vadd.f32 %v3879, %v3880
  %v3882 = vsel %vm3854, %v3836, 0.0
  %v3883 = vadd.f32 %v3881, %v3882
  %v3884 = vsel %vm3854, %v3837, 0.0
  %v3885 = vadd.f32 %v3883, %v3884
  %v3886 = vsel %vm3854, %v3838, 0.0
  %v3887 = vadd.f32 %v3885, %v3886
  %v3888 = vsel %vm3854, %v3839, 0.0
  %v3889 = vadd.f32 %v3887, %v3888
  %v3890 = vsel %vm3854, %v3840, 0.0
  %v3891 = vadd.f32 %v3889, %v3890
  %v3892 = vsel %vm3854, %v3841, 0.0
  %v3893 = vadd.f32 %v3891, %v3892
  %v3894 = vsel %vm3854, %v3842, 0.0
  %v3895 = vadd.f32 %v3893, %v3894
  %v3896 = vsel %vm3854, %v3843, 0.0
  %v3897 = vadd.f32 %v3895, %v3896
  %v3898 = vsel %vm3854, %v3844, 0.0
  %v3899 = vadd.f32 %v3897, %v3898
  %v3900 = vsel %vm3854, %v3845, 0.0
  %v3901 = vadd.f32 %v3899, %v3900
  %v3902 = vsel %vm3854, %v3846, 0.0
  %v3903 = vadd.f32 %v3901, %v3902
  %v3904 = vsel %vm3854, %v3847, 0.0
  %v3905 = vadd.f32 %v3903, %v3904
  %v3906 = vsel %vm3854, %v3848, 0.0
  %v3907 = vadd.f32 %v3905, %v3906
  %v3908 = vsel %vm3854, %v3849, 0.0
  %v3909 = vadd.f32 %v3907, %v3908
  %v3910 = vsel %vm3854, %v3850, 0.0
  %v3911 = vadd.f32 %v3909, %v3910
  %v3912 = vsel %vm3854, %v3851, 0.0
  %v3913 = vadd.f32 %v3911, %v3912
  %v3914 = vsel %vm3854, %v3852, 0.0
  %v3915 = vadd.f32 %v3913, %v3914
  %v3916 = vsel %vm3854, %v3853, 0.0
  %v3917 = vadd.f32 %v3915, %v3916
  %v3918 = vrot.slane %v3917, 4
  %v3919 = vadd.f32 %v3917, %v3918
  %v3920 = vrot.slane %v3919, 2
  %v3921 = vadd.f32 %v3919, %v3920
  %v3922 = vrot.slane %v3921, 1
  %v3923 = vadd.f32 %v3921, %v3922
  %v3924 = vmul.f32 %v3822, %v3822
  %v3925 = vmul.f32 %v3823, %v3823
  %v3926 = vmul.f32 %v3824, %v3824
  %v3927 = vmul.f32 %v3825, %v3825
  %v3928 = vmul.f32 %v3826, %v3826
  %v3929 = vmul.f32 %v3827, %v3827
  %v3930 = vmul.f32 %v3828, %v3828
  %v3931 = vmul.f32 %v3829, %v3829
  %v3932 = vmul.f32 %v3830, %v3830
  %v3933 = vmul.f32 %v3831, %v3831
  %v3934 = vmul.f32 %v3832, %v3832
  %v3935 = vmul.f32 %v3833, %v3833
  %v3936 = vmul.f32 %v3834, %v3834
  %v3937 = vmul.f32 %v3835, %v3835
  %v3938 = vmul.f32 %v3836, %v3836
  %v3939 = vmul.f32 %v3837, %v3837
  %v3940 = vmul.f32 %v3838, %v3838
  %v3941 = vmul.f32 %v3839, %v3839
  %v3942 = vmul.f32 %v3840, %v3840
  %v3943 = vmul.f32 %v3841, %v3841
  %v3944 = vmul.f32 %v3842, %v3842
  %v3945 = vmul.f32 %v3843, %v3843
  %v3946 = vmul.f32 %v3844, %v3844
  %v3947 = vmul.f32 %v3845, %v3845
  %v3948 = vmul.f32 %v3846, %v3846
  %v3949 = vmul.f32 %v3847, %v3847
  %v3950 = vmul.f32 %v3848, %v3848
  %v3951 = vmul.f32 %v3849, %v3849
  %v3952 = vmul.f32 %v3850, %v3850
  %v3953 = vmul.f32 %v3851, %v3851
  %v3954 = vmul.f32 %v3852, %v3852
  %v3955 = vmul.f32 %v3853, %v3853
  %v3956 = vsel %vm3854, %v3924, 0.0
  %v3957 = vsel %vm3854, %v3925, 0.0
  %v3958 = vadd.f32 %v3956, %v3957
  %v3959 = vsel %vm3854, %v3926, 0.0
  %v3960 = vadd.f32 %v3958, %v3959
  %v3961 = vsel %vm3854, %v3927, 0.0
  %v3962 = vadd.f32 %v3960, %v3961
  %v3963 = vsel %vm3854, %v3928, 0.0
  %v3964 = vadd.f32 %v3962, %v3963
  %v3965 = vsel %vm3854, %v3929, 0.0
  %v3966 = vadd.f32 %v3964, %v3965
  %v3967 = vsel %vm3854, %v3930, 0.0
  %v3968 = vadd.f32 %v3966, %v3967
  %v3969 = vsel %vm3854, %v3931, 0.0
  %v3970 = vadd.f32 %v3968, %v3969
  %v3971 = vsel %vm3854, %v3932, 0.0
  %v3972 = vadd.f32 %v3970, %v3971
  %v3973 = vsel %vm3854, %v3933, 0.0
  %v3974 = vadd.f32 %v3972, %v3973
  %v3975 = vsel %vm3854, %v3934, 0.0
  %v3976 = vadd.f32 %v3974, %v3975
  %v3977 = vsel %vm3854, %v3935, 0.0
  %v3978 = vadd.f32 %v3976, %v3977
  %v3979 = vsel %vm3854, %v3936, 0.0
  %v3980 = vadd.f32 %v3978, %v3979
  %v3981 = vsel %vm3854, %v3937, 0.0
  %v3982 = vadd.f32 %v3980, %v3981
  %v3983 = vsel %vm3854, %v3938, 0.0
  %v3984 = vadd.f32 %v3982, %v3983
  %v3985 = vsel %vm3854, %v3939, 0.0
  %v3986 = vadd.f32 %v3984, %v3985
  %v3987 = vsel %vm3854, %v3940, 0.0
  %v3988 = vadd.f32 %v3986, %v3987
  %v3989 = vsel %vm3854, %v3941, 0.0
  %v3990 = vadd.f32 %v3988, %v3989
  %v3991 = vsel %vm3854, %v3942, 0.0
  %v3992 = vadd.f32 %v3990, %v3991
  %v3993 = vsel %vm3854, %v3943, 0.0
  %v3994 = vadd.f32 %v3992, %v3993
  %v3995 = vsel %vm3854, %v3944, 0.0
  %v3996 = vadd.f32 %v3994, %v3995
  %v3997 = vsel %vm3854, %v3945, 0.0
  %v3998 = vadd.f32 %v3996, %v3997
  %v3999 = vsel %vm3854, %v3946, 0.0
  %v4000 = vadd.f32 %v3998, %v3999
  %v4001 = vsel %vm3854, %v3947, 0.0
  %v4002 = vadd.f32 %v4000, %v4001
  %v4003 = vsel %vm3854, %v3948, 0.0
  %v4004 = vadd.f32 %v4002, %v4003
  %v4005 = vsel %vm3854, %v3949, 0.0
  %v4006 = vadd.f32 %v4004, %v4005
  %v4007 = vsel %vm3854, %v3950, 0.0
  %v4008 = vadd.f32 %v4006, %v4007
  %v4009 = vsel %vm3854, %v3951, 0.0
  %v4010 = vadd.f32 %v4008, %v4009
  %v4011 = vsel %vm3854, %v3952, 0.0
  %v4012 = vadd.f32 %v4010, %v4011
  %v4013 = vsel %vm3854, %v3953, 0.0
  %v4014 = vadd.f32 %v4012, %v4013
  %v4015 = vsel %vm3854, %v3954, 0.0
  %v4016 = vadd.f32 %v4014, %v4015
  %v4017 = vsel %vm3854, %v3955, 0.0
  %v4018 = vadd.f32 %v4016, %v4017
  %v4019 = vrot.slane %v4018, 4
  %v4020 = vadd.f32 %v4018, %v4019
  %v4021 = vrot.slane %v4020, 2
  %v4022 = vadd.f32 %v4020, %v4021
  %v4023 = vrot.slane %v4022, 1
  %v4024 = vadd.f32 %v4022, %v4023
  %v4025 = vmul.f32 %v3923, 0.00390625
  %v4026 = vmul.f32 %v4024, 0.00390625
  %v4027 = vmul.f32 %v4025, %v4025
  %v4028 = vsub.f32 %v4026, %v4027
  %v4029 = vmax.f32 %v4028, 0.0
  %v4030 = vld [vmem:[%s9 + $0xa] sm:$0x1]
  %v4031 = vadd.f32 %v4029, 1e-05
  %v4032 = vrsqrt.pop %v4031
  %v4033 = vmul.f32 %v4032, %v4031
  %v4034 = vmul.f32 %v4033, %v4032
  %v4035 = vmul.f32 0.5, %v4034
  %v4036 = vsub.f32 1.5, %v4035
  %v4037 = vmul.f32 %v4032, %v4036
  %vm4038 = vweird.f32 %v4031
  %vm4039 = vweird.f32 %v4032
  %vm4040 = vmor %vm4038, %vm4039
  %v4041 = vsel %vm4040, %v4032, %v4037
  %v4042 = vmul.f32 %v4030, %v4041
  %v4043 = vld [vmem:[%s9 + $0xb] sm:$0x1]
  %v4044 = vmul.f32 %v4025, %v4042
  %v4045 = vsub.f32 %v4043, %v4044
  %v4047 = vperm.slane %v4042, 0
  %v4049 = vmul.f32 %v3822, %v4047
  %v4050 = vmul.f32 %v3823, %v4047
  %v4051 = vmul.f32 %v3824, %v4047
  %v4052 = vmul.f32 %v3825, %v4047
  %v4053 = vmul.f32 %v3826, %v4047
  %v4054 = vmul.f32 %v3827, %v4047
  %v4055 = vmul.f32 %v3828, %v4047
  %v4056 = vmul.f32 %v3829, %v4047
  %v4057 = vmul.f32 %v3830, %v4047
  %v4058 = vmul.f32 %v3831, %v4047
  %v4059 = vmul.f32 %v3832, %v4047
  %v4060 = vmul.f32 %v3833, %v4047
  %v4061 = vmul.f32 %v3834, %v4047
  %v4062 = vmul.f32 %v3835, %v4047
  %v4063 = vmul.f32 %v3836, %v4047
  %v4064 = vmul.f32 %v3837, %v4047
  %v4065 = vmul.f32 %v3838, %v4047
  %v4066 = vmul.f32 %v3839, %v4047
  %v4067 = vmul.f32 %v3840, %v4047
  %v4068 = vmul.f32 %v3841, %v4047
  %v4069 = vmul.f32 %v3842, %v4047
  %v4070 = vmul.f32 %v3843, %v4047
  %v4071 = vmul.f32 %v3844, %v4047
  %v4072 = vmul.f32 %v3845, %v4047
  %v4073 = vmul.f32 %v3846, %v4047
  %v4074 = vmul.f32 %v3847, %v4047
  %v4075 = vmul.f32 %v3848, %v4047
  %v4076 = vmul.f32 %v3849, %v4047
  %v4077 = vmul.f32 %v3850, %v4047
  %v4078 = vmul.f32 %v3851, %v4047
  %v4079 = vmul.f32 %v3852, %v4047
  %v4080 = vmul.f32 %v3853, %v4047
  %v4082 = vperm.slane %v4045, 0
  %v4084 = vadd.f32 %v4049, %v4082
  %v4085 = vadd.f32 %v4050, %v4082
  %v4086 = vadd.f32 %v4051, %v4082
  %v4087 = vadd.f32 %v4052, %v4082
  %v4088 = vadd.f32 %v4053, %v4082
  %v4089 = vadd.f32 %v4054, %v4082
  %v4090 = vadd.f32 %v4055, %v4082
  %v4091 = vadd.f32 %v4056, %v4082
  %v4092 = vadd.f32 %v4057, %v4082
  %v4093 = vadd.f32 %v4058, %v4082
  %v4094 = vadd.f32 %v4059, %v4082
  %v4095 = vadd.f32 %v4060, %v4082
  %v4096 = vadd.f32 %v4061, %v4082
  %v4097 = vadd.f32 %v4062, %v4082
  %v4098 = vadd.f32 %v4063, %v4082
  %v4099 = vadd.f32 %v4064, %v4082
  %v4100 = vadd.f32 %v4065, %v4082
  %v4101 = vadd.f32 %v4066, %v4082
  %v4102 = vadd.f32 %v4067, %v4082
  %v4103 = vadd.f32 %v4068, %v4082
  %v4104 = vadd.f32 %v4069, %v4082
  %v4105 = vadd.f32 %v4070, %v4082
  %v4106 = vadd.f32 %v4071, %v4082
  %v4107 = vadd.f32 %v4072, %v4082
  %v4108 = vadd.f32 %v4073, %v4082
  %v4109 = vadd.f32 %v4074, %v4082
  %v4110 = vadd.f32 %v4075, %v4082
  %v4111 = vadd.f32 %v4076, %v4082
  %v4112 = vadd.f32 %v4077, %v4082
  %v4113 = vadd.f32 %v4078, %v4082
  %v4114 = vadd.f32 %v4079, %v4082
  %v4115 = vadd.f32 %v4080, %v4082
  %v4116 = vpack.c.bf16 %v4085, %v4084
  %v4117 = vpack.c.bf16 %v4087, %v4086
  %v4118 = vpack.c.bf16 %v4089, %v4088
  %v4119 = vpack.c.bf16 %v4091, %v4090
  %v4120 = vpack.c.bf16 %v4093, %v4092
  %v4121 = vpack.c.bf16 %v4095, %v4094
  %v4122 = vpack.c.bf16 %v4097, %v4096
  %v4123 = vpack.c.bf16 %v4099, %v4098
  %v4124 = vpack.c.bf16 %v4101, %v4100
  %v4125 = vpack.c.bf16 %v4103, %v4102
  %v4126 = vpack.c.bf16 %v4105, %v4104
  %v4127 = vpack.c.bf16 %v4107, %v4106
  %v4128 = vpack.c.bf16 %v4109, %v4108
  %v4129 = vpack.c.bf16 %v4111, %v4110
  %v4130 = vpack.c.bf16 %v4113, %v4112
  %v4131 = vpack.c.bf16 %v4115, %v4114
  %v4132 = vld [vmem:[%s4] sm:$0xf]
  %v4133 = vld [vmem:[%s4 + $0x4] sm:$0xf]
  %v4134 = vld [vmem:[%s4 + $0x8] sm:$0xf]
  %v4135 = vld [vmem:[%s4 + $0xc] sm:$0xf]
  %v4136 = vld [vmem:[%s4 + $0x10] sm:$0xf]
  %v4137 = vld [vmem:[%s4 + $0x14] sm:$0xf]
  %v4138 = vld [vmem:[%s4 + $0x18] sm:$0xf]
  %v4139 = vld [vmem:[%s4 + $0x1c] sm:$0xf]
  %v4140 = vld [vmem:[%s9 + $0xc] sm:$0x1]
  %v4142 = vperm.slane %v4140, 0
  %v4152 = vunpack.c.l.b16 %v4132
  %v4153 = vunpack.c.l.b16 %v4133
  %v4154 = vunpack.c.l.b16 %v4134
  %v4155 = vunpack.c.l.b16 %v4135
  %v4156 = vunpack.c.l.b16 %v4136
  %v4157 = vunpack.c.l.b16 %v4137
  %v4158 = vunpack.c.l.b16 %v4138
  %v4159 = vunpack.c.l.b16 %v4139
  %v4160 = vpack.c.b16 %v4153, %v4152
  %v4161 = vpack.c.b16 %v4155, %v4154
  %v4162 = vpack.c.b16 %v4157, %v4156
  %v4163 = vpack.c.b16 %v4159, %v4158
  %v4169 = vsel %vm3854, %v4116, 0
  %v4172 = vsel %vm3854, %v4117, 0
  %v4175 = vsel %vm3854, %v4118, 0
  %v4178 = vsel %vm3854, %v4119, 0
  %v4181 = vsel %vm3854, %v4120, 0
  %v4184 = vsel %vm3854, %v4121, 0
  %v4187 = vsel %vm3854, %v4122, 0
  %v4190 = vsel %vm3854, %v4123, 0
  %v4193 = vsel %vm3854, %v4124, 0
  %v4196 = vsel %vm3854, %v4125, 0
  %v4199 = vsel %vm3854, %v4126, 0
  %v4202 = vsel %vm3854, %v4127, 0
  %v4205 = vsel %vm3854, %v4128, 0
  %v4208 = vsel %vm3854, %v4129, 0
  %v4211 = vsel %vm3854, %v4130, 0
  %v4214 = vsel %vm3854, %v4131, 0
  %4216 = vmatpush.bf16.msra.mxu0 0
  %4217 = vmatpush.bf16.msra.mxu0 0
  %4218 = vmatpush.bf16.msra.mxu0 0
  %4219 = vmatpush.bf16.msra.mxu0 0
  %4220 = vmatpush.bf16.msra.mxu0 %v4163
  %4221 = vmatpush.bf16.msra.mxu0 %v4162
  %4222 = vmatpush.bf16.msra.mxu0 %v4161
  %4223 = vmatpush.bf16.msra.mxu0 %v4160
  %4224 = vmatmul.bf16.gmra.mxu0 %v4169
  %v4225 = vpop.f32.mrf.mxu0
  %v4226 = vadd.f32 %v4142, %v4225
  %v4227 = vpop.f32.mrf.mxu0
  %v4228 = vadd.f32 %v4142, %v4227
  %4229 = vmatmul.bf16.gmra.mxu0 %v4172
  %v4230 = vpop.f32.mrf.mxu0
  %v4231 = vadd.f32 %v4142, %v4230
  %v4232 = vpop.f32.mrf.mxu0
  %v4233 = vadd.f32 %v4142, %v4232
  %4234 = vmatmul.bf16.gmra.mxu0 %v4175
  %v4235 = vpop.f32.mrf.mxu0
  %v4236 = vadd.f32 %v4142, %v4235
  %v4237 = vpop.f32.mrf.mxu0
  %v4238 = vadd.f32 %v4142, %v4237
  %4239 = vmatmul.bf16.gmra.mxu0 %v4178
  %v4240 = vpop.f32.mrf.mxu0
  %v4241 = vadd.f32 %v4142, %v4240
  %v4242 = vpop.f32.mrf.mxu0
  %v4243 = vadd.f32 %v4142, %v4242
  %4244 = vmatmul.bf16.gmra.mxu0 %v4181
  %v4245 = vpop.f32.mrf.mxu0
  %v4246 = vadd.f32 %v4142, %v4245
  %v4247 = vpop.f32.mrf.mxu0
  %v4248 = vadd.f32 %v4142, %v4247
  %4249 = vmatmul.bf16.gmra.mxu0 %v4184
  %v4250 = vpop.f32.mrf.mxu0
  %v4251 = vadd.f32 %v4142, %v4250
  %v4252 = vpop.f32.mrf.mxu0
  %v4253 = vadd.f32 %v4142, %v4252
  %4254 = vmatmul.bf16.gmra.mxu0 %v4187
  %v4255 = vpop.f32.mrf.mxu0
  %v4256 = vadd.f32 %v4142, %v4255
  %v4257 = vpop.f32.mrf.mxu0
  %v4258 = vadd.f32 %v4142, %v4257
  %4259 = vmatmul.bf16.gmra.mxu0 %v4190
  %v4260 = vpop.f32.mrf.mxu0
  %v4261 = vadd.f32 %v4142, %v4260
  %v4262 = vpop.f32.mrf.mxu0
  %v4263 = vadd.f32 %v4142, %v4262
  %4264 = vmatmul.bf16.gmra.mxu0 %v4193
  %v4265 = vpop.f32.mrf.mxu0
  %v4266 = vadd.f32 %v4142, %v4265
  %v4267 = vpop.f32.mrf.mxu0
  %v4268 = vadd.f32 %v4142, %v4267
  %4269 = vmatmul.bf16.gmra.mxu0 %v4196
  %v4270 = vpop.f32.mrf.mxu0
  %v4271 = vadd.f32 %v4142, %v4270
  %v4272 = vpop.f32.mrf.mxu0
  %v4273 = vadd.f32 %v4142, %v4272
  %4274 = vmatmul.bf16.gmra.mxu0 %v4199
  %v4275 = vpop.f32.mrf.mxu0
  %v4276 = vadd.f32 %v4142, %v4275
  %v4277 = vpop.f32.mrf.mxu0
  %v4278 = vadd.f32 %v4142, %v4277
  %4279 = vmatmul.bf16.gmra.mxu0 %v4202
  %v4280 = vpop.f32.mrf.mxu0
  %v4281 = vadd.f32 %v4142, %v4280
  %v4282 = vpop.f32.mrf.mxu0
  %v4283 = vadd.f32 %v4142, %v4282
  %4284 = vmatmul.bf16.gmra.mxu0 %v4205
  %v4285 = vpop.f32.mrf.mxu0
  %v4286 = vadd.f32 %v4142, %v4285
  %v4287 = vpop.f32.mrf.mxu0
  %v4288 = vadd.f32 %v4142, %v4287
  %4289 = vmatmul.bf16.gmra.mxu0 %v4208
  %v4290 = vpop.f32.mrf.mxu0
  %v4291 = vadd.f32 %v4142, %v4290
  %v4292 = vpop.f32.mrf.mxu0
  %v4293 = vadd.f32 %v4142, %v4292
  %4294 = vmatmul.bf16.gmra.mxu0 %v4211
  %v4295 = vpop.f32.mrf.mxu0
  %v4296 = vadd.f32 %v4142, %v4295
  %v4297 = vpop.f32.mrf.mxu0
  %v4298 = vadd.f32 %v4142, %v4297
  %4299 = vmatmul.bf16.gmra.mxu0 %v4214
  %v4300 = vpop.f32.mrf.mxu0
  %v4301 = vadd.f32 %v4142, %v4300
  %v4302 = vpop.f32.mrf.mxu0
  %v4303 = vadd.f32 %v4142, %v4302
  %4304 = vdwg.mxu0
  %v4305 = vpack.c.bf16 %v4226, %v4226
  %v4306 = vpack.c.bf16 %v4228, %v4228
  %v4307 = vpack.c.bf16 %v4231, %v4231
  %v4308 = vpack.c.bf16 %v4233, %v4233
  %v4309 = vpack.c.bf16 %v4236, %v4236
  %v4310 = vpack.c.bf16 %v4238, %v4238
  %v4311 = vpack.c.bf16 %v4241, %v4241
  %v4312 = vpack.c.bf16 %v4243, %v4243
  %v4313 = vpack.c.bf16 %v4246, %v4246
  %v4314 = vpack.c.bf16 %v4248, %v4248
  %v4315 = vpack.c.bf16 %v4251, %v4251
  %v4316 = vpack.c.bf16 %v4253, %v4253
  %v4317 = vpack.c.bf16 %v4256, %v4256
  %v4318 = vpack.c.bf16 %v4258, %v4258
  %v4319 = vpack.c.bf16 %v4261, %v4261
  %v4320 = vpack.c.bf16 %v4263, %v4263
  %v4321 = vpack.c.bf16 %v4266, %v4266
  %v4322 = vpack.c.bf16 %v4268, %v4268
  %v4323 = vpack.c.bf16 %v4271, %v4271
  %v4324 = vpack.c.bf16 %v4273, %v4273
  %v4325 = vpack.c.bf16 %v4276, %v4276
  %v4326 = vpack.c.bf16 %v4278, %v4278
  %v4327 = vpack.c.bf16 %v4281, %v4281
  %v4328 = vpack.c.bf16 %v4283, %v4283
  %v4329 = vpack.c.bf16 %v4286, %v4286
  %v4330 = vpack.c.bf16 %v4288, %v4288
  %v4331 = vpack.c.bf16 %v4291, %v4291
  %v4332 = vpack.c.bf16 %v4293, %v4293
  %v4333 = vpack.c.bf16 %v4296, %v4296
  %v4334 = vpack.c.bf16 %v4298, %v4298
  %v4335 = vpack.c.bf16 %v4301, %v4301
  %v4336 = vpack.c.bf16 %v4303, %v4303
  %4337 = vst [vmem:[%s10] sm:$0xf] %v4305
  %4338 = vst [vmem:[%s10 + $0x4] sm:$0xf] %v4306
  %4339 = vst [vmem:[%s10 + $0x8] sm:$0xf] %v4307
  %4340 = vst [vmem:[%s10 + $0xc] sm:$0xf] %v4308
  %4341 = vst [vmem:[%s10 + $0x10] sm:$0xf] %v4309
  %4342 = vst [vmem:[%s10 + $0x14] sm:$0xf] %v4310
  %4343 = vst [vmem:[%s10 + $0x18] sm:$0xf] %v4311
  %4344 = vst [vmem:[%s10 + $0x1c] sm:$0xf] %v4312
  %4345 = vst [vmem:[%s10 + $0x20] sm:$0xf] %v4313
  %4346 = vst [vmem:[%s10 + $0x24] sm:$0xf] %v4314
  %4347 = vst [vmem:[%s10 + $0x28] sm:$0xf] %v4315
  %4348 = vst [vmem:[%s10 + $0x2c] sm:$0xf] %v4316
  %4349 = vst [vmem:[%s10 + $0x30] sm:$0xf] %v4317
  %4350 = vst [vmem:[%s10 + $0x34] sm:$0xf] %v4318
  %4351 = vst [vmem:[%s10 + $0x38] sm:$0xf] %v4319
  %4352 = vst [vmem:[%s10 + $0x3c] sm:$0xf] %v4320
  %4353 = vst [vmem:[%s10 + $0x40] sm:$0xf] %v4321
  %4354 = vst [vmem:[%s10 + $0x44] sm:$0xf] %v4322
  %4355 = vst [vmem:[%s10 + $0x48] sm:$0xf] %v4323
  %4356 = vst [vmem:[%s10 + $0x4c] sm:$0xf] %v4324
  %4357 = vst [vmem:[%s10 + $0x50] sm:$0xf] %v4325
  %4358 = vst [vmem:[%s10 + $0x54] sm:$0xf] %v4326
  %4359 = vst [vmem:[%s10 + $0x58] sm:$0xf] %v4327
  %4360 = vst [vmem:[%s10 + $0x5c] sm:$0xf] %v4328
  %4361 = vst [vmem:[%s10 + $0x60] sm:$0xf] %v4329
  %4362 = vst [vmem:[%s10 + $0x64] sm:$0xf] %v4330
  %4363 = vst [vmem:[%s10 + $0x68] sm:$0xf] %v4331
  %4364 = vst [vmem:[%s10 + $0x6c] sm:$0xf] %v4332
  %4365 = vst [vmem:[%s10 + $0x70] sm:$0xf] %v4333
  %4366 = vst [vmem:[%s10 + $0x74] sm:$0xf] %v4334
  %4367 = vst [vmem:[%s10 + $0x78] sm:$0xf] %v4335
  %4368 = vst [vmem:[%s10 + $0x7c] sm:$0xf] %v4336
  %v4369 = vld [vmem:[%s5] sm:$0xf]
  %v4370 = vld [vmem:[%s5 + $0x4] sm:$0xf]
  %v4371 = vld [vmem:[%s5 + $0x8] sm:$0xf]
  %v4372 = vld [vmem:[%s5 + $0xc] sm:$0xf]
  %v4373 = vld [vmem:[%s5 + $0x10] sm:$0xf]
  %v4374 = vld [vmem:[%s5 + $0x14] sm:$0xf]
  %v4375 = vld [vmem:[%s5 + $0x18] sm:$0xf]
  %v4376 = vld [vmem:[%s5 + $0x1c] sm:$0xf]
  %v4377 = vld [vmem:[%s5 + $0x20] sm:$0xf]
  %v4378 = vld [vmem:[%s5 + $0x24] sm:$0xf]
  %v4379 = vld [vmem:[%s5 + $0x28] sm:$0xf]
  %v4380 = vld [vmem:[%s5 + $0x2c] sm:$0xf]
  %v4381 = vld [vmem:[%s5 + $0x30] sm:$0xf]
  %v4382 = vld [vmem:[%s5 + $0x34] sm:$0xf]
  %v4383 = vld [vmem:[%s5 + $0x38] sm:$0xf]
  %v4384 = vld [vmem:[%s5 + $0x3c] sm:$0xf]
  %v4385 = vld [vmem:[%s9 + $0xd] sm:$0x1]
  %v4387 = vperm.slane %v4385, 0
  %v4421 = vunpack.c.l.b16 %v4305
  %v4422 = vunpack.c.l.b16 %v4306
  %v4423 = vunpack.c.l.b16 %v4307
  %v4424 = vunpack.c.l.b16 %v4308
  %v4425 = vunpack.c.l.b16 %v4309
  %v4426 = vunpack.c.l.b16 %v4310
  %v4427 = vunpack.c.l.b16 %v4311
  %v4428 = vunpack.c.l.b16 %v4312
  %v4429 = vunpack.c.l.b16 %v4313
  %v4430 = vunpack.c.l.b16 %v4314
  %v4431 = vunpack.c.l.b16 %v4315
  %v4432 = vunpack.c.l.b16 %v4316
  %v4433 = vunpack.c.l.b16 %v4317
  %v4434 = vunpack.c.l.b16 %v4318
  %v4435 = vunpack.c.l.b16 %v4319
  %v4436 = vunpack.c.l.b16 %v4320
  %v4437 = vunpack.c.l.b16 %v4321
  %v4438 = vunpack.c.l.b16 %v4322
  %v4439 = vunpack.c.l.b16 %v4323
  %v4440 = vunpack.c.l.b16 %v4324
  %v4441 = vunpack.c.l.b16 %v4325
  %v4442 = vunpack.c.l.b16 %v4326
  %v4443 = vunpack.c.l.b16 %v4327
  %v4444 = vunpack.c.l.b16 %v4328
  %v4445 = vunpack.c.l.b16 %v4329
  %v4446 = vunpack.c.l.b16 %v4330
  %v4447 = vunpack.c.l.b16 %v4331
  %v4448 = vunpack.c.l.b16 %v4332
  %v4449 = vunpack.c.l.b16 %v4333
  %v4450 = vunpack.c.l.b16 %v4334
  %v4451 = vunpack.c.l.b16 %v4335
  %v4452 = vunpack.c.l.b16 %v4336
  %v4453 = vpack.c.b16 %v4422, %v4421
  %v4454 = vpack.c.b16 %v4424, %v4423
  %v4455 = vpack.c.b16 %v4426, %v4425
  %v4456 = vpack.c.b16 %v4428, %v4427
  %v4457 = vpack.c.b16 %v4430, %v4429
  %v4458 = vpack.c.b16 %v4432, %v4431
  %v4459 = vpack.c.b16 %v4434, %v4433
  %v4460 = vpack.c.b16 %v4436, %v4435
  %v4461 = vpack.c.b16 %v4438, %v4437
  %v4462 = vpack.c.b16 %v4440, %v4439
  %v4463 = vpack.c.b16 %v4442, %v4441
  %v4464 = vpack.c.b16 %v4444, %v4443
  %v4465 = vpack.c.b16 %v4446, %v4445
  %v4466 = vpack.c.b16 %v4448, %v4447
  %v4467 = vpack.c.b16 %v4450, %v4449
  %v4468 = vpack.c.b16 %v4452, %v4451
  %v4501 = vunpack.c.l.b16 %v4369
  %v4502 = vunpack.c.l.b16 %v4370
  %v4503 = vunpack.c.l.b16 %v4371
  %v4504 = vunpack.c.l.b16 %v4372
  %v4505 = vunpack.c.l.b16 %v4373
  %v4506 = vunpack.c.l.b16 %v4374
  %v4507 = vunpack.c.l.b16 %v4375
  %v4508 = vunpack.c.l.b16 %v4376
  %v4509 = vunpack.c.l.b16 %v4377
  %v4510 = vunpack.c.l.b16 %v4378
  %v4511 = vunpack.c.l.b16 %v4379
  %v4512 = vunpack.c.l.b16 %v4380
  %v4513 = vunpack.c.l.b16 %v4381
  %v4514 = vunpack.c.l.b16 %v4382
  %v4515 = vunpack.c.l.b16 %v4383
  %v4516 = vunpack.c.l.b16 %v4384
  %v4517 = vpack.c.b16 %v4502, %v4501
  %v4518 = vpack.c.b16 %v4504, %v4503
  %v4519 = vpack.c.b16 %v4506, %v4505
  %v4520 = vpack.c.b16 %v4508, %v4507
  %v4521 = vpack.c.b16 %v4510, %v4509
  %v4522 = vpack.c.b16 %v4512, %v4511
  %v4523 = vpack.c.b16 %v4514, %v4513
  %v4524 = vpack.c.b16 %v4516, %v4515
  %4533 = vmatpush.bf16.msra.mxu0 %v4524
  %4534 = vmatpush.bf16.msra.mxu0 %v4523
  %4535 = vmatpush.bf16.msra.mxu0 %v4522
  %4536 = vmatpush.bf16.msra.mxu0 %v4521
  %4537 = vmatpush.bf16.msra.mxu0 %v4520
  %4538 = vmatpush.bf16.msra.mxu0 %v4519
  %4539 = vmatpush.bf16.msra.mxu0 %v4518
  %4540 = vmatpush.bf16.msra.mxu0 %v4517
  %4541 = vmatmul.bf16.gmra.mxu0 %v4453
  %v4542 = vpop.f32.mrf.mxu0
  %v4543 = vadd.f32 %v4387, %v4542
  %v4544 = vpop.f32.mrf.mxu0
  %v4545 = vadd.f32 %v4387, %v4544
  %4546 = vmatmul.bf16.gmra.mxu0 %v4454
  %v4547 = vpop.f32.mrf.mxu0
  %v4548 = vadd.f32 %v4387, %v4547
  %v4549 = vpop.f32.mrf.mxu0
  %v4550 = vadd.f32 %v4387, %v4549
  %4551 = vmatmul.bf16.gmra.mxu0 %v4455
  %v4552 = vpop.f32.mrf.mxu0
  %v4553 = vadd.f32 %v4387, %v4552
  %v4554 = vpop.f32.mrf.mxu0
  %v4555 = vadd.f32 %v4387, %v4554
  %4556 = vmatmul.bf16.gmra.mxu0 %v4456
  %v4557 = vpop.f32.mrf.mxu0
  %v4558 = vadd.f32 %v4387, %v4557
  %v4559 = vpop.f32.mrf.mxu0
  %v4560 = vadd.f32 %v4387, %v4559
  %4561 = vmatmul.bf16.gmra.mxu0 %v4457
  %v4562 = vpop.f32.mrf.mxu0
  %v4563 = vadd.f32 %v4387, %v4562
  %v4564 = vpop.f32.mrf.mxu0
  %v4565 = vadd.f32 %v4387, %v4564
  %4566 = vmatmul.bf16.gmra.mxu0 %v4458
  %v4567 = vpop.f32.mrf.mxu0
  %v4568 = vadd.f32 %v4387, %v4567
  %v4569 = vpop.f32.mrf.mxu0
  %v4570 = vadd.f32 %v4387, %v4569
  %4571 = vmatmul.bf16.gmra.mxu0 %v4459
  %v4572 = vpop.f32.mrf.mxu0
  %v4573 = vadd.f32 %v4387, %v4572
  %v4574 = vpop.f32.mrf.mxu0
  %v4575 = vadd.f32 %v4387, %v4574
  %4576 = vmatmul.bf16.gmra.mxu0 %v4460
  %v4577 = vpop.f32.mrf.mxu0
  %v4578 = vadd.f32 %v4387, %v4577
  %v4579 = vpop.f32.mrf.mxu0
  %v4580 = vadd.f32 %v4387, %v4579
  %4581 = vmatmul.bf16.gmra.mxu0 %v4461
  %v4582 = vpop.f32.mrf.mxu0
  %v4583 = vadd.f32 %v4387, %v4582
  %v4584 = vpop.f32.mrf.mxu0
  %v4585 = vadd.f32 %v4387, %v4584
  %4586 = vmatmul.bf16.gmra.mxu0 %v4462
  %v4587 = vpop.f32.mrf.mxu0
  %v4588 = vadd.f32 %v4387, %v4587
  %v4589 = vpop.f32.mrf.mxu0
  %v4590 = vadd.f32 %v4387, %v4589
  %4591 = vmatmul.bf16.gmra.mxu0 %v4463
  %v4592 = vpop.f32.mrf.mxu0
  %v4593 = vadd.f32 %v4387, %v4592
  %v4594 = vpop.f32.mrf.mxu0
  %v4595 = vadd.f32 %v4387, %v4594
  %4596 = vmatmul.bf16.gmra.mxu0 %v4464
  %v4597 = vpop.f32.mrf.mxu0
  %v4598 = vadd.f32 %v4387, %v4597
  %v4599 = vpop.f32.mrf.mxu0
  %v4600 = vadd.f32 %v4387, %v4599
  %4601 = vmatmul.bf16.gmra.mxu0 %v4465
  %v4602 = vpop.f32.mrf.mxu0
  %v4603 = vadd.f32 %v4387, %v4602
  %v4604 = vpop.f32.mrf.mxu0
  %v4605 = vadd.f32 %v4387, %v4604
  %4606 = vmatmul.bf16.gmra.mxu0 %v4466
  %v4607 = vpop.f32.mrf.mxu0
  %v4608 = vadd.f32 %v4387, %v4607
  %v4609 = vpop.f32.mrf.mxu0
  %v4610 = vadd.f32 %v4387, %v4609
  %4611 = vmatmul.bf16.gmra.mxu0 %v4467
  %v4612 = vpop.f32.mrf.mxu0
  %v4613 = vadd.f32 %v4387, %v4612
  %v4614 = vpop.f32.mrf.mxu0
  %v4615 = vadd.f32 %v4387, %v4614
  %4616 = vmatmul.bf16.gmra.mxu0 %v4468
  %v4617 = vpop.f32.mrf.mxu0
  %v4618 = vadd.f32 %v4387, %v4617
  %v4619 = vpop.f32.mrf.mxu0
  %v4620 = vadd.f32 %v4387, %v4619
  %4621 = vdwg.mxu0
  %v4622 = vmax.f32 %v4543, 0.0
  %v4623 = vmax.f32 %v4545, 0.0
  %v4624 = vmax.f32 %v4548, 0.0
  %v4625 = vmax.f32 %v4550, 0.0
  %v4626 = vmax.f32 %v4553, 0.0
  %v4627 = vmax.f32 %v4555, 0.0
  %v4628 = vmax.f32 %v4558, 0.0
  %v4629 = vmax.f32 %v4560, 0.0
  %v4630 = vmax.f32 %v4563, 0.0
  %v4631 = vmax.f32 %v4565, 0.0
  %v4632 = vmax.f32 %v4568, 0.0
  %v4633 = vmax.f32 %v4570, 0.0
  %v4634 = vmax.f32 %v4573, 0.0
  %v4635 = vmax.f32 %v4575, 0.0
  %v4636 = vmax.f32 %v4578, 0.0
  %v4637 = vmax.f32 %v4580, 0.0
  %v4638 = vmax.f32 %v4583, 0.0
  %v4639 = vmax.f32 %v4585, 0.0
  %v4640 = vmax.f32 %v4588, 0.0
  %v4641 = vmax.f32 %v4590, 0.0
  %v4642 = vmax.f32 %v4593, 0.0
  %v4643 = vmax.f32 %v4595, 0.0
  %v4644 = vmax.f32 %v4598, 0.0
  %v4645 = vmax.f32 %v4600, 0.0
  %v4646 = vmax.f32 %v4603, 0.0
  %v4647 = vmax.f32 %v4605, 0.0
  %v4648 = vmax.f32 %v4608, 0.0
  %v4649 = vmax.f32 %v4610, 0.0
  %v4650 = vmax.f32 %v4613, 0.0
  %v4651 = vmax.f32 %v4615, 0.0
  %v4652 = vmax.f32 %v4618, 0.0
  %v4653 = vmax.f32 %v4620, 0.0
  %v4654 = vsel %vm3854, %v4622, 0.0
  %v4655 = vsel %vm3854, %v4623, 0.0
  %v4656 = vadd.f32 %v4654, %v4655
  %v4657 = vsel %vm3854, %v4624, 0.0
  %v4658 = vadd.f32 %v4656, %v4657
  %v4659 = vsel %vm3854, %v4625, 0.0
  %v4660 = vadd.f32 %v4658, %v4659
  %v4661 = vsel %vm3854, %v4626, 0.0
  %v4662 = vadd.f32 %v4660, %v4661
  %v4663 = vsel %vm3854, %v4627, 0.0
  %v4664 = vadd.f32 %v4662, %v4663
  %v4665 = vsel %vm3854, %v4628, 0.0
  %v4666 = vadd.f32 %v4664, %v4665
  %v4667 = vsel %vm3854, %v4629, 0.0
  %v4668 = vadd.f32 %v4666, %v4667
  %v4669 = vsel %vm3854, %v4630, 0.0
  %v4670 = vadd.f32 %v4668, %v4669
  %v4671 = vsel %vm3854, %v4631, 0.0
  %v4672 = vadd.f32 %v4670, %v4671
  %v4673 = vsel %vm3854, %v4632, 0.0
  %v4674 = vadd.f32 %v4672, %v4673
  %v4675 = vsel %vm3854, %v4633, 0.0
  %v4676 = vadd.f32 %v4674, %v4675
  %v4677 = vsel %vm3854, %v4634, 0.0
  %v4678 = vadd.f32 %v4676, %v4677
  %v4679 = vsel %vm3854, %v4635, 0.0
  %v4680 = vadd.f32 %v4678, %v4679
  %v4681 = vsel %vm3854, %v4636, 0.0
  %v4682 = vadd.f32 %v4680, %v4681
  %v4683 = vsel %vm3854, %v4637, 0.0
  %v4684 = vadd.f32 %v4682, %v4683
  %v4685 = vsel %vm3854, %v4638, 0.0
  %v4686 = vadd.f32 %v4684, %v4685
  %v4687 = vsel %vm3854, %v4639, 0.0
  %v4688 = vadd.f32 %v4686, %v4687
  %v4689 = vsel %vm3854, %v4640, 0.0
  %v4690 = vadd.f32 %v4688, %v4689
  %v4691 = vsel %vm3854, %v4641, 0.0
  %v4692 = vadd.f32 %v4690, %v4691
  %v4693 = vsel %vm3854, %v4642, 0.0
  %v4694 = vadd.f32 %v4692, %v4693
  %v4695 = vsel %vm3854, %v4643, 0.0
  %v4696 = vadd.f32 %v4694, %v4695
  %v4697 = vsel %vm3854, %v4644, 0.0
  %v4698 = vadd.f32 %v4696, %v4697
  %v4699 = vsel %vm3854, %v4645, 0.0
  %v4700 = vadd.f32 %v4698, %v4699
  %v4701 = vsel %vm3854, %v4646, 0.0
  %v4702 = vadd.f32 %v4700, %v4701
  %v4703 = vsel %vm3854, %v4647, 0.0
  %v4704 = vadd.f32 %v4702, %v4703
  %v4705 = vsel %vm3854, %v4648, 0.0
  %v4706 = vadd.f32 %v4704, %v4705
  %v4707 = vsel %vm3854, %v4649, 0.0
  %v4708 = vadd.f32 %v4706, %v4707
  %v4709 = vsel %vm3854, %v4650, 0.0
  %v4710 = vadd.f32 %v4708, %v4709
  %v4711 = vsel %vm3854, %v4651, 0.0
  %v4712 = vadd.f32 %v4710, %v4711
  %v4713 = vsel %vm3854, %v4652, 0.0
  %v4714 = vadd.f32 %v4712, %v4713
  %v4715 = vsel %vm3854, %v4653, 0.0
  %v4716 = vadd.f32 %v4714, %v4715
  %v4717 = vrot.slane %v4716, 4
  %v4718 = vadd.f32 %v4716, %v4717
  %v4719 = vrot.slane %v4718, 2
  %v4720 = vadd.f32 %v4718, %v4719
  %v4721 = vrot.slane %v4720, 1
  %v4722 = vadd.f32 %v4720, %v4721
  %v4723 = vmul.f32 %v4622, %v4622
  %v4724 = vmul.f32 %v4623, %v4623
  %v4725 = vmul.f32 %v4624, %v4624
  %v4726 = vmul.f32 %v4625, %v4625
  %v4727 = vmul.f32 %v4626, %v4626
  %v4728 = vmul.f32 %v4627, %v4627
  %v4729 = vmul.f32 %v4628, %v4628
  %v4730 = vmul.f32 %v4629, %v4629
  %v4731 = vmul.f32 %v4630, %v4630
  %v4732 = vmul.f32 %v4631, %v4631
  %v4733 = vmul.f32 %v4632, %v4632
  %v4734 = vmul.f32 %v4633, %v4633
  %v4735 = vmul.f32 %v4634, %v4634
  %v4736 = vmul.f32 %v4635, %v4635
  %v4737 = vmul.f32 %v4636, %v4636
  %v4738 = vmul.f32 %v4637, %v4637
  %v4739 = vmul.f32 %v4638, %v4638
  %v4740 = vmul.f32 %v4639, %v4639
  %v4741 = vmul.f32 %v4640, %v4640
  %v4742 = vmul.f32 %v4641, %v4641
  %v4743 = vmul.f32 %v4642, %v4642
  %v4744 = vmul.f32 %v4643, %v4643
  %v4745 = vmul.f32 %v4644, %v4644
  %v4746 = vmul.f32 %v4645, %v4645
  %v4747 = vmul.f32 %v4646, %v4646
  %v4748 = vmul.f32 %v4647, %v4647
  %v4749 = vmul.f32 %v4648, %v4648
  %v4750 = vmul.f32 %v4649, %v4649
  %v4751 = vmul.f32 %v4650, %v4650
  %v4752 = vmul.f32 %v4651, %v4651
  %v4753 = vmul.f32 %v4652, %v4652
  %v4754 = vmul.f32 %v4653, %v4653
  %v4755 = vsel %vm3854, %v4723, 0.0
  %v4756 = vsel %vm3854, %v4724, 0.0
  %v4757 = vadd.f32 %v4755, %v4756
  %v4758 = vsel %vm3854, %v4725, 0.0
  %v4759 = vadd.f32 %v4757, %v4758
  %v4760 = vsel %vm3854, %v4726, 0.0
  %v4761 = vadd.f32 %v4759, %v4760
  %v4762 = vsel %vm3854, %v4727, 0.0
  %v4763 = vadd.f32 %v4761, %v4762
  %v4764 = vsel %vm3854, %v4728, 0.0
  %v4765 = vadd.f32 %v4763, %v4764
  %v4766 = vsel %vm3854, %v4729, 0.0
  %v4767 = vadd.f32 %v4765, %v4766
  %v4768 = vsel %vm3854, %v4730, 0.0
  %v4769 = vadd.f32 %v4767, %v4768
  %v4770 = vsel %vm3854, %v4731, 0.0
  %v4771 = vadd.f32 %v4769, %v4770
  %v4772 = vsel %vm3854, %v4732, 0.0
  %v4773 = vadd.f32 %v4771, %v4772
  %v4774 = vsel %vm3854, %v4733, 0.0
  %v4775 = vadd.f32 %v4773, %v4774
  %v4776 = vsel %vm3854, %v4734, 0.0
  %v4777 = vadd.f32 %v4775, %v4776
  %v4778 = vsel %vm3854, %v4735, 0.0
  %v4779 = vadd.f32 %v4777, %v4778
  %v4780 = vsel %vm3854, %v4736, 0.0
  %v4781 = vadd.f32 %v4779, %v4780
  %v4782 = vsel %vm3854, %v4737, 0.0
  %v4783 = vadd.f32 %v4781, %v4782
  %v4784 = vsel %vm3854, %v4738, 0.0
  %v4785 = vadd.f32 %v4783, %v4784
  %v4786 = vsel %vm3854, %v4739, 0.0
  %v4787 = vadd.f32 %v4785, %v4786
  %v4788 = vsel %vm3854, %v4740, 0.0
  %v4789 = vadd.f32 %v4787, %v4788
  %v4790 = vsel %vm3854, %v4741, 0.0
  %v4791 = vadd.f32 %v4789, %v4790
  %v4792 = vsel %vm3854, %v4742, 0.0
  %v4793 = vadd.f32 %v4791, %v4792
  %v4794 = vsel %vm3854, %v4743, 0.0
  %v4795 = vadd.f32 %v4793, %v4794
  %v4796 = vsel %vm3854, %v4744, 0.0
  %v4797 = vadd.f32 %v4795, %v4796
  %v4798 = vsel %vm3854, %v4745, 0.0
  %v4799 = vadd.f32 %v4797, %v4798
  %v4800 = vsel %vm3854, %v4746, 0.0
  %v4801 = vadd.f32 %v4799, %v4800
  %v4802 = vsel %vm3854, %v4747, 0.0
  %v4803 = vadd.f32 %v4801, %v4802
  %v4804 = vsel %vm3854, %v4748, 0.0
  %v4805 = vadd.f32 %v4803, %v4804
  %v4806 = vsel %vm3854, %v4749, 0.0
  %v4807 = vadd.f32 %v4805, %v4806
  %v4808 = vsel %vm3854, %v4750, 0.0
  %v4809 = vadd.f32 %v4807, %v4808
  %v4810 = vsel %vm3854, %v4751, 0.0
  %v4811 = vadd.f32 %v4809, %v4810
  %v4812 = vsel %vm3854, %v4752, 0.0
  %v4813 = vadd.f32 %v4811, %v4812
  %v4814 = vsel %vm3854, %v4753, 0.0
  %v4815 = vadd.f32 %v4813, %v4814
  %v4816 = vsel %vm3854, %v4754, 0.0
  %v4817 = vadd.f32 %v4815, %v4816
  %v4818 = vrot.slane %v4817, 4
  %v4819 = vadd.f32 %v4817, %v4818
  %v4820 = vrot.slane %v4819, 2
  %v4821 = vadd.f32 %v4819, %v4820
  %v4822 = vrot.slane %v4821, 1
  %v4823 = vadd.f32 %v4821, %v4822
  %v4824 = vmul.f32 %v4722, 0.00390625
  %v4825 = vmul.f32 %v4823, 0.00390625
  %v4826 = vmul.f32 %v4824, %v4824
  %v4827 = vsub.f32 %v4825, %v4826
  %v4828 = vmax.f32 %v4827, 0.0
  %v4829 = vld [vmem:[%s9 + $0xe] sm:$0x1]
  %v4830 = vadd.f32 %v4828, 1e-05
  %v4831 = vrsqrt.pop %v4830
  %v4832 = vmul.f32 %v4831, %v4830
  %v4833 = vmul.f32 %v4832, %v4831
  %v4834 = vmul.f32 0.5, %v4833
  %v4835 = vsub.f32 1.5, %v4834
  %v4836 = vmul.f32 %v4831, %v4835
  %vm4837 = vweird.f32 %v4830
  %vm4838 = vweird.f32 %v4831
  %vm4839 = vmor %vm4837, %vm4838
  %v4840 = vsel %vm4839, %v4831, %v4836
  %v4841 = vmul.f32 %v4829, %v4840
  %v4842 = vld [vmem:[%s9 + $0xf] sm:$0x1]
  %v4843 = vmul.f32 %v4824, %v4841
  %v4844 = vsub.f32 %v4842, %v4843
  %v4846 = vperm.slane %v4841, 0
  %v4848 = vmul.f32 %v4622, %v4846
  %v4849 = vmul.f32 %v4623, %v4846
  %v4850 = vmul.f32 %v4624, %v4846
  %v4851 = vmul.f32 %v4625, %v4846
  %v4852 = vmul.f32 %v4626, %v4846
  %v4853 = vmul.f32 %v4627, %v4846
  %v4854 = vmul.f32 %v4628, %v4846
  %v4855 = vmul.f32 %v4629, %v4846
  %v4856 = vmul.f32 %v4630, %v4846
  %v4857 = vmul.f32 %v4631, %v4846
  %v4858 = vmul.f32 %v4632, %v4846
  %v4859 = vmul.f32 %v4633, %v4846
  %v4860 = vmul.f32 %v4634, %v4846
  %v4861 = vmul.f32 %v4635, %v4846
  %v4862 = vmul.f32 %v4636, %v4846
  %v4863 = vmul.f32 %v4637, %v4846
  %v4864 = vmul.f32 %v4638, %v4846
  %v4865 = vmul.f32 %v4639, %v4846
  %v4866 = vmul.f32 %v4640, %v4846
  %v4867 = vmul.f32 %v4641, %v4846
  %v4868 = vmul.f32 %v4642, %v4846
  %v4869 = vmul.f32 %v4643, %v4846
  %v4870 = vmul.f32 %v4644, %v4846
  %v4871 = vmul.f32 %v4645, %v4846
  %v4872 = vmul.f32 %v4646, %v4846
  %v4873 = vmul.f32 %v4647, %v4846
  %v4874 = vmul.f32 %v4648, %v4846
  %v4875 = vmul.f32 %v4649, %v4846
  %v4876 = vmul.f32 %v4650, %v4846
  %v4877 = vmul.f32 %v4651, %v4846
  %v4878 = vmul.f32 %v4652, %v4846
  %v4879 = vmul.f32 %v4653, %v4846
  %v4881 = vperm.slane %v4844, 0
  %v4883 = vadd.f32 %v4848, %v4881
  %v4884 = vadd.f32 %v4849, %v4881
  %v4885 = vadd.f32 %v4850, %v4881
  %v4886 = vadd.f32 %v4851, %v4881
  %v4887 = vadd.f32 %v4852, %v4881
  %v4888 = vadd.f32 %v4853, %v4881
  %v4889 = vadd.f32 %v4854, %v4881
  %v4890 = vadd.f32 %v4855, %v4881
  %v4891 = vadd.f32 %v4856, %v4881
  %v4892 = vadd.f32 %v4857, %v4881
  %v4893 = vadd.f32 %v4858, %v4881
  %v4894 = vadd.f32 %v4859, %v4881
  %v4895 = vadd.f32 %v4860, %v4881
  %v4896 = vadd.f32 %v4861, %v4881
  %v4897 = vadd.f32 %v4862, %v4881
  %v4898 = vadd.f32 %v4863, %v4881
  %v4899 = vadd.f32 %v4864, %v4881
  %v4900 = vadd.f32 %v4865, %v4881
  %v4901 = vadd.f32 %v4866, %v4881
  %v4902 = vadd.f32 %v4867, %v4881
  %v4903 = vadd.f32 %v4868, %v4881
  %v4904 = vadd.f32 %v4869, %v4881
  %v4905 = vadd.f32 %v4870, %v4881
  %v4906 = vadd.f32 %v4871, %v4881
  %v4907 = vadd.f32 %v4872, %v4881
  %v4908 = vadd.f32 %v4873, %v4881
  %v4909 = vadd.f32 %v4874, %v4881
  %v4910 = vadd.f32 %v4875, %v4881
  %v4911 = vadd.f32 %v4876, %v4881
  %v4912 = vadd.f32 %v4877, %v4881
  %v4913 = vadd.f32 %v4878, %v4881
  %v4914 = vadd.f32 %v4879, %v4881
  %v4915 = vpack.c.bf16 %v4884, %v4883
  %v4916 = vpack.c.bf16 %v4886, %v4885
  %v4917 = vpack.c.bf16 %v4888, %v4887
  %v4918 = vpack.c.bf16 %v4890, %v4889
  %v4919 = vpack.c.bf16 %v4892, %v4891
  %v4920 = vpack.c.bf16 %v4894, %v4893
  %v4921 = vpack.c.bf16 %v4896, %v4895
  %v4922 = vpack.c.bf16 %v4898, %v4897
  %v4923 = vpack.c.bf16 %v4900, %v4899
  %v4924 = vpack.c.bf16 %v4902, %v4901
  %v4925 = vpack.c.bf16 %v4904, %v4903
  %v4926 = vpack.c.bf16 %v4906, %v4905
  %v4927 = vpack.c.bf16 %v4908, %v4907
  %v4928 = vpack.c.bf16 %v4910, %v4909
  %v4929 = vpack.c.bf16 %v4912, %v4911
  %v4930 = vpack.c.bf16 %v4914, %v4913
  %v4931 = vld [vmem:[%s6] sm:$0xf]
  %v4932 = vld [vmem:[%s6 + $0x4] sm:$0xf]
  %v4933 = vld [vmem:[%s6 + $0x8] sm:$0xf]
  %v4934 = vld [vmem:[%s6 + $0xc] sm:$0xf]
  %v4935 = vld [vmem:[%s6 + $0x10] sm:$0xf]
  %v4936 = vld [vmem:[%s6 + $0x14] sm:$0xf]
  %v4937 = vld [vmem:[%s6 + $0x18] sm:$0xf]
  %v4938 = vld [vmem:[%s6 + $0x1c] sm:$0xf]
  %v4939 = vld [vmem:[%s9 + $0x10] sm:$0x1]
  %v4941 = vperm.slane %v4939, 0
  %v4951 = vunpack.c.l.b16 %v4931
  %v4952 = vunpack.c.l.b16 %v4932
  %v4953 = vunpack.c.l.b16 %v4933
  %v4954 = vunpack.c.l.b16 %v4934
  %v4955 = vunpack.c.l.b16 %v4935
  %v4956 = vunpack.c.l.b16 %v4936
  %v4957 = vunpack.c.l.b16 %v4937
  %v4958 = vunpack.c.l.b16 %v4938
  %v4959 = vpack.c.b16 %v4952, %v4951
  %v4960 = vpack.c.b16 %v4954, %v4953
  %v4961 = vpack.c.b16 %v4956, %v4955
  %v4962 = vpack.c.b16 %v4958, %v4957
  %v4968 = vsel %vm3854, %v4915, 0
  %v4971 = vsel %vm3854, %v4916, 0
  %v4974 = vsel %vm3854, %v4917, 0
  %v4977 = vsel %vm3854, %v4918, 0
  %v4980 = vsel %vm3854, %v4919, 0
  %v4983 = vsel %vm3854, %v4920, 0
  %v4986 = vsel %vm3854, %v4921, 0
  %v4989 = vsel %vm3854, %v4922, 0
  %v4992 = vsel %vm3854, %v4923, 0
  %v4995 = vsel %vm3854, %v4924, 0
  %v4998 = vsel %vm3854, %v4925, 0
  %v5001 = vsel %vm3854, %v4926, 0
  %v5004 = vsel %vm3854, %v4927, 0
  %v5007 = vsel %vm3854, %v4928, 0
  %v5010 = vsel %vm3854, %v4929, 0
  %v5013 = vsel %vm3854, %v4930, 0
  %5015 = vmatpush.bf16.msra.mxu0 0
  %5016 = vmatpush.bf16.msra.mxu0 0
  %5017 = vmatpush.bf16.msra.mxu0 0
  %5018 = vmatpush.bf16.msra.mxu0 0
  %5019 = vmatpush.bf16.msra.mxu0 %v4962
  %5020 = vmatpush.bf16.msra.mxu0 %v4961
  %5021 = vmatpush.bf16.msra.mxu0 %v4960
  %5022 = vmatpush.bf16.msra.mxu0 %v4959
  %5023 = vmatmul.bf16.gmra.mxu0 %v4968
  %v5024 = vpop.f32.mrf.mxu0
  %v5025 = vadd.f32 %v4941, %v5024
  %v5026 = vpop.f32.mrf.mxu0
  %v5027 = vadd.f32 %v4941, %v5026
  %5028 = vmatmul.bf16.gmra.mxu0 %v4971
  %v5029 = vpop.f32.mrf.mxu0
  %v5030 = vadd.f32 %v4941, %v5029
  %v5031 = vpop.f32.mrf.mxu0
  %v5032 = vadd.f32 %v4941, %v5031
  %5033 = vmatmul.bf16.gmra.mxu0 %v4974
  %v5034 = vpop.f32.mrf.mxu0
  %v5035 = vadd.f32 %v4941, %v5034
  %v5036 = vpop.f32.mrf.mxu0
  %v5037 = vadd.f32 %v4941, %v5036
  %5038 = vmatmul.bf16.gmra.mxu0 %v4977
  %v5039 = vpop.f32.mrf.mxu0
  %v5040 = vadd.f32 %v4941, %v5039
  %v5041 = vpop.f32.mrf.mxu0
  %v5042 = vadd.f32 %v4941, %v5041
  %5043 = vmatmul.bf16.gmra.mxu0 %v4980
  %v5044 = vpop.f32.mrf.mxu0
  %v5045 = vadd.f32 %v4941, %v5044
  %v5046 = vpop.f32.mrf.mxu0
  %v5047 = vadd.f32 %v4941, %v5046
  %5048 = vmatmul.bf16.gmra.mxu0 %v4983
  %v5049 = vpop.f32.mrf.mxu0
  %v5050 = vadd.f32 %v4941, %v5049
  %v5051 = vpop.f32.mrf.mxu0
  %v5052 = vadd.f32 %v4941, %v5051
  %5053 = vmatmul.bf16.gmra.mxu0 %v4986
  %v5054 = vpop.f32.mrf.mxu0
  %v5055 = vadd.f32 %v4941, %v5054
  %v5056 = vpop.f32.mrf.mxu0
  %v5057 = vadd.f32 %v4941, %v5056
  %5058 = vmatmul.bf16.gmra.mxu0 %v4989
  %v5059 = vpop.f32.mrf.mxu0
  %v5060 = vadd.f32 %v4941, %v5059
  %v5061 = vpop.f32.mrf.mxu0
  %v5062 = vadd.f32 %v4941, %v5061
  %5063 = vmatmul.bf16.gmra.mxu0 %v4992
  %v5064 = vpop.f32.mrf.mxu0
  %v5065 = vadd.f32 %v4941, %v5064
  %v5066 = vpop.f32.mrf.mxu0
  %v5067 = vadd.f32 %v4941, %v5066
  %5068 = vmatmul.bf16.gmra.mxu0 %v4995
  %v5069 = vpop.f32.mrf.mxu0
  %v5070 = vadd.f32 %v4941, %v5069
  %v5071 = vpop.f32.mrf.mxu0
  %v5072 = vadd.f32 %v4941, %v5071
  %5073 = vmatmul.bf16.gmra.mxu0 %v4998
  %v5074 = vpop.f32.mrf.mxu0
  %v5075 = vadd.f32 %v4941, %v5074
  %v5076 = vpop.f32.mrf.mxu0
  %v5077 = vadd.f32 %v4941, %v5076
  %5078 = vmatmul.bf16.gmra.mxu0 %v5001
  %v5079 = vpop.f32.mrf.mxu0
  %v5080 = vadd.f32 %v4941, %v5079
  %v5081 = vpop.f32.mrf.mxu0
  %v5082 = vadd.f32 %v4941, %v5081
  %5083 = vmatmul.bf16.gmra.mxu0 %v5004
  %v5084 = vpop.f32.mrf.mxu0
  %v5085 = vadd.f32 %v4941, %v5084
  %v5086 = vpop.f32.mrf.mxu0
  %v5087 = vadd.f32 %v4941, %v5086
  %5088 = vmatmul.bf16.gmra.mxu0 %v5007
  %v5089 = vpop.f32.mrf.mxu0
  %v5090 = vadd.f32 %v4941, %v5089
  %v5091 = vpop.f32.mrf.mxu0
  %v5092 = vadd.f32 %v4941, %v5091
  %5093 = vmatmul.bf16.gmra.mxu0 %v5010
  %v5094 = vpop.f32.mrf.mxu0
  %v5095 = vadd.f32 %v4941, %v5094
  %v5096 = vpop.f32.mrf.mxu0
  %v5097 = vadd.f32 %v4941, %v5096
  %5098 = vmatmul.bf16.gmra.mxu0 %v5013
  %v5099 = vpop.f32.mrf.mxu0
  %v5100 = vadd.f32 %v4941, %v5099
  %v5101 = vpop.f32.mrf.mxu0
  %v5102 = vadd.f32 %v4941, %v5101
  %5103 = vdwg.mxu0
  %v5104 = vmax.f32 %v5025, 0.0
  %v5105 = vmax.f32 %v5027, 0.0
  %v5106 = vmax.f32 %v5030, 0.0
  %v5107 = vmax.f32 %v5032, 0.0
  %v5108 = vmax.f32 %v5035, 0.0
  %v5109 = vmax.f32 %v5037, 0.0
  %v5110 = vmax.f32 %v5040, 0.0
  %v5111 = vmax.f32 %v5042, 0.0
  %v5112 = vmax.f32 %v5045, 0.0
  %v5113 = vmax.f32 %v5047, 0.0
  %v5114 = vmax.f32 %v5050, 0.0
  %v5115 = vmax.f32 %v5052, 0.0
  %v5116 = vmax.f32 %v5055, 0.0
  %v5117 = vmax.f32 %v5057, 0.0
  %v5118 = vmax.f32 %v5060, 0.0
  %v5119 = vmax.f32 %v5062, 0.0
  %v5120 = vmax.f32 %v5065, 0.0
  %v5121 = vmax.f32 %v5067, 0.0
  %v5122 = vmax.f32 %v5070, 0.0
  %v5123 = vmax.f32 %v5072, 0.0
  %v5124 = vmax.f32 %v5075, 0.0
  %v5125 = vmax.f32 %v5077, 0.0
  %v5126 = vmax.f32 %v5080, 0.0
  %v5127 = vmax.f32 %v5082, 0.0
  %v5128 = vmax.f32 %v5085, 0.0
  %v5129 = vmax.f32 %v5087, 0.0
  %v5130 = vmax.f32 %v5090, 0.0
  %v5131 = vmax.f32 %v5092, 0.0
  %v5132 = vmax.f32 %v5095, 0.0
  %v5133 = vmax.f32 %v5097, 0.0
  %v5134 = vmax.f32 %v5100, 0.0
  %v5135 = vmax.f32 %v5102, 0.0
  %v5136 = vadd.f32 %v5104, %v5105
  %v5137 = vadd.f32 %v5136, %v5106
  %v5138 = vadd.f32 %v5137, %v5107
  %v5139 = vadd.f32 %v5138, %v5108
  %v5140 = vadd.f32 %v5139, %v5109
  %v5141 = vadd.f32 %v5140, %v5110
  %v5142 = vadd.f32 %v5141, %v5111
  %v5143 = vadd.f32 %v5142, %v5112
  %v5144 = vadd.f32 %v5143, %v5113
  %v5145 = vadd.f32 %v5144, %v5114
  %v5146 = vadd.f32 %v5145, %v5115
  %v5147 = vadd.f32 %v5146, %v5116
  %v5148 = vadd.f32 %v5147, %v5117
  %v5149 = vadd.f32 %v5148, %v5118
  %v5150 = vadd.f32 %v5149, %v5119
  %v5151 = vadd.f32 %v5150, %v5120
  %v5152 = vadd.f32 %v5151, %v5121
  %v5153 = vadd.f32 %v5152, %v5122
  %v5154 = vadd.f32 %v5153, %v5123
  %v5155 = vadd.f32 %v5154, %v5124
  %v5156 = vadd.f32 %v5155, %v5125
  %v5157 = vadd.f32 %v5156, %v5126
  %v5158 = vadd.f32 %v5157, %v5127
  %v5159 = vadd.f32 %v5158, %v5128
  %v5160 = vadd.f32 %v5159, %v5129
  %v5161 = vadd.f32 %v5160, %v5130
  %v5162 = vadd.f32 %v5161, %v5131
  %v5163 = vadd.f32 %v5162, %v5132
  %v5164 = vadd.f32 %v5163, %v5133
  %v5165 = vadd.f32 %v5164, %v5134
  %v5166 = vadd.f32 %v5165, %v5135
  %v5167 = vrot.slane %v5166, 4
  %v5168 = vadd.f32 %v5166, %v5167
  %v5169 = vrot.slane %v5168, 2
  %v5170 = vadd.f32 %v5168, %v5169
  %v5171 = vrot.slane %v5170, 1
  %v5172 = vadd.f32 %v5170, %v5171
  %v5173 = vmul.f32 %v5104, %v5104
  %v5174 = vmul.f32 %v5105, %v5105
  %v5175 = vmul.f32 %v5106, %v5106
  %v5176 = vmul.f32 %v5107, %v5107
  %v5177 = vmul.f32 %v5108, %v5108
  %v5178 = vmul.f32 %v5109, %v5109
  %v5179 = vmul.f32 %v5110, %v5110
  %v5180 = vmul.f32 %v5111, %v5111
  %v5181 = vmul.f32 %v5112, %v5112
  %v5182 = vmul.f32 %v5113, %v5113
  %v5183 = vmul.f32 %v5114, %v5114
  %v5184 = vmul.f32 %v5115, %v5115
  %v5185 = vmul.f32 %v5116, %v5116
  %v5186 = vmul.f32 %v5117, %v5117
  %v5187 = vmul.f32 %v5118, %v5118
  %v5188 = vmul.f32 %v5119, %v5119
  %v5189 = vmul.f32 %v5120, %v5120
  %v5190 = vmul.f32 %v5121, %v5121
  %v5191 = vmul.f32 %v5122, %v5122
  %v5192 = vmul.f32 %v5123, %v5123
  %v5193 = vmul.f32 %v5124, %v5124
  %v5194 = vmul.f32 %v5125, %v5125
  %v5195 = vmul.f32 %v5126, %v5126
  %v5196 = vmul.f32 %v5127, %v5127
  %v5197 = vmul.f32 %v5128, %v5128
  %v5198 = vmul.f32 %v5129, %v5129
  %v5199 = vmul.f32 %v5130, %v5130
  %v5200 = vmul.f32 %v5131, %v5131
  %v5201 = vmul.f32 %v5132, %v5132
  %v5202 = vmul.f32 %v5133, %v5133
  %v5203 = vmul.f32 %v5134, %v5134
  %v5204 = vmul.f32 %v5135, %v5135
  %v5205 = vadd.f32 %v5173, %v5174
  %v5206 = vadd.f32 %v5205, %v5175
  %v5207 = vadd.f32 %v5206, %v5176
  %v5208 = vadd.f32 %v5207, %v5177
  %v5209 = vadd.f32 %v5208, %v5178
  %v5210 = vadd.f32 %v5209, %v5179
  %v5211 = vadd.f32 %v5210, %v5180
  %v5212 = vadd.f32 %v5211, %v5181
  %v5213 = vadd.f32 %v5212, %v5182
  %v5214 = vadd.f32 %v5213, %v5183
  %v5215 = vadd.f32 %v5214, %v5184
  %v5216 = vadd.f32 %v5215, %v5185
  %v5217 = vadd.f32 %v5216, %v5186
  %v5218 = vadd.f32 %v5217, %v5187
  %v5219 = vadd.f32 %v5218, %v5188
  %v5220 = vadd.f32 %v5219, %v5189
  %v5221 = vadd.f32 %v5220, %v5190
  %v5222 = vadd.f32 %v5221, %v5191
  %v5223 = vadd.f32 %v5222, %v5192
  %v5224 = vadd.f32 %v5223, %v5193
  %v5225 = vadd.f32 %v5224, %v5194
  %v5226 = vadd.f32 %v5225, %v5195
  %v5227 = vadd.f32 %v5226, %v5196
  %v5228 = vadd.f32 %v5227, %v5197
  %v5229 = vadd.f32 %v5228, %v5198
  %v5230 = vadd.f32 %v5229, %v5199
  %v5231 = vadd.f32 %v5230, %v5200
  %v5232 = vadd.f32 %v5231, %v5201
  %v5233 = vadd.f32 %v5232, %v5202
  %v5234 = vadd.f32 %v5233, %v5203
  %v5235 = vadd.f32 %v5234, %v5204
  %v5236 = vrot.slane %v5235, 4
  %v5237 = vadd.f32 %v5235, %v5236
  %v5238 = vrot.slane %v5237, 2
  %v5239 = vadd.f32 %v5237, %v5238
  %v5240 = vrot.slane %v5239, 1
  %v5241 = vadd.f32 %v5239, %v5240
  %v5242 = vmul.f32 %v5172, 0.00390625
  %v5243 = vmul.f32 %v5241, 0.00390625
  %v5244 = vmul.f32 %v5242, %v5242
  %v5245 = vsub.f32 %v5243, %v5244
  %v5246 = vmax.f32 %v5245, 0.0
  %v5247 = vld [vmem:[%s9 + $0x11] sm:$0x1]
  %v5248 = vadd.f32 %v5246, 1e-05
  %v5249 = vrsqrt.pop %v5248
  %v5250 = vmul.f32 %v5249, %v5248
  %v5251 = vmul.f32 %v5250, %v5249
  %v5252 = vmul.f32 0.5, %v5251
  %v5253 = vsub.f32 1.5, %v5252
  %v5254 = vmul.f32 %v5249, %v5253
  %vm5255 = vweird.f32 %v5248
  %vm5256 = vweird.f32 %v5249
  %vm5257 = vmor %vm5255, %vm5256
  %v5258 = vsel %vm5257, %v5249, %v5254
  %v5259 = vmul.f32 %v5247, %v5258
  %v5260 = vld [vmem:[%s9 + $0x12] sm:$0x1]
  %v5261 = vmul.f32 %v5242, %v5259
  %v5262 = vsub.f32 %v5260, %v5261
  %v5264 = vperm.slane %v5259, 0
  %v5266 = vmul.f32 %v5104, %v5264
  %v5267 = vmul.f32 %v5105, %v5264
  %v5268 = vmul.f32 %v5106, %v5264
  %v5269 = vmul.f32 %v5107, %v5264
  %v5270 = vmul.f32 %v5108, %v5264
  %v5271 = vmul.f32 %v5109, %v5264
  %v5272 = vmul.f32 %v5110, %v5264
  %v5273 = vmul.f32 %v5111, %v5264
  %v5274 = vmul.f32 %v5112, %v5264
  %v5275 = vmul.f32 %v5113, %v5264
  %v5276 = vmul.f32 %v5114, %v5264
  %v5277 = vmul.f32 %v5115, %v5264
  %v5278 = vmul.f32 %v5116, %v5264
  %v5279 = vmul.f32 %v5117, %v5264
  %v5280 = vmul.f32 %v5118, %v5264
  %v5281 = vmul.f32 %v5119, %v5264
  %v5282 = vmul.f32 %v5120, %v5264
  %v5283 = vmul.f32 %v5121, %v5264
  %v5284 = vmul.f32 %v5122, %v5264
  %v5285 = vmul.f32 %v5123, %v5264
  %v5286 = vmul.f32 %v5124, %v5264
  %v5287 = vmul.f32 %v5125, %v5264
  %v5288 = vmul.f32 %v5126, %v5264
  %v5289 = vmul.f32 %v5127, %v5264
  %v5290 = vmul.f32 %v5128, %v5264
  %v5291 = vmul.f32 %v5129, %v5264
  %v5292 = vmul.f32 %v5130, %v5264
  %v5293 = vmul.f32 %v5131, %v5264
  %v5294 = vmul.f32 %v5132, %v5264
  %v5295 = vmul.f32 %v5133, %v5264
  %v5296 = vmul.f32 %v5134, %v5264
  %v5297 = vmul.f32 %v5135, %v5264
  %v5299 = vperm.slane %v5262, 0
  %v5301 = vadd.f32 %v5266, %v5299
  %v5302 = vadd.f32 %v5267, %v5299
  %v5303 = vadd.f32 %v5268, %v5299
  %v5304 = vadd.f32 %v5269, %v5299
  %v5305 = vadd.f32 %v5270, %v5299
  %v5306 = vadd.f32 %v5271, %v5299
  %v5307 = vadd.f32 %v5272, %v5299
  %v5308 = vadd.f32 %v5273, %v5299
  %v5309 = vadd.f32 %v5274, %v5299
  %v5310 = vadd.f32 %v5275, %v5299
  %v5311 = vadd.f32 %v5276, %v5299
  %v5312 = vadd.f32 %v5277, %v5299
  %v5313 = vadd.f32 %v5278, %v5299
  %v5314 = vadd.f32 %v5279, %v5299
  %v5315 = vadd.f32 %v5280, %v5299
  %v5316 = vadd.f32 %v5281, %v5299
  %v5317 = vadd.f32 %v5282, %v5299
  %v5318 = vadd.f32 %v5283, %v5299
  %v5319 = vadd.f32 %v5284, %v5299
  %v5320 = vadd.f32 %v5285, %v5299
  %v5321 = vadd.f32 %v5286, %v5299
  %v5322 = vadd.f32 %v5287, %v5299
  %v5323 = vadd.f32 %v5288, %v5299
  %v5324 = vadd.f32 %v5289, %v5299
  %v5325 = vadd.f32 %v5290, %v5299
  %v5326 = vadd.f32 %v5291, %v5299
  %v5327 = vadd.f32 %v5292, %v5299
  %v5328 = vadd.f32 %v5293, %v5299
  %v5329 = vadd.f32 %v5294, %v5299
  %v5330 = vadd.f32 %v5295, %v5299
  %v5331 = vadd.f32 %v5296, %v5299
  %v5332 = vadd.f32 %v5297, %v5299
  %v5333 = vpack.c.bf16 %v5302, %v5301
  %v5334 = vpack.c.bf16 %v5304, %v5303
  %v5335 = vpack.c.bf16 %v5306, %v5305
  %v5336 = vpack.c.bf16 %v5308, %v5307
  %v5337 = vpack.c.bf16 %v5310, %v5309
  %v5338 = vpack.c.bf16 %v5312, %v5311
  %v5339 = vpack.c.bf16 %v5314, %v5313
  %v5340 = vpack.c.bf16 %v5316, %v5315
  %v5341 = vpack.c.bf16 %v5318, %v5317
  %v5342 = vpack.c.bf16 %v5320, %v5319
  %v5343 = vpack.c.bf16 %v5322, %v5321
  %v5344 = vpack.c.bf16 %v5324, %v5323
  %v5345 = vpack.c.bf16 %v5326, %v5325
  %v5346 = vpack.c.bf16 %v5328, %v5327
  %v5347 = vpack.c.bf16 %v5330, %v5329
  %v5348 = vpack.c.bf16 %v5332, %v5331
  %v5349 = vld [vmem:[%s7] sm:$0xff]
  %v5350 = vld [vmem:[%s7 + $0x8] sm:$0xff]
  %v5351 = vld [vmem:[%s7 + $0x10] sm:$0xff]
  %v5352 = vld [vmem:[%s7 + $0x18] sm:$0xff]
  %v5353 = vld [vmem:[%s7 + $0x20] sm:$0xff]
  %v5354 = vld [vmem:[%s7 + $0x28] sm:$0xff]
  %v5355 = vld [vmem:[%s7 + $0x30] sm:$0xff]
  %v5356 = vld [vmem:[%s7 + $0x38] sm:$0xff]
  %v5357 = vld [vmem:[%s7 + $0x40] sm:$0xff]
  %v5358 = vld [vmem:[%s7 + $0x48] sm:$0xff]
  %v5359 = vld [vmem:[%s7 + $0x50] sm:$0xff]
  %v5360 = vld [vmem:[%s7 + $0x58] sm:$0xff]
  %v5361 = vld [vmem:[%s7 + $0x60] sm:$0xff]
  %v5362 = vld [vmem:[%s7 + $0x68] sm:$0xff]
  %v5363 = vld [vmem:[%s7 + $0x70] sm:$0xff]
  %v5364 = vld [vmem:[%s7 + $0x78] sm:$0xff]
  %v5365 = vld [vmem:[%s9 + $0x13] sm:$0x3]
  %v5367 = vperm.slane %v5365, 0
  %v5368 = vperm.slane %v5365, 1
  %v5387 = vunpack.c.l.b16 %v5349
  %v5388 = vunpack.c.h.b16 %v5349
  %v5389 = vunpack.c.l.b16 %v5350
  %v5390 = vunpack.c.h.b16 %v5350
  %v5391 = vunpack.c.l.b16 %v5351
  %v5392 = vunpack.c.h.b16 %v5351
  %v5393 = vunpack.c.l.b16 %v5352
  %v5394 = vunpack.c.h.b16 %v5352
  %v5395 = vunpack.c.l.b16 %v5353
  %v5396 = vunpack.c.h.b16 %v5353
  %v5397 = vunpack.c.l.b16 %v5354
  %v5398 = vunpack.c.h.b16 %v5354
  %v5399 = vunpack.c.l.b16 %v5355
  %v5400 = vunpack.c.h.b16 %v5355
  %v5401 = vunpack.c.l.b16 %v5356
  %v5402 = vunpack.c.h.b16 %v5356
  %v5403 = vunpack.c.l.b16 %v5357
  %v5404 = vunpack.c.h.b16 %v5357
  %v5405 = vunpack.c.l.b16 %v5358
  %v5406 = vunpack.c.h.b16 %v5358
  %v5407 = vunpack.c.l.b16 %v5359
  %v5408 = vunpack.c.h.b16 %v5359
  %v5409 = vunpack.c.l.b16 %v5360
  %v5410 = vunpack.c.h.b16 %v5360
  %v5411 = vunpack.c.l.b16 %v5361
  %v5412 = vunpack.c.h.b16 %v5361
  %v5413 = vunpack.c.l.b16 %v5362
  %v5414 = vunpack.c.h.b16 %v5362
  %v5415 = vunpack.c.l.b16 %v5363
  %v5416 = vunpack.c.h.b16 %v5363
  %v5417 = vunpack.c.l.b16 %v5364
  %v5418 = vunpack.c.h.b16 %v5364
  %v5419 = vpack.c.b16 %v5389, %v5387
  %v5420 = vpack.c.b16 %v5390, %v5388
  %v5421 = vpack.c.b16 %v5393, %v5391
  %v5422 = vpack.c.b16 %v5394, %v5392
  %v5423 = vpack.c.b16 %v5397, %v5395
  %v5424 = vpack.c.b16 %v5398, %v5396
  %v5425 = vpack.c.b16 %v5401, %v5399
  %v5426 = vpack.c.b16 %v5402, %v5400
  %v5427 = vpack.c.b16 %v5405, %v5403
  %v5428 = vpack.c.b16 %v5406, %v5404
  %v5429 = vpack.c.b16 %v5409, %v5407
  %v5430 = vpack.c.b16 %v5410, %v5408
  %v5431 = vpack.c.b16 %v5413, %v5411
  %v5432 = vpack.c.b16 %v5414, %v5412
  %v5433 = vpack.c.b16 %v5417, %v5415
  %v5434 = vpack.c.b16 %v5418, %v5416
  %5451 = vmatpush.bf16.msra.mxu0 %v5433
  %5452 = vmatpush.bf16.msra.mxu0 %v5431
  %5453 = vmatpush.bf16.msra.mxu0 %v5429
  %5454 = vmatpush.bf16.msra.mxu0 %v5427
  %5455 = vmatpush.bf16.msra.mxu0 %v5425
  %5456 = vmatpush.bf16.msra.mxu0 %v5423
  %5457 = vmatpush.bf16.msra.mxu0 %v5421
  %5458 = vmatpush.bf16.msra.mxu0 %v5419
  %5459 = vmatmul.bf16.gmra.mxu0 %v5333
  %v5460 = vpop.f32.mrf.mxu0
  %v5461 = vadd.f32 %v5367, %v5460
  %v5462 = vpop.f32.mrf.mxu0
  %v5463 = vadd.f32 %v5367, %v5462
  %5464 = vmatmul.bf16.gmra.mxu0 %v5334
  %v5465 = vpop.f32.mrf.mxu0
  %v5466 = vadd.f32 %v5367, %v5465
  %v5467 = vpop.f32.mrf.mxu0
  %v5468 = vadd.f32 %v5367, %v5467
  %5469 = vmatmul.bf16.gmra.mxu0 %v5335
  %v5470 = vpop.f32.mrf.mxu0
  %v5471 = vadd.f32 %v5367, %v5470
  %v5472 = vpop.f32.mrf.mxu0
  %v5473 = vadd.f32 %v5367, %v5472
  %5474 = vmatmul.bf16.gmra.mxu0 %v5336
  %v5475 = vpop.f32.mrf.mxu0
  %v5476 = vadd.f32 %v5367, %v5475
  %v5477 = vpop.f32.mrf.mxu0
  %v5478 = vadd.f32 %v5367, %v5477
  %5479 = vmatmul.bf16.gmra.mxu0 %v5337
  %v5480 = vpop.f32.mrf.mxu0
  %v5481 = vadd.f32 %v5367, %v5480
  %v5482 = vpop.f32.mrf.mxu0
  %v5483 = vadd.f32 %v5367, %v5482
  %5484 = vmatmul.bf16.gmra.mxu0 %v5338
  %v5485 = vpop.f32.mrf.mxu0
  %v5486 = vadd.f32 %v5367, %v5485
  %v5487 = vpop.f32.mrf.mxu0
  %v5488 = vadd.f32 %v5367, %v5487
  %5489 = vmatmul.bf16.gmra.mxu0 %v5339
  %v5490 = vpop.f32.mrf.mxu0
  %v5491 = vadd.f32 %v5367, %v5490
  %v5492 = vpop.f32.mrf.mxu0
  %v5493 = vadd.f32 %v5367, %v5492
  %5494 = vmatmul.bf16.gmra.mxu0 %v5340
  %v5495 = vpop.f32.mrf.mxu0
  %v5496 = vadd.f32 %v5367, %v5495
  %v5497 = vpop.f32.mrf.mxu0
  %v5498 = vadd.f32 %v5367, %v5497
  %5499 = vmatmul.bf16.gmra.mxu0 %v5341
  %v5500 = vpop.f32.mrf.mxu0
  %v5501 = vadd.f32 %v5367, %v5500
  %v5502 = vpop.f32.mrf.mxu0
  %v5503 = vadd.f32 %v5367, %v5502
  %5504 = vmatmul.bf16.gmra.mxu0 %v5342
  %v5505 = vpop.f32.mrf.mxu0
  %v5506 = vadd.f32 %v5367, %v5505
  %v5507 = vpop.f32.mrf.mxu0
  %v5508 = vadd.f32 %v5367, %v5507
  %5509 = vmatmul.bf16.gmra.mxu0 %v5343
  %v5510 = vpop.f32.mrf.mxu0
  %v5511 = vadd.f32 %v5367, %v5510
  %v5512 = vpop.f32.mrf.mxu0
  %v5513 = vadd.f32 %v5367, %v5512
  %5514 = vmatmul.bf16.gmra.mxu0 %v5344
  %v5515 = vpop.f32.mrf.mxu0
  %v5516 = vadd.f32 %v5367, %v5515
  %v5517 = vpop.f32.mrf.mxu0
  %v5518 = vadd.f32 %v5367, %v5517
  %5519 = vmatmul.bf16.gmra.mxu0 %v5345
  %v5520 = vpop.f32.mrf.mxu0
  %v5521 = vadd.f32 %v5367, %v5520
  %v5522 = vpop.f32.mrf.mxu0
  %v5523 = vadd.f32 %v5367, %v5522
  %5524 = vmatmul.bf16.gmra.mxu0 %v5346
  %v5525 = vpop.f32.mrf.mxu0
  %v5526 = vadd.f32 %v5367, %v5525
  %v5527 = vpop.f32.mrf.mxu0
  %v5528 = vadd.f32 %v5367, %v5527
  %5529 = vmatmul.bf16.gmra.mxu0 %v5347
  %v5530 = vpop.f32.mrf.mxu0
  %v5531 = vadd.f32 %v5367, %v5530
  %v5532 = vpop.f32.mrf.mxu0
  %v5533 = vadd.f32 %v5367, %v5532
  %5534 = vmatmul.bf16.gmra.mxu0 %v5348
  %v5535 = vpop.f32.mrf.mxu0
  %v5536 = vadd.f32 %v5367, %v5535
  %v5537 = vpop.f32.mrf.mxu0
  %v5538 = vadd.f32 %v5367, %v5537
  %5539 = vdwg.mxu0
  %5540 = vmatpush.bf16.msra.mxu0 %v5434
  %5541 = vmatpush.bf16.msra.mxu0 %v5432
  %5542 = vmatpush.bf16.msra.mxu0 %v5430
  %5543 = vmatpush.bf16.msra.mxu0 %v5428
  %5544 = vmatpush.bf16.msra.mxu0 %v5426
  %5545 = vmatpush.bf16.msra.mxu0 %v5424
  %5546 = vmatpush.bf16.msra.mxu0 %v5422
  %5547 = vmatpush.bf16.msra.mxu0 %v5420
  %5548 = vmatmul.bf16.gmra.mxu0 %v5333
  %v5549 = vpop.f32.mrf.mxu0
  %v5550 = vadd.f32 %v5368, %v5549
  %v5551 = vpop.f32.mrf.mxu0
  %v5552 = vadd.f32 %v5368, %v5551
  %5553 = vmatmul.bf16.gmra.mxu0 %v5334
  %v5554 = vpop.f32.mrf.mxu0
  %v5555 = vadd.f32 %v5368, %v5554
  %v5556 = vpop.f32.mrf.mxu0
  %v5557 = vadd.f32 %v5368, %v5556
  %5558 = vmatmul.bf16.gmra.mxu0 %v5335
  %v5559 = vpop.f32.mrf.mxu0
  %v5560 = vadd.f32 %v5368, %v5559
  %v5561 = vpop.f32.mrf.mxu0
  %v5562 = vadd.f32 %v5368, %v5561
  %5563 = vmatmul.bf16.gmra.mxu0 %v5336
  %v5564 = vpop.f32.mrf.mxu0
  %v5565 = vadd.f32 %v5368, %v5564
  %v5566 = vpop.f32.mrf.mxu0
  %v5567 = vadd.f32 %v5368, %v5566
  %5568 = vmatmul.bf16.gmra.mxu0 %v5337
  %v5569 = vpop.f32.mrf.mxu0
  %v5570 = vadd.f32 %v5368, %v5569
  %v5571 = vpop.f32.mrf.mxu0
  %v5572 = vadd.f32 %v5368, %v5571
  %5573 = vmatmul.bf16.gmra.mxu0 %v5338
  %v5574 = vpop.f32.mrf.mxu0
  %v5575 = vadd.f32 %v5368, %v5574
  %v5576 = vpop.f32.mrf.mxu0
  %v5577 = vadd.f32 %v5368, %v5576
  %5578 = vmatmul.bf16.gmra.mxu0 %v5339
  %v5579 = vpop.f32.mrf.mxu0
  %v5580 = vadd.f32 %v5368, %v5579
  %v5581 = vpop.f32.mrf.mxu0
  %v5582 = vadd.f32 %v5368, %v5581
  %5583 = vmatmul.bf16.gmra.mxu0 %v5340
  %v5584 = vpop.f32.mrf.mxu0
  %v5585 = vadd.f32 %v5368, %v5584
  %v5586 = vpop.f32.mrf.mxu0
  %v5587 = vadd.f32 %v5368, %v5586
  %5588 = vmatmul.bf16.gmra.mxu0 %v5341
  %v5589 = vpop.f32.mrf.mxu0
  %v5590 = vadd.f32 %v5368, %v5589
  %v5591 = vpop.f32.mrf.mxu0
  %v5592 = vadd.f32 %v5368, %v5591
  %5593 = vmatmul.bf16.gmra.mxu0 %v5342
  %v5594 = vpop.f32.mrf.mxu0
  %v5595 = vadd.f32 %v5368, %v5594
  %v5596 = vpop.f32.mrf.mxu0
  %v5597 = vadd.f32 %v5368, %v5596
  %5598 = vmatmul.bf16.gmra.mxu0 %v5343
  %v5599 = vpop.f32.mrf.mxu0
  %v5600 = vadd.f32 %v5368, %v5599
  %v5601 = vpop.f32.mrf.mxu0
  %v5602 = vadd.f32 %v5368, %v5601
  %5603 = vmatmul.bf16.gmra.mxu0 %v5344
  %v5604 = vpop.f32.mrf.mxu0
  %v5605 = vadd.f32 %v5368, %v5604
  %v5606 = vpop.f32.mrf.mxu0
  %v5607 = vadd.f32 %v5368, %v5606
  %5608 = vmatmul.bf16.gmra.mxu0 %v5345
  %v5609 = vpop.f32.mrf.mxu0
  %v5610 = vadd.f32 %v5368, %v5609
  %v5611 = vpop.f32.mrf.mxu0
  %v5612 = vadd.f32 %v5368, %v5611
  %5613 = vmatmul.bf16.gmra.mxu0 %v5346
  %v5614 = vpop.f32.mrf.mxu0
  %v5615 = vadd.f32 %v5368, %v5614
  %v5616 = vpop.f32.mrf.mxu0
  %v5617 = vadd.f32 %v5368, %v5616
  %5618 = vmatmul.bf16.gmra.mxu0 %v5347
  %v5619 = vpop.f32.mrf.mxu0
  %v5620 = vadd.f32 %v5368, %v5619
  %v5621 = vpop.f32.mrf.mxu0
  %v5622 = vadd.f32 %v5368, %v5621
  %5623 = vmatmul.bf16.gmra.mxu0 %v5348
  %v5624 = vpop.f32.mrf.mxu0
  %v5625 = vadd.f32 %v5368, %v5624
  %v5626 = vpop.f32.mrf.mxu0
  %v5627 = vadd.f32 %v5368, %v5626
  %5628 = vdwg.mxu0
  %v5629 = vmax.f32 %v5461, 0.0
  %v5630 = vmax.f32 %v5550, 0.0
  %v5631 = vmax.f32 %v5463, 0.0
  %v5632 = vmax.f32 %v5552, 0.0
  %v5633 = vmax.f32 %v5466, 0.0
  %v5634 = vmax.f32 %v5555, 0.0
  %v5635 = vmax.f32 %v5468, 0.0
  %v5636 = vmax.f32 %v5557, 0.0
  %v5637 = vmax.f32 %v5471, 0.0
  %v5638 = vmax.f32 %v5560, 0.0
  %v5639 = vmax.f32 %v5473, 0.0
  %v5640 = vmax.f32 %v5562, 0.0
  %v5641 = vmax.f32 %v5476, 0.0
  %v5642 = vmax.f32 %v5565, 0.0
  %v5643 = vmax.f32 %v5478, 0.0
  %v5644 = vmax.f32 %v5567, 0.0
  %v5645 = vmax.f32 %v5481, 0.0
  %v5646 = vmax.f32 %v5570, 0.0
  %v5647 = vmax.f32 %v5483, 0.0
  %v5648 = vmax.f32 %v5572, 0.0
  %v5649 = vmax.f32 %v5486, 0.0
  %v5650 = vmax.f32 %v5575, 0.0
  %v5651 = vmax.f32 %v5488, 0.0
  %v5652 = vmax.f32 %v5577, 0.0
  %v5653 = vmax.f32 %v5491, 0.0
  %v5654 = vmax.f32 %v5580, 0.0
  %v5655 = vmax.f32 %v5493, 0.0
  %v5656 = vmax.f32 %v5582, 0.0
  %v5657 = vmax.f32 %v5496, 0.0
  %v5658 = vmax.f32 %v5585, 0.0
  %v5659 = vmax.f32 %v5498, 0.0
  %v5660 = vmax.f32 %v5587, 0.0
  %v5661 = vmax.f32 %v5501, 0.0
  %v5662 = vmax.f32 %v5590, 0.0
  %v5663 = vmax.f32 %v5503, 0.0
  %v5664 = vmax.f32 %v5592, 0.0
  %v5665 = vmax.f32 %v5506, 0.0
  %v5666 = vmax.f32 %v5595, 0.0
  %v5667 = vmax.f32 %v5508, 0.0
  %v5668 = vmax.f32 %v5597, 0.0
  %v5669 = vmax.f32 %v5511, 0.0
  %v5670 = vmax.f32 %v5600, 0.0
  %v5671 = vmax.f32 %v5513, 0.0
  %v5672 = vmax.f32 %v5602, 0.0
  %v5673 = vmax.f32 %v5516, 0.0
  %v5674 = vmax.f32 %v5605, 0.0
  %v5675 = vmax.f32 %v5518, 0.0
  %v5676 = vmax.f32 %v5607, 0.0
  %v5677 = vmax.f32 %v5521, 0.0
  %v5678 = vmax.f32 %v5610, 0.0
  %v5679 = vmax.f32 %v5523, 0.0
  %v5680 = vmax.f32 %v5612, 0.0
  %v5681 = vmax.f32 %v5526, 0.0
  %v5682 = vmax.f32 %v5615, 0.0
  %v5683 = vmax.f32 %v5528, 0.0
  %v5684 = vmax.f32 %v5617, 0.0
  %v5685 = vmax.f32 %v5531, 0.0
  %v5686 = vmax.f32 %v5620, 0.0
  %v5687 = vmax.f32 %v5533, 0.0
  %v5688 = vmax.f32 %v5622, 0.0
  %v5689 = vmax.f32 %v5536, 0.0
  %v5690 = vmax.f32 %v5625, 0.0
  %v5691 = vmax.f32 %v5538, 0.0
  %v5692 = vmax.f32 %v5627, 0.0
  %v5693 = vadd.f32 %v5629, %v5631
  %v5694 = vadd.f32 %v5693, %v5633
  %v5695 = vadd.f32 %v5694, %v5635
  %v5696 = vadd.f32 %v5695, %v5637
  %v5697 = vadd.f32 %v5696, %v5639
  %v5698 = vadd.f32 %v5697, %v5641
  %v5699 = vadd.f32 %v5698, %v5643
  %v5700 = vadd.f32 %v5699, %v5645
  %v5701 = vadd.f32 %v5700, %v5647
  %v5702 = vadd.f32 %v5701, %v5649
  %v5703 = vadd.f32 %v5702, %v5651
  %v5704 = vadd.f32 %v5703, %v5653
  %v5705 = vadd.f32 %v5704, %v5655
  %v5706 = vadd.f32 %v5705, %v5657
  %v5707 = vadd.f32 %v5706, %v5659
  %v5708 = vadd.f32 %v5707, %v5661
  %v5709 = vadd.f32 %v5708, %v5663
  %v5710 = vadd.f32 %v5709, %v5665
  %v5711 = vadd.f32 %v5710, %v5667
  %v5712 = vadd.f32 %v5711, %v5669
  %v5713 = vadd.f32 %v5712, %v5671
  %v5714 = vadd.f32 %v5713, %v5673
  %v5715 = vadd.f32 %v5714, %v5675
  %v5716 = vadd.f32 %v5715, %v5677
  %v5717 = vadd.f32 %v5716, %v5679
  %v5718 = vadd.f32 %v5717, %v5681
  %v5719 = vadd.f32 %v5718, %v5683
  %v5720 = vadd.f32 %v5719, %v5685
  %v5721 = vadd.f32 %v5720, %v5687
  %v5722 = vadd.f32 %v5721, %v5689
  %v5723 = vadd.f32 %v5722, %v5691
  %v5724 = vrot.slane %v5723, 4
  %v5725 = vadd.f32 %v5723, %v5724
  %v5726 = vrot.slane %v5725, 2
  %v5727 = vadd.f32 %v5725, %v5726
  %v5728 = vrot.slane %v5727, 1
  %v5729 = vadd.f32 %v5727, %v5728
  %v5730 = vadd.f32 %v5630, %v5632
  %v5731 = vadd.f32 %v5730, %v5634
  %v5732 = vadd.f32 %v5731, %v5636
  %v5733 = vadd.f32 %v5732, %v5638
  %v5734 = vadd.f32 %v5733, %v5640
  %v5735 = vadd.f32 %v5734, %v5642
  %v5736 = vadd.f32 %v5735, %v5644
  %v5737 = vadd.f32 %v5736, %v5646
  %v5738 = vadd.f32 %v5737, %v5648
  %v5739 = vadd.f32 %v5738, %v5650
  %v5740 = vadd.f32 %v5739, %v5652
  %v5741 = vadd.f32 %v5740, %v5654
  %v5742 = vadd.f32 %v5741, %v5656
  %v5743 = vadd.f32 %v5742, %v5658
  %v5744 = vadd.f32 %v5743, %v5660
  %v5745 = vadd.f32 %v5744, %v5662
  %v5746 = vadd.f32 %v5745, %v5664
  %v5747 = vadd.f32 %v5746, %v5666
  %v5748 = vadd.f32 %v5747, %v5668
  %v5749 = vadd.f32 %v5748, %v5670
  %v5750 = vadd.f32 %v5749, %v5672
  %v5751 = vadd.f32 %v5750, %v5674
  %v5752 = vadd.f32 %v5751, %v5676
  %v5753 = vadd.f32 %v5752, %v5678
  %v5754 = vadd.f32 %v5753, %v5680
  %v5755 = vadd.f32 %v5754, %v5682
  %v5756 = vadd.f32 %v5755, %v5684
  %v5757 = vadd.f32 %v5756, %v5686
  %v5758 = vadd.f32 %v5757, %v5688
  %v5759 = vadd.f32 %v5758, %v5690
  %v5760 = vadd.f32 %v5759, %v5692
  %v5761 = vrot.slane %v5760, 4
  %v5762 = vadd.f32 %v5760, %v5761
  %v5763 = vrot.slane %v5762, 2
  %v5764 = vadd.f32 %v5762, %v5763
  %v5765 = vrot.slane %v5764, 1
  %v5766 = vadd.f32 %v5764, %v5765
  %v5767 = vmul.f32 %v5629, %v5629
  %v5768 = vmul.f32 %v5630, %v5630
  %v5769 = vmul.f32 %v5631, %v5631
  %v5770 = vmul.f32 %v5632, %v5632
  %v5771 = vmul.f32 %v5633, %v5633
  %v5772 = vmul.f32 %v5634, %v5634
  %v5773 = vmul.f32 %v5635, %v5635
  %v5774 = vmul.f32 %v5636, %v5636
  %v5775 = vmul.f32 %v5637, %v5637
  %v5776 = vmul.f32 %v5638, %v5638
  %v5777 = vmul.f32 %v5639, %v5639
  %v5778 = vmul.f32 %v5640, %v5640
  %v5779 = vmul.f32 %v5641, %v5641
  %v5780 = vmul.f32 %v5642, %v5642
  %v5781 = vmul.f32 %v5643, %v5643
  %v5782 = vmul.f32 %v5644, %v5644
  %v5783 = vmul.f32 %v5645, %v5645
  %v5784 = vmul.f32 %v5646, %v5646
  %v5785 = vmul.f32 %v5647, %v5647
  %v5786 = vmul.f32 %v5648, %v5648
  %v5787 = vmul.f32 %v5649, %v5649
  %v5788 = vmul.f32 %v5650, %v5650
  %v5789 = vmul.f32 %v5651, %v5651
  %v5790 = vmul.f32 %v5652, %v5652
  %v5791 = vmul.f32 %v5653, %v5653
  %v5792 = vmul.f32 %v5654, %v5654
  %v5793 = vmul.f32 %v5655, %v5655
  %v5794 = vmul.f32 %v5656, %v5656
  %v5795 = vmul.f32 %v5657, %v5657
  %v5796 = vmul.f32 %v5658, %v5658
  %v5797 = vmul.f32 %v5659, %v5659
  %v5798 = vmul.f32 %v5660, %v5660
  %v5799 = vmul.f32 %v5661, %v5661
  %v5800 = vmul.f32 %v5662, %v5662
  %v5801 = vmul.f32 %v5663, %v5663
  %v5802 = vmul.f32 %v5664, %v5664
  %v5803 = vmul.f32 %v5665, %v5665
  %v5804 = vmul.f32 %v5666, %v5666
  %v5805 = vmul.f32 %v5667, %v5667
  %v5806 = vmul.f32 %v5668, %v5668
  %v5807 = vmul.f32 %v5669, %v5669
  %v5808 = vmul.f32 %v5670, %v5670
  %v5809 = vmul.f32 %v5671, %v5671
  %v5810 = vmul.f32 %v5672, %v5672
  %v5811 = vmul.f32 %v5673, %v5673
  %v5812 = vmul.f32 %v5674, %v5674
  %v5813 = vmul.f32 %v5675, %v5675
  %v5814 = vmul.f32 %v5676, %v5676
  %v5815 = vmul.f32 %v5677, %v5677
  %v5816 = vmul.f32 %v5678, %v5678
  %v5817 = vmul.f32 %v5679, %v5679
  %v5818 = vmul.f32 %v5680, %v5680
  %v5819 = vmul.f32 %v5681, %v5681
  %v5820 = vmul.f32 %v5682, %v5682
  %v5821 = vmul.f32 %v5683, %v5683
  %v5822 = vmul.f32 %v5684, %v5684
  %v5823 = vmul.f32 %v5685, %v5685
  %v5824 = vmul.f32 %v5686, %v5686
  %v5825 = vmul.f32 %v5687, %v5687
  %v5826 = vmul.f32 %v5688, %v5688
  %v5827 = vmul.f32 %v5689, %v5689
  %v5828 = vmul.f32 %v5690, %v5690
  %v5829 = vmul.f32 %v5691, %v5691
  %v5830 = vmul.f32 %v5692, %v5692
  %v5831 = vadd.f32 %v5767, %v5769
  %v5832 = vadd.f32 %v5831, %v5771
  %v5833 = vadd.f32 %v5832, %v5773
  %v5834 = vadd.f32 %v5833, %v5775
  %v5835 = vadd.f32 %v5834, %v5777
  %v5836 = vadd.f32 %v5835, %v5779
  %v5837 = vadd.f32 %v5836, %v5781
  %v5838 = vadd.f32 %v5837, %v5783
  %v5839 = vadd.f32 %v5838, %v5785
  %v5840 = vadd.f32 %v5839, %v5787
  %v5841 = vadd.f32 %v5840, %v5789
  %v5842 = vadd.f32 %v5841, %v5791
  %v5843 = vadd.f32 %v5842, %v5793
  %v5844 = vadd.f32 %v5843, %v5795
  %v5845 = vadd.f32 %v5844, %v5797
  %v5846 = vadd.f32 %v5845, %v5799
  %v5847 = vadd.f32 %v5846, %v5801
  %v5848 = vadd.f32 %v5847, %v5803
  %v5849 = vadd.f32 %v5848, %v5805
  %v5850 = vadd.f32 %v5849, %v5807
  %v5851 = vadd.f32 %v5850, %v5809
  %v5852 = vadd.f32 %v5851, %v5811
  %v5853 = vadd.f32 %v5852, %v5813
  %v5854 = vadd.f32 %v5853, %v5815
  %v5855 = vadd.f32 %v5854, %v5817
  %v5856 = vadd.f32 %v5855, %v5819
  %v5857 = vadd.f32 %v5856, %v5821
  %v5858 = vadd.f32 %v5857, %v5823
  %v5859 = vadd.f32 %v5858, %v5825
  %v5860 = vadd.f32 %v5859, %v5827
  %v5861 = vadd.f32 %v5860, %v5829
  %v5862 = vrot.slane %v5861, 4
  %v5863 = vadd.f32 %v5861, %v5862
  %v5864 = vrot.slane %v5863, 2
  %v5865 = vadd.f32 %v5863, %v5864
  %v5866 = vrot.slane %v5865, 1
  %v5867 = vadd.f32 %v5865, %v5866
  %v5868 = vadd.f32 %v5768, %v5770
  %v5869 = vadd.f32 %v5868, %v5772
  %v5870 = vadd.f32 %v5869, %v5774
  %v5871 = vadd.f32 %v5870, %v5776
  %v5872 = vadd.f32 %v5871, %v5778
  %v5873 = vadd.f32 %v5872, %v5780
  %v5874 = vadd.f32 %v5873, %v5782
  %v5875 = vadd.f32 %v5874, %v5784
  %v5876 = vadd.f32 %v5875, %v5786
  %v5877 = vadd.f32 %v5876, %v5788
  %v5878 = vadd.f32 %v5877, %v5790
  %v5879 = vadd.f32 %v5878, %v5792
  %v5880 = vadd.f32 %v5879, %v5794
  %v5881 = vadd.f32 %v5880, %v5796
  %v5882 = vadd.f32 %v5881, %v5798
  %v5883 = vadd.f32 %v5882, %v5800
  %v5884 = vadd.f32 %v5883, %v5802
  %v5885 = vadd.f32 %v5884, %v5804
  %v5886 = vadd.f32 %v5885, %v5806
  %v5887 = vadd.f32 %v5886, %v5808
  %v5888 = vadd.f32 %v5887, %v5810
  %v5889 = vadd.f32 %v5888, %v5812
  %v5890 = vadd.f32 %v5889, %v5814
  %v5891 = vadd.f32 %v5890, %v5816
  %v5892 = vadd.f32 %v5891, %v5818
  %v5893 = vadd.f32 %v5892, %v5820
  %v5894 = vadd.f32 %v5893, %v5822
  %v5895 = vadd.f32 %v5894, %v5824
  %v5896 = vadd.f32 %v5895, %v5826
  %v5897 = vadd.f32 %v5896, %v5828
  %v5898 = vadd.f32 %v5897, %v5830
  %v5899 = vrot.slane %v5898, 4
  %v5900 = vadd.f32 %v5898, %v5899
  %v5901 = vrot.slane %v5900, 2
  %v5902 = vadd.f32 %v5900, %v5901
  %v5903 = vrot.slane %v5902, 1
  %v5904 = vadd.f32 %v5902, %v5903
  %v5905 = vmul.f32 %v5729, 0.00390625
  %v5906 = vmul.f32 %v5766, 0.00390625
  %v5907 = vmul.f32 %v5867, 0.00390625
  %v5908 = vmul.f32 %v5904, 0.00390625
  %v5909 = vmul.f32 %v5905, %v5905
  %v5910 = vmul.f32 %v5906, %v5906
  %v5911 = vsub.f32 %v5907, %v5909
  %v5912 = vsub.f32 %v5908, %v5910
  %v5913 = vmax.f32 %v5911, 0.0
  %v5914 = vmax.f32 %v5912, 0.0
  %v5915 = vld [vmem:[%s9 + $0x15] sm:$0x3]
  %v5916 = vadd.f32 %v5913, 1e-05
  %v5917 = vadd.f32 %v5914, 1e-05
  %v5918 = vrsqrt.pop %v5916
  %v5919 = vmul.f32 %v5918, %v5916
  %v5920 = vmul.f32 %v5919, %v5918
  %v5921 = vmul.f32 0.5, %v5920
  %v5922 = vsub.f32 1.5, %v5921
  %v5923 = vmul.f32 %v5918, %v5922
  %vm5924 = vweird.f32 %v5916
  %vm5925 = vweird.f32 %v5918
  %vm5926 = vmor %vm5924, %vm5925
  %v5927 = vsel %vm5926, %v5918, %v5923
  %v5928 = vrsqrt.pop %v5917
  %v5929 = vmul.f32 %v5928, %v5917
  %v5930 = vmul.f32 %v5929, %v5928
  %v5931 = vmul.f32 0.5, %v5930
  %v5932 = vsub.f32 1.5, %v5931
  %v5933 = vmul.f32 %v5928, %v5932
  %vm5934 = vweird.f32 %v5917
  %vm5935 = vweird.f32 %v5928
  %vm5936 = vmor %vm5934, %vm5935
  %v5937 = vsel %vm5936, %v5928, %v5933
  %v5940 = vrot.slane %v5937, 7
  %v5941 = vsel %vm2927, %v5927, %v5940
  %v5943 = vmul.f32 %v5915, %v5941
  %v5944 = vld [vmem:[%s9 + $0x17] sm:$0x3]
  %v5946 = vperm.slane %v5943, 0
  %v5947 = vperm.slane %v5943, 1
  %v5950 = vmul.f32 %v5905, %v5946
  %v5951 = vmul.f32 %v5906, %v5947
  %v5954 = vrot.slane %v5951, 7
  %v5955 = vsel %vm2927, %v5950, %v5954
  %v5957 = vsub.f32 %v5944, %v5955
  %v5958 = vmul.f32 %v5629, %v5946
  %v5959 = vmul.f32 %v5630, %v5947
  %v5960 = vmul.f32 %v5631, %v5946
  %v5961 = vmul.f32 %v5632, %v5947
  %v5962 = vmul.f32 %v5633, %v5946
  %v5963 = vmul.f32 %v5634, %v5947
  %v5964 = vmul.f32 %v5635, %v5946
  %v5965 = vmul.f32 %v5636, %v5947
  %v5966 = vmul.f32 %v5637, %v5946
  %v5967 = vmul.f32 %v5638, %v5947
  %v5968 = vmul.f32 %v5639, %v5946
  %v5969 = vmul.f32 %v5640, %v5947
  %v5970 = vmul.f32 %v5641, %v5946
  %v5971 = vmul.f32 %v5642, %v5947
  %v5972 = vmul.f32 %v5643, %v5946
  %v5973 = vmul.f32 %v5644, %v5947
  %v5974 = vmul.f32 %v5645, %v5946
  %v5975 = vmul.f32 %v5646, %v5947
  %v5976 = vmul.f32 %v5647, %v5946
  %v5977 = vmul.f32 %v5648, %v5947
  %v5978 = vmul.f32 %v5649, %v5946
  %v5979 = vmul.f32 %v5650, %v5947
  %v5980 = vmul.f32 %v5651, %v5946
  %v5981 = vmul.f32 %v5652, %v5947
  %v5982 = vmul.f32 %v5653, %v5946
  %v5983 = vmul.f32 %v5654, %v5947
  %v5984 = vmul.f32 %v5655, %v5946
  %v5985 = vmul.f32 %v5656, %v5947
  %v5986 = vmul.f32 %v5657, %v5946
  %v5987 = vmul.f32 %v5658, %v5947
  %v5988 = vmul.f32 %v5659, %v5946
  %v5989 = vmul.f32 %v5660, %v5947
  %v5990 = vmul.f32 %v5661, %v5946
  %v5991 = vmul.f32 %v5662, %v5947
  %v5992 = vmul.f32 %v5663, %v5946
  %v5993 = vmul.f32 %v5664, %v5947
  %v5994 = vmul.f32 %v5665, %v5946
  %v5995 = vmul.f32 %v5666, %v5947
  %v5996 = vmul.f32 %v5667, %v5946
  %v5997 = vmul.f32 %v5668, %v5947
  %v5998 = vmul.f32 %v5669, %v5946
  %v5999 = vmul.f32 %v5670, %v5947
  %v6000 = vmul.f32 %v5671, %v5946
  %v6001 = vmul.f32 %v5672, %v5947
  %v6002 = vmul.f32 %v5673, %v5946
  %v6003 = vmul.f32 %v5674, %v5947
  %v6004 = vmul.f32 %v5675, %v5946
  %v6005 = vmul.f32 %v5676, %v5947
  %v6006 = vmul.f32 %v5677, %v5946
  %v6007 = vmul.f32 %v5678, %v5947
  %v6008 = vmul.f32 %v5679, %v5946
  %v6009 = vmul.f32 %v5680, %v5947
  %v6010 = vmul.f32 %v5681, %v5946
  %v6011 = vmul.f32 %v5682, %v5947
  %v6012 = vmul.f32 %v5683, %v5946
  %v6013 = vmul.f32 %v5684, %v5947
  %v6014 = vmul.f32 %v5685, %v5946
  %v6015 = vmul.f32 %v5686, %v5947
  %v6016 = vmul.f32 %v5687, %v5946
  %v6017 = vmul.f32 %v5688, %v5947
  %v6018 = vmul.f32 %v5689, %v5946
  %v6019 = vmul.f32 %v5690, %v5947
  %v6020 = vmul.f32 %v5691, %v5946
  %v6021 = vmul.f32 %v5692, %v5947
  %v6023 = vperm.slane %v5957, 0
  %v6024 = vperm.slane %v5957, 1
  %v6027 = vadd.f32 %v5958, %v6023
  %v6028 = vadd.f32 %v5959, %v6024
  %v6029 = vadd.f32 %v5960, %v6023
  %v6030 = vadd.f32 %v5961, %v6024
  %v6031 = vadd.f32 %v5962, %v6023
  %v6032 = vadd.f32 %v5963, %v6024
  %v6033 = vadd.f32 %v5964, %v6023
  %v6034 = vadd.f32 %v5965, %v6024
  %v6035 = vadd.f32 %v5966, %v6023
  %v6036 = vadd.f32 %v5967, %v6024
  %v6037 = vadd.f32 %v5968, %v6023
  %v6038 = vadd.f32 %v5969, %v6024
  %v6039 = vadd.f32 %v5970, %v6023
  %v6040 = vadd.f32 %v5971, %v6024
  %v6041 = vadd.f32 %v5972, %v6023
  %v6042 = vadd.f32 %v5973, %v6024
  %v6043 = vadd.f32 %v5974, %v6023
  %v6044 = vadd.f32 %v5975, %v6024
  %v6045 = vadd.f32 %v5976, %v6023
  %v6046 = vadd.f32 %v5977, %v6024
  %v6047 = vadd.f32 %v5978, %v6023
  %v6048 = vadd.f32 %v5979, %v6024
  %v6049 = vadd.f32 %v5980, %v6023
  %v6050 = vadd.f32 %v5981, %v6024
  %v6051 = vadd.f32 %v5982, %v6023
  %v6052 = vadd.f32 %v5983, %v6024
  %v6053 = vadd.f32 %v5984, %v6023
  %v6054 = vadd.f32 %v5985, %v6024
  %v6055 = vadd.f32 %v5986, %v6023
  %v6056 = vadd.f32 %v5987, %v6024
  %v6057 = vadd.f32 %v5988, %v6023
  %v6058 = vadd.f32 %v5989, %v6024
  %v6059 = vadd.f32 %v5990, %v6023
  %v6060 = vadd.f32 %v5991, %v6024
  %v6061 = vadd.f32 %v5992, %v6023
  %v6062 = vadd.f32 %v5993, %v6024
  %v6063 = vadd.f32 %v5994, %v6023
  %v6064 = vadd.f32 %v5995, %v6024
  %v6065 = vadd.f32 %v5996, %v6023
  %v6066 = vadd.f32 %v5997, %v6024
  %v6067 = vadd.f32 %v5998, %v6023
  %v6068 = vadd.f32 %v5999, %v6024
  %v6069 = vadd.f32 %v6000, %v6023
  %v6070 = vadd.f32 %v6001, %v6024
  %v6071 = vadd.f32 %v6002, %v6023
  %v6072 = vadd.f32 %v6003, %v6024
  %v6073 = vadd.f32 %v6004, %v6023
  %v6074 = vadd.f32 %v6005, %v6024
  %v6075 = vadd.f32 %v6006, %v6023
  %v6076 = vadd.f32 %v6007, %v6024
  %v6077 = vadd.f32 %v6008, %v6023
  %v6078 = vadd.f32 %v6009, %v6024
  %v6079 = vadd.f32 %v6010, %v6023
  %v6080 = vadd.f32 %v6011, %v6024
  %v6081 = vadd.f32 %v6012, %v6023
  %v6082 = vadd.f32 %v6013, %v6024
  %v6083 = vadd.f32 %v6014, %v6023
  %v6084 = vadd.f32 %v6015, %v6024
  %v6085 = vadd.f32 %v6016, %v6023
  %v6086 = vadd.f32 %v6017, %v6024
  %v6087 = vadd.f32 %v6018, %v6023
  %v6088 = vadd.f32 %v6019, %v6024
  %v6089 = vadd.f32 %v6020, %v6023
  %v6090 = vadd.f32 %v6021, %v6024
  %v6091 = vpack.c.bf16 %v6029, %v6027
  %v6092 = vpack.c.bf16 %v6030, %v6028
  %v6093 = vpack.c.bf16 %v6033, %v6031
  %v6094 = vpack.c.bf16 %v6034, %v6032
  %v6095 = vpack.c.bf16 %v6037, %v6035
  %v6096 = vpack.c.bf16 %v6038, %v6036
  %v6097 = vpack.c.bf16 %v6041, %v6039
  %v6098 = vpack.c.bf16 %v6042, %v6040
  %v6099 = vpack.c.bf16 %v6045, %v6043
  %v6100 = vpack.c.bf16 %v6046, %v6044
  %v6101 = vpack.c.bf16 %v6049, %v6047
  %v6102 = vpack.c.bf16 %v6050, %v6048
  %v6103 = vpack.c.bf16 %v6053, %v6051
  %v6104 = vpack.c.bf16 %v6054, %v6052
  %v6105 = vpack.c.bf16 %v6057, %v6055
  %v6106 = vpack.c.bf16 %v6058, %v6056
  %v6107 = vpack.c.bf16 %v6061, %v6059
  %v6108 = vpack.c.bf16 %v6062, %v6060
  %v6109 = vpack.c.bf16 %v6065, %v6063
  %v6110 = vpack.c.bf16 %v6066, %v6064
  %v6111 = vpack.c.bf16 %v6069, %v6067
  %v6112 = vpack.c.bf16 %v6070, %v6068
  %v6113 = vpack.c.bf16 %v6073, %v6071
  %v6114 = vpack.c.bf16 %v6074, %v6072
  %v6115 = vpack.c.bf16 %v6077, %v6075
  %v6116 = vpack.c.bf16 %v6078, %v6076
  %v6117 = vpack.c.bf16 %v6081, %v6079
  %v6118 = vpack.c.bf16 %v6082, %v6080
  %v6119 = vpack.c.bf16 %v6085, %v6083
  %v6120 = vpack.c.bf16 %v6086, %v6084
  %v6121 = vpack.c.bf16 %v6089, %v6087
  %v6122 = vpack.c.bf16 %v6090, %v6088
  %v6123 = vld [vmem:[%s8] sm:$0xff]
  %v6124 = vld [vmem:[%s8 + $0x8] sm:$0xff]
  %v6125 = vld [vmem:[%s8 + $0x10] sm:$0xff]
  %v6126 = vld [vmem:[%s8 + $0x18] sm:$0xf]
  %v6127 = vld [vmem:[%s8 + $0x1c] sm:$0xff]
  %v6128 = vld [vmem:[%s8 + $0x24] sm:$0xff]
  %v6129 = vld [vmem:[%s8 + $0x2c] sm:$0xff]
  %v6130 = vld [vmem:[%s8 + $0x34] sm:$0xf]
  %v6131 = vld [vmem:[%s8 + $0x38] sm:$0xff]
  %v6132 = vld [vmem:[%s8 + $0x40] sm:$0xff]
  %v6133 = vld [vmem:[%s8 + $0x48] sm:$0xff]
  %v6134 = vld [vmem:[%s8 + $0x50] sm:$0xf]
  %v6135 = vld [vmem:[%s8 + $0x54] sm:$0xff]
  %v6136 = vld [vmem:[%s8 + $0x5c] sm:$0xff]
  %v6137 = vld [vmem:[%s8 + $0x64] sm:$0xff]
  %v6138 = vld [vmem:[%s8 + $0x6c] sm:$0xf]
  %v6139 = vld [vmem:[%s8 + $0x70] sm:$0xff]
  %v6140 = vld [vmem:[%s8 + $0x78] sm:$0xff]
  %v6141 = vld [vmem:[%s8 + $0x80] sm:$0xff]
  %v6142 = vld [vmem:[%s8 + $0x88] sm:$0xf]
  %v6143 = vld [vmem:[%s8 + $0x8c] sm:$0xff]
  %v6144 = vld [vmem:[%s8 + $0x94] sm:$0xff]
  %v6145 = vld [vmem:[%s8 + $0x9c] sm:$0xff]
  %v6146 = vld [vmem:[%s8 + $0xa4] sm:$0xf]
  %v6147 = vld [vmem:[%s8 + $0xa8] sm:$0xff]
  %v6148 = vld [vmem:[%s8 + $0xb0] sm:$0xff]
  %v6149 = vld [vmem:[%s8 + $0xb8] sm:$0xff]
  %v6150 = vld [vmem:[%s8 + $0xc0] sm:$0xf]
  %v6151 = vld [vmem:[%s8 + $0xc4] sm:$0xff]
  %v6152 = vld [vmem:[%s8 + $0xcc] sm:$0xff]
  %v6153 = vld [vmem:[%s8 + $0xd4] sm:$0xff]
  %v6154 = vld [vmem:[%s8 + $0xdc] sm:$0xf]
  %v6155 = vld [vmem:[%s8 + $0xe0] sm:$0xff]
  %v6156 = vld [vmem:[%s8 + $0xe8] sm:$0xff]
  %v6157 = vld [vmem:[%s8 + $0xf0] sm:$0xff]
  %v6158 = vld [vmem:[%s8 + $0xf8] sm:$0xf]
  %v6159 = vld [vmem:[%s8 + $0xfc] sm:$0xff]
  %v6160 = vld [vmem:[%s8 + $0x104] sm:$0xff]
  %v6161 = vld [vmem:[%s8 + $0x10c] sm:$0xff]
  %v6162 = vld [vmem:[%s8 + $0x114] sm:$0xf]
  %v6163 = vld [vmem:[%s8 + $0x118] sm:$0xff]
  %v6164 = vld [vmem:[%s8 + $0x120] sm:$0xff]
  %v6165 = vld [vmem:[%s8 + $0x128] sm:$0xff]
  %v6166 = vld [vmem:[%s8 + $0x130] sm:$0xf]
  %v6167 = vld [vmem:[%s8 + $0x134] sm:$0xff]
  %v6168 = vld [vmem:[%s8 + $0x13c] sm:$0xff]
  %v6169 = vld [vmem:[%s8 + $0x144] sm:$0xff]
  %v6170 = vld [vmem:[%s8 + $0x14c] sm:$0xf]
  %v6171 = vld [vmem:[%s8 + $0x150] sm:$0xff]
  %v6172 = vld [vmem:[%s8 + $0x158] sm:$0xff]
  %v6173 = vld [vmem:[%s8 + $0x160] sm:$0xff]
  %v6174 = vld [vmem:[%s8 + $0x168] sm:$0xf]
  %v6175 = vld [vmem:[%s8 + $0x16c] sm:$0xff]
  %v6176 = vld [vmem:[%s8 + $0x174] sm:$0xff]
  %v6177 = vld [vmem:[%s8 + $0x17c] sm:$0xff]
  %v6178 = vld [vmem:[%s8 + $0x184] sm:$0xf]
  %v6179 = vld [vmem:[%s8 + $0x188] sm:$0xff]
  %v6180 = vld [vmem:[%s8 + $0x190] sm:$0xff]
  %v6181 = vld [vmem:[%s8 + $0x198] sm:$0xff]
  %v6182 = vld [vmem:[%s8 + $0x1a0] sm:$0xf]
  %v6183 = vld [vmem:[%s8 + $0x1a4] sm:$0xff]
  %v6184 = vld [vmem:[%s8 + $0x1ac] sm:$0xff]
  %v6185 = vld [vmem:[%s8 + $0x1b4] sm:$0xff]
  %v6186 = vld [vmem:[%s8 + $0x1bc] sm:$0xf]
  %v6187 = vld [vmem:[%s8 + $0x1c0] sm:$0xff]
  %v6188 = vld [vmem:[%s8 + $0x1c8] sm:$0xff]
  %v6189 = vld [vmem:[%s8 + $0x1d0] sm:$0xff]
  %v6190 = vld [vmem:[%s8 + $0x1d8] sm:$0xf]
  %v6191 = vld [vmem:[%s8 + $0x1dc] sm:$0xff]
  %v6192 = vld [vmem:[%s8 + $0x1e4] sm:$0xff]
  %v6193 = vld [vmem:[%s8 + $0x1ec] sm:$0xff]
  %v6194 = vld [vmem:[%s8 + $0x1f4] sm:$0xf]
  %v6195 = vld [vmem:[%s8 + $0x1f8] sm:$0xff]
  %v6196 = vld [vmem:[%s8 + $0x200] sm:$0xff]
  %v6197 = vld [vmem:[%s8 + $0x208] sm:$0xff]
  %v6198 = vld [vmem:[%s8 + $0x210] sm:$0xf]
  %v6199 = vld [vmem:[%s8 + $0x214] sm:$0xff]
  %v6200 = vld [vmem:[%s8 + $0x21c] sm:$0xff]
  %v6201 = vld [vmem:[%s8 + $0x224] sm:$0xff]
  %v6202 = vld [vmem:[%s8 + $0x22c] sm:$0xf]
  %v6203 = vld [vmem:[%s8 + $0x230] sm:$0xff]
  %v6204 = vld [vmem:[%s8 + $0x238] sm:$0xff]
  %v6205 = vld [vmem:[%s8 + $0x240] sm:$0xff]
  %v6206 = vld [vmem:[%s8 + $0x248] sm:$0xf]
  %v6207 = vld [vmem:[%s8 + $0x24c] sm:$0xff]
  %v6208 = vld [vmem:[%s8 + $0x254] sm:$0xff]
  %v6209 = vld [vmem:[%s8 + $0x25c] sm:$0xff]
  %v6210 = vld [vmem:[%s8 + $0x264] sm:$0xf]
  %v6211 = vld [vmem:[%s8 + $0x268] sm:$0xff]
  %v6212 = vld [vmem:[%s8 + $0x270] sm:$0xff]
  %v6213 = vld [vmem:[%s8 + $0x278] sm:$0xff]
  %v6214 = vld [vmem:[%s8 + $0x280] sm:$0xf]
  %v6215 = vld [vmem:[%s8 + $0x284] sm:$0xff]
  %v6216 = vld [vmem:[%s8 + $0x28c] sm:$0xff]
  %v6217 = vld [vmem:[%s8 + $0x294] sm:$0xff]
  %v6218 = vld [vmem:[%s8 + $0x29c] sm:$0xf]
  %v6219 = vld [vmem:[%s8 + $0x2a0] sm:$0xff]
  %v6220 = vld [vmem:[%s8 + $0x2a8] sm:$0xff]
  %v6221 = vld [vmem:[%s8 + $0x2b0] sm:$0xff]
  %v6222 = vld [vmem:[%s8 + $0x2b8] sm:$0xf]
  %v6223 = vld [vmem:[%s8 + $0x2bc] sm:$0xff]
  %v6224 = vld [vmem:[%s8 + $0x2c4] sm:$0xff]
  %v6225 = vld [vmem:[%s8 + $0x2cc] sm:$0xff]
  %v6226 = vld [vmem:[%s8 + $0x2d4] sm:$0xf]
  %v6227 = vld [vmem:[%s8 + $0x2d8] sm:$0xff]
  %v6228 = vld [vmem:[%s8 + $0x2e0] sm:$0xff]
  %v6229 = vld [vmem:[%s8 + $0x2e8] sm:$0xff]
  %v6230 = vld [vmem:[%s8 + $0x2f0] sm:$0xf]
  %v6231 = vld [vmem:[%s8 + $0x2f4] sm:$0xff]
  %v6232 = vld [vmem:[%s8 + $0x2fc] sm:$0xff]
  %v6233 = vld [vmem:[%s8 + $0x304] sm:$0xff]
  %v6234 = vld [vmem:[%s8 + $0x30c] sm:$0xf]
  %v6235 = vld [vmem:[%s8 + $0x310] sm:$0xff]
  %v6236 = vld [vmem:[%s8 + $0x318] sm:$0xff]
  %v6237 = vld [vmem:[%s8 + $0x320] sm:$0xff]
  %v6238 = vld [vmem:[%s8 + $0x328] sm:$0xf]
  %v6239 = vld [vmem:[%s8 + $0x32c] sm:$0xff]
  %v6240 = vld [vmem:[%s8 + $0x334] sm:$0xff]
  %v6241 = vld [vmem:[%s8 + $0x33c] sm:$0xff]
  %v6242 = vld [vmem:[%s8 + $0x344] sm:$0xf]
  %v6243 = vld [vmem:[%s8 + $0x348] sm:$0xff]
  %v6244 = vld [vmem:[%s8 + $0x350] sm:$0xff]
  %v6245 = vld [vmem:[%s8 + $0x358] sm:$0xff]
  %v6246 = vld [vmem:[%s8 + $0x360] sm:$0xf]
  %v6247 = vld [vmem:[%s8 + $0x364] sm:$0xff]
  %v6248 = vld [vmem:[%s8 + $0x36c] sm:$0xff]
  %v6249 = vld [vmem:[%s8 + $0x374] sm:$0xff]
  %v6250 = vld [vmem:[%s8 + $0x37c] sm:$0xf]
  %v6251 = vld [vmem:[%s9 + $0x19] sm:$0x7f]
  %v6253 = vperm.slane %v6251, 0
  %v6254 = vperm.slane %v6251, 1
  %v6255 = vperm.slane %v6251, 2
  %v6256 = vperm.slane %v6251, 3
  %v6257 = vperm.slane %v6251, 4
  %v6258 = vperm.slane %v6251, 5
  %v6259 = vperm.slane %v6251, 6
  %v6395 = vunpack.c.l.b16 %v6123
  %v6396 = vunpack.c.h.b16 %v6123
  %v6397 = vunpack.c.l.b16 %v6124
  %v6398 = vunpack.c.h.b16 %v6124
  %v6399 = vunpack.c.l.b16 %v6125
  %v6400 = vunpack.c.h.b16 %v6125
  %v6401 = vunpack.c.l.b16 %v6126
  %v6402 = vunpack.c.l.b16 %v6127
  %v6403 = vunpack.c.h.b16 %v6127
  %v6404 = vunpack.c.l.b16 %v6128
  %v6405 = vunpack.c.h.b16 %v6128
  %v6406 = vunpack.c.l.b16 %v6129
  %v6407 = vunpack.c.h.b16 %v6129
  %v6408 = vunpack.c.l.b16 %v6130
  %v6409 = vunpack.c.l.b16 %v6131
  %v6410 = vunpack.c.h.b16 %v6131
  %v6411 = vunpack.c.l.b16 %v6132
  %v6412 = vunpack.c.h.b16 %v6132
  %v6413 = vunpack.c.l.b16 %v6133
  %v6414 = vunpack.c.h.b16 %v6133
  %v6415 = vunpack.c.l.b16 %v6134
  %v6416 = vunpack.c.l.b16 %v6135
  %v6417 = vunpack.c.h.b16 %v6135
  %v6418 = vunpack.c.l.b16 %v6136
  %v6419 = vunpack.c.h.b16 %v6136
  %v6420 = vunpack.c.l.b16 %v6137
  %v6421 = vunpack.c.h.b16 %v6137
  %v6422 = vunpack.c.l.b16 %v6138
  %v6423 = vunpack.c.l.b16 %v6139
  %v6424 = vunpack.c.h.b16 %v6139
  %v6425 = vunpack.c.l.b16 %v6140
  %v6426 = vunpack.c.h.b16 %v6140
  %v6427 = vunpack.c.l.b16 %v6141
  %v6428 = vunpack.c.h.b16 %v6141
  %v6429 = vunpack.c.l.b16 %v6142
  %v6430 = vunpack.c.l.b16 %v6143
  %v6431 = vunpack.c.h.b16 %v6143
  %v6432 = vunpack.c.l.b16 %v6144
  %v6433 = vunpack.c.h.b16 %v6144
  %v6434 = vunpack.c.l.b16 %v6145
  %v6435 = vunpack.c.h.b16 %v6145
  %v6436 = vunpack.c.l.b16 %v6146
  %v6437 = vunpack.c.l.b16 %v6147
  %v6438 = vunpack.c.h.b16 %v6147
  %v6439 = vunpack.c.l.b16 %v6148
  %v6440 = vunpack.c.h.b16 %v6148
  %v6441 = vunpack.c.l.b16 %v6149
  %v6442 = vunpack.c.h.b16 %v6149
  %v6443 = vunpack.c.l.b16 %v6150
  %v6444 = vunpack.c.l.b16 %v6151
  %v6445 = vunpack.c.h.b16 %v6151
  %v6446 = vunpack.c.l.b16 %v6152
  %v6447 = vunpack.c.h.b16 %v6152
  %v6448 = vunpack.c.l.b16 %v6153
  %v6449 = vunpack.c.h.b16 %v6153
  %v6450 = vunpack.c.l.b16 %v6154
  %v6451 = vunpack.c.l.b16 %v6155
  %v6452 = vunpack.c.h.b16 %v6155
  %v6453 = vunpack.c.l.b16 %v6156
  %v6454 = vunpack.c.h.b16 %v6156
  %v6455 = vunpack.c.l.b16 %v6157
  %v6456 = vunpack.c.h.b16 %v6157
  %v6457 = vunpack.c.l.b16 %v6158
  %v6458 = vunpack.c.l.b16 %v6159
  %v6459 = vunpack.c.h.b16 %v6159
  %v6460 = vunpack.c.l.b16 %v6160
  %v6461 = vunpack.c.h.b16 %v6160
  %v6462 = vunpack.c.l.b16 %v6161
  %v6463 = vunpack.c.h.b16 %v6161
  %v6464 = vunpack.c.l.b16 %v6162
  %v6465 = vunpack.c.l.b16 %v6163
  %v6466 = vunpack.c.h.b16 %v6163
  %v6467 = vunpack.c.l.b16 %v6164
  %v6468 = vunpack.c.h.b16 %v6164
  %v6469 = vunpack.c.l.b16 %v6165
  %v6470 = vunpack.c.h.b16 %v6165
  %v6471 = vunpack.c.l.b16 %v6166
  %v6472 = vunpack.c.l.b16 %v6167
  %v6473 = vunpack.c.h.b16 %v6167
  %v6474 = vunpack.c.l.b16 %v6168
  %v6475 = vunpack.c.h.b16 %v6168
  %v6476 = vunpack.c.l.b16 %v6169
  %v6477 = vunpack.c.h.b16 %v6169
  %v6478 = vunpack.c.l.b16 %v6170
  %v6479 = vunpack.c.l.b16 %v6171
  %v6480 = vunpack.c.h.b16 %v6171
  %v6481 = vunpack.c.l.b16 %v6172
  %v6482 = vunpack.c.h.b16 %v6172
  %v6483 = vunpack.c.l.b16 %v6173
  %v6484 = vunpack.c.h.b16 %v6173
  %v6485 = vunpack.c.l.b16 %v6174
  %v6486 = vunpack.c.l.b16 %v6175
  %v6487 = vunpack.c.h.b16 %v6175
  %v6488 = vunpack.c.l.b16 %v6176
  %v6489 = vunpack.c.h.b16 %v6176
  %v6490 = vunpack.c.l.b16 %v6177
  %v6491 = vunpack.c.h.b16 %v6177
  %v6492 = vunpack.c.l.b16 %v6178
  %v6493 = vunpack.c.l.b16 %v6179
  %v6494 = vunpack.c.h.b16 %v6179
  %v6495 = vunpack.c.l.b16 %v6180
  %v6496 = vunpack.c.h.b16 %v6180
  %v6497 = vunpack.c.l.b16 %v6181
  %v6498 = vunpack.c.h.b16 %v6181
  %v6499 = vunpack.c.l.b16 %v6182
  %v6500 = vunpack.c.l.b16 %v6183
  %v6501 = vunpack.c.h.b16 %v6183
  %v6502 = vunpack.c.l.b16 %v6184
  %v6503 = vunpack.c.h.b16 %v6184
  %v6504 = vunpack.c.l.b16 %v6185
  %v6505 = vunpack.c.h.b16 %v6185
  %v6506 = vunpack.c.l.b16 %v6186
  %v6507 = vunpack.c.l.b16 %v6187
  %v6508 = vunpack.c.h.b16 %v6187
  %v6509 = vunpack.c.l.b16 %v6188
  %v6510 = vunpack.c.h.b16 %v6188
  %v6511 = vunpack.c.l.b16 %v6189
  %v6512 = vunpack.c.h.b16 %v6189
  %v6513 = vunpack.c.l.b16 %v6190
  %v6514 = vunpack.c.l.b16 %v6191
  %v6515 = vunpack.c.h.b16 %v6191
  %v6516 = vunpack.c.l.b16 %v6192
  %v6517 = vunpack.c.h.b16 %v6192
  %v6518 = vunpack.c.l.b16 %v6193
  %v6519 = vunpack.c.h.b16 %v6193
  %v6520 = vunpack.c.l.b16 %v6194
  %v6521 = vunpack.c.l.b16 %v6195
  %v6522 = vunpack.c.h.b16 %v6195
  %v6523 = vunpack.c.l.b16 %v6196
  %v6524 = vunpack.c.h.b16 %v6196
  %v6525 = vunpack.c.l.b16 %v6197
  %v6526 = vunpack.c.h.b16 %v6197
  %v6527 = vunpack.c.l.b16 %v6198
  %v6528 = vunpack.c.l.b16 %v6199
  %v6529 = vunpack.c.h.b16 %v6199
  %v6530 = vunpack.c.l.b16 %v6200
  %v6531 = vunpack.c.h.b16 %v6200
  %v6532 = vunpack.c.l.b16 %v6201
  %v6533 = vunpack.c.h.b16 %v6201
  %v6534 = vunpack.c.l.b16 %v6202
  %v6535 = vunpack.c.l.b16 %v6203
  %v6536 = vunpack.c.h.b16 %v6203
  %v6537 = vunpack.c.l.b16 %v6204
  %v6538 = vunpack.c.h.b16 %v6204
  %v6539 = vunpack.c.l.b16 %v6205
  %v6540 = vunpack.c.h.b16 %v6205
  %v6541 = vunpack.c.l.b16 %v6206
  %v6542 = vunpack.c.l.b16 %v6207
  %v6543 = vunpack.c.h.b16 %v6207
  %v6544 = vunpack.c.l.b16 %v6208
  %v6545 = vunpack.c.h.b16 %v6208
  %v6546 = vunpack.c.l.b16 %v6209
  %v6547 = vunpack.c.h.b16 %v6209
  %v6548 = vunpack.c.l.b16 %v6210
  %v6549 = vunpack.c.l.b16 %v6211
  %v6550 = vunpack.c.h.b16 %v6211
  %v6551 = vunpack.c.l.b16 %v6212
  %v6552 = vunpack.c.h.b16 %v6212
  %v6553 = vunpack.c.l.b16 %v6213
  %v6554 = vunpack.c.h.b16 %v6213
  %v6555 = vunpack.c.l.b16 %v6214
  %v6556 = vunpack.c.l.b16 %v6215
  %v6557 = vunpack.c.h.b16 %v6215
  %v6558 = vunpack.c.l.b16 %v6216
  %v6559 = vunpack.c.h.b16 %v6216
  %v6560 = vunpack.c.l.b16 %v6217
  %v6561 = vunpack.c.h.b16 %v6217
  %v6562 = vunpack.c.l.b16 %v6218
  %v6563 = vunpack.c.l.b16 %v6219
  %v6564 = vunpack.c.h.b16 %v6219
  %v6565 = vunpack.c.l.b16 %v6220
  %v6566 = vunpack.c.h.b16 %v6220
  %v6567 = vunpack.c.l.b16 %v6221
  %v6568 = vunpack.c.h.b16 %v6221
  %v6569 = vunpack.c.l.b16 %v6222
  %v6570 = vunpack.c.l.b16 %v6223
  %v6571 = vunpack.c.h.b16 %v6223
  %v6572 = vunpack.c.l.b16 %v6224
  %v6573 = vunpack.c.h.b16 %v6224
  %v6574 = vunpack.c.l.b16 %v6225
  %v6575 = vunpack.c.h.b16 %v6225
  %v6576 = vunpack.c.l.b16 %v6226
  %v6577 = vunpack.c.l.b16 %v6227
  %v6578 = vunpack.c.h.b16 %v6227
  %v6579 = vunpack.c.l.b16 %v6228
  %v6580 = vunpack.c.h.b16 %v6228
  %v6581 = vunpack.c.l.b16 %v6229
  %v6582 = vunpack.c.h.b16 %v6229
  %v6583 = vunpack.c.l.b16 %v6230
  %v6584 = vunpack.c.l.b16 %v6231
  %v6585 = vunpack.c.h.b16 %v6231
  %v6586 = vunpack.c.l.b16 %v6232
  %v6587 = vunpack.c.h.b16 %v6232
  %v6588 = vunpack.c.l.b16 %v6233
  %v6589 = vunpack.c.h.b16 %v6233
  %v6590 = vunpack.c.l.b16 %v6234
  %v6591 = vunpack.c.l.b16 %v6235
  %v6592 = vunpack.c.h.b16 %v6235
  %v6593 = vunpack.c.l.b16 %v6236
  %v6594 = vunpack.c.h.b16 %v6236
  %v6595 = vunpack.c.l.b16 %v6237
  %v6596 = vunpack.c.h.b16 %v6237
  %v6597 = vunpack.c.l.b16 %v6238
  %v6598 = vunpack.c.l.b16 %v6239
  %v6599 = vunpack.c.h.b16 %v6239
  %v6600 = vunpack.c.l.b16 %v6240
  %v6601 = vunpack.c.h.b16 %v6240
  %v6602 = vunpack.c.l.b16 %v6241
  %v6603 = vunpack.c.h.b16 %v6241
  %v6604 = vunpack.c.l.b16 %v6242
  %v6605 = vunpack.c.l.b16 %v6243
  %v6606 = vunpack.c.h.b16 %v6243
  %v6607 = vunpack.c.l.b16 %v6244
  %v6608 = vunpack.c.h.b16 %v6244
  %v6609 = vunpack.c.l.b16 %v6245
  %v6610 = vunpack.c.h.b16 %v6245
  %v6611 = vunpack.c.l.b16 %v6246
  %v6612 = vunpack.c.l.b16 %v6247
  %v6613 = vunpack.c.h.b16 %v6247
  %v6614 = vunpack.c.l.b16 %v6248
  %v6615 = vunpack.c.h.b16 %v6248
  %v6616 = vunpack.c.l.b16 %v6249
  %v6617 = vunpack.c.h.b16 %v6249
  %v6618 = vunpack.c.l.b16 %v6250
  %v6619 = vpack.c.b16 %v6402, %v6395
  %v6620 = vpack.c.b16 %v6403, %v6396
  %v6621 = vpack.c.b16 %v6404, %v6397
  %v6622 = vpack.c.b16 %v6405, %v6398
  %v6623 = vpack.c.b16 %v6406, %v6399
  %v6624 = vpack.c.b16 %v6407, %v6400
  %v6625 = vpack.c.b16 %v6408, %v6401
  %v6626 = vpack.c.b16 %v6416, %v6409
  %v6627 = vpack.c.b16 %v6417, %v6410
  %v6628 = vpack.c.b16 %v6418, %v6411
  %v6629 = vpack.c.b16 %v6419, %v6412
  %v6630 = vpack.c.b16 %v6420, %v6413
  %v6631 = vpack.c.b16 %v6421, %v6414
  %v6632 = vpack.c.b16 %v6422, %v6415
  %v6633 = vpack.c.b16 %v6430, %v6423
  %v6634 = vpack.c.b16 %v6431, %v6424
  %v6635 = vpack.c.b16 %v6432, %v6425
  %v6636 = vpack.c.b16 %v6433, %v6426
  %v6637 = vpack.c.b16 %v6434, %v6427
  %v6638 = vpack.c.b16 %v6435, %v6428
  %v6639 = vpack.c.b16 %v6436, %v6429
  %v6640 = vpack.c.b16 %v6444, %v6437
  %v6641 = vpack.c.b16 %v6445, %v6438
  %v6642 = vpack.c.b16 %v6446, %v6439
  %v6643 = vpack.c.b16 %v6447, %v6440
  %v6644 = vpack.c.b16 %v6448, %v6441
  %v6645 = vpack.c.b16 %v6449, %v6442
  %v6646 = vpack.c.b16 %v6450, %v6443
  %v6647 = vpack.c.b16 %v6458, %v6451
  %v6648 = vpack.c.b16 %v6459, %v6452
  %v6649 = vpack.c.b16 %v6460, %v6453
  %v6650 = vpack.c.b16 %v6461, %v6454
  %v6651 = vpack.c.b16 %v6462, %v6455
  %v6652 = vpack.c.b16 %v6463, %v6456
  %v6653 = vpack.c.b16 %v6464, %v6457
  %v6654 = vpack.c.b16 %v6472, %v6465
  %v6655 = vpack.c.b16 %v6473, %v6466
  %v6656 = vpack.c.b16 %v6474, %v6467
  %v6657 = vpack.c.b16 %v6475, %v6468
  %v6658 = vpack.c.b16 %v6476, %v6469
  %v6659 = vpack.c.b16 %v6477, %v6470
  %v6660 = vpack.c.b16 %v6478, %v6471
  %v6661 = vpack.c.b16 %v6486, %v6479
  %v6662 = vpack.c.b16 %v6487, %v6480
  %v6663 = vpack.c.b16 %v6488, %v6481
  %v6664 = vpack.c.b16 %v6489, %v6482
  %v6665 = vpack.c.b16 %v6490, %v6483
  %v6666 = vpack.c.b16 %v6491, %v6484
  %v6667 = vpack.c.b16 %v6492, %v6485
  %v6668 = vpack.c.b16 %v6500, %v6493
  %v6669 = vpack.c.b16 %v6501, %v6494
  %v6670 = vpack.c.b16 %v6502, %v6495
  %v6671 = vpack.c.b16 %v6503, %v6496
  %v6672 = vpack.c.b16 %v6504, %v6497
  %v6673 = vpack.c.b16 %v6505, %v6498
  %v6674 = vpack.c.b16 %v6506, %v6499
  %v6675 = vpack.c.b16 %v6514, %v6507
  %v6676 = vpack.c.b16 %v6515, %v6508
  %v6677 = vpack.c.b16 %v6516, %v6509
  %v6678 = vpack.c.b16 %v6517, %v6510
  %v6679 = vpack.c.b16 %v6518, %v6511
  %v6680 = vpack.c.b16 %v6519, %v6512
  %v6681 = vpack.c.b16 %v6520, %v6513
  %v6682 = vpack.c.b16 %v6528, %v6521
  %v6683 = vpack.c.b16 %v6529, %v6522
  %v6684 = vpack.c.b16 %v6530, %v6523
  %v6685 = vpack.c.b16 %v6531, %v6524
  %v6686 = vpack.c.b16 %v6532, %v6525
  %v6687 = vpack.c.b16 %v6533, %v6526
  %v6688 = vpack.c.b16 %v6534, %v6527
  %v6689 = vpack.c.b16 %v6542, %v6535
  %v6690 = vpack.c.b16 %v6543, %v6536
  %v6691 = vpack.c.b16 %v6544, %v6537
  %v6692 = vpack.c.b16 %v6545, %v6538
  %v6693 = vpack.c.b16 %v6546, %v6539
  %v6694 = vpack.c.b16 %v6547, %v6540
  %v6695 = vpack.c.b16 %v6548, %v6541
  %v6696 = vpack.c.b16 %v6556, %v6549
  %v6697 = vpack.c.b16 %v6557, %v6550
  %v6698 = vpack.c.b16 %v6558, %v6551
  %v6699 = vpack.c.b16 %v6559, %v6552
  %v6700 = vpack.c.b16 %v6560, %v6553
  %v6701 = vpack.c.b16 %v6561, %v6554
  %v6702 = vpack.c.b16 %v6562, %v6555
  %v6703 = vpack.c.b16 %v6570, %v6563
  %v6704 = vpack.c.b16 %v6571, %v6564
  %v6705 = vpack.c.b16 %v6572, %v6565
  %v6706 = vpack.c.b16 %v6573, %v6566
  %v6707 = vpack.c.b16 %v6574, %v6567
  %v6708 = vpack.c.b16 %v6575, %v6568
  %v6709 = vpack.c.b16 %v6576, %v6569
  %v6710 = vpack.c.b16 %v6584, %v6577
  %v6711 = vpack.c.b16 %v6585, %v6578
  %v6712 = vpack.c.b16 %v6586, %v6579
  %v6713 = vpack.c.b16 %v6587, %v6580
  %v6714 = vpack.c.b16 %v6588, %v6581
  %v6715 = vpack.c.b16 %v6589, %v6582
  %v6716 = vpack.c.b16 %v6590, %v6583
  %v6717 = vpack.c.b16 %v6598, %v6591
  %v6718 = vpack.c.b16 %v6599, %v6592
  %v6719 = vpack.c.b16 %v6600, %v6593
  %v6720 = vpack.c.b16 %v6601, %v6594
  %v6721 = vpack.c.b16 %v6602, %v6595
  %v6722 = vpack.c.b16 %v6603, %v6596
  %v6723 = vpack.c.b16 %v6604, %v6597
  %v6724 = vpack.c.b16 %v6612, %v6605
  %v6725 = vpack.c.b16 %v6613, %v6606
  %v6726 = vpack.c.b16 %v6614, %v6607
  %v6727 = vpack.c.b16 %v6615, %v6608
  %v6728 = vpack.c.b16 %v6616, %v6609
  %v6729 = vpack.c.b16 %v6617, %v6610
  %v6730 = vpack.c.b16 %v6618, %v6611
  %6843 = vmatpush.bf16.msra.mxu0 %v6668
  %6844 = vmatpush.bf16.msra.mxu0 %v6661
  %6845 = vmatpush.bf16.msra.mxu0 %v6654
  %6846 = vmatpush.bf16.msra.mxu0 %v6647
  %6847 = vmatpush.bf16.msra.mxu0 %v6640
  %6848 = vmatpush.bf16.msra.mxu0 %v6633
  %6849 = vmatpush.bf16.msra.mxu0 %v6626
  %6850 = vmatpush.bf16.msra.mxu0 %v6619
  %6851 = vmatmul.bf16.gmra.mxu0 %v6091
  %v6852 = vpop.f32.mrf.mxu0
  %v6853 = vadd.f32 %v6253, %v6852
  %v6854 = vpop.f32.mrf.mxu0
  %v6855 = vadd.f32 %v6253, %v6854
  %6856 = vmatmul.bf16.gmra.mxu0 %v6093
  %v6857 = vpop.f32.mrf.mxu0
  %v6858 = vadd.f32 %v6253, %v6857
  %v6859 = vpop.f32.mrf.mxu0
  %v6860 = vadd.f32 %v6253, %v6859
  %6861 = vmatmul.bf16.gmra.mxu0 %v6095
  %v6862 = vpop.f32.mrf.mxu0
  %v6863 = vadd.f32 %v6253, %v6862
  %v6864 = vpop.f32.mrf.mxu0
  %v6865 = vadd.f32 %v6253, %v6864
  %6866 = vmatmul.bf16.gmra.mxu0 %v6097
  %v6867 = vpop.f32.mrf.mxu0
  %v6868 = vadd.f32 %v6253, %v6867
  %v6869 = vpop.f32.mrf.mxu0
  %v6870 = vadd.f32 %v6253, %v6869
  %6871 = vmatmul.bf16.gmra.mxu0 %v6099
  %v6872 = vpop.f32.mrf.mxu0
  %v6873 = vadd.f32 %v6253, %v6872
  %v6874 = vpop.f32.mrf.mxu0
  %v6875 = vadd.f32 %v6253, %v6874
  %6876 = vmatmul.bf16.gmra.mxu0 %v6101
  %v6877 = vpop.f32.mrf.mxu0
  %v6878 = vadd.f32 %v6253, %v6877
  %v6879 = vpop.f32.mrf.mxu0
  %v6880 = vadd.f32 %v6253, %v6879
  %6881 = vmatmul.bf16.gmra.mxu0 %v6103
  %v6882 = vpop.f32.mrf.mxu0
  %v6883 = vadd.f32 %v6253, %v6882
  %v6884 = vpop.f32.mrf.mxu0
  %v6885 = vadd.f32 %v6253, %v6884
  %6886 = vmatmul.bf16.gmra.mxu0 %v6105
  %v6887 = vpop.f32.mrf.mxu0
  %v6888 = vadd.f32 %v6253, %v6887
  %v6889 = vpop.f32.mrf.mxu0
  %v6890 = vadd.f32 %v6253, %v6889
  %6891 = vmatmul.bf16.gmra.mxu0 %v6107
  %v6892 = vpop.f32.mrf.mxu0
  %v6893 = vadd.f32 %v6253, %v6892
  %v6894 = vpop.f32.mrf.mxu0
  %v6895 = vadd.f32 %v6253, %v6894
  %6896 = vmatmul.bf16.gmra.mxu0 %v6109
  %v6897 = vpop.f32.mrf.mxu0
  %v6898 = vadd.f32 %v6253, %v6897
  %v6899 = vpop.f32.mrf.mxu0
  %v6900 = vadd.f32 %v6253, %v6899
  %6901 = vmatmul.bf16.gmra.mxu0 %v6111
  %v6902 = vpop.f32.mrf.mxu0
  %v6903 = vadd.f32 %v6253, %v6902
  %v6904 = vpop.f32.mrf.mxu0
  %v6905 = vadd.f32 %v6253, %v6904
  %6906 = vmatmul.bf16.gmra.mxu0 %v6113
  %v6907 = vpop.f32.mrf.mxu0
  %v6908 = vadd.f32 %v6253, %v6907
  %v6909 = vpop.f32.mrf.mxu0
  %v6910 = vadd.f32 %v6253, %v6909
  %6911 = vmatmul.bf16.gmra.mxu0 %v6115
  %v6912 = vpop.f32.mrf.mxu0
  %v6913 = vadd.f32 %v6253, %v6912
  %v6914 = vpop.f32.mrf.mxu0
  %v6915 = vadd.f32 %v6253, %v6914
  %6916 = vmatmul.bf16.gmra.mxu0 %v6117
  %v6917 = vpop.f32.mrf.mxu0
  %v6918 = vadd.f32 %v6253, %v6917
  %v6919 = vpop.f32.mrf.mxu0
  %v6920 = vadd.f32 %v6253, %v6919
  %6921 = vmatmul.bf16.gmra.mxu0 %v6119
  %v6922 = vpop.f32.mrf.mxu0
  %v6923 = vadd.f32 %v6253, %v6922
  %v6924 = vpop.f32.mrf.mxu0
  %v6925 = vadd.f32 %v6253, %v6924
  %6926 = vmatmul.bf16.gmra.mxu0 %v6121
  %v6927 = vpop.f32.mrf.mxu0
  %v6928 = vadd.f32 %v6253, %v6927
  %v6929 = vpop.f32.mrf.mxu0
  %v6930 = vadd.f32 %v6253, %v6929
  %6931 = vdwg.mxu0
  %6932 = vmatpush.bf16.msra.mxu0 %v6724
  %6933 = vmatpush.bf16.msra.mxu0 %v6717
  %6934 = vmatpush.bf16.msra.mxu0 %v6710
  %6935 = vmatpush.bf16.msra.mxu0 %v6703
  %6936 = vmatpush.bf16.msra.mxu0 %v6696
  %6937 = vmatpush.bf16.msra.mxu0 %v6689
  %6938 = vmatpush.bf16.msra.mxu0 %v6682
  %6939 = vmatpush.bf16.msra.mxu0 %v6675
  %6940 = vmatmul.bf16.gmra.mxu0 %v6092
  %v6941 = vpop.f32.mrf.mxu0
  %v6942 = vadd.f32 %v6853, %v6941
  %v6943 = vpop.f32.mrf.mxu0
  %v6944 = vadd.f32 %v6855, %v6943
  %6945 = vmatmul.bf16.gmra.mxu0 %v6094
  %v6946 = vpop.f32.mrf.mxu0
  %v6947 = vadd.f32 %v6858, %v6946
  %v6948 = vpop.f32.mrf.mxu0
  %v6949 = vadd.f32 %v6860, %v6948
  %6950 = vmatmul.bf16.gmra.mxu0 %v6096
  %v6951 = vpop.f32.mrf.mxu0
  %v6952 = vadd.f32 %v6863, %v6951
  %v6953 = vpop.f32.mrf.mxu0
  %v6954 = vadd.f32 %v6865, %v6953
  %6955 = vmatmul.bf16.gmra.mxu0 %v6098
  %v6956 = vpop.f32.mrf.mxu0
  %v6957 = vadd.f32 %v6868, %v6956
  %v6958 = vpop.f32.mrf.mxu0
  %v6959 = vadd.f32 %v6870, %v6958
  %6960 = vmatmul.bf16.gmra.mxu0 %v6100
  %v6961 = vpop.f32.mrf.mxu0
  %v6962 = vadd.f32 %v6873, %v6961
  %v6963 = vpop.f32.mrf.mxu0
  %v6964 = vadd.f32 %v6875, %v6963
  %6965 = vmatmul.bf16.gmra.mxu0 %v6102
  %v6966 = vpop.f32.mrf.mxu0
  %v6967 = vadd.f32 %v6878, %v6966
  %v6968 = vpop.f32.mrf.mxu0
  %v6969 = vadd.f32 %v6880, %v6968
  %6970 = vmatmul.bf16.gmra.mxu0 %v6104
  %v6971 = vpop.f32.mrf.mxu0
  %v6972 = vadd.f32 %v6883, %v6971
  %v6973 = vpop.f32.mrf.mxu0
  %v6974 = vadd.f32 %v6885, %v6973
  %6975 = vmatmul.bf16.gmra.mxu0 %v6106
  %v6976 = vpop.f32.mrf.mxu0
  %v6977 = vadd.f32 %v6888, %v6976
  %v6978 = vpop.f32.mrf.mxu0
  %v6979 = vadd.f32 %v6890, %v6978
  %6980 = vmatmul.bf16.gmra.mxu0 %v6108
  %v6981 = vpop.f32.mrf.mxu0
  %v6982 = vadd.f32 %v6893, %v6981
  %v6983 = vpop.f32.mrf.mxu0
  %v6984 = vadd.f32 %v6895, %v6983
  %6985 = vmatmul.bf16.gmra.mxu0 %v6110
  %v6986 = vpop.f32.mrf.mxu0
  %v6987 = vadd.f32 %v6898, %v6986
  %v6988 = vpop.f32.mrf.mxu0
  %v6989 = vadd.f32 %v6900, %v6988
  %6990 = vmatmul.bf16.gmra.mxu0 %v6112
  %v6991 = vpop.f32.mrf.mxu0
  %v6992 = vadd.f32 %v6903, %v6991
  %v6993 = vpop.f32.mrf.mxu0
  %v6994 = vadd.f32 %v6905, %v6993
  %6995 = vmatmul.bf16.gmra.mxu0 %v6114
  %v6996 = vpop.f32.mrf.mxu0
  %v6997 = vadd.f32 %v6908, %v6996
  %v6998 = vpop.f32.mrf.mxu0
  %v6999 = vadd.f32 %v6910, %v6998
  %7000 = vmatmul.bf16.gmra.mxu0 %v6116
  %v7001 = vpop.f32.mrf.mxu0
  %v7002 = vadd.f32 %v6913, %v7001
  %v7003 = vpop.f32.mrf.mxu0
  %v7004 = vadd.f32 %v6915, %v7003
  %7005 = vmatmul.bf16.gmra.mxu0 %v6118
  %v7006 = vpop.f32.mrf.mxu0
  %v7007 = vadd.f32 %v6918, %v7006
  %v7008 = vpop.f32.mrf.mxu0
  %v7009 = vadd.f32 %v6920, %v7008
  %7010 = vmatmul.bf16.gmra.mxu0 %v6120
  %v7011 = vpop.f32.mrf.mxu0
  %v7012 = vadd.f32 %v6923, %v7011
  %v7013 = vpop.f32.mrf.mxu0
  %v7014 = vadd.f32 %v6925, %v7013
  %7015 = vmatmul.bf16.gmra.mxu0 %v6122
  %v7016 = vpop.f32.mrf.mxu0
  %v7017 = vadd.f32 %v6928, %v7016
  %v7018 = vpop.f32.mrf.mxu0
  %v7019 = vadd.f32 %v6930, %v7018
  %7020 = vdwg.mxu0
  %7021 = vmatpush.bf16.msra.mxu0 %v6669
  %7022 = vmatpush.bf16.msra.mxu0 %v6662
  %7023 = vmatpush.bf16.msra.mxu0 %v6655
  %7024 = vmatpush.bf16.msra.mxu0 %v6648
  %7025 = vmatpush.bf16.msra.mxu0 %v6641
  %7026 = vmatpush.bf16.msra.mxu0 %v6634
  %7027 = vmatpush.bf16.msra.mxu0 %v6627
  %7028 = vmatpush.bf16.msra.mxu0 %v6620
  %7029 = vmatmul.bf16.gmra.mxu0 %v6091
  %v7030 = vpop.f32.mrf.mxu0
  %v7031 = vadd.f32 %v6254, %v7030
  %v7032 = vpop.f32.mrf.mxu0
  %v7033 = vadd.f32 %v6254, %v7032
  %7034 = vmatmul.bf16.gmra.mxu0 %v6093
  %v7035 = vpop.f32.mrf.mxu0
  %v7036 = vadd.f32 %v6254, %v7035
  %v7037 = vpop.f32.mrf.mxu0
  %v7038 = vadd.f32 %v6254, %v7037
  %7039 = vmatmul.bf16.gmra.mxu0 %v6095
  %v7040 = vpop.f32.mrf.mxu0
  %v7041 = vadd.f32 %v6254, %v7040
  %v7042 = vpop.f32.mrf.mxu0
  %v7043 = vadd.f32 %v6254, %v7042
  %7044 = vmatmul.bf16.gmra.mxu0 %v6097
  %v7045 = vpop.f32.mrf.mxu0
  %v7046 = vadd.f32 %v6254, %v7045
  %v7047 = vpop.f32.mrf.mxu0
  %v7048 = vadd.f32 %v6254, %v7047
  %7049 = vmatmul.bf16.gmra.mxu0 %v6099
  %v7050 = vpop.f32.mrf.mxu0
  %v7051 = vadd.f32 %v6254, %v7050
  %v7052 = vpop.f32.mrf.mxu0
  %v7053 = vadd.f32 %v6254, %v7052
  %7054 = vmatmul.bf16.gmra.mxu0 %v6101
  %v7055 = vpop.f32.mrf.mxu0
  %v7056 = vadd.f32 %v6254, %v7055
  %v7057 = vpop.f32.mrf.mxu0
  %v7058 = vadd.f32 %v6254, %v7057
  %7059 = vmatmul.bf16.gmra.mxu0 %v6103
  %v7060 = vpop.f32.mrf.mxu0
  %v7061 = vadd.f32 %v6254, %v7060
  %v7062 = vpop.f32.mrf.mxu0
  %v7063 = vadd.f32 %v6254, %v7062
  %7064 = vmatmul.bf16.gmra.mxu0 %v6105
  %v7065 = vpop.f32.mrf.mxu0
  %v7066 = vadd.f32 %v6254, %v7065
  %v7067 = vpop.f32.mrf.mxu0
  %v7068 = vadd.f32 %v6254, %v7067
  %7069 = vmatmul.bf16.gmra.mxu0 %v6107
  %v7070 = vpop.f32.mrf.mxu0
  %v7071 = vadd.f32 %v6254, %v7070
  %v7072 = vpop.f32.mrf.mxu0
  %v7073 = vadd.f32 %v6254, %v7072
  %7074 = vmatmul.bf16.gmra.mxu0 %v6109
  %v7075 = vpop.f32.mrf.mxu0
  %v7076 = vadd.f32 %v6254, %v7075
  %v7077 = vpop.f32.mrf.mxu0
  %v7078 = vadd.f32 %v6254, %v7077
  %7079 = vmatmul.bf16.gmra.mxu0 %v6111
  %v7080 = vpop.f32.mrf.mxu0
  %v7081 = vadd.f32 %v6254, %v7080
  %v7082 = vpop.f32.mrf.mxu0
  %v7083 = vadd.f32 %v6254, %v7082
  %7084 = vmatmul.bf16.gmra.mxu0 %v6113
  %v7085 = vpop.f32.mrf.mxu0
  %v7086 = vadd.f32 %v6254, %v7085
  %v7087 = vpop.f32.mrf.mxu0
  %v7088 = vadd.f32 %v6254, %v7087
  %7089 = vmatmul.bf16.gmra.mxu0 %v6115
  %v7090 = vpop.f32.mrf.mxu0
  %v7091 = vadd.f32 %v6254, %v7090
  %v7092 = vpop.f32.mrf.mxu0
  %v7093 = vadd.f32 %v6254, %v7092
  %7094 = vmatmul.bf16.gmra.mxu0 %v6117
  %v7095 = vpop.f32.mrf.mxu0
  %v7096 = vadd.f32 %v6254, %v7095
  %v7097 = vpop.f32.mrf.mxu0
  %v7098 = vadd.f32 %v6254, %v7097
  %7099 = vmatmul.bf16.gmra.mxu0 %v6119
  %v7100 = vpop.f32.mrf.mxu0
  %v7101 = vadd.f32 %v6254, %v7100
  %v7102 = vpop.f32.mrf.mxu0
  %v7103 = vadd.f32 %v6254, %v7102
  %7104 = vmatmul.bf16.gmra.mxu0 %v6121
  %v7105 = vpop.f32.mrf.mxu0
  %v7106 = vadd.f32 %v6254, %v7105
  %v7107 = vpop.f32.mrf.mxu0
  %v7108 = vadd.f32 %v6254, %v7107
  %7109 = vdwg.mxu0
  %7110 = vmatpush.bf16.msra.mxu0 %v6725
  %7111 = vmatpush.bf16.msra.mxu0 %v6718
  %7112 = vmatpush.bf16.msra.mxu0 %v6711
  %7113 = vmatpush.bf16.msra.mxu0 %v6704
  %7114 = vmatpush.bf16.msra.mxu0 %v6697
  %7115 = vmatpush.bf16.msra.mxu0 %v6690
  %7116 = vmatpush.bf16.msra.mxu0 %v6683
  %7117 = vmatpush.bf16.msra.mxu0 %v6676
  %7118 = vmatmul.bf16.gmra.mxu0 %v6092
  %v7119 = vpop.f32.mrf.mxu0
  %v7120 = vadd.f32 %v7031, %v7119
  %v7121 = vpop.f32.mrf.mxu0
  %v7122 = vadd.f32 %v7033, %v7121
  %7123 = vmatmul.bf16.gmra.mxu0 %v6094
  %v7124 = vpop.f32.mrf.mxu0
  %v7125 = vadd.f32 %v7036, %v7124
  %v7126 = vpop.f32.mrf.mxu0
  %v7127 = vadd.f32 %v7038, %v7126
  %7128 = vmatmul.bf16.gmra.mxu0 %v6096
  %v7129 = vpop.f32.mrf.mxu0
  %v7130 = vadd.f32 %v7041, %v7129
  %v7131 = vpop.f32.mrf.mxu0
  %v7132 = vadd.f32 %v7043, %v7131
  %7133 = vmatmul.bf16.gmra.mxu0 %v6098
  %v7134 = vpop.f32.mrf.mxu0
  %v7135 = vadd.f32 %v7046, %v7134
  %v7136 = vpop.f32.mrf.mxu0
  %v7137 = vadd.f32 %v7048, %v7136
  %7138 = vmatmul.bf16.gmra.mxu0 %v6100
  %v7139 = vpop.f32.mrf.mxu0
  %v7140 = vadd.f32 %v7051, %v7139
  %v7141 = vpop.f32.mrf.mxu0
  %v7142 = vadd.f32 %v7053, %v7141
  %7143 = vmatmul.bf16.gmra.mxu0 %v6102
  %v7144 = vpop.f32.mrf.mxu0
  %v7145 = vadd.f32 %v7056, %v7144
  %v7146 = vpop.f32.mrf.mxu0
  %v7147 = vadd.f32 %v7058, %v7146
  %7148 = vmatmul.bf16.gmra.mxu0 %v6104
  %v7149 = vpop.f32.mrf.mxu0
  %v7150 = vadd.f32 %v7061, %v7149
  %v7151 = vpop.f32.mrf.mxu0
  %v7152 = vadd.f32 %v7063, %v7151
  %7153 = vmatmul.bf16.gmra.mxu0 %v6106
  %v7154 = vpop.f32.mrf.mxu0
  %v7155 = vadd.f32 %v7066, %v7154
  %v7156 = vpop.f32.mrf.mxu0
  %v7157 = vadd.f32 %v7068, %v7156
  %7158 = vmatmul.bf16.gmra.mxu0 %v6108
  %v7159 = vpop.f32.mrf.mxu0
  %v7160 = vadd.f32 %v7071, %v7159
  %v7161 = vpop.f32.mrf.mxu0
  %v7162 = vadd.f32 %v7073, %v7161
  %7163 = vmatmul.bf16.gmra.mxu0 %v6110
  %v7164 = vpop.f32.mrf.mxu0
  %v7165 = vadd.f32 %v7076, %v7164
  %v7166 = vpop.f32.mrf.mxu0
  %v7167 = vadd.f32 %v7078, %v7166
  %7168 = vmatmul.bf16.gmra.mxu0 %v6112
  %v7169 = vpop.f32.mrf.mxu0
  %v7170 = vadd.f32 %v7081, %v7169
  %v7171 = vpop.f32.mrf.mxu0
  %v7172 = vadd.f32 %v7083, %v7171
  %7173 = vmatmul.bf16.gmra.mxu0 %v6114
  %v7174 = vpop.f32.mrf.mxu0
  %v7175 = vadd.f32 %v7086, %v7174
  %v7176 = vpop.f32.mrf.mxu0
  %v7177 = vadd.f32 %v7088, %v7176
  %7178 = vmatmul.bf16.gmra.mxu0 %v6116
  %v7179 = vpop.f32.mrf.mxu0
  %v7180 = vadd.f32 %v7091, %v7179
  %v7181 = vpop.f32.mrf.mxu0
  %v7182 = vadd.f32 %v7093, %v7181
  %7183 = vmatmul.bf16.gmra.mxu0 %v6118
  %v7184 = vpop.f32.mrf.mxu0
  %v7185 = vadd.f32 %v7096, %v7184
  %v7186 = vpop.f32.mrf.mxu0
  %v7187 = vadd.f32 %v7098, %v7186
  %7188 = vmatmul.bf16.gmra.mxu0 %v6120
  %v7189 = vpop.f32.mrf.mxu0
  %v7190 = vadd.f32 %v7101, %v7189
  %v7191 = vpop.f32.mrf.mxu0
  %v7192 = vadd.f32 %v7103, %v7191
  %7193 = vmatmul.bf16.gmra.mxu0 %v6122
  %v7194 = vpop.f32.mrf.mxu0
  %v7195 = vadd.f32 %v7106, %v7194
  %v7196 = vpop.f32.mrf.mxu0
  %v7197 = vadd.f32 %v7108, %v7196
  %7198 = vdwg.mxu0
  %7199 = vmatpush.bf16.msra.mxu0 %v6670
  %7200 = vmatpush.bf16.msra.mxu0 %v6663
  %7201 = vmatpush.bf16.msra.mxu0 %v6656
  %7202 = vmatpush.bf16.msra.mxu0 %v6649
  %7203 = vmatpush.bf16.msra.mxu0 %v6642
  %7204 = vmatpush.bf16.msra.mxu0 %v6635
  %7205 = vmatpush.bf16.msra.mxu0 %v6628
  %7206 = vmatpush.bf16.msra.mxu0 %v6621
  %7207 = vmatmul.bf16.gmra.mxu0 %v6091
  %v7208 = vpop.f32.mrf.mxu0
  %v7209 = vadd.f32 %v6255, %v7208
  %v7210 = vpop.f32.mrf.mxu0
  %v7211 = vadd.f32 %v6255, %v7210
  %7212 = vmatmul.bf16.gmra.mxu0 %v6093
  %v7213 = vpop.f32.mrf.mxu0
  %v7214 = vadd.f32 %v6255, %v7213
  %v7215 = vpop.f32.mrf.mxu0
  %v7216 = vadd.f32 %v6255, %v7215
  %7217 = vmatmul.bf16.gmra.mxu0 %v6095
  %v7218 = vpop.f32.mrf.mxu0
  %v7219 = vadd.f32 %v6255, %v7218
  %v7220 = vpop.f32.mrf.mxu0
  %v7221 = vadd.f32 %v6255, %v7220
  %7222 = vmatmul.bf16.gmra.mxu0 %v6097
  %v7223 = vpop.f32.mrf.mxu0
  %v7224 = vadd.f32 %v6255, %v7223
  %v7225 = vpop.f32.mrf.mxu0
  %v7226 = vadd.f32 %v6255, %v7225
  %7227 = vmatmul.bf16.gmra.mxu0 %v6099
  %v7228 = vpop.f32.mrf.mxu0
  %v7229 = vadd.f32 %v6255, %v7228
  %v7230 = vpop.f32.mrf.mxu0
  %v7231 = vadd.f32 %v6255, %v7230
  %7232 = vmatmul.bf16.gmra.mxu0 %v6101
  %v7233 = vpop.f32.mrf.mxu0
  %v7234 = vadd.f32 %v6255, %v7233
  %v7235 = vpop.f32.mrf.mxu0
  %v7236 = vadd.f32 %v6255, %v7235
  %7237 = vmatmul.bf16.gmra.mxu0 %v6103
  %v7238 = vpop.f32.mrf.mxu0
  %v7239 = vadd.f32 %v6255, %v7238
  %v7240 = vpop.f32.mrf.mxu0
  %v7241 = vadd.f32 %v6255, %v7240
  %7242 = vmatmul.bf16.gmra.mxu0 %v6105
  %v7243 = vpop.f32.mrf.mxu0
  %v7244 = vadd.f32 %v6255, %v7243
  %v7245 = vpop.f32.mrf.mxu0
  %v7246 = vadd.f32 %v6255, %v7245
  %7247 = vmatmul.bf16.gmra.mxu0 %v6107
  %v7248 = vpop.f32.mrf.mxu0
  %v7249 = vadd.f32 %v6255, %v7248
  %v7250 = vpop.f32.mrf.mxu0
  %v7251 = vadd.f32 %v6255, %v7250
  %7252 = vmatmul.bf16.gmra.mxu0 %v6109
  %v7253 = vpop.f32.mrf.mxu0
  %v7254 = vadd.f32 %v6255, %v7253
  %v7255 = vpop.f32.mrf.mxu0
  %v7256 = vadd.f32 %v6255, %v7255
  %7257 = vmatmul.bf16.gmra.mxu0 %v6111
  %v7258 = vpop.f32.mrf.mxu0
  %v7259 = vadd.f32 %v6255, %v7258
  %v7260 = vpop.f32.mrf.mxu0
  %v7261 = vadd.f32 %v6255, %v7260
  %7262 = vmatmul.bf16.gmra.mxu0 %v6113
  %v7263 = vpop.f32.mrf.mxu0
  %v7264 = vadd.f32 %v6255, %v7263
  %v7265 = vpop.f32.mrf.mxu0
  %v7266 = vadd.f32 %v6255, %v7265
  %7267 = vmatmul.bf16.gmra.mxu0 %v6115
  %v7268 = vpop.f32.mrf.mxu0
  %v7269 = vadd.f32 %v6255, %v7268
  %v7270 = vpop.f32.mrf.mxu0
  %v7271 = vadd.f32 %v6255, %v7270
  %7272 = vmatmul.bf16.gmra.mxu0 %v6117
  %v7273 = vpop.f32.mrf.mxu0
  %v7274 = vadd.f32 %v6255, %v7273
  %v7275 = vpop.f32.mrf.mxu0
  %v7276 = vadd.f32 %v6255, %v7275
  %7277 = vmatmul.bf16.gmra.mxu0 %v6119
  %v7278 = vpop.f32.mrf.mxu0
  %v7279 = vadd.f32 %v6255, %v7278
  %v7280 = vpop.f32.mrf.mxu0
  %v7281 = vadd.f32 %v6255, %v7280
  %7282 = vmatmul.bf16.gmra.mxu0 %v6121
  %v7283 = vpop.f32.mrf.mxu0
  %v7284 = vadd.f32 %v6255, %v7283
  %v7285 = vpop.f32.mrf.mxu0
  %v7286 = vadd.f32 %v6255, %v7285
  %7287 = vdwg.mxu0
  %7288 = vmatpush.bf16.msra.mxu0 %v6726
  %7289 = vmatpush.bf16.msra.mxu0 %v6719
  %7290 = vmatpush.bf16.msra.mxu0 %v6712
  %7291 = vmatpush.bf16.msra.mxu0 %v6705
  %7292 = vmatpush.bf16.msra.mxu0 %v6698
  %7293 = vmatpush.bf16.msra.mxu0 %v6691
  %7294 = vmatpush.bf16.msra.mxu0 %v6684
  %7295 = vmatpush.bf16.msra.mxu0 %v6677
  %7296 = vmatmul.bf16.gmra.mxu0 %v6092
  %v7297 = vpop.f32.mrf.mxu0
  %v7298 = vadd.f32 %v7209, %v7297
  %v7299 = vpop.f32.mrf.mxu0
  %v7300 = vadd.f32 %v7211, %v7299
  %7301 = vmatmul.bf16.gmra.mxu0 %v6094
  %v7302 = vpop.f32.mrf.mxu0
  %v7303 = vadd.f32 %v7214, %v7302
  %v7304 = vpop.f32.mrf.mxu0
  %v7305 = vadd.f32 %v7216, %v7304
  %7306 = vmatmul.bf16.gmra.mxu0 %v6096
  %v7307 = vpop.f32.mrf.mxu0
  %v7308 = vadd.f32 %v7219, %v7307
  %v7309 = vpop.f32.mrf.mxu0
  %v7310 = vadd.f32 %v7221, %v7309
  %7311 = vmatmul.bf16.gmra.mxu0 %v6098
  %v7312 = vpop.f32.mrf.mxu0
  %v7313 = vadd.f32 %v7224, %v7312
  %v7314 = vpop.f32.mrf.mxu0
  %v7315 = vadd.f32 %v7226, %v7314
  %7316 = vmatmul.bf16.gmra.mxu0 %v6100
  %v7317 = vpop.f32.mrf.mxu0
  %v7318 = vadd.f32 %v7229, %v7317
  %v7319 = vpop.f32.mrf.mxu0
  %v7320 = vadd.f32 %v7231, %v7319
  %7321 = vmatmul.bf16.gmra.mxu0 %v6102
  %v7322 = vpop.f32.mrf.mxu0
  %v7323 = vadd.f32 %v7234, %v7322
  %v7324 = vpop.f32.mrf.mxu0
  %v7325 = vadd.f32 %v7236, %v7324
  %7326 = vmatmul.bf16.gmra.mxu0 %v6104
  %v7327 = vpop.f32.mrf.mxu0
  %v7328 = vadd.f32 %v7239, %v7327
  %v7329 = vpop.f32.mrf.mxu0
  %v7330 = vadd.f32 %v7241, %v7329
  %7331 = vmatmul.bf16.gmra.mxu0 %v6106
  %v7332 = vpop.f32.mrf.mxu0
  %v7333 = vadd.f32 %v7244, %v7332
  %v7334 = vpop.f32.mrf.mxu0
  %v7335 = vadd.f32 %v7246, %v7334
  %7336 = vmatmul.bf16.gmra.mxu0 %v6108
  %v7337 = vpop.f32.mrf.mxu0
  %v7338 = vadd.f32 %v7249, %v7337
  %v7339 = vpop.f32.mrf.mxu0
  %v7340 = vadd.f32 %v7251, %v7339
  %7341 = vmatmul.bf16.gmra.mxu0 %v6110
  %v7342 = vpop.f32.mrf.mxu0
  %v7343 = vadd.f32 %v7254, %v7342
  %v7344 = vpop.f32.mrf.mxu0
  %v7345 = vadd.f32 %v7256, %v7344
  %7346 = vmatmul.bf16.gmra.mxu0 %v6112
  %v7347 = vpop.f32.mrf.mxu0
  %v7348 = vadd.f32 %v7259, %v7347
  %v7349 = vpop.f32.mrf.mxu0
  %v7350 = vadd.f32 %v7261, %v7349
  %7351 = vmatmul.bf16.gmra.mxu0 %v6114
  %v7352 = vpop.f32.mrf.mxu0
  %v7353 = vadd.f32 %v7264, %v7352
  %v7354 = vpop.f32.mrf.mxu0
  %v7355 = vadd.f32 %v7266, %v7354
  %7356 = vmatmul.bf16.gmra.mxu0 %v6116
  %v7357 = vpop.f32.mrf.mxu0
  %v7358 = vadd.f32 %v7269, %v7357
  %v7359 = vpop.f32.mrf.mxu0
  %v7360 = vadd.f32 %v7271, %v7359
  %7361 = vmatmul.bf16.gmra.mxu0 %v6118
  %v7362 = vpop.f32.mrf.mxu0
  %v7363 = vadd.f32 %v7274, %v7362
  %v7364 = vpop.f32.mrf.mxu0
  %v7365 = vadd.f32 %v7276, %v7364
  %7366 = vmatmul.bf16.gmra.mxu0 %v6120
  %v7367 = vpop.f32.mrf.mxu0
  %v7368 = vadd.f32 %v7279, %v7367
  %v7369 = vpop.f32.mrf.mxu0
  %v7370 = vadd.f32 %v7281, %v7369
  %7371 = vmatmul.bf16.gmra.mxu0 %v6122
  %v7372 = vpop.f32.mrf.mxu0
  %v7373 = vadd.f32 %v7284, %v7372
  %v7374 = vpop.f32.mrf.mxu0
  %v7375 = vadd.f32 %v7286, %v7374
  %7376 = vdwg.mxu0
  %7377 = vmatpush.bf16.msra.mxu0 %v6671
  %7378 = vmatpush.bf16.msra.mxu0 %v6664
  %7379 = vmatpush.bf16.msra.mxu0 %v6657
  %7380 = vmatpush.bf16.msra.mxu0 %v6650
  %7381 = vmatpush.bf16.msra.mxu0 %v6643
  %7382 = vmatpush.bf16.msra.mxu0 %v6636
  %7383 = vmatpush.bf16.msra.mxu0 %v6629
  %7384 = vmatpush.bf16.msra.mxu0 %v6622
  %7385 = vmatmul.bf16.gmra.mxu0 %v6091
  %v7386 = vpop.f32.mrf.mxu0
  %v7387 = vadd.f32 %v6256, %v7386
  %v7388 = vpop.f32.mrf.mxu0
  %v7389 = vadd.f32 %v6256, %v7388
  %7390 = vmatmul.bf16.gmra.mxu0 %v6093
  %v7391 = vpop.f32.mrf.mxu0
  %v7392 = vadd.f32 %v6256, %v7391
  %v7393 = vpop.f32.mrf.mxu0
  %v7394 = vadd.f32 %v6256, %v7393
  %7395 = vmatmul.bf16.gmra.mxu0 %v6095
  %v7396 = vpop.f32.mrf.mxu0
  %v7397 = vadd.f32 %v6256, %v7396
  %v7398 = vpop.f32.mrf.mxu0
  %v7399 = vadd.f32 %v6256, %v7398
  %7400 = vmatmul.bf16.gmra.mxu0 %v6097
  %v7401 = vpop.f32.mrf.mxu0
  %v7402 = vadd.f32 %v6256, %v7401
  %v7403 = vpop.f32.mrf.mxu0
  %v7404 = vadd.f32 %v6256, %v7403
  %7405 = vmatmul.bf16.gmra.mxu0 %v6099
  %v7406 = vpop.f32.mrf.mxu0
  %v7407 = vadd.f32 %v6256, %v7406
  %v7408 = vpop.f32.mrf.mxu0
  %v7409 = vadd.f32 %v6256, %v7408
  %7410 = vmatmul.bf16.gmra.mxu0 %v6101
  %v7411 = vpop.f32.mrf.mxu0
  %v7412 = vadd.f32 %v6256, %v7411
  %v7413 = vpop.f32.mrf.mxu0
  %v7414 = vadd.f32 %v6256, %v7413
  %7415 = vmatmul.bf16.gmra.mxu0 %v6103
  %v7416 = vpop.f32.mrf.mxu0
  %v7417 = vadd.f32 %v6256, %v7416
  %v7418 = vpop.f32.mrf.mxu0
  %v7419 = vadd.f32 %v6256, %v7418
  %7420 = vmatmul.bf16.gmra.mxu0 %v6105
  %v7421 = vpop.f32.mrf.mxu0
  %v7422 = vadd.f32 %v6256, %v7421
  %v7423 = vpop.f32.mrf.mxu0
  %v7424 = vadd.f32 %v6256, %v7423
  %7425 = vmatmul.bf16.gmra.mxu0 %v6107
  %v7426 = vpop.f32.mrf.mxu0
  %v7427 = vadd.f32 %v6256, %v7426
  %v7428 = vpop.f32.mrf.mxu0
  %v7429 = vadd.f32 %v6256, %v7428
  %7430 = vmatmul.bf16.gmra.mxu0 %v6109
  %v7431 = vpop.f32.mrf.mxu0
  %v7432 = vadd.f32 %v6256, %v7431
  %v7433 = vpop.f32.mrf.mxu0
  %v7434 = vadd.f32 %v6256, %v7433
  %7435 = vmatmul.bf16.gmra.mxu0 %v6111
  %v7436 = vpop.f32.mrf.mxu0
  %v7437 = vadd.f32 %v6256, %v7436
  %v7438 = vpop.f32.mrf.mxu0
  %v7439 = vadd.f32 %v6256, %v7438
  %7440 = vmatmul.bf16.gmra.mxu0 %v6113
  %v7441 = vpop.f32.mrf.mxu0
  %v7442 = vadd.f32 %v6256, %v7441
  %v7443 = vpop.f32.mrf.mxu0
  %v7444 = vadd.f32 %v6256, %v7443
  %7445 = vmatmul.bf16.gmra.mxu0 %v6115
  %v7446 = vpop.f32.mrf.mxu0
  %v7447 = vadd.f32 %v6256, %v7446
  %v7448 = vpop.f32.mrf.mxu0
  %v7449 = vadd.f32 %v6256, %v7448
  %7450 = vmatmul.bf16.gmra.mxu0 %v6117
  %v7451 = vpop.f32.mrf.mxu0
  %v7452 = vadd.f32 %v6256, %v7451
  %v7453 = vpop.f32.mrf.mxu0
  %v7454 = vadd.f32 %v6256, %v7453
  %7455 = vmatmul.bf16.gmra.mxu0 %v6119
  %v7456 = vpop.f32.mrf.mxu0
  %v7457 = vadd.f32 %v6256, %v7456
  %v7458 = vpop.f32.mrf.mxu0
  %v7459 = vadd.f32 %v6256, %v7458
  %7460 = vmatmul.bf16.gmra.mxu0 %v6121
  %v7461 = vpop.f32.mrf.mxu0
  %v7462 = vadd.f32 %v6256, %v7461
  %v7463 = vpop.f32.mrf.mxu0
  %v7464 = vadd.f32 %v6256, %v7463
  %7465 = vdwg.mxu0
  %7466 = vmatpush.bf16.msra.mxu0 %v6727
  %7467 = vmatpush.bf16.msra.mxu0 %v6720
  %7468 = vmatpush.bf16.msra.mxu0 %v6713
  %7469 = vmatpush.bf16.msra.mxu0 %v6706
  %7470 = vmatpush.bf16.msra.mxu0 %v6699
  %7471 = vmatpush.bf16.msra.mxu0 %v6692
  %7472 = vmatpush.bf16.msra.mxu0 %v6685
  %7473 = vmatpush.bf16.msra.mxu0 %v6678
  %7474 = vmatmul.bf16.gmra.mxu0 %v6092
  %v7475 = vpop.f32.mrf.mxu0
  %v7476 = vadd.f32 %v7387, %v7475
  %v7477 = vpop.f32.mrf.mxu0
  %v7478 = vadd.f32 %v7389, %v7477
  %7479 = vmatmul.bf16.gmra.mxu0 %v6094
  %v7480 = vpop.f32.mrf.mxu0
  %v7481 = vadd.f32 %v7392, %v7480
  %v7482 = vpop.f32.mrf.mxu0
  %v7483 = vadd.f32 %v7394, %v7482
  %7484 = vmatmul.bf16.gmra.mxu0 %v6096
  %v7485 = vpop.f32.mrf.mxu0
  %v7486 = vadd.f32 %v7397, %v7485
  %v7487 = vpop.f32.mrf.mxu0
  %v7488 = vadd.f32 %v7399, %v7487
  %7489 = vmatmul.bf16.gmra.mxu0 %v6098
  %v7490 = vpop.f32.mrf.mxu0
  %v7491 = vadd.f32 %v7402, %v7490
  %v7492 = vpop.f32.mrf.mxu0
  %v7493 = vadd.f32 %v7404, %v7492
  %7494 = vmatmul.bf16.gmra.mxu0 %v6100
  %v7495 = vpop.f32.mrf.mxu0
  %v7496 = vadd.f32 %v7407, %v7495
  %v7497 = vpop.f32.mrf.mxu0
  %v7498 = vadd.f32 %v7409, %v7497
  %7499 = vmatmul.bf16.gmra.mxu0 %v6102
  %v7500 = vpop.f32.mrf.mxu0
  %v7501 = vadd.f32 %v7412, %v7500
  %v7502 = vpop.f32.mrf.mxu0
  %v7503 = vadd.f32 %v7414, %v7502
  %7504 = vmatmul.bf16.gmra.mxu0 %v6104
  %v7505 = vpop.f32.mrf.mxu0
  %v7506 = vadd.f32 %v7417, %v7505
  %v7507 = vpop.f32.mrf.mxu0
  %v7508 = vadd.f32 %v7419, %v7507
  %7509 = vmatmul.bf16.gmra.mxu0 %v6106
  %v7510 = vpop.f32.mrf.mxu0
  %v7511 = vadd.f32 %v7422, %v7510
  %v7512 = vpop.f32.mrf.mxu0
  %v7513 = vadd.f32 %v7424, %v7512
  %7514 = vmatmul.bf16.gmra.mxu0 %v6108
  %v7515 = vpop.f32.mrf.mxu0
  %v7516 = vadd.f32 %v7427, %v7515
  %v7517 = vpop.f32.mrf.mxu0
  %v7518 = vadd.f32 %v7429, %v7517
  %7519 = vmatmul.bf16.gmra.mxu0 %v6110
  %v7520 = vpop.f32.mrf.mxu0
  %v7521 = vadd.f32 %v7432, %v7520
  %v7522 = vpop.f32.mrf.mxu0
  %v7523 = vadd.f32 %v7434, %v7522
  %7524 = vmatmul.bf16.gmra.mxu0 %v6112
  %v7525 = vpop.f32.mrf.mxu0
  %v7526 = vadd.f32 %v7437, %v7525
  %v7527 = vpop.f32.mrf.mxu0
  %v7528 = vadd.f32 %v7439, %v7527
  %7529 = vmatmul.bf16.gmra.mxu0 %v6114
  %v7530 = vpop.f32.mrf.mxu0
  %v7531 = vadd.f32 %v7442, %v7530
  %v7532 = vpop.f32.mrf.mxu0
  %v7533 = vadd.f32 %v7444, %v7532
  %7534 = vmatmul.bf16.gmra.mxu0 %v6116
  %v7535 = vpop.f32.mrf.mxu0
  %v7536 = vadd.f32 %v7447, %v7535
  %v7537 = vpop.f32.mrf.mxu0
  %v7538 = vadd.f32 %v7449, %v7537
  %7539 = vmatmul.bf16.gmra.mxu0 %v6118
  %v7540 = vpop.f32.mrf.mxu0
  %v7541 = vadd.f32 %v7452, %v7540
  %v7542 = vpop.f32.mrf.mxu0
  %v7543 = vadd.f32 %v7454, %v7542
  %7544 = vmatmul.bf16.gmra.mxu0 %v6120
  %v7545 = vpop.f32.mrf.mxu0
  %v7546 = vadd.f32 %v7457, %v7545
  %v7547 = vpop.f32.mrf.mxu0
  %v7548 = vadd.f32 %v7459, %v7547
  %7549 = vmatmul.bf16.gmra.mxu0 %v6122
  %v7550 = vpop.f32.mrf.mxu0
  %v7551 = vadd.f32 %v7462, %v7550
  %v7552 = vpop.f32.mrf.mxu0
  %v7553 = vadd.f32 %v7464, %v7552
  %7554 = vdwg.mxu0
  %7555 = vmatpush.bf16.msra.mxu0 %v6672
  %7556 = vmatpush.bf16.msra.mxu0 %v6665
  %7557 = vmatpush.bf16.msra.mxu0 %v6658
  %7558 = vmatpush.bf16.msra.mxu0 %v6651
  %7559 = vmatpush.bf16.msra.mxu0 %v6644
  %7560 = vmatpush.bf16.msra.mxu0 %v6637
  %7561 = vmatpush.bf16.msra.mxu0 %v6630
  %7562 = vmatpush.bf16.msra.mxu0 %v6623
  %7563 = vmatmul.bf16.gmra.mxu0 %v6091
  %v7564 = vpop.f32.mrf.mxu0
  %v7565 = vadd.f32 %v6257, %v7564
  %v7566 = vpop.f32.mrf.mxu0
  %v7567 = vadd.f32 %v6257, %v7566
  %7568 = vmatmul.bf16.gmra.mxu0 %v6093
  %v7569 = vpop.f32.mrf.mxu0
  %v7570 = vadd.f32 %v6257, %v7569
  %v7571 = vpop.f32.mrf.mxu0
  %v7572 = vadd.f32 %v6257, %v7571
  %7573 = vmatmul.bf16.gmra.mxu0 %v6095
  %v7574 = vpop.f32.mrf.mxu0
  %v7575 = vadd.f32 %v6257, %v7574
  %v7576 = vpop.f32.mrf.mxu0
  %v7577 = vadd.f32 %v6257, %v7576
  %7578 = vmatmul.bf16.gmra.mxu0 %v6097
  %v7579 = vpop.f32.mrf.mxu0
  %v7580 = vadd.f32 %v6257, %v7579
  %v7581 = vpop.f32.mrf.mxu0
  %v7582 = vadd.f32 %v6257, %v7581
  %7583 = vmatmul.bf16.gmra.mxu0 %v6099
  %v7584 = vpop.f32.mrf.mxu0
  %v7585 = vadd.f32 %v6257, %v7584
  %v7586 = vpop.f32.mrf.mxu0
  %v7587 = vadd.f32 %v6257, %v7586
  %7588 = vmatmul.bf16.gmra.mxu0 %v6101
  %v7589 = vpop.f32.mrf.mxu0
  %v7590 = vadd.f32 %v6257, %v7589
  %v7591 = vpop.f32.mrf.mxu0
  %v7592 = vadd.f32 %v6257, %v7591
  %7593 = vmatmul.bf16.gmra.mxu0 %v6103
  %v7594 = vpop.f32.mrf.mxu0
  %v7595 = vadd.f32 %v6257, %v7594
  %v7596 = vpop.f32.mrf.mxu0
  %v7597 = vadd.f32 %v6257, %v7596
  %7598 = vmatmul.bf16.gmra.mxu0 %v6105
  %v7599 = vpop.f32.mrf.mxu0
  %v7600 = vadd.f32 %v6257, %v7599
  %v7601 = vpop.f32.mrf.mxu0
  %v7602 = vadd.f32 %v6257, %v7601
  %7603 = vmatmul.bf16.gmra.mxu0 %v6107
  %v7604 = vpop.f32.mrf.mxu0
  %v7605 = vadd.f32 %v6257, %v7604
  %v7606 = vpop.f32.mrf.mxu0
  %v7607 = vadd.f32 %v6257, %v7606
  %7608 = vmatmul.bf16.gmra.mxu0 %v6109
  %v7609 = vpop.f32.mrf.mxu0
  %v7610 = vadd.f32 %v6257, %v7609
  %v7611 = vpop.f32.mrf.mxu0
  %v7612 = vadd.f32 %v6257, %v7611
  %7613 = vmatmul.bf16.gmra.mxu0 %v6111
  %v7614 = vpop.f32.mrf.mxu0
  %v7615 = vadd.f32 %v6257, %v7614
  %v7616 = vpop.f32.mrf.mxu0
  %v7617 = vadd.f32 %v6257, %v7616
  %7618 = vmatmul.bf16.gmra.mxu0 %v6113
  %v7619 = vpop.f32.mrf.mxu0
  %v7620 = vadd.f32 %v6257, %v7619
  %v7621 = vpop.f32.mrf.mxu0
  %v7622 = vadd.f32 %v6257, %v7621
  %7623 = vmatmul.bf16.gmra.mxu0 %v6115
  %v7624 = vpop.f32.mrf.mxu0
  %v7625 = vadd.f32 %v6257, %v7624
  %v7626 = vpop.f32.mrf.mxu0
  %v7627 = vadd.f32 %v6257, %v7626
  %7628 = vmatmul.bf16.gmra.mxu0 %v6117
  %v7629 = vpop.f32.mrf.mxu0
  %v7630 = vadd.f32 %v6257, %v7629
  %v7631 = vpop.f32.mrf.mxu0
  %v7632 = vadd.f32 %v6257, %v7631
  %7633 = vmatmul.bf16.gmra.mxu0 %v6119
  %v7634 = vpop.f32.mrf.mxu0
  %v7635 = vadd.f32 %v6257, %v7634
  %v7636 = vpop.f32.mrf.mxu0
  %v7637 = vadd.f32 %v6257, %v7636
  %7638 = vmatmul.bf16.gmra.mxu0 %v6121
  %v7639 = vpop.f32.mrf.mxu0
  %v7640 = vadd.f32 %v6257, %v7639
  %v7641 = vpop.f32.mrf.mxu0
  %v7642 = vadd.f32 %v6257, %v7641
  %7643 = vdwg.mxu0
  %7644 = vmatpush.bf16.msra.mxu0 %v6728
  %7645 = vmatpush.bf16.msra.mxu0 %v6721
  %7646 = vmatpush.bf16.msra.mxu0 %v6714
  %7647 = vmatpush.bf16.msra.mxu0 %v6707
  %7648 = vmatpush.bf16.msra.mxu0 %v6700
  %7649 = vmatpush.bf16.msra.mxu0 %v6693
  %7650 = vmatpush.bf16.msra.mxu0 %v6686
  %7651 = vmatpush.bf16.msra.mxu0 %v6679
  %7652 = vmatmul.bf16.gmra.mxu0 %v6092
  %v7653 = vpop.f32.mrf.mxu0
  %v7654 = vadd.f32 %v7565, %v7653
  %v7655 = vpop.f32.mrf.mxu0
  %v7656 = vadd.f32 %v7567, %v7655
  %7657 = vmatmul.bf16.gmra.mxu0 %v6094
  %v7658 = vpop.f32.mrf.mxu0
  %v7659 = vadd.f32 %v7570, %v7658
  %v7660 = vpop.f32.mrf.mxu0
  %v7661 = vadd.f32 %v7572, %v7660
  %7662 = vmatmul.bf16.gmra.mxu0 %v6096
  %v7663 = vpop.f32.mrf.mxu0
  %v7664 = vadd.f32 %v7575, %v7663
  %v7665 = vpop.f32.mrf.mxu0
  %v7666 = vadd.f32 %v7577, %v7665
  %7667 = vmatmul.bf16.gmra.mxu0 %v6098
  %v7668 = vpop.f32.mrf.mxu0
  %v7669 = vadd.f32 %v7580, %v7668
  %v7670 = vpop.f32.mrf.mxu0
  %v7671 = vadd.f32 %v7582, %v7670
  %7672 = vmatmul.bf16.gmra.mxu0 %v6100
  %v7673 = vpop.f32.mrf.mxu0
  %v7674 = vadd.f32 %v7585, %v7673
  %v7675 = vpop.f32.mrf.mxu0
  %v7676 = vadd.f32 %v7587, %v7675
  %7677 = vmatmul.bf16.gmra.mxu0 %v6102
  %v7678 = vpop.f32.mrf.mxu0
  %v7679 = vadd.f32 %v7590, %v7678
  %v7680 = vpop.f32.mrf.mxu0
  %v7681 = vadd.f32 %v7592, %v7680
  %7682 = vmatmul.bf16.gmra.mxu0 %v6104
  %v7683 = vpop.f32.mrf.mxu0
  %v7684 = vadd.f32 %v7595, %v7683
  %v7685 = vpop.f32.mrf.mxu0
  %v7686 = vadd.f32 %v7597, %v7685
  %7687 = vmatmul.bf16.gmra.mxu0 %v6106
  %v7688 = vpop.f32.mrf.mxu0
  %v7689 = vadd.f32 %v7600, %v7688
  %v7690 = vpop.f32.mrf.mxu0
  %v7691 = vadd.f32 %v7602, %v7690
  %7692 = vmatmul.bf16.gmra.mxu0 %v6108
  %v7693 = vpop.f32.mrf.mxu0
  %v7694 = vadd.f32 %v7605, %v7693
  %v7695 = vpop.f32.mrf.mxu0
  %v7696 = vadd.f32 %v7607, %v7695
  %7697 = vmatmul.bf16.gmra.mxu0 %v6110
  %v7698 = vpop.f32.mrf.mxu0
  %v7699 = vadd.f32 %v7610, %v7698
  %v7700 = vpop.f32.mrf.mxu0
  %v7701 = vadd.f32 %v7612, %v7700
  %7702 = vmatmul.bf16.gmra.mxu0 %v6112
  %v7703 = vpop.f32.mrf.mxu0
  %v7704 = vadd.f32 %v7615, %v7703
  %v7705 = vpop.f32.mrf.mxu0
  %v7706 = vadd.f32 %v7617, %v7705
  %7707 = vmatmul.bf16.gmra.mxu0 %v6114
  %v7708 = vpop.f32.mrf.mxu0
  %v7709 = vadd.f32 %v7620, %v7708
  %v7710 = vpop.f32.mrf.mxu0
  %v7711 = vadd.f32 %v7622, %v7710
  %7712 = vmatmul.bf16.gmra.mxu0 %v6116
  %v7713 = vpop.f32.mrf.mxu0
  %v7714 = vadd.f32 %v7625, %v7713
  %v7715 = vpop.f32.mrf.mxu0
  %v7716 = vadd.f32 %v7627, %v7715
  %7717 = vmatmul.bf16.gmra.mxu0 %v6118
  %v7718 = vpop.f32.mrf.mxu0
  %v7719 = vadd.f32 %v7630, %v7718
  %v7720 = vpop.f32.mrf.mxu0
  %v7721 = vadd.f32 %v7632, %v7720
  %7722 = vmatmul.bf16.gmra.mxu0 %v6120
  %v7723 = vpop.f32.mrf.mxu0
  %v7724 = vadd.f32 %v7635, %v7723
  %v7725 = vpop.f32.mrf.mxu0
  %v7726 = vadd.f32 %v7637, %v7725
  %7727 = vmatmul.bf16.gmra.mxu0 %v6122
  %v7728 = vpop.f32.mrf.mxu0
  %v7729 = vadd.f32 %v7640, %v7728
  %v7730 = vpop.f32.mrf.mxu0
  %v7731 = vadd.f32 %v7642, %v7730
  %7732 = vdwg.mxu0
  %7733 = vmatpush.bf16.msra.mxu0 %v6673
  %7734 = vmatpush.bf16.msra.mxu0 %v6666
  %7735 = vmatpush.bf16.msra.mxu0 %v6659
  %7736 = vmatpush.bf16.msra.mxu0 %v6652
  %7737 = vmatpush.bf16.msra.mxu0 %v6645
  %7738 = vmatpush.bf16.msra.mxu0 %v6638
  %7739 = vmatpush.bf16.msra.mxu0 %v6631
  %7740 = vmatpush.bf16.msra.mxu0 %v6624
  %7741 = vmatmul.bf16.gmra.mxu0 %v6091
  %v7742 = vpop.f32.mrf.mxu0
  %v7743 = vadd.f32 %v6258, %v7742
  %v7744 = vpop.f32.mrf.mxu0
  %v7745 = vadd.f32 %v6258, %v7744
  %7746 = vmatmul.bf16.gmra.mxu0 %v6093
  %v7747 = vpop.f32.mrf.mxu0
  %v7748 = vadd.f32 %v6258, %v7747
  %v7749 = vpop.f32.mrf.mxu0
  %v7750 = vadd.f32 %v6258, %v7749
  %7751 = vmatmul.bf16.gmra.mxu0 %v6095
  %v7752 = vpop.f32.mrf.mxu0
  %v7753 = vadd.f32 %v6258, %v7752
  %v7754 = vpop.f32.mrf.mxu0
  %v7755 = vadd.f32 %v6258, %v7754
  %7756 = vmatmul.bf16.gmra.mxu0 %v6097
  %v7757 = vpop.f32.mrf.mxu0
  %v7758 = vadd.f32 %v6258, %v7757
  %v7759 = vpop.f32.mrf.mxu0
  %v7760 = vadd.f32 %v6258, %v7759
  %7761 = vmatmul.bf16.gmra.mxu0 %v6099
  %v7762 = vpop.f32.mrf.mxu0
  %v7763 = vadd.f32 %v6258, %v7762
  %v7764 = vpop.f32.mrf.mxu0
  %v7765 = vadd.f32 %v6258, %v7764
  %7766 = vmatmul.bf16.gmra.mxu0 %v6101
  %v7767 = vpop.f32.mrf.mxu0
  %v7768 = vadd.f32 %v6258, %v7767
  %v7769 = vpop.f32.mrf.mxu0
  %v7770 = vadd.f32 %v6258, %v7769
  %7771 = vmatmul.bf16.gmra.mxu0 %v6103
  %v7772 = vpop.f32.mrf.mxu0
  %v7773 = vadd.f32 %v6258, %v7772
  %v7774 = vpop.f32.mrf.mxu0
  %v7775 = vadd.f32 %v6258, %v7774
  %7776 = vmatmul.bf16.gmra.mxu0 %v6105
  %v7777 = vpop.f32.mrf.mxu0
  %v7778 = vadd.f32 %v6258, %v7777
  %v7779 = vpop.f32.mrf.mxu0
  %v7780 = vadd.f32 %v6258, %v7779
  %7781 = vmatmul.bf16.gmra.mxu0 %v6107
  %v7782 = vpop.f32.mrf.mxu0
  %v7783 = vadd.f32 %v6258, %v7782
  %v7784 = vpop.f32.mrf.mxu0
  %v7785 = vadd.f32 %v6258, %v7784
  %7786 = vmatmul.bf16.gmra.mxu0 %v6109
  %v7787 = vpop.f32.mrf.mxu0
  %v7788 = vadd.f32 %v6258, %v7787
  %v7789 = vpop.f32.mrf.mxu0
  %v7790 = vadd.f32 %v6258, %v7789
  %7791 = vmatmul.bf16.gmra.mxu0 %v6111
  %v7792 = vpop.f32.mrf.mxu0
  %v7793 = vadd.f32 %v6258, %v7792
  %v7794 = vpop.f32.mrf.mxu0
  %v7795 = vadd.f32 %v6258, %v7794
  %7796 = vmatmul.bf16.gmra.mxu0 %v6113
  %v7797 = vpop.f32.mrf.mxu0
  %v7798 = vadd.f32 %v6258, %v7797
  %v7799 = vpop.f32.mrf.mxu0
  %v7800 = vadd.f32 %v6258, %v7799
  %7801 = vmatmul.bf16.gmra.mxu0 %v6115
  %v7802 = vpop.f32.mrf.mxu0
  %v7803 = vadd.f32 %v6258, %v7802
  %v7804 = vpop.f32.mrf.mxu0
  %v7805 = vadd.f32 %v6258, %v7804
  %7806 = vmatmul.bf16.gmra.mxu0 %v6117
  %v7807 = vpop.f32.mrf.mxu0
  %v7808 = vadd.f32 %v6258, %v7807
  %v7809 = vpop.f32.mrf.mxu0
  %v7810 = vadd.f32 %v6258, %v7809
  %7811 = vmatmul.bf16.gmra.mxu0 %v6119
  %v7812 = vpop.f32.mrf.mxu0
  %v7813 = vadd.f32 %v6258, %v7812
  %v7814 = vpop.f32.mrf.mxu0
  %v7815 = vadd.f32 %v6258, %v7814
  %7816 = vmatmul.bf16.gmra.mxu0 %v6121
  %v7817 = vpop.f32.mrf.mxu0
  %v7818 = vadd.f32 %v6258, %v7817
  %v7819 = vpop.f32.mrf.mxu0
  %v7820 = vadd.f32 %v6258, %v7819
  %7821 = vdwg.mxu0
  %7822 = vmatpush.bf16.msra.mxu0 %v6729
  %7823 = vmatpush.bf16.msra.mxu0 %v6722
  %7824 = vmatpush.bf16.msra.mxu0 %v6715
  %7825 = vmatpush.bf16.msra.mxu0 %v6708
  %7826 = vmatpush.bf16.msra.mxu0 %v6701
  %7827 = vmatpush.bf16.msra.mxu0 %v6694
  %7828 = vmatpush.bf16.msra.mxu0 %v6687
  %7829 = vmatpush.bf16.msra.mxu0 %v6680
  %7830 = vmatmul.bf16.gmra.mxu0 %v6092
  %v7831 = vpop.f32.mrf.mxu0
  %v7832 = vadd.f32 %v7743, %v7831
  %v7833 = vpop.f32.mrf.mxu0
  %v7834 = vadd.f32 %v7745, %v7833
  %7835 = vmatmul.bf16.gmra.mxu0 %v6094
  %v7836 = vpop.f32.mrf.mxu0
  %v7837 = vadd.f32 %v7748, %v7836
  %v7838 = vpop.f32.mrf.mxu0
  %v7839 = vadd.f32 %v7750, %v7838
  %7840 = vmatmul.bf16.gmra.mxu0 %v6096
  %v7841 = vpop.f32.mrf.mxu0
  %v7842 = vadd.f32 %v7753, %v7841
  %v7843 = vpop.f32.mrf.mxu0
  %v7844 = vadd.f32 %v7755, %v7843
  %7845 = vmatmul.bf16.gmra.mxu0 %v6098
  %v7846 = vpop.f32.mrf.mxu0
  %v7847 = vadd.f32 %v7758, %v7846
  %v7848 = vpop.f32.mrf.mxu0
  %v7849 = vadd.f32 %v7760, %v7848
  %7850 = vmatmul.bf16.gmra.mxu0 %v6100
  %v7851 = vpop.f32.mrf.mxu0
  %v7852 = vadd.f32 %v7763, %v7851
  %v7853 = vpop.f32.mrf.mxu0
  %v7854 = vadd.f32 %v7765, %v7853
  %7855 = vmatmul.bf16.gmra.mxu0 %v6102
  %v7856 = vpop.f32.mrf.mxu0
  %v7857 = vadd.f32 %v7768, %v7856
  %v7858 = vpop.f32.mrf.mxu0
  %v7859 = vadd.f32 %v7770, %v7858
  %7860 = vmatmul.bf16.gmra.mxu0 %v6104
  %v7861 = vpop.f32.mrf.mxu0
  %v7862 = vadd.f32 %v7773, %v7861
  %v7863 = vpop.f32.mrf.mxu0
  %v7864 = vadd.f32 %v7775, %v7863
  %7865 = vmatmul.bf16.gmra.mxu0 %v6106
  %v7866 = vpop.f32.mrf.mxu0
  %v7867 = vadd.f32 %v7778, %v7866
  %v7868 = vpop.f32.mrf.mxu0
  %v7869 = vadd.f32 %v7780, %v7868
  %7870 = vmatmul.bf16.gmra.mxu0 %v6108
  %v7871 = vpop.f32.mrf.mxu0
  %v7872 = vadd.f32 %v7783, %v7871
  %v7873 = vpop.f32.mrf.mxu0
  %v7874 = vadd.f32 %v7785, %v7873
  %7875 = vmatmul.bf16.gmra.mxu0 %v6110
  %v7876 = vpop.f32.mrf.mxu0
  %v7877 = vadd.f32 %v7788, %v7876
  %v7878 = vpop.f32.mrf.mxu0
  %v7879 = vadd.f32 %v7790, %v7878
  %7880 = vmatmul.bf16.gmra.mxu0 %v6112
  %v7881 = vpop.f32.mrf.mxu0
  %v7882 = vadd.f32 %v7793, %v7881
  %v7883 = vpop.f32.mrf.mxu0
  %v7884 = vadd.f32 %v7795, %v7883
  %7885 = vmatmul.bf16.gmra.mxu0 %v6114
  %v7886 = vpop.f32.mrf.mxu0
  %v7887 = vadd.f32 %v7798, %v7886
  %v7888 = vpop.f32.mrf.mxu0
  %v7889 = vadd.f32 %v7800, %v7888
  %7890 = vmatmul.bf16.gmra.mxu0 %v6116
  %v7891 = vpop.f32.mrf.mxu0
  %v7892 = vadd.f32 %v7803, %v7891
  %v7893 = vpop.f32.mrf.mxu0
  %v7894 = vadd.f32 %v7805, %v7893
  %7895 = vmatmul.bf16.gmra.mxu0 %v6118
  %v7896 = vpop.f32.mrf.mxu0
  %v7897 = vadd.f32 %v7808, %v7896
  %v7898 = vpop.f32.mrf.mxu0
  %v7899 = vadd.f32 %v7810, %v7898
  %7900 = vmatmul.bf16.gmra.mxu0 %v6120
  %v7901 = vpop.f32.mrf.mxu0
  %v7902 = vadd.f32 %v7813, %v7901
  %v7903 = vpop.f32.mrf.mxu0
  %v7904 = vadd.f32 %v7815, %v7903
  %7905 = vmatmul.bf16.gmra.mxu0 %v6122
  %v7906 = vpop.f32.mrf.mxu0
  %v7907 = vadd.f32 %v7818, %v7906
  %v7908 = vpop.f32.mrf.mxu0
  %v7909 = vadd.f32 %v7820, %v7908
  %7910 = vdwg.mxu0
  %7911 = vmatpush.bf16.msra.mxu0 %v6674
  %7912 = vmatpush.bf16.msra.mxu0 %v6667
  %7913 = vmatpush.bf16.msra.mxu0 %v6660
  %7914 = vmatpush.bf16.msra.mxu0 %v6653
  %7915 = vmatpush.bf16.msra.mxu0 %v6646
  %7916 = vmatpush.bf16.msra.mxu0 %v6639
  %7917 = vmatpush.bf16.msra.mxu0 %v6632
  %7918 = vmatpush.bf16.msra.mxu0 %v6625
  %7919 = vmatmul.bf16.gmra.mxu0 %v6091
  %v7920 = vpop.f32.mrf.mxu0
  %v7921 = vadd.f32 %v6259, %v7920
  %v7922 = vpop.f32.mrf.mxu0
  %v7923 = vadd.f32 %v6259, %v7922
  %7924 = vmatmul.bf16.gmra.mxu0 %v6093
  %v7925 = vpop.f32.mrf.mxu0
  %v7926 = vadd.f32 %v6259, %v7925
  %v7927 = vpop.f32.mrf.mxu0
  %v7928 = vadd.f32 %v6259, %v7927
  %7929 = vmatmul.bf16.gmra.mxu0 %v6095
  %v7930 = vpop.f32.mrf.mxu0
  %v7931 = vadd.f32 %v6259, %v7930
  %v7932 = vpop.f32.mrf.mxu0
  %v7933 = vadd.f32 %v6259, %v7932
  %7934 = vmatmul.bf16.gmra.mxu0 %v6097
  %v7935 = vpop.f32.mrf.mxu0
  %v7936 = vadd.f32 %v6259, %v7935
  %v7937 = vpop.f32.mrf.mxu0
  %v7938 = vadd.f32 %v6259, %v7937
  %7939 = vmatmul.bf16.gmra.mxu0 %v6099
  %v7940 = vpop.f32.mrf.mxu0
  %v7941 = vadd.f32 %v6259, %v7940
  %v7942 = vpop.f32.mrf.mxu0
  %v7943 = vadd.f32 %v6259, %v7942
  %7944 = vmatmul.bf16.gmra.mxu0 %v6101
  %v7945 = vpop.f32.mrf.mxu0
  %v7946 = vadd.f32 %v6259, %v7945
  %v7947 = vpop.f32.mrf.mxu0
  %v7948 = vadd.f32 %v6259, %v7947
  %7949 = vmatmul.bf16.gmra.mxu0 %v6103
  %v7950 = vpop.f32.mrf.mxu0
  %v7951 = vadd.f32 %v6259, %v7950
  %v7952 = vpop.f32.mrf.mxu0
  %v7953 = vadd.f32 %v6259, %v7952
  %7954 = vmatmul.bf16.gmra.mxu0 %v6105
  %v7955 = vpop.f32.mrf.mxu0
  %v7956 = vadd.f32 %v6259, %v7955
  %v7957 = vpop.f32.mrf.mxu0
  %v7958 = vadd.f32 %v6259, %v7957
  %7959 = vmatmul.bf16.gmra.mxu0 %v6107
  %v7960 = vpop.f32.mrf.mxu0
  %v7961 = vadd.f32 %v6259, %v7960
  %v7962 = vpop.f32.mrf.mxu0
  %v7963 = vadd.f32 %v6259, %v7962
  %7964 = vmatmul.bf16.gmra.mxu0 %v6109
  %v7965 = vpop.f32.mrf.mxu0
  %v7966 = vadd.f32 %v6259, %v7965
  %v7967 = vpop.f32.mrf.mxu0
  %v7968 = vadd.f32 %v6259, %v7967
  %7969 = vmatmul.bf16.gmra.mxu0 %v6111
  %v7970 = vpop.f32.mrf.mxu0
  %v7971 = vadd.f32 %v6259, %v7970
  %v7972 = vpop.f32.mrf.mxu0
  %v7973 = vadd.f32 %v6259, %v7972
  %7974 = vmatmul.bf16.gmra.mxu0 %v6113
  %v7975 = vpop.f32.mrf.mxu0
  %v7976 = vadd.f32 %v6259, %v7975
  %v7977 = vpop.f32.mrf.mxu0
  %v7978 = vadd.f32 %v6259, %v7977
  %7979 = vmatmul.bf16.gmra.mxu0 %v6115
  %v7980 = vpop.f32.mrf.mxu0
  %v7981 = vadd.f32 %v6259, %v7980
  %v7982 = vpop.f32.mrf.mxu0
  %v7983 = vadd.f32 %v6259, %v7982
  %7984 = vmatmul.bf16.gmra.mxu0 %v6117
  %v7985 = vpop.f32.mrf.mxu0
  %v7986 = vadd.f32 %v6259, %v7985
  %v7987 = vpop.f32.mrf.mxu0
  %v7988 = vadd.f32 %v6259, %v7987
  %7989 = vmatmul.bf16.gmra.mxu0 %v6119
  %v7990 = vpop.f32.mrf.mxu0
  %v7991 = vadd.f32 %v6259, %v7990
  %v7992 = vpop.f32.mrf.mxu0
  %v7993 = vadd.f32 %v6259, %v7992
  %7994 = vmatmul.bf16.gmra.mxu0 %v6121
  %v7995 = vpop.f32.mrf.mxu0
  %v7996 = vadd.f32 %v6259, %v7995
  %v7997 = vpop.f32.mrf.mxu0
  %v7998 = vadd.f32 %v6259, %v7997
  %7999 = vdwg.mxu0
  %8000 = vmatpush.bf16.msra.mxu0 %v6730
  %8001 = vmatpush.bf16.msra.mxu0 %v6723
  %8002 = vmatpush.bf16.msra.mxu0 %v6716
  %8003 = vmatpush.bf16.msra.mxu0 %v6709
  %8004 = vmatpush.bf16.msra.mxu0 %v6702
  %8005 = vmatpush.bf16.msra.mxu0 %v6695
  %8006 = vmatpush.bf16.msra.mxu0 %v6688
  %8007 = vmatpush.bf16.msra.mxu0 %v6681
  %8008 = vmatmul.bf16.gmra.mxu0 %v6092
  %v8009 = vpop.f32.mrf.mxu0
  %v8010 = vadd.f32 %v7921, %v8009
  %v8011 = vpop.f32.mrf.mxu0
  %v8012 = vadd.f32 %v7923, %v8011
  %8013 = vmatmul.bf16.gmra.mxu0 %v6094
  %v8014 = vpop.f32.mrf.mxu0
  %v8015 = vadd.f32 %v7926, %v8014
  %v8016 = vpop.f32.mrf.mxu0
  %v8017 = vadd.f32 %v7928, %v8016
  %8018 = vmatmul.bf16.gmra.mxu0 %v6096
  %v8019 = vpop.f32.mrf.mxu0
  %v8020 = vadd.f32 %v7931, %v8019
  %v8021 = vpop.f32.mrf.mxu0
  %v8022 = vadd.f32 %v7933, %v8021
  %8023 = vmatmul.bf16.gmra.mxu0 %v6098
  %v8024 = vpop.f32.mrf.mxu0
  %v8025 = vadd.f32 %v7936, %v8024
  %v8026 = vpop.f32.mrf.mxu0
  %v8027 = vadd.f32 %v7938, %v8026
  %8028 = vmatmul.bf16.gmra.mxu0 %v6100
  %v8029 = vpop.f32.mrf.mxu0
  %v8030 = vadd.f32 %v7941, %v8029
  %v8031 = vpop.f32.mrf.mxu0
  %v8032 = vadd.f32 %v7943, %v8031
  %8033 = vmatmul.bf16.gmra.mxu0 %v6102
  %v8034 = vpop.f32.mrf.mxu0
  %v8035 = vadd.f32 %v7946, %v8034
  %v8036 = vpop.f32.mrf.mxu0
  %v8037 = vadd.f32 %v7948, %v8036
  %8038 = vmatmul.bf16.gmra.mxu0 %v6104
  %v8039 = vpop.f32.mrf.mxu0
  %v8040 = vadd.f32 %v7951, %v8039
  %v8041 = vpop.f32.mrf.mxu0
  %v8042 = vadd.f32 %v7953, %v8041
  %8043 = vmatmul.bf16.gmra.mxu0 %v6106
  %v8044 = vpop.f32.mrf.mxu0
  %v8045 = vadd.f32 %v7956, %v8044
  %v8046 = vpop.f32.mrf.mxu0
  %v8047 = vadd.f32 %v7958, %v8046
  %8048 = vmatmul.bf16.gmra.mxu0 %v6108
  %v8049 = vpop.f32.mrf.mxu0
  %v8050 = vadd.f32 %v7961, %v8049
  %v8051 = vpop.f32.mrf.mxu0
  %v8052 = vadd.f32 %v7963, %v8051
  %8053 = vmatmul.bf16.gmra.mxu0 %v6110
  %v8054 = vpop.f32.mrf.mxu0
  %v8055 = vadd.f32 %v7966, %v8054
  %v8056 = vpop.f32.mrf.mxu0
  %v8057 = vadd.f32 %v7968, %v8056
  %8058 = vmatmul.bf16.gmra.mxu0 %v6112
  %v8059 = vpop.f32.mrf.mxu0
  %v8060 = vadd.f32 %v7971, %v8059
  %v8061 = vpop.f32.mrf.mxu0
  %v8062 = vadd.f32 %v7973, %v8061
  %8063 = vmatmul.bf16.gmra.mxu0 %v6114
  %v8064 = vpop.f32.mrf.mxu0
  %v8065 = vadd.f32 %v7976, %v8064
  %v8066 = vpop.f32.mrf.mxu0
  %v8067 = vadd.f32 %v7978, %v8066
  %8068 = vmatmul.bf16.gmra.mxu0 %v6116
  %v8069 = vpop.f32.mrf.mxu0
  %v8070 = vadd.f32 %v7981, %v8069
  %v8071 = vpop.f32.mrf.mxu0
  %v8072 = vadd.f32 %v7983, %v8071
  %8073 = vmatmul.bf16.gmra.mxu0 %v6118
  %v8074 = vpop.f32.mrf.mxu0
  %v8075 = vadd.f32 %v7986, %v8074
  %v8076 = vpop.f32.mrf.mxu0
  %v8077 = vadd.f32 %v7988, %v8076
  %8078 = vmatmul.bf16.gmra.mxu0 %v6120
  %v8079 = vpop.f32.mrf.mxu0
  %v8080 = vadd.f32 %v7991, %v8079
  %v8081 = vpop.f32.mrf.mxu0
  %v8082 = vadd.f32 %v7993, %v8081
  %8083 = vmatmul.bf16.gmra.mxu0 %v6122
  %v8084 = vpop.f32.mrf.mxu0
  %v8085 = vadd.f32 %v7996, %v8084
  %v8086 = vpop.f32.mrf.mxu0
  %v8087 = vadd.f32 %v7998, %v8086
  %8088 = vdwg.mxu0
  %v8089 = vxor.u32 %v6942, 2147483648
  %v8090 = vxor.u32 %v7120, 2147483648
  %v8091 = vxor.u32 %v7298, 2147483648
  %v8092 = vxor.u32 %v7476, 2147483648
  %v8093 = vxor.u32 %v7654, 2147483648
  %v8094 = vxor.u32 %v7832, 2147483648
  %v8095 = vxor.u32 %v8010, 2147483648
  %v8096 = vxor.u32 %v6944, 2147483648
  %v8097 = vxor.u32 %v7122, 2147483648
  %v8098 = vxor.u32 %v7300, 2147483648
  %v8099 = vxor.u32 %v7478, 2147483648
  %v8100 = vxor.u32 %v7656, 2147483648
  %v8101 = vxor.u32 %v7834, 2147483648
  %v8102 = vxor.u32 %v8012, 2147483648
  %v8103 = vxor.u32 %v6947, 2147483648
  %v8104 = vxor.u32 %v7125, 2147483648
  %v8105 = vxor.u32 %v7303, 2147483648
  %v8106 = vxor.u32 %v7481, 2147483648
  %v8107 = vxor.u32 %v7659, 2147483648
  %v8108 = vxor.u32 %v7837, 2147483648
  %v8109 = vxor.u32 %v8015, 2147483648
  %v8110 = vxor.u32 %v6949, 2147483648
  %v8111 = vxor.u32 %v7127, 2147483648
  %v8112 = vxor.u32 %v7305, 2147483648
  %v8113 = vxor.u32 %v7483, 2147483648
  %v8114 = vxor.u32 %v7661, 2147483648
  %v8115 = vxor.u32 %v7839, 2147483648
  %v8116 = vxor.u32 %v8017, 2147483648
  %v8117 = vxor.u32 %v6952, 2147483648
  %v8118 = vxor.u32 %v7130, 2147483648
  %v8119 = vxor.u32 %v7308, 2147483648
  %v8120 = vxor.u32 %v7486, 2147483648
  %v8121 = vxor.u32 %v7664, 2147483648
  %v8122 = vxor.u32 %v7842, 2147483648
  %v8123 = vxor.u32 %v8020, 2147483648
  %v8124 = vxor.u32 %v6954, 2147483648
  %v8125 = vxor.u32 %v7132, 2147483648
  %v8126 = vxor.u32 %v7310, 2147483648
  %v8127 = vxor.u32 %v7488, 2147483648
  %v8128 = vxor.u32 %v7666, 2147483648
  %v8129 = vxor.u32 %v7844, 2147483648
  %v8130 = vxor.u32 %v8022, 2147483648
  %v8131 = vxor.u32 %v6957, 2147483648
  %v8132 = vxor.u32 %v7135, 2147483648
  %v8133 = vxor.u32 %v7313, 2147483648
  %v8134 = vxor.u32 %v7491, 2147483648
  %v8135 = vxor.u32 %v7669, 2147483648
  %v8136 = vxor.u32 %v7847, 2147483648
  %v8137 = vxor.u32 %v8025, 2147483648
  %v8138 = vxor.u32 %v6959, 2147483648
  %v8139 = vxor.u32 %v7137, 2147483648
  %v8140 = vxor.u32 %v7315, 2147483648
  %v8141 = vxor.u32 %v7493, 2147483648
  %v8142 = vxor.u32 %v7671, 2147483648
  %v8143 = vxor.u32 %v7849, 2147483648
  %v8144 = vxor.u32 %v8027, 2147483648
  %v8145 = vxor.u32 %v6962, 2147483648
  %v8146 = vxor.u32 %v7140, 2147483648
  %v8147 = vxor.u32 %v7318, 2147483648
  %v8148 = vxor.u32 %v7496, 2147483648
  %v8149 = vxor.u32 %v7674, 2147483648
  %v8150 = vxor.u32 %v7852, 2147483648
  %v8151 = vxor.u32 %v8030, 2147483648
  %v8152 = vxor.u32 %v6964, 2147483648
  %v8153 = vxor.u32 %v7142, 2147483648
  %v8154 = vxor.u32 %v7320, 2147483648
  %v8155 = vxor.u32 %v7498, 2147483648
  %v8156 = vxor.u32 %v7676, 2147483648
  %v8157 = vxor.u32 %v7854, 2147483648
  %v8158 = vxor.u32 %v8032, 2147483648
  %v8159 = vxor.u32 %v6967, 2147483648
  %v8160 = vxor.u32 %v7145, 2147483648
  %v8161 = vxor.u32 %v7323, 2147483648
  %v8162 = vxor.u32 %v7501, 2147483648
  %v8163 = vxor.u32 %v7679, 2147483648
  %v8164 = vxor.u32 %v7857, 2147483648
  %v8165 = vxor.u32 %v8035, 2147483648
  %v8166 = vxor.u32 %v6969, 2147483648
  %v8167 = vxor.u32 %v7147, 2147483648
  %v8168 = vxor.u32 %v7325, 2147483648
  %v8169 = vxor.u32 %v7503, 2147483648
  %v8170 = vxor.u32 %v7681, 2147483648
  %v8171 = vxor.u32 %v7859, 2147483648
  %v8172 = vxor.u32 %v8037, 2147483648
  %v8173 = vxor.u32 %v6972, 2147483648
  %v8174 = vxor.u32 %v7150, 2147483648
  %v8175 = vxor.u32 %v7328, 2147483648
  %v8176 = vxor.u32 %v7506, 2147483648
  %v8177 = vxor.u32 %v7684, 2147483648
  %v8178 = vxor.u32 %v7862, 2147483648
  %v8179 = vxor.u32 %v8040, 2147483648
  %v8180 = vxor.u32 %v6974, 2147483648
  %v8181 = vxor.u32 %v7152, 2147483648
  %v8182 = vxor.u32 %v7330, 2147483648
  %v8183 = vxor.u32 %v7508, 2147483648
  %v8184 = vxor.u32 %v7686, 2147483648
  %v8185 = vxor.u32 %v7864, 2147483648
  %v8186 = vxor.u32 %v8042, 2147483648
  %v8187 = vxor.u32 %v6977, 2147483648
  %v8188 = vxor.u32 %v7155, 2147483648
  %v8189 = vxor.u32 %v7333, 2147483648
  %v8190 = vxor.u32 %v7511, 2147483648
  %v8191 = vxor.u32 %v7689, 2147483648
  %v8192 = vxor.u32 %v7867, 2147483648
  %v8193 = vxor.u32 %v8045, 2147483648
  %v8194 = vxor.u32 %v6979, 2147483648
  %v8195 = vxor.u32 %v7157, 2147483648
  %v8196 = vxor.u32 %v7335, 2147483648
  %v8197 = vxor.u32 %v7513, 2147483648
  %v8198 = vxor.u32 %v7691, 2147483648
  %v8199 = vxor.u32 %v7869, 2147483648
  %v8200 = vxor.u32 %v8047, 2147483648
  %v8201 = vxor.u32 %v6982, 2147483648
  %v8202 = vxor.u32 %v7160, 2147483648
  %v8203 = vxor.u32 %v7338, 2147483648
  %v8204 = vxor.u32 %v7516, 2147483648
  %v8205 = vxor.u32 %v7694, 2147483648
  %v8206 = vxor.u32 %v7872, 2147483648
  %v8207 = vxor.u32 %v8050, 2147483648
  %v8208 = vxor.u32 %v6984, 2147483648
  %v8209 = vxor.u32 %v7162, 2147483648
  %v8210 = vxor.u32 %v7340, 2147483648
  %v8211 = vxor.u32 %v7518, 2147483648
  %v8212 = vxor.u32 %v7696, 2147483648
  %v8213 = vxor.u32 %v7874, 2147483648
  %v8214 = vxor.u32 %v8052, 2147483648
  %v8215 = vxor.u32 %v6987, 2147483648
  %v8216 = vxor.u32 %v7165, 2147483648
  %v8217 = vxor.u32 %v7343, 2147483648
  %v8218 = vxor.u32 %v7521, 2147483648
  %v8219 = vxor.u32 %v7699, 2147483648
  %v8220 = vxor.u32 %v7877, 2147483648
  %v8221 = vxor.u32 %v8055, 2147483648
  %v8222 = vxor.u32 %v6989, 2147483648
  %v8223 = vxor.u32 %v7167, 2147483648
  %v8224 = vxor.u32 %v7345, 2147483648
  %v8225 = vxor.u32 %v7523, 2147483648
  %v8226 = vxor.u32 %v7701, 2147483648
  %v8227 = vxor.u32 %v7879, 2147483648
  %v8228 = vxor.u32 %v8057, 2147483648
  %v8229 = vxor.u32 %v6992, 2147483648
  %v8230 = vxor.u32 %v7170, 2147483648
  %v8231 = vxor.u32 %v7348, 2147483648
  %v8232 = vxor.u32 %v7526, 2147483648
  %v8233 = vxor.u32 %v7704, 2147483648
  %v8234 = vxor.u32 %v7882, 2147483648
  %v8235 = vxor.u32 %v8060, 2147483648
  %v8236 = vxor.u32 %v6994, 2147483648
  %v8237 = vxor.u32 %v7172, 2147483648
  %v8238 = vxor.u32 %v7350, 2147483648
  %v8239 = vxor.u32 %v7528, 2147483648
  %v8240 = vxor.u32 %v7706, 2147483648
  %v8241 = vxor.u32 %v7884, 2147483648
  %v8242 = vxor.u32 %v8062, 2147483648
  %v8243 = vxor.u32 %v6997, 2147483648
  %v8244 = vxor.u32 %v7175, 2147483648
  %v8245 = vxor.u32 %v7353, 2147483648
  %v8246 = vxor.u32 %v7531, 2147483648
  %v8247 = vxor.u32 %v7709, 2147483648
  %v8248 = vxor.u32 %v7887, 2147483648
  %v8249 = vxor.u32 %v8065, 2147483648
  %v8250 = vxor.u32 %v6999, 2147483648
  %v8251 = vxor.u32 %v7177, 2147483648
  %v8252 = vxor.u32 %v7355, 2147483648
  %v8253 = vxor.u32 %v7533, 2147483648
  %v8254 = vxor.u32 %v7711, 2147483648
  %v8255 = vxor.u32 %v7889, 2147483648
  %v8256 = vxor.u32 %v8067, 2147483648
  %v8257 = vxor.u32 %v7002, 2147483648
  %v8258 = vxor.u32 %v7180, 2147483648
  %v8259 = vxor.u32 %v7358, 2147483648
  %v8260 = vxor.u32 %v7536, 2147483648
  %v8261 = vxor.u32 %v7714, 2147483648
  %v8262 = vxor.u32 %v7892, 2147483648
  %v8263 = vxor.u32 %v8070, 2147483648
  %v8264 = vxor.u32 %v7004, 2147483648
  %v8265 = vxor.u32 %v7182, 2147483648
  %v8266 = vxor.u32 %v7360, 2147483648
  %v8267 = vxor.u32 %v7538, 2147483648
  %v8268 = vxor.u32 %v7716, 2147483648
  %v8269 = vxor.u32 %v7894, 2147483648
  %v8270 = vxor.u32 %v8072, 2147483648
  %v8271 = vxor.u32 %v7007, 2147483648
  %v8272 = vxor.u32 %v7185, 2147483648
  %v8273 = vxor.u32 %v7363, 2147483648
  %v8274 = vxor.u32 %v7541, 2147483648
  %v8275 = vxor.u32 %v7719, 2147483648
  %v8276 = vxor.u32 %v7897, 2147483648
  %v8277 = vxor.u32 %v8075, 2147483648
  %v8278 = vxor.u32 %v7009, 2147483648
  %v8279 = vxor.u32 %v7187, 2147483648
  %v8280 = vxor.u32 %v7365, 2147483648
  %v8281 = vxor.u32 %v7543, 2147483648
  %v8282 = vxor.u32 %v7721, 2147483648
  %v8283 = vxor.u32 %v7899, 2147483648
  %v8284 = vxor.u32 %v8077, 2147483648
  %v8285 = vxor.u32 %v7012, 2147483648
  %v8286 = vxor.u32 %v7190, 2147483648
  %v8287 = vxor.u32 %v7368, 2147483648
  %v8288 = vxor.u32 %v7546, 2147483648
  %v8289 = vxor.u32 %v7724, 2147483648
  %v8290 = vxor.u32 %v7902, 2147483648
  %v8291 = vxor.u32 %v8080, 2147483648
  %v8292 = vxor.u32 %v7014, 2147483648
  %v8293 = vxor.u32 %v7192, 2147483648
  %v8294 = vxor.u32 %v7370, 2147483648
  %v8295 = vxor.u32 %v7548, 2147483648
  %v8296 = vxor.u32 %v7726, 2147483648
  %v8297 = vxor.u32 %v7904, 2147483648
  %v8298 = vxor.u32 %v8082, 2147483648
  %v8299 = vxor.u32 %v7017, 2147483648
  %v8300 = vxor.u32 %v7195, 2147483648
  %v8301 = vxor.u32 %v7373, 2147483648
  %v8302 = vxor.u32 %v7551, 2147483648
  %v8303 = vxor.u32 %v7729, 2147483648
  %v8304 = vxor.u32 %v7907, 2147483648
  %v8305 = vxor.u32 %v8085, 2147483648
  %v8306 = vxor.u32 %v7019, 2147483648
  %v8307 = vxor.u32 %v7197, 2147483648
  %v8308 = vxor.u32 %v7375, 2147483648
  %v8309 = vxor.u32 %v7553, 2147483648
  %v8310 = vxor.u32 %v7731, 2147483648
  %v8311 = vxor.u32 %v7909, 2147483648
  %v8312 = vxor.u32 %v8087, 2147483648
  %v8313 = vmul.f32 %v8089, 1.442695
  %v8314 = vpow.pop %v8313
  %v8315 = vmul.f32 %v8090, 1.442695
  %v8316 = vpow.pop %v8315
  %v8317 = vmul.f32 %v8091, 1.442695
  %v8318 = vpow.pop %v8317
  %v8319 = vmul.f32 %v8092, 1.442695
  %v8320 = vpow.pop %v8319
  %v8321 = vmul.f32 %v8093, 1.442695
  %v8322 = vpow.pop %v8321
  %v8323 = vmul.f32 %v8094, 1.442695
  %v8324 = vpow.pop %v8323
  %v8325 = vmul.f32 %v8095, 1.442695
  %v8326 = vpow.pop %v8325
  %v8327 = vmul.f32 %v8096, 1.442695
  %v8328 = vpow.pop %v8327
  %v8329 = vmul.f32 %v8097, 1.442695
  %v8330 = vpow.pop %v8329
  %v8331 = vmul.f32 %v8098, 1.442695
  %v8332 = vpow.pop %v8331
  %v8333 = vmul.f32 %v8099, 1.442695
  %v8334 = vpow.pop %v8333
  %v8335 = vmul.f32 %v8100, 1.442695
  %v8336 = vpow.pop %v8335
  %v8337 = vmul.f32 %v8101, 1.442695
  %v8338 = vpow.pop %v8337
  %v8339 = vmul.f32 %v8102, 1.442695
  %v8340 = vpow.pop %v8339
  %v8341 = vmul.f32 %v8103, 1.442695
  %v8342 = vpow.pop %v8341
  %v8343 = vmul.f32 %v8104, 1.442695
  %v8344 = vpow.pop %v8343
  %v8345 = vmul.f32 %v8105, 1.442695
  %v8346 = vpow.pop %v8345
  %v8347 = vmul.f32 %v8106, 1.442695
  %v8348 = vpow.pop %v8347
  %v8349 = vmul.f32 %v8107, 1.442695
  %v8350 = vpow.pop %v8349
  %v8351 = vmul.f32 %v8108, 1.442695
  %v8352 = vpow.pop %v8351
  %v8353 = vmul.f32 %v8109, 1.442695
  %v8354 = vpow.pop %v8353
  %v8355 = vmul.f32 %v8110, 1.442695
  %v8356 = vpow.pop %v8355
  %v8357 = vmul.f32 %v8111, 1.442695
  %v8358 = vpow.pop %v8357
  %v8359 = vmul.f32 %v8112, 1.442695
  %v8360 = vpow.pop %v8359
  %v8361 = vmul.f32 %v8113, 1.442695
  %v8362 = vpow.pop %v8361
  %v8363 = vmul.f32 %v8114, 1.442695
  %v8364 = vpow.pop %v8363
  %v8365 = vmul.f32 %v8115, 1.442695
  %v8366 = vpow.pop %v8365
  %v8367 = vmul.f32 %v8116, 1.442695
  %v8368 = vpow.pop %v8367
  %v8369 = vmul.f32 %v8117, 1.442695
  %v8370 = vpow.pop %v8369
  %v8371 = vmul.f32 %v8118, 1.442695
  %v8372 = vpow.pop %v8371
  %v8373 = vmul.f32 %v8119, 1.442695
  %v8374 = vpow.pop %v8373
  %v8375 = vmul.f32 %v8120, 1.442695
  %v8376 = vpow.pop %v8375
  %v8377 = vmul.f32 %v8121, 1.442695
  %v8378 = vpow.pop %v8377
  %v8379 = vmul.f32 %v8122, 1.442695
  %v8380 = vpow.pop %v8379
  %v8381 = vmul.f32 %v8123, 1.442695
  %v8382 = vpow.pop %v8381
  %v8383 = vmul.f32 %v8124, 1.442695
  %v8384 = vpow.pop %v8383
  %v8385 = vmul.f32 %v8125, 1.442695
  %v8386 = vpow.pop %v8385
  %v8387 = vmul.f32 %v8126, 1.442695
  %v8388 = vpow.pop %v8387
  %v8389 = vmul.f32 %v8127, 1.442695
  %v8390 = vpow.pop %v8389
  %v8391 = vmul.f32 %v8128, 1.442695
  %v8392 = vpow.pop %v8391
  %v8393 = vmul.f32 %v8129, 1.442695
  %v8394 = vpow.pop %v8393
  %v8395 = vmul.f32 %v8130, 1.442695
  %v8396 = vpow.pop %v8395
  %v8397 = vmul.f32 %v8131, 1.442695
  %v8398 = vpow.pop %v8397
  %v8399 = vmul.f32 %v8132, 1.442695
  %v8400 = vpow.pop %v8399
  %v8401 = vmul.f32 %v8133, 1.442695
  %v8402 = vpow.pop %v8401
  %v8403 = vmul.f32 %v8134, 1.442695
  %v8404 = vpow.pop %v8403
  %v8405 = vmul.f32 %v8135, 1.442695
  %v8406 = vpow.pop %v8405
  %v8407 = vmul.f32 %v8136, 1.442695
  %v8408 = vpow.pop %v8407
  %v8409 = vmul.f32 %v8137, 1.442695
  %v8410 = vpow.pop %v8409
  %v8411 = vmul.f32 %v8138, 1.442695
  %v8412 = vpow.pop %v8411
  %v8413 = vmul.f32 %v8139, 1.442695
  %v8414 = vpow.pop %v8413
  %v8415 = vmul.f32 %v8140, 1.442695
  %v8416 = vpow.pop %v8415
  %v8417 = vmul.f32 %v8141, 1.442695
  %v8418 = vpow.pop %v8417
  %v8419 = vmul.f32 %v8142, 1.442695
  %v8420 = vpow.pop %v8419
  %v8421 = vmul.f32 %v8143, 1.442695
  %v8422 = vpow.pop %v8421
  %v8423 = vmul.f32 %v8144, 1.442695
  %v8424 = vpow.pop %v8423
  %v8425 = vmul.f32 %v8145, 1.442695
  %v8426 = vpow.pop %v8425
  %v8427 = vmul.f32 %v8146, 1.442695
  %v8428 = vpow.pop %v8427
  %v8429 = vmul.f32 %v8147, 1.442695
  %v8430 = vpow.pop %v8429
  %v8431 = vmul.f32 %v8148, 1.442695
  %v8432 = vpow.pop %v8431
  %v8433 = vmul.f32 %v8149, 1.442695
  %v8434 = vpow.pop %v8433
  %v8435 = vmul.f32 %v8150, 1.442695
  %v8436 = vpow.pop %v8435
  %v8437 = vmul.f32 %v8151, 1.442695
  %v8438 = vpow.pop %v8437
  %v8439 = vmul.f32 %v8152, 1.442695
  %v8440 = vpow.pop %v8439
  %v8441 = vmul.f32 %v8153, 1.442695
  %v8442 = vpow.pop %v8441
  %v8443 = vmul.f32 %v8154, 1.442695
  %v8444 = vpow.pop %v8443
  %v8445 = vmul.f32 %v8155, 1.442695
  %v8446 = vpow.pop %v8445
  %v8447 = vmul.f32 %v8156, 1.442695
  %v8448 = vpow.pop %v8447
  %v8449 = vmul.f32 %v8157, 1.442695
  %v8450 = vpow.pop %v8449
  %v8451 = vmul.f32 %v8158, 1.442695
  %v8452 = vpow.pop %v8451
  %v8453 = vmul.f32 %v8159, 1.442695
  %v8454 = vpow.pop %v8453
  %v8455 = vmul.f32 %v8160, 1.442695
  %v8456 = vpow.pop %v8455
  %v8457 = vmul.f32 %v8161, 1.442695
  %v8458 = vpow.pop %v8457
  %v8459 = vmul.f32 %v8162, 1.442695
  %v8460 = vpow.pop %v8459
  %v8461 = vmul.f32 %v8163, 1.442695
  %v8462 = vpow.pop %v8461
  %v8463 = vmul.f32 %v8164, 1.442695
  %v8464 = vpow.pop %v8463
  %v8465 = vmul.f32 %v8165, 1.442695
  %v8466 = vpow.pop %v8465
  %v8467 = vmul.f32 %v8166, 1.442695
  %v8468 = vpow.pop %v8467
  %v8469 = vmul.f32 %v8167, 1.442695
  %v8470 = vpow.pop %v8469
  %v8471 = vmul.f32 %v8168, 1.442695
  %v8472 = vpow.pop %v8471
  %v8473 = vmul.f32 %v8169, 1.442695
  %v8474 = vpow.pop %v8473
  %v8475 = vmul.f32 %v8170, 1.442695
  %v8476 = vpow.pop %v8475
  %v8477 = vmul.f32 %v8171, 1.442695
  %v8478 = vpow.pop %v8477
  %v8479 = vmul.f32 %v8172, 1.442695
  %v8480 = vpow.pop %v8479
  %v8481 = vmul.f32 %v8173, 1.442695
  %v8482 = vpow.pop %v8481
  %v8483 = vmul.f32 %v8174, 1.442695
  %v8484 = vpow.pop %v8483
  %v8485 = vmul.f32 %v8175, 1.442695
  %v8486 = vpow.pop %v8485
  %v8487 = vmul.f32 %v8176, 1.442695
  %v8488 = vpow.pop %v8487
  %v8489 = vmul.f32 %v8177, 1.442695
  %v8490 = vpow.pop %v8489
  %v8491 = vmul.f32 %v8178, 1.442695
  %v8492 = vpow.pop %v8491
  %v8493 = vmul.f32 %v8179, 1.442695
  %v8494 = vpow.pop %v8493
  %v8495 = vmul.f32 %v8180, 1.442695
  %v8496 = vpow.pop %v8495
  %v8497 = vmul.f32 %v8181, 1.442695
  %v8498 = vpow.pop %v8497
  %v8499 = vmul.f32 %v8182, 1.442695
  %v8500 = vpow.pop %v8499
  %v8501 = vmul.f32 %v8183, 1.442695
  %v8502 = vpow.pop %v8501
  %v8503 = vmul.f32 %v8184, 1.442695
  %v8504 = vpow.pop %v8503
  %v8505 = vmul.f32 %v8185, 1.442695
  %v8506 = vpow.pop %v8505
  %v8507 = vmul.f32 %v8186, 1.442695
  %v8508 = vpow.pop %v8507
  %v8509 = vmul.f32 %v8187, 1.442695
  %v8510 = vpow.pop %v8509
  %v8511 = vmul.f32 %v8188, 1.442695
  %v8512 = vpow.pop %v8511
  %v8513 = vmul.f32 %v8189, 1.442695
  %v8514 = vpow.pop %v8513
  %v8515 = vmul.f32 %v8190, 1.442695
  %v8516 = vpow.pop %v8515
  %v8517 = vmul.f32 %v8191, 1.442695
  %v8518 = vpow.pop %v8517
  %v8519 = vmul.f32 %v8192, 1.442695
  %v8520 = vpow.pop %v8519
  %v8521 = vmul.f32 %v8193, 1.442695
  %v8522 = vpow.pop %v8521
  %v8523 = vmul.f32 %v8194, 1.442695
  %v8524 = vpow.pop %v8523
  %v8525 = vmul.f32 %v8195, 1.442695
  %v8526 = vpow.pop %v8525
  %v8527 = vmul.f32 %v8196, 1.442695
  %v8528 = vpow.pop %v8527
  %v8529 = vmul.f32 %v8197, 1.442695
  %v8530 = vpow.pop %v8529
  %v8531 = vmul.f32 %v8198, 1.442695
  %v8532 = vpow.pop %v8531
  %v8533 = vmul.f32 %v8199, 1.442695
  %v8534 = vpow.pop %v8533
  %v8535 = vmul.f32 %v8200, 1.442695
  %v8536 = vpow.pop %v8535
  %v8537 = vmul.f32 %v8201, 1.442695
  %v8538 = vpow.pop %v8537
  %v8539 = vmul.f32 %v8202, 1.442695
  %v8540 = vpow.pop %v8539
  %v8541 = vmul.f32 %v8203, 1.442695
  %v8542 = vpow.pop %v8541
  %v8543 = vmul.f32 %v8204, 1.442695
  %v8544 = vpow.pop %v8543
  %v8545 = vmul.f32 %v8205, 1.442695
  %v8546 = vpow.pop %v8545
  %v8547 = vmul.f32 %v8206, 1.442695
  %v8548 = vpow.pop %v8547
  %v8549 = vmul.f32 %v8207, 1.442695
  %v8550 = vpow.pop %v8549
  %v8551 = vmul.f32 %v8208, 1.442695
  %v8552 = vpow.pop %v8551
  %v8553 = vmul.f32 %v8209, 1.442695
  %v8554 = vpow.pop %v8553
  %v8555 = vmul.f32 %v8210, 1.442695
  %v8556 = vpow.pop %v8555
  %v8557 = vmul.f32 %v8211, 1.442695
  %v8558 = vpow.pop %v8557
  %v8559 = vmul.f32 %v8212, 1.442695
  %v8560 = vpow.pop %v8559
  %v8561 = vmul.f32 %v8213, 1.442695
  %v8562 = vpow.pop %v8561
  %v8563 = vmul.f32 %v8214, 1.442695
  %v8564 = vpow.pop %v8563
  %v8565 = vmul.f32 %v8215, 1.442695
  %v8566 = vpow.pop %v8565
  %v8567 = vmul.f32 %v8216, 1.442695
  %v8568 = vpow.pop %v8567
  %v8569 = vmul.f32 %v8217, 1.442695
  %v8570 = vpow.pop %v8569
  %v8571 = vmul.f32 %v8218, 1.442695
  %v8572 = vpow.pop %v8571
  %v8573 = vmul.f32 %v8219, 1.442695
  %v8574 = vpow.pop %v8573
  %v8575 = vmul.f32 %v8220, 1.442695
  %v8576 = vpow.pop %v8575
  %v8577 = vmul.f32 %v8221, 1.442695
  %v8578 = vpow.pop %v8577
  %v8579 = vmul.f32 %v8222, 1.442695
  %v8580 = vpow.pop %v8579
  %v8581 = vmul.f32 %v8223, 1.442695
  %v8582 = vpow.pop %v8581
  %v8583 = vmul.f32 %v8224, 1.442695
  %v8584 = vpow.pop %v8583
  %v8585 = vmul.f32 %v8225, 1.442695
  %v8586 = vpow.pop %v8585
  %v8587 = vmul.f32 %v8226, 1.442695
  %v8588 = vpow.pop %v8587
  %v8589 = vmul.f32 %v8227, 1.442695
  %v8590 = vpow.pop %v8589
  %v8591 = vmul.f32 %v8228, 1.442695
  %v8592 = vpow.pop %v8591
  %v8593 = vmul.f32 %v8229, 1.442695
  %v8594 = vpow.pop %v8593
  %v8595 = vmul.f32 %v8230, 1.442695
  %v8596 = vpow.pop %v8595
  %v8597 = vmul.f32 %v8231, 1.442695
  %v8598 = vpow.pop %v8597
  %v8599 = vmul.f32 %v8232, 1.442695
  %v8600 = vpow.pop %v8599
  %v8601 = vmul.f32 %v8233, 1.442695
  %v8602 = vpow.pop %v8601
  %v8603 = vmul.f32 %v8234, 1.442695
  %v8604 = vpow.pop %v8603
  %v8605 = vmul.f32 %v8235, 1.442695
  %v8606 = vpow.pop %v8605
  %v8607 = vmul.f32 %v8236, 1.442695
  %v8608 = vpow.pop %v8607
  %v8609 = vmul.f32 %v8237, 1.442695
  %v8610 = vpow.pop %v8609
  %v8611 = vmul.f32 %v8238, 1.442695
  %v8612 = vpow.pop %v8611
  %v8613 = vmul.f32 %v8239, 1.442695
  %v8614 = vpow.pop %v8613
  %v8615 = vmul.f32 %v8240, 1.442695
  %v8616 = vpow.pop %v8615
  %v8617 = vmul.f32 %v8241, 1.442695
  %v8618 = vpow.pop %v8617
  %v8619 = vmul.f32 %v8242, 1.442695
  %v8620 = vpow.pop %v8619
  %v8621 = vmul.f32 %v8243, 1.442695
  %v8622 = vpow.pop %v8621
  %v8623 = vmul.f32 %v8244, 1.442695
  %v8624 = vpow.pop %v8623
  %v8625 = vmul.f32 %v8245, 1.442695
  %v8626 = vpow.pop %v8625
  %v8627 = vmul.f32 %v8246, 1.442695
  %v8628 = vpow.pop %v8627
  %v8629 = vmul.f32 %v8247, 1.442695
  %v8630 = vpow.pop %v8629
  %v8631 = vmul.f32 %v8248, 1.442695
  %v8632 = vpow.pop %v8631
  %v8633 = vmul.f32 %v8249, 1.442695
  %v8634 = vpow.pop %v8633
  %v8635 = vmul.f32 %v8250, 1.442695
  %v8636 = vpow.pop %v8635
  %v8637 = vmul.f32 %v8251, 1.442695
  %v8638 = vpow.pop %v8637
  %v8639 = vmul.f32 %v8252, 1.442695
  %v8640 = vpow.pop %v8639
  %v8641 = vmul.f32 %v8253, 1.442695
  %v8642 = vpow.pop %v8641
  %v8643 = vmul.f32 %v8254, 1.442695
  %v8644 = vpow.pop %v8643
  %v8645 = vmul.f32 %v8255, 1.442695
  %v8646 = vpow.pop %v8645
  %v8647 = vmul.f32 %v8256, 1.442695
  %v8648 = vpow.pop %v8647
  %v8649 = vmul.f32 %v8257, 1.442695
  %v8650 = vpow.pop %v8649
  %v8651 = vmul.f32 %v8258, 1.442695
  %v8652 = vpow.pop %v8651
  %v8653 = vmul.f32 %v8259, 1.442695
  %v8654 = vpow.pop %v8653
  %v8655 = vmul.f32 %v8260, 1.442695
  %v8656 = vpow.pop %v8655
  %v8657 = vmul.f32 %v8261, 1.442695
  %v8658 = vpow.pop %v8657
  %v8659 = vmul.f32 %v8262, 1.442695
  %v8660 = vpow.pop %v8659
  %v8661 = vmul.f32 %v8263, 1.442695
  %v8662 = vpow.pop %v8661
  %v8663 = vmul.f32 %v8264, 1.442695
  %v8664 = vpow.pop %v8663
  %v8665 = vmul.f32 %v8265, 1.442695
  %v8666 = vpow.pop %v8665
  %v8667 = vmul.f32 %v8266, 1.442695
  %v8668 = vpow.pop %v8667
  %v8669 = vmul.f32 %v8267, 1.442695
  %v8670 = vpow.pop %v8669
  %v8671 = vmul.f32 %v8268, 1.442695
  %v8672 = vpow.pop %v8671
  %v8673 = vmul.f32 %v8269, 1.442695
  %v8674 = vpow.pop %v8673
  %v8675 = vmul.f32 %v8270, 1.442695
  %v8676 = vpow.pop %v8675
  %v8677 = vmul.f32 %v8271, 1.442695
  %v8678 = vpow.pop %v8677
  %v8679 = vmul.f32 %v8272, 1.442695
  %v8680 = vpow.pop %v8679
  %v8681 = vmul.f32 %v8273, 1.442695
  %v8682 = vpow.pop %v8681
  %v8683 = vmul.f32 %v8274, 1.442695
  %v8684 = vpow.pop %v8683
  %v8685 = vmul.f32 %v8275, 1.442695
  %v8686 = vpow.pop %v8685
  %v8687 = vmul.f32 %v8276, 1.442695
  %v8688 = vpow.pop %v8687
  %v8689 = vmul.f32 %v8277, 1.442695
  %v8690 = vpow.pop %v8689
  %v8691 = vmul.f32 %v8278, 1.442695
  %v8692 = vpow.pop %v8691
  %v8693 = vmul.f32 %v8279, 1.442695
  %v8694 = vpow.pop %v8693
  %v8695 = vmul.f32 %v8280, 1.442695
  %v8696 = vpow.pop %v8695
  %v8697 = vmul.f32 %v8281, 1.442695
  %v8698 = vpow.pop %v8697
  %v8699 = vmul.f32 %v8282, 1.442695
  %v8700 = vpow.pop %v8699
  %v8701 = vmul.f32 %v8283, 1.442695
  %v8702 = vpow.pop %v8701
  %v8703 = vmul.f32 %v8284, 1.442695
  %v8704 = vpow.pop %v8703
  %v8705 = vmul.f32 %v8285, 1.442695
  %v8706 = vpow.pop %v8705
  %v8707 = vmul.f32 %v8286, 1.442695
  %v8708 = vpow.pop %v8707
  %v8709 = vmul.f32 %v8287, 1.442695
  %v8710 = vpow.pop %v8709
  %v8711 = vmul.f32 %v8288, 1.442695
  %v8712 = vpow.pop %v8711
  %v8713 = vmul.f32 %v8289, 1.442695
  %v8714 = vpow.pop %v8713
  %v8715 = vmul.f32 %v8290, 1.442695
  %v8716 = vpow.pop %v8715
  %v8717 = vmul.f32 %v8291, 1.442695
  %v8718 = vpow.pop %v8717
  %v8719 = vmul.f32 %v8292, 1.442695
  %v8720 = vpow.pop %v8719
  %v8721 = vmul.f32 %v8293, 1.442695
  %v8722 = vpow.pop %v8721
  %v8723 = vmul.f32 %v8294, 1.442695
  %v8724 = vpow.pop %v8723
  %v8725 = vmul.f32 %v8295, 1.442695
  %v8726 = vpow.pop %v8725
  %v8727 = vmul.f32 %v8296, 1.442695
  %v8728 = vpow.pop %v8727
  %v8729 = vmul.f32 %v8297, 1.442695
  %v8730 = vpow.pop %v8729
  %v8731 = vmul.f32 %v8298, 1.442695
  %v8732 = vpow.pop %v8731
  %v8733 = vmul.f32 %v8299, 1.442695
  %v8734 = vpow.pop %v8733
  %v8735 = vmul.f32 %v8300, 1.442695
  %v8736 = vpow.pop %v8735
  %v8737 = vmul.f32 %v8301, 1.442695
  %v8738 = vpow.pop %v8737
  %v8739 = vmul.f32 %v8302, 1.442695
  %v8740 = vpow.pop %v8739
  %v8741 = vmul.f32 %v8303, 1.442695
  %v8742 = vpow.pop %v8741
  %v8743 = vmul.f32 %v8304, 1.442695
  %v8744 = vpow.pop %v8743
  %v8745 = vmul.f32 %v8305, 1.442695
  %v8746 = vpow.pop %v8745
  %v8747 = vmul.f32 %v8306, 1.442695
  %v8748 = vpow.pop %v8747
  %v8749 = vmul.f32 %v8307, 1.442695
  %v8750 = vpow.pop %v8749
  %v8751 = vmul.f32 %v8308, 1.442695
  %v8752 = vpow.pop %v8751
  %v8753 = vmul.f32 %v8309, 1.442695
  %v8754 = vpow.pop %v8753
  %v8755 = vmul.f32 %v8310, 1.442695
  %v8756 = vpow.pop %v8755
  %v8757 = vmul.f32 %v8311, 1.442695
  %v8758 = vpow.pop %v8757
  %v8759 = vmul.f32 %v8312, 1.442695
  %v8760 = vpow.pop %v8759
  %v8761 = vadd.f32 %v8314, 1.0
  %v8762 = vadd.f32 %v8316, 1.0
  %v8763 = vadd.f32 %v8318, 1.0
  %v8764 = vadd.f32 %v8320, 1.0
  %v8765 = vadd.f32 %v8322, 1.0
  %v8766 = vadd.f32 %v8324, 1.0
  %v8767 = vadd.f32 %v8326, 1.0
  %v8768 = vadd.f32 %v8328, 1.0
  %v8769 = vadd.f32 %v8330, 1.0
  %v8770 = vadd.f32 %v8332, 1.0
  %v8771 = vadd.f32 %v8334, 1.0
  %v8772 = vadd.f32 %v8336, 1.0
  %v8773 = vadd.f32 %v8338, 1.0
  %v8774 = vadd.f32 %v8340, 1.0
  %v8775 = vadd.f32 %v8342, 1.0
  %v8776 = vadd.f32 %v8344, 1.0
  %v8777 = vadd.f32 %v8346, 1.0
  %v8778 = vadd.f32 %v8348, 1.0
  %v8779 = vadd.f32 %v8350, 1.0
  %v8780 = vadd.f32 %v8352, 1.0
  %v8781 = vadd.f32 %v8354, 1.0
  %v8782 = vadd.f32 %v8356, 1.0
  %v8783 = vadd.f32 %v8358, 1.0
  %v8784 = vadd.f32 %v8360, 1.0
  %v8785 = vadd.f32 %v8362, 1.0
  %v8786 = vadd.f32 %v8364, 1.0
  %v8787 = vadd.f32 %v8366, 1.0
  %v8788 = vadd.f32 %v8368, 1.0
  %v8789 = vadd.f32 %v8370, 1.0
  %v8790 = vadd.f32 %v8372, 1.0
  %v8791 = vadd.f32 %v8374, 1.0
  %v8792 = vadd.f32 %v8376, 1.0
  %v8793 = vadd.f32 %v8378, 1.0
  %v8794 = vadd.f32 %v8380, 1.0
  %v8795 = vadd.f32 %v8382, 1.0
  %v8796 = vadd.f32 %v8384, 1.0
  %v8797 = vadd.f32 %v8386, 1.0
  %v8798 = vadd.f32 %v8388, 1.0
  %v8799 = vadd.f32 %v8390, 1.0
  %v8800 = vadd.f32 %v8392, 1.0
  %v8801 = vadd.f32 %v8394, 1.0
  %v8802 = vadd.f32 %v8396, 1.0
  %v8803 = vadd.f32 %v8398, 1.0
  %v8804 = vadd.f32 %v8400, 1.0
  %v8805 = vadd.f32 %v8402, 1.0
  %v8806 = vadd.f32 %v8404, 1.0
  %v8807 = vadd.f32 %v8406, 1.0
  %v8808 = vadd.f32 %v8408, 1.0
  %v8809 = vadd.f32 %v8410, 1.0
  %v8810 = vadd.f32 %v8412, 1.0
  %v8811 = vadd.f32 %v8414, 1.0
  %v8812 = vadd.f32 %v8416, 1.0
  %v8813 = vadd.f32 %v8418, 1.0
  %v8814 = vadd.f32 %v8420, 1.0
  %v8815 = vadd.f32 %v8422, 1.0
  %v8816 = vadd.f32 %v8424, 1.0
  %v8817 = vadd.f32 %v8426, 1.0
  %v8818 = vadd.f32 %v8428, 1.0
  %v8819 = vadd.f32 %v8430, 1.0
  %v8820 = vadd.f32 %v8432, 1.0
  %v8821 = vadd.f32 %v8434, 1.0
  %v8822 = vadd.f32 %v8436, 1.0
  %v8823 = vadd.f32 %v8438, 1.0
  %v8824 = vadd.f32 %v8440, 1.0
  %v8825 = vadd.f32 %v8442, 1.0
  %v8826 = vadd.f32 %v8444, 1.0
  %v8827 = vadd.f32 %v8446, 1.0
  %v8828 = vadd.f32 %v8448, 1.0
  %v8829 = vadd.f32 %v8450, 1.0
  %v8830 = vadd.f32 %v8452, 1.0
  %v8831 = vadd.f32 %v8454, 1.0
  %v8832 = vadd.f32 %v8456, 1.0
  %v8833 = vadd.f32 %v8458, 1.0
  %v8834 = vadd.f32 %v8460, 1.0
  %v8835 = vadd.f32 %v8462, 1.0
  %v8836 = vadd.f32 %v8464, 1.0
  %v8837 = vadd.f32 %v8466, 1.0
  %v8838 = vadd.f32 %v8468, 1.0
  %v8839 = vadd.f32 %v8470, 1.0
  %v8840 = vadd.f32 %v8472, 1.0
  %v8841 = vadd.f32 %v8474, 1.0
  %v8842 = vadd.f32 %v8476, 1.0
  %v8843 = vadd.f32 %v8478, 1.0
  %v8844 = vadd.f32 %v8480, 1.0
  %v8845 = vadd.f32 %v8482, 1.0
  %v8846 = vadd.f32 %v8484, 1.0
  %v8847 = vadd.f32 %v8486, 1.0
  %v8848 = vadd.f32 %v8488, 1.0
  %v8849 = vadd.f32 %v8490, 1.0
  %v8850 = vadd.f32 %v8492, 1.0
  %v8851 = vadd.f32 %v8494, 1.0
  %v8852 = vadd.f32 %v8496, 1.0
  %v8853 = vadd.f32 %v8498, 1.0
  %v8854 = vadd.f32 %v8500, 1.0
  %v8855 = vadd.f32 %v8502, 1.0
  %v8856 = vadd.f32 %v8504, 1.0
  %v8857 = vadd.f32 %v8506, 1.0
  %v8858 = vadd.f32 %v8508, 1.0
  %v8859 = vadd.f32 %v8510, 1.0
  %v8860 = vadd.f32 %v8512, 1.0
  %v8861 = vadd.f32 %v8514, 1.0
  %v8862 = vadd.f32 %v8516, 1.0
  %v8863 = vadd.f32 %v8518, 1.0
  %v8864 = vadd.f32 %v8520, 1.0
  %v8865 = vadd.f32 %v8522, 1.0
  %v8866 = vadd.f32 %v8524, 1.0
  %v8867 = vadd.f32 %v8526, 1.0
  %v8868 = vadd.f32 %v8528, 1.0
  %v8869 = vadd.f32 %v8530, 1.0
  %v8870 = vadd.f32 %v8532, 1.0
  %v8871 = vadd.f32 %v8534, 1.0
  %v8872 = vadd.f32 %v8536, 1.0
  %v8873 = vadd.f32 %v8538, 1.0
  %v8874 = vadd.f32 %v8540, 1.0
  %v8875 = vadd.f32 %v8542, 1.0
  %v8876 = vadd.f32 %v8544, 1.0
  %v8877 = vadd.f32 %v8546, 1.0
  %v8878 = vadd.f32 %v8548, 1.0
  %v8879 = vadd.f32 %v8550, 1.0
  %v8880 = vadd.f32 %v8552, 1.0
  %v8881 = vadd.f32 %v8554, 1.0
  %v8882 = vadd.f32 %v8556, 1.0
  %v8883 = vadd.f32 %v8558, 1.0
  %v8884 = vadd.f32 %v8560, 1.0
  %v8885 = vadd.f32 %v8562, 1.0
  %v8886 = vadd.f32 %v8564, 1.0
  %v8887 = vadd.f32 %v8566, 1.0
  %v8888 = vadd.f32 %v8568, 1.0
  %v8889 = vadd.f32 %v8570, 1.0
  %v8890 = vadd.f32 %v8572, 1.0
  %v8891 = vadd.f32 %v8574, 1.0
  %v8892 = vadd.f32 %v8576, 1.0
  %v8893 = vadd.f32 %v8578, 1.0
  %v8894 = vadd.f32 %v8580, 1.0
  %v8895 = vadd.f32 %v8582, 1.0
  %v8896 = vadd.f32 %v8584, 1.0
  %v8897 = vadd.f32 %v8586, 1.0
  %v8898 = vadd.f32 %v8588, 1.0
  %v8899 = vadd.f32 %v8590, 1.0
  %v8900 = vadd.f32 %v8592, 1.0
  %v8901 = vadd.f32 %v8594, 1.0
  %v8902 = vadd.f32 %v8596, 1.0
  %v8903 = vadd.f32 %v8598, 1.0
  %v8904 = vadd.f32 %v8600, 1.0
  %v8905 = vadd.f32 %v8602, 1.0
  %v8906 = vadd.f32 %v8604, 1.0
  %v8907 = vadd.f32 %v8606, 1.0
  %v8908 = vadd.f32 %v8608, 1.0
  %v8909 = vadd.f32 %v8610, 1.0
  %v8910 = vadd.f32 %v8612, 1.0
  %v8911 = vadd.f32 %v8614, 1.0
  %v8912 = vadd.f32 %v8616, 1.0
  %v8913 = vadd.f32 %v8618, 1.0
  %v8914 = vadd.f32 %v8620, 1.0
  %v8915 = vadd.f32 %v8622, 1.0
  %v8916 = vadd.f32 %v8624, 1.0
  %v8917 = vadd.f32 %v8626, 1.0
  %v8918 = vadd.f32 %v8628, 1.0
  %v8919 = vadd.f32 %v8630, 1.0
  %v8920 = vadd.f32 %v8632, 1.0
  %v8921 = vadd.f32 %v8634, 1.0
  %v8922 = vadd.f32 %v8636, 1.0
  %v8923 = vadd.f32 %v8638, 1.0
  %v8924 = vadd.f32 %v8640, 1.0
  %v8925 = vadd.f32 %v8642, 1.0
  %v8926 = vadd.f32 %v8644, 1.0
  %v8927 = vadd.f32 %v8646, 1.0
  %v8928 = vadd.f32 %v8648, 1.0
  %v8929 = vadd.f32 %v8650, 1.0
  %v8930 = vadd.f32 %v8652, 1.0
  %v8931 = vadd.f32 %v8654, 1.0
  %v8932 = vadd.f32 %v8656, 1.0
  %v8933 = vadd.f32 %v8658, 1.0
  %v8934 = vadd.f32 %v8660, 1.0
  %v8935 = vadd.f32 %v8662, 1.0
  %v8936 = vadd.f32 %v8664, 1.0
  %v8937 = vadd.f32 %v8666, 1.0
  %v8938 = vadd.f32 %v8668, 1.0
  %v8939 = vadd.f32 %v8670, 1.0
  %v8940 = vadd.f32 %v8672, 1.0
  %v8941 = vadd.f32 %v8674, 1.0
  %v8942 = vadd.f32 %v8676, 1.0
  %v8943 = vadd.f32 %v8678, 1.0
  %v8944 = vadd.f32 %v8680, 1.0
  %v8945 = vadd.f32 %v8682, 1.0
  %v8946 = vadd.f32 %v8684, 1.0
  %v8947 = vadd.f32 %v8686, 1.0
  %v8948 = vadd.f32 %v8688, 1.0
  %v8949 = vadd.f32 %v8690, 1.0
  %v8950 = vadd.f32 %v8692, 1.0
  %v8951 = vadd.f32 %v8694, 1.0
  %v8952 = vadd.f32 %v8696, 1.0
  %v8953 = vadd.f32 %v8698, 1.0
  %v8954 = vadd.f32 %v8700, 1.0
  %v8955 = vadd.f32 %v8702, 1.0
  %v8956 = vadd.f32 %v8704, 1.0
  %v8957 = vadd.f32 %v8706, 1.0
  %v8958 = vadd.f32 %v8708, 1.0
  %v8959 = vadd.f32 %v8710, 1.0
  %v8960 = vadd.f32 %v8712, 1.0
  %v8961 = vadd.f32 %v8714, 1.0
  %v8962 = vadd.f32 %v8716, 1.0
  %v8963 = vadd.f32 %v8718, 1.0
  %v8964 = vadd.f32 %v8720, 1.0
  %v8965 = vadd.f32 %v8722, 1.0
  %v8966 = vadd.f32 %v8724, 1.0
  %v8967 = vadd.f32 %v8726, 1.0
  %v8968 = vadd.f32 %v8728, 1.0
  %v8969 = vadd.f32 %v8730, 1.0
  %v8970 = vadd.f32 %v8732, 1.0
  %v8971 = vadd.f32 %v8734, 1.0
  %v8972 = vadd.f32 %v8736, 1.0
  %v8973 = vadd.f32 %v8738, 1.0
  %v8974 = vadd.f32 %v8740, 1.0
  %v8975 = vadd.f32 %v8742, 1.0
  %v8976 = vadd.f32 %v8744, 1.0
  %v8977 = vadd.f32 %v8746, 1.0
  %v8978 = vadd.f32 %v8748, 1.0
  %v8979 = vadd.f32 %v8750, 1.0
  %v8980 = vadd.f32 %v8752, 1.0
  %v8981 = vadd.f32 %v8754, 1.0
  %v8982 = vadd.f32 %v8756, 1.0
  %v8983 = vadd.f32 %v8758, 1.0
  %v8984 = vadd.f32 %v8760, 1.0
  %v8985 = vrcp.pop %v8761
  %v8986 = vmul.f32 %v8761, %v8985
  %v8987 = vsub.f32 1.0, %v8986
  %v8988 = vmul.f32 %v8985, %v8987
  %v8989 = vadd.f32 %v8985, %v8988
  %vm8990 = vweird.f32 %v8761
  %vm8991 = vweird.f32 %v8985
  %vm8992 = vmor %vm8990, %vm8991
  %v8993 = vsel %vm8992, %v8985, %v8989
  %v8994 = vand.u32 2147483647, %v8761
  %vm8995 = vcmp.eq.f32.partialorder %v8994, 8.507059e+37
  %v8996 = vand.u32 %v8761, 2147483648
  %v8997 = vor.u32 1.1754944e-38, %v8996
  %v8998 = vsel %vm8995, %v8997, %v8993
  %v8999 = vmul.f32 1.0, %v8998
  %v9000 = vrcp.pop %v8762
  %v9001 = vmul.f32 %v8762, %v9000
  %v9002 = vsub.f32 1.0, %v9001
  %v9003 = vmul.f32 %v9000, %v9002
  %v9004 = vadd.f32 %v9000, %v9003
  %vm9005 = vweird.f32 %v8762
  %vm9006 = vweird.f32 %v9000
  %vm9007 = vmor %vm9005, %vm9006
  %v9008 = vsel %vm9007, %v9000, %v9004
  %v9009 = vand.u32 2147483647, %v8762
  %vm9010 = vcmp.eq.f32.partialorder %v9009, 8.507059e+37
  %v9011 = vand.u32 %v8762, 2147483648
  %v9012 = vor.u32 1.1754944e-38, %v9011
  %v9013 = vsel %vm9010, %v9012, %v9008
  %v9014 = vmul.f32 1.0, %v9013
  %v9015 = vrcp.pop %v8763
  %v9016 = vmul.f32 %v8763, %v9015
  %v9017 = vsub.f32 1.0, %v9016
  %v9018 = vmul.f32 %v9015, %v9017
  %v9019 = vadd.f32 %v9015, %v9018
  %vm9020 = vweird.f32 %v8763
  %vm9021 = vweird.f32 %v9015
  %vm9022 = vmor %vm9020, %vm9021
  %v9023 = vsel %vm9022, %v9015, %v9019
  %v9024 = vand.u32 2147483647, %v8763
  %vm9025 = vcmp.eq.f32.partialorder %v9024, 8.507059e+37
  %v9026 = vand.u32 %v8763, 2147483648
  %v9027 = vor.u32 1.1754944e-38, %v9026
  %v9028 = vsel %vm9025, %v9027, %v9023
  %v9029 = vmul.f32 1.0, %v9028
  %v9030 = vrcp.pop %v8764
  %v9031 = vmul.f32 %v8764, %v9030
  %v9032 = vsub.f32 1.0, %v9031
  %v9033 = vmul.f32 %v9030, %v9032
  %v9034 = vadd.f32 %v9030, %v9033
  %vm9035 = vweird.f32 %v8764
  %vm9036 = vweird.f32 %v9030
  %vm9037 = vmor %vm9035, %vm9036
  %v9038 = vsel %vm9037, %v9030, %v9034
  %v9039 = vand.u32 2147483647, %v8764
  %vm9040 = vcmp.eq.f32.partialorder %v9039, 8.507059e+37
  %v9041 = vand.u32 %v8764, 2147483648
  %v9042 = vor.u32 1.1754944e-38, %v9041
  %v9043 = vsel %vm9040, %v9042, %v9038
  %v9044 = vmul.f32 1.0, %v9043
  %v9045 = vrcp.pop %v8765
  %v9046 = vmul.f32 %v8765, %v9045
  %v9047 = vsub.f32 1.0, %v9046
  %v9048 = vmul.f32 %v9045, %v9047
  %v9049 = vadd.f32 %v9045, %v9048
  %vm9050 = vweird.f32 %v8765
  %vm9051 = vweird.f32 %v9045
  %vm9052 = vmor %vm9050, %vm9051
  %v9053 = vsel %vm9052, %v9045, %v9049
  %v9054 = vand.u32 2147483647, %v8765
  %vm9055 = vcmp.eq.f32.partialorder %v9054, 8.507059e+37
  %v9056 = vand.u32 %v8765, 2147483648
  %v9057 = vor.u32 1.1754944e-38, %v9056
  %v9058 = vsel %vm9055, %v9057, %v9053
  %v9059 = vmul.f32 1.0, %v9058
  %v9060 = vrcp.pop %v8766
  %v9061 = vmul.f32 %v8766, %v9060
  %v9062 = vsub.f32 1.0, %v9061
  %v9063 = vmul.f32 %v9060, %v9062
  %v9064 = vadd.f32 %v9060, %v9063
  %vm9065 = vweird.f32 %v8766
  %vm9066 = vweird.f32 %v9060
  %vm9067 = vmor %vm9065, %vm9066
  %v9068 = vsel %vm9067, %v9060, %v9064
  %v9069 = vand.u32 2147483647, %v8766
  %vm9070 = vcmp.eq.f32.partialorder %v9069, 8.507059e+37
  %v9071 = vand.u32 %v8766, 2147483648
  %v9072 = vor.u32 1.1754944e-38, %v9071
  %v9073 = vsel %vm9070, %v9072, %v9068
  %v9074 = vmul.f32 1.0, %v9073
  %v9075 = vrcp.pop %v8767
  %v9076 = vmul.f32 %v8767, %v9075
  %v9077 = vsub.f32 1.0, %v9076
  %v9078 = vmul.f32 %v9075, %v9077
  %v9079 = vadd.f32 %v9075, %v9078
  %vm9080 = vweird.f32 %v8767
  %vm9081 = vweird.f32 %v9075
  %vm9082 = vmor %vm9080, %vm9081
  %v9083 = vsel %vm9082, %v9075, %v9079
  %v9084 = vand.u32 2147483647, %v8767
  %vm9085 = vcmp.eq.f32.partialorder %v9084, 8.507059e+37
  %v9086 = vand.u32 %v8767, 2147483648
  %v9087 = vor.u32 1.1754944e-38, %v9086
  %v9088 = vsel %vm9085, %v9087, %v9083
  %v9089 = vmul.f32 1.0, %v9088
  %v9090 = vrcp.pop %v8768
  %v9091 = vmul.f32 %v8768, %v9090
  %v9092 = vsub.f32 1.0, %v9091
  %v9093 = vmul.f32 %v9090, %v9092
  %v9094 = vadd.f32 %v9090, %v9093
  %vm9095 = vweird.f32 %v8768
  %vm9096 = vweird.f32 %v9090
  %vm9097 = vmor %vm9095, %vm9096
  %v9098 = vsel %vm9097, %v9090, %v9094
  %v9099 = vand.u32 2147483647, %v8768
  %vm9100 = vcmp.eq.f32.partialorder %v9099, 8.507059e+37
  %v9101 = vand.u32 %v8768, 2147483648
  %v9102 = vor.u32 1.1754944e-38, %v9101
  %v9103 = vsel %vm9100, %v9102, %v9098
  %v9104 = vmul.f32 1.0, %v9103
  %v9105 = vrcp.pop %v8769
  %v9106 = vmul.f32 %v8769, %v9105
  %v9107 = vsub.f32 1.0, %v9106
  %v9108 = vmul.f32 %v9105, %v9107
  %v9109 = vadd.f32 %v9105, %v9108
  %vm9110 = vweird.f32 %v8769
  %vm9111 = vweird.f32 %v9105
  %vm9112 = vmor %vm9110, %vm9111
  %v9113 = vsel %vm9112, %v9105, %v9109
  %v9114 = vand.u32 2147483647, %v8769
  %vm9115 = vcmp.eq.f32.partialorder %v9114, 8.507059e+37
  %v9116 = vand.u32 %v8769, 2147483648
  %v9117 = vor.u32 1.1754944e-38, %v9116
  %v9118 = vsel %vm9115, %v9117, %v9113
  %v9119 = vmul.f32 1.0, %v9118
  %v9120 = vrcp.pop %v8770
  %v9121 = vmul.f32 %v8770, %v9120
  %v9122 = vsub.f32 1.0, %v9121
  %v9123 = vmul.f32 %v9120, %v9122
  %v9124 = vadd.f32 %v9120, %v9123
  %vm9125 = vweird.f32 %v8770
  %vm9126 = vweird.f32 %v9120
  %vm9127 = vmor %vm9125, %vm9126
  %v9128 = vsel %vm9127, %v9120, %v9124
  %v9129 = vand.u32 2147483647, %v8770
  %vm9130 = vcmp.eq.f32.partialorder %v9129, 8.507059e+37
  %v9131 = vand.u32 %v8770, 2147483648
  %v9132 = vor.u32 1.1754944e-38, %v9131
  %v9133 = vsel %vm9130, %v9132, %v9128
  %v9134 = vmul.f32 1.0, %v9133
  %v9135 = vrcp.pop %v8771
  %v9136 = vmul.f32 %v8771, %v9135
  %v9137 = vsub.f32 1.0, %v9136
  %v9138 = vmul.f32 %v9135, %v9137
  %v9139 = vadd.f32 %v9135, %v9138
  %vm9140 = vweird.f32 %v8771
  %vm9141 = vweird.f32 %v9135
  %vm9142 = vmor %vm9140, %vm9141
  %v9143 = vsel %vm9142, %v9135, %v9139
  %v9144 = vand.u32 2147483647, %v8771
  %vm9145 = vcmp.eq.f32.partialorder %v9144, 8.507059e+37
  %v9146 = vand.u32 %v8771, 2147483648
  %v9147 = vor.u32 1.1754944e-38, %v9146
  %v9148 = vsel %vm9145, %v9147, %v9143
  %v9149 = vmul.f32 1.0, %v9148
  %v9150 = vrcp.pop %v8772
  %v9151 = vmul.f32 %v8772, %v9150
  %v9152 = vsub.f32 1.0, %v9151
  %v9153 = vmul.f32 %v9150, %v9152
  %v9154 = vadd.f32 %v9150, %v9153
  %vm9155 = vweird.f32 %v8772
  %vm9156 = vweird.f32 %v9150
  %vm9157 = vmor %vm9155, %vm9156
  %v9158 = vsel %vm9157, %v9150, %v9154
  %v9159 = vand.u32 2147483647, %v8772
  %vm9160 = vcmp.eq.f32.partialorder %v9159, 8.507059e+37
  %v9161 = vand.u32 %v8772, 2147483648
  %v9162 = vor.u32 1.1754944e-38, %v9161
  %v9163 = vsel %vm9160, %v9162, %v9158
  %v9164 = vmul.f32 1.0, %v9163
  %v9165 = vrcp.pop %v8773
  %v9166 = vmul.f32 %v8773, %v9165
  %v9167 = vsub.f32 1.0, %v9166
  %v9168 = vmul.f32 %v9165, %v9167
  %v9169 = vadd.f32 %v9165, %v9168
  %vm9170 = vweird.f32 %v8773
  %vm9171 = vweird.f32 %v9165
  %vm9172 = vmor %vm9170, %vm9171
  %v9173 = vsel %vm9172, %v9165, %v9169
  %v9174 = vand.u32 2147483647, %v8773
  %vm9175 = vcmp.eq.f32.partialorder %v9174, 8.507059e+37
  %v9176 = vand.u32 %v8773, 2147483648
  %v9177 = vor.u32 1.1754944e-38, %v9176
  %v9178 = vsel %vm9175, %v9177, %v9173
  %v9179 = vmul.f32 1.0, %v9178
  %v9180 = vrcp.pop %v8774
  %v9181 = vmul.f32 %v8774, %v9180
  %v9182 = vsub.f32 1.0, %v9181
  %v9183 = vmul.f32 %v9180, %v9182
  %v9184 = vadd.f32 %v9180, %v9183
  %vm9185 = vweird.f32 %v8774
  %vm9186 = vweird.f32 %v9180
  %vm9187 = vmor %vm9185, %vm9186
  %v9188 = vsel %vm9187, %v9180, %v9184
  %v9189 = vand.u32 2147483647, %v8774
  %vm9190 = vcmp.eq.f32.partialorder %v9189, 8.507059e+37
  %v9191 = vand.u32 %v8774, 2147483648
  %v9192 = vor.u32 1.1754944e-38, %v9191
  %v9193 = vsel %vm9190, %v9192, %v9188
  %v9194 = vmul.f32 1.0, %v9193
  %v9195 = vrcp.pop %v8775
  %v9196 = vmul.f32 %v8775, %v9195
  %v9197 = vsub.f32 1.0, %v9196
  %v9198 = vmul.f32 %v9195, %v9197
  %v9199 = vadd.f32 %v9195, %v9198
  %vm9200 = vweird.f32 %v8775
  %vm9201 = vweird.f32 %v9195
  %vm9202 = vmor %vm9200, %vm9201
  %v9203 = vsel %vm9202, %v9195, %v9199
  %v9204 = vand.u32 2147483647, %v8775
  %vm9205 = vcmp.eq.f32.partialorder %v9204, 8.507059e+37
  %v9206 = vand.u32 %v8775, 2147483648
  %v9207 = vor.u32 1.1754944e-38, %v9206
  %v9208 = vsel %vm9205, %v9207, %v9203
  %v9209 = vmul.f32 1.0, %v9208
  %v9210 = vrcp.pop %v8776
  %v9211 = vmul.f32 %v8776, %v9210
  %v9212 = vsub.f32 1.0, %v9211
  %v9213 = vmul.f32 %v9210, %v9212
  %v9214 = vadd.f32 %v9210, %v9213
  %vm9215 = vweird.f32 %v8776
  %vm9216 = vweird.f32 %v9210
  %vm9217 = vmor %vm9215, %vm9216
  %v9218 = vsel %vm9217, %v9210, %v9214
  %v9219 = vand.u32 2147483647, %v8776
  %vm9220 = vcmp.eq.f32.partialorder %v9219, 8.507059e+37
  %v9221 = vand.u32 %v8776, 2147483648
  %v9222 = vor.u32 1.1754944e-38, %v9221
  %v9223 = vsel %vm9220, %v9222, %v9218
  %v9224 = vmul.f32 1.0, %v9223
  %v9225 = vrcp.pop %v8777
  %v9226 = vmul.f32 %v8777, %v9225
  %v9227 = vsub.f32 1.0, %v9226
  %v9228 = vmul.f32 %v9225, %v9227
  %v9229 = vadd.f32 %v9225, %v9228
  %vm9230 = vweird.f32 %v8777
  %vm9231 = vweird.f32 %v9225
  %vm9232 = vmor %vm9230, %vm9231
  %v9233 = vsel %vm9232, %v9225, %v9229
  %v9234 = vand.u32 2147483647, %v8777
  %vm9235 = vcmp.eq.f32.partialorder %v9234, 8.507059e+37
  %v9236 = vand.u32 %v8777, 2147483648
  %v9237 = vor.u32 1.1754944e-38, %v9236
  %v9238 = vsel %vm9235, %v9237, %v9233
  %v9239 = vmul.f32 1.0, %v9238
  %v9240 = vrcp.pop %v8778
  %v9241 = vmul.f32 %v8778, %v9240
  %v9242 = vsub.f32 1.0, %v9241
  %v9243 = vmul.f32 %v9240, %v9242
  %v9244 = vadd.f32 %v9240, %v9243
  %vm9245 = vweird.f32 %v8778
  %vm9246 = vweird.f32 %v9240
  %vm9247 = vmor %vm9245, %vm9246
  %v9248 = vsel %vm9247, %v9240, %v9244
  %v9249 = vand.u32 2147483647, %v8778
  %vm9250 = vcmp.eq.f32.partialorder %v9249, 8.507059e+37
  %v9251 = vand.u32 %v8778, 2147483648
  %v9252 = vor.u32 1.1754944e-38, %v9251
  %v9253 = vsel %vm9250, %v9252, %v9248
  %v9254 = vmul.f32 1.0, %v9253
  %v9255 = vrcp.pop %v8779
  %v9256 = vmul.f32 %v8779, %v9255
  %v9257 = vsub.f32 1.0, %v9256
  %v9258 = vmul.f32 %v9255, %v9257
  %v9259 = vadd.f32 %v9255, %v9258
  %vm9260 = vweird.f32 %v8779
  %vm9261 = vweird.f32 %v9255
  %vm9262 = vmor %vm9260, %vm9261
  %v9263 = vsel %vm9262, %v9255, %v9259
  %v9264 = vand.u32 2147483647, %v8779
  %vm9265 = vcmp.eq.f32.partialorder %v9264, 8.507059e+37
  %v9266 = vand.u32 %v8779, 2147483648
  %v9267 = vor.u32 1.1754944e-38, %v9266
  %v9268 = vsel %vm9265, %v9267, %v9263
  %v9269 = vmul.f32 1.0, %v9268
  %v9270 = vrcp.pop %v8780
  %v9271 = vmul.f32 %v8780, %v9270
  %v9272 = vsub.f32 1.0, %v9271
  %v9273 = vmul.f32 %v9270, %v9272
  %v9274 = vadd.f32 %v9270, %v9273
  %vm9275 = vweird.f32 %v8780
  %vm9276 = vweird.f32 %v9270
  %vm9277 = vmor %vm9275, %vm9276
  %v9278 = vsel %vm9277, %v9270, %v9274
  %v9279 = vand.u32 2147483647, %v8780
  %vm9280 = vcmp.eq.f32.partialorder %v9279, 8.507059e+37
  %v9281 = vand.u32 %v8780, 2147483648
  %v9282 = vor.u32 1.1754944e-38, %v9281
  %v9283 = vsel %vm9280, %v9282, %v9278
  %v9284 = vmul.f32 1.0, %v9283
  %v9285 = vrcp.pop %v8781
  %v9286 = vmul.f32 %v8781, %v9285
  %v9287 = vsub.f32 1.0, %v9286
  %v9288 = vmul.f32 %v9285, %v9287
  %v9289 = vadd.f32 %v9285, %v9288
  %vm9290 = vweird.f32 %v8781
  %vm9291 = vweird.f32 %v9285
  %vm9292 = vmor %vm9290, %vm9291
  %v9293 = vsel %vm9292, %v9285, %v9289
  %v9294 = vand.u32 2147483647, %v8781
  %vm9295 = vcmp.eq.f32.partialorder %v9294, 8.507059e+37
  %v9296 = vand.u32 %v8781, 2147483648
  %v9297 = vor.u32 1.1754944e-38, %v9296
  %v9298 = vsel %vm9295, %v9297, %v9293
  %v9299 = vmul.f32 1.0, %v9298
  %v9300 = vrcp.pop %v8782
  %v9301 = vmul.f32 %v8782, %v9300
  %v9302 = vsub.f32 1.0, %v9301
  %v9303 = vmul.f32 %v9300, %v9302
  %v9304 = vadd.f32 %v9300, %v9303
  %vm9305 = vweird.f32 %v8782
  %vm9306 = vweird.f32 %v9300
  %vm9307 = vmor %vm9305, %vm9306
  %v9308 = vsel %vm9307, %v9300, %v9304
  %v9309 = vand.u32 2147483647, %v8782
  %vm9310 = vcmp.eq.f32.partialorder %v9309, 8.507059e+37
  %v9311 = vand.u32 %v8782, 2147483648
  %v9312 = vor.u32 1.1754944e-38, %v9311
  %v9313 = vsel %vm9310, %v9312, %v9308
  %v9314 = vmul.f32 1.0, %v9313
  %v9315 = vrcp.pop %v8783
  %v9316 = vmul.f32 %v8783, %v9315
  %v9317 = vsub.f32 1.0, %v9316
  %v9318 = vmul.f32 %v9315, %v9317
  %v9319 = vadd.f32 %v9315, %v9318
  %vm9320 = vweird.f32 %v8783
  %vm9321 = vweird.f32 %v9315
  %vm9322 = vmor %vm9320, %vm9321
  %v9323 = vsel %vm9322, %v9315, %v9319
  %v9324 = vand.u32 2147483647, %v8783
  %vm9325 = vcmp.eq.f32.partialorder %v9324, 8.507059e+37
  %v9326 = vand.u32 %v8783, 2147483648
  %v9327 = vor.u32 1.1754944e-38, %v9326
  %v9328 = vsel %vm9325, %v9327, %v9323
  %v9329 = vmul.f32 1.0, %v9328
  %v9330 = vrcp.pop %v8784
  %v9331 = vmul.f32 %v8784, %v9330
  %v9332 = vsub.f32 1.0, %v9331
  %v9333 = vmul.f32 %v9330, %v9332
  %v9334 = vadd.f32 %v9330, %v9333
  %vm9335 = vweird.f32 %v8784
  %vm9336 = vweird.f32 %v9330
  %vm9337 = vmor %vm9335, %vm9336
  %v9338 = vsel %vm9337, %v9330, %v9334
  %v9339 = vand.u32 2147483647, %v8784
  %vm9340 = vcmp.eq.f32.partialorder %v9339, 8.507059e+37
  %v9341 = vand.u32 %v8784, 2147483648
  %v9342 = vor.u32 1.1754944e-38, %v9341
  %v9343 = vsel %vm9340, %v9342, %v9338
  %v9344 = vmul.f32 1.0, %v9343
  %v9345 = vrcp.pop %v8785
  %v9346 = vmul.f32 %v8785, %v9345
  %v9347 = vsub.f32 1.0, %v9346
  %v9348 = vmul.f32 %v9345, %v9347
  %v9349 = vadd.f32 %v9345, %v9348
  %vm9350 = vweird.f32 %v8785
  %vm9351 = vweird.f32 %v9345
  %vm9352 = vmor %vm9350, %vm9351
  %v9353 = vsel %vm9352, %v9345, %v9349
  %v9354 = vand.u32 2147483647, %v8785
  %vm9355 = vcmp.eq.f32.partialorder %v9354, 8.507059e+37
  %v9356 = vand.u32 %v8785, 2147483648
  %v9357 = vor.u32 1.1754944e-38, %v9356
  %v9358 = vsel %vm9355, %v9357, %v9353
  %v9359 = vmul.f32 1.0, %v9358
  %v9360 = vrcp.pop %v8786
  %v9361 = vmul.f32 %v8786, %v9360
  %v9362 = vsub.f32 1.0, %v9361
  %v9363 = vmul.f32 %v9360, %v9362
  %v9364 = vadd.f32 %v9360, %v9363
  %vm9365 = vweird.f32 %v8786
  %vm9366 = vweird.f32 %v9360
  %vm9367 = vmor %vm9365, %vm9366
  %v9368 = vsel %vm9367, %v9360, %v9364
  %v9369 = vand.u32 2147483647, %v8786
  %vm9370 = vcmp.eq.f32.partialorder %v9369, 8.507059e+37
  %v9371 = vand.u32 %v8786, 2147483648
  %v9372 = vor.u32 1.1754944e-38, %v9371
  %v9373 = vsel %vm9370, %v9372, %v9368
  %v9374 = vmul.f32 1.0, %v9373
  %v9375 = vrcp.pop %v8787
  %v9376 = vmul.f32 %v8787, %v9375
  %v9377 = vsub.f32 1.0, %v9376
  %v9378 = vmul.f32 %v9375, %v9377
  %v9379 = vadd.f32 %v9375, %v9378
  %vm9380 = vweird.f32 %v8787
  %vm9381 = vweird.f32 %v9375
  %vm9382 = vmor %vm9380, %vm9381
  %v9383 = vsel %vm9382, %v9375, %v9379
  %v9384 = vand.u32 2147483647, %v8787
  %vm9385 = vcmp.eq.f32.partialorder %v9384, 8.507059e+37
  %v9386 = vand.u32 %v8787, 2147483648
  %v9387 = vor.u32 1.1754944e-38, %v9386
  %v9388 = vsel %vm9385, %v9387, %v9383
  %v9389 = vmul.f32 1.0, %v9388
  %v9390 = vrcp.pop %v8788
  %v9391 = vmul.f32 %v8788, %v9390
  %v9392 = vsub.f32 1.0, %v9391
  %v9393 = vmul.f32 %v9390, %v9392
  %v9394 = vadd.f32 %v9390, %v9393
  %vm9395 = vweird.f32 %v8788
  %vm9396 = vweird.f32 %v9390
  %vm9397 = vmor %vm9395, %vm9396
  %v9398 = vsel %vm9397, %v9390, %v9394
  %v9399 = vand.u32 2147483647, %v8788
  %vm9400 = vcmp.eq.f32.partialorder %v9399, 8.507059e+37
  %v9401 = vand.u32 %v8788, 2147483648
  %v9402 = vor.u32 1.1754944e-38, %v9401
  %v9403 = vsel %vm9400, %v9402, %v9398
  %v9404 = vmul.f32 1.0, %v9403
  %v9405 = vrcp.pop %v8789
  %v9406 = vmul.f32 %v8789, %v9405
  %v9407 = vsub.f32 1.0, %v9406
  %v9408 = vmul.f32 %v9405, %v9407
  %v9409 = vadd.f32 %v9405, %v9408
  %vm9410 = vweird.f32 %v8789
  %vm9411 = vweird.f32 %v9405
  %vm9412 = vmor %vm9410, %vm9411
  %v9413 = vsel %vm9412, %v9405, %v9409
  %v9414 = vand.u32 2147483647, %v8789
  %vm9415 = vcmp.eq.f32.partialorder %v9414, 8.507059e+37
  %v9416 = vand.u32 %v8789, 2147483648
  %v9417 = vor.u32 1.1754944e-38, %v9416
  %v9418 = vsel %vm9415, %v9417, %v9413
  %v9419 = vmul.f32 1.0, %v9418
  %v9420 = vrcp.pop %v8790
  %v9421 = vmul.f32 %v8790, %v9420
  %v9422 = vsub.f32 1.0, %v9421
  %v9423 = vmul.f32 %v9420, %v9422
  %v9424 = vadd.f32 %v9420, %v9423
  %vm9425 = vweird.f32 %v8790
  %vm9426 = vweird.f32 %v9420
  %vm9427 = vmor %vm9425, %vm9426
  %v9428 = vsel %vm9427, %v9420, %v9424
  %v9429 = vand.u32 2147483647, %v8790
  %vm9430 = vcmp.eq.f32.partialorder %v9429, 8.507059e+37
  %v9431 = vand.u32 %v8790, 2147483648
  %v9432 = vor.u32 1.1754944e-38, %v9431
  %v9433 = vsel %vm9430, %v9432, %v9428
  %v9434 = vmul.f32 1.0, %v9433
  %v9435 = vrcp.pop %v8791
  %v9436 = vmul.f32 %v8791, %v9435
  %v9437 = vsub.f32 1.0, %v9436
  %v9438 = vmul.f32 %v9435, %v9437
  %v9439 = vadd.f32 %v9435, %v9438
  %vm9440 = vweird.f32 %v8791
  %vm9441 = vweird.f32 %v9435
  %vm9442 = vmor %vm9440, %vm9441
  %v9443 = vsel %vm9442, %v9435, %v9439
  %v9444 = vand.u32 2147483647, %v8791
  %vm9445 = vcmp.eq.f32.partialorder %v9444, 8.507059e+37
  %v9446 = vand.u32 %v8791, 2147483648
  %v9447 = vor.u32 1.1754944e-38, %v9446
  %v9448 = vsel %vm9445, %v9447, %v9443
  %v9449 = vmul.f32 1.0, %v9448
  %v9450 = vrcp.pop %v8792
  %v9451 = vmul.f32 %v8792, %v9450
  %v9452 = vsub.f32 1.0, %v9451
  %v9453 = vmul.f32 %v9450, %v9452
  %v9454 = vadd.f32 %v9450, %v9453
  %vm9455 = vweird.f32 %v8792
  %vm9456 = vweird.f32 %v9450
  %vm9457 = vmor %vm9455, %vm9456
  %v9458 = vsel %vm9457, %v9450, %v9454
  %v9459 = vand.u32 2147483647, %v8792
  %vm9460 = vcmp.eq.f32.partialorder %v9459, 8.507059e+37
  %v9461 = vand.u32 %v8792, 2147483648
  %v9462 = vor.u32 1.1754944e-38, %v9461
  %v9463 = vsel %vm9460, %v9462, %v9458
  %v9464 = vmul.f32 1.0, %v9463
  %v9465 = vrcp.pop %v8793
  %v9466 = vmul.f32 %v8793, %v9465
  %v9467 = vsub.f32 1.0, %v9466
  %v9468 = vmul.f32 %v9465, %v9467
  %v9469 = vadd.f32 %v9465, %v9468
  %vm9470 = vweird.f32 %v8793
  %vm9471 = vweird.f32 %v9465
  %vm9472 = vmor %vm9470, %vm9471
  %v9473 = vsel %vm9472, %v9465, %v9469
  %v9474 = vand.u32 2147483647, %v8793
  %vm9475 = vcmp.eq.f32.partialorder %v9474, 8.507059e+37
  %v9476 = vand.u32 %v8793, 2147483648
  %v9477 = vor.u32 1.1754944e-38, %v9476
  %v9478 = vsel %vm9475, %v9477, %v9473
  %v9479 = vmul.f32 1.0, %v9478
  %v9480 = vrcp.pop %v8794
  %v9481 = vmul.f32 %v8794, %v9480
  %v9482 = vsub.f32 1.0, %v9481
  %v9483 = vmul.f32 %v9480, %v9482
  %v9484 = vadd.f32 %v9480, %v9483
  %vm9485 = vweird.f32 %v8794
  %vm9486 = vweird.f32 %v9480
  %vm9487 = vmor %vm9485, %vm9486
  %v9488 = vsel %vm9487, %v9480, %v9484
  %v9489 = vand.u32 2147483647, %v8794
  %vm9490 = vcmp.eq.f32.partialorder %v9489, 8.507059e+37
  %v9491 = vand.u32 %v8794, 2147483648
  %v9492 = vor.u32 1.1754944e-38, %v9491
  %v9493 = vsel %vm9490, %v9492, %v9488
  %v9494 = vmul.f32 1.0, %v9493
  %v9495 = vrcp.pop %v8795
  %v9496 = vmul.f32 %v8795, %v9495
  %v9497 = vsub.f32 1.0, %v9496
  %v9498 = vmul.f32 %v9495, %v9497
  %v9499 = vadd.f32 %v9495, %v9498
  %vm9500 = vweird.f32 %v8795
  %vm9501 = vweird.f32 %v9495
  %vm9502 = vmor %vm9500, %vm9501
  %v9503 = vsel %vm9502, %v9495, %v9499
  %v9504 = vand.u32 2147483647, %v8795
  %vm9505 = vcmp.eq.f32.partialorder %v9504, 8.507059e+37
  %v9506 = vand.u32 %v8795, 2147483648
  %v9507 = vor.u32 1.1754944e-38, %v9506
  %v9508 = vsel %vm9505, %v9507, %v9503
  %v9509 = vmul.f32 1.0, %v9508
  %v9510 = vrcp.pop %v8796
  %v9511 = vmul.f32 %v8796, %v9510
  %v9512 = vsub.f32 1.0, %v9511
  %v9513 = vmul.f32 %v9510, %v9512
  %v9514 = vadd.f32 %v9510, %v9513
  %vm9515 = vweird.f32 %v8796
  %vm9516 = vweird.f32 %v9510
  %vm9517 = vmor %vm9515, %vm9516
  %v9518 = vsel %vm9517, %v9510, %v9514
  %v9519 = vand.u32 2147483647, %v8796
  %vm9520 = vcmp.eq.f32.partialorder %v9519, 8.507059e+37
  %v9521 = vand.u32 %v8796, 2147483648
  %v9522 = vor.u32 1.1754944e-38, %v9521
  %v9523 = vsel %vm9520, %v9522, %v9518
  %v9524 = vmul.f32 1.0, %v9523
  %v9525 = vrcp.pop %v8797
  %v9526 = vmul.f32 %v8797, %v9525
  %v9527 = vsub.f32 1.0, %v9526
  %v9528 = vmul.f32 %v9525, %v9527
  %v9529 = vadd.f32 %v9525, %v9528
  %vm9530 = vweird.f32 %v8797
  %vm9531 = vweird.f32 %v9525
  %vm9532 = vmor %vm9530, %vm9531
  %v9533 = vsel %vm9532, %v9525, %v9529
  %v9534 = vand.u32 2147483647, %v8797
  %vm9535 = vcmp.eq.f32.partialorder %v9534, 8.507059e+37
  %v9536 = vand.u32 %v8797, 2147483648
  %v9537 = vor.u32 1.1754944e-38, %v9536
  %v9538 = vsel %vm9535, %v9537, %v9533
  %v9539 = vmul.f32 1.0, %v9538
  %v9540 = vrcp.pop %v8798
  %v9541 = vmul.f32 %v8798, %v9540
  %v9542 = vsub.f32 1.0, %v9541
  %v9543 = vmul.f32 %v9540, %v9542
  %v9544 = vadd.f32 %v9540, %v9543
  %vm9545 = vweird.f32 %v8798
  %vm9546 = vweird.f32 %v9540
  %vm9547 = vmor %vm9545, %vm9546
  %v9548 = vsel %vm9547, %v9540, %v9544
  %v9549 = vand.u32 2147483647, %v8798
  %vm9550 = vcmp.eq.f32.partialorder %v9549, 8.507059e+37
  %v9551 = vand.u32 %v8798, 2147483648
  %v9552 = vor.u32 1.1754944e-38, %v9551
  %v9553 = vsel %vm9550, %v9552, %v9548
  %v9554 = vmul.f32 1.0, %v9553
  %v9555 = vrcp.pop %v8799
  %v9556 = vmul.f32 %v8799, %v9555
  %v9557 = vsub.f32 1.0, %v9556
  %v9558 = vmul.f32 %v9555, %v9557
  %v9559 = vadd.f32 %v9555, %v9558
  %vm9560 = vweird.f32 %v8799
  %vm9561 = vweird.f32 %v9555
  %vm9562 = vmor %vm9560, %vm9561
  %v9563 = vsel %vm9562, %v9555, %v9559
  %v9564 = vand.u32 2147483647, %v8799
  %vm9565 = vcmp.eq.f32.partialorder %v9564, 8.507059e+37
  %v9566 = vand.u32 %v8799, 2147483648
  %v9567 = vor.u32 1.1754944e-38, %v9566
  %v9568 = vsel %vm9565, %v9567, %v9563
  %v9569 = vmul.f32 1.0, %v9568
  %v9570 = vrcp.pop %v8800
  %v9571 = vmul.f32 %v8800, %v9570
  %v9572 = vsub.f32 1.0, %v9571
  %v9573 = vmul.f32 %v9570, %v9572
  %v9574 = vadd.f32 %v9570, %v9573
  %vm9575 = vweird.f32 %v8800
  %vm9576 = vweird.f32 %v9570
  %vm9577 = vmor %vm9575, %vm9576
  %v9578 = vsel %vm9577, %v9570, %v9574
  %v9579 = vand.u32 2147483647, %v8800
  %vm9580 = vcmp.eq.f32.partialorder %v9579, 8.507059e+37
  %v9581 = vand.u32 %v8800, 2147483648
  %v9582 = vor.u32 1.1754944e-38, %v9581
  %v9583 = vsel %vm9580, %v9582, %v9578
  %v9584 = vmul.f32 1.0, %v9583
  %v9585 = vrcp.pop %v8801
  %v9586 = vmul.f32 %v8801, %v9585
  %v9587 = vsub.f32 1.0, %v9586
  %v9588 = vmul.f32 %v9585, %v9587
  %v9589 = vadd.f32 %v9585, %v9588
  %vm9590 = vweird.f32 %v8801
  %vm9591 = vweird.f32 %v9585
  %vm9592 = vmor %vm9590, %vm9591
  %v9593 = vsel %vm9592, %v9585, %v9589
  %v9594 = vand.u32 2147483647, %v8801
  %vm9595 = vcmp.eq.f32.partialorder %v9594, 8.507059e+37
  %v9596 = vand.u32 %v8801, 2147483648
  %v9597 = vor.u32 1.1754944e-38, %v9596
  %v9598 = vsel %vm9595, %v9597, %v9593
  %v9599 = vmul.f32 1.0, %v9598
  %v9600 = vrcp.pop %v8802
  %v9601 = vmul.f32 %v8802, %v9600
  %v9602 = vsub.f32 1.0, %v9601
  %v9603 = vmul.f32 %v9600, %v9602
  %v9604 = vadd.f32 %v9600, %v9603
  %vm9605 = vweird.f32 %v8802
  %vm9606 = vweird.f32 %v9600
  %vm9607 = vmor %vm9605, %vm9606
  %v9608 = vsel %vm9607, %v9600, %v9604
  %v9609 = vand.u32 2147483647, %v8802
  %vm9610 = vcmp.eq.f32.partialorder %v9609, 8.507059e+37
  %v9611 = vand.u32 %v8802, 2147483648
  %v9612 = vor.u32 1.1754944e-38, %v9611
  %v9613 = vsel %vm9610, %v9612, %v9608
  %v9614 = vmul.f32 1.0, %v9613
  %v9615 = vrcp.pop %v8803
  %v9616 = vmul.f32 %v8803, %v9615
  %v9617 = vsub.f32 1.0, %v9616
  %v9618 = vmul.f32 %v9615, %v9617
  %v9619 = vadd.f32 %v9615, %v9618
  %vm9620 = vweird.f32 %v8803
  %vm9621 = vweird.f32 %v9615
  %vm9622 = vmor %vm9620, %vm9621
  %v9623 = vsel %vm9622, %v9615, %v9619
  %v9624 = vand.u32 2147483647, %v8803
  %vm9625 = vcmp.eq.f32.partialorder %v9624, 8.507059e+37
  %v9626 = vand.u32 %v8803, 2147483648
  %v9627 = vor.u32 1.1754944e-38, %v9626
  %v9628 = vsel %vm9625, %v9627, %v9623
  %v9629 = vmul.f32 1.0, %v9628
  %v9630 = vrcp.pop %v8804
  %v9631 = vmul.f32 %v8804, %v9630
  %v9632 = vsub.f32 1.0, %v9631
  %v9633 = vmul.f32 %v9630, %v9632
  %v9634 = vadd.f32 %v9630, %v9633
  %vm9635 = vweird.f32 %v8804
  %vm9636 = vweird.f32 %v9630
  %vm9637 = vmor %vm9635, %vm9636
  %v9638 = vsel %vm9637, %v9630, %v9634
  %v9639 = vand.u32 2147483647, %v8804
  %vm9640 = vcmp.eq.f32.partialorder %v9639, 8.507059e+37
  %v9641 = vand.u32 %v8804, 2147483648
  %v9642 = vor.u32 1.1754944e-38, %v9641
  %v9643 = vsel %vm9640, %v9642, %v9638
  %v9644 = vmul.f32 1.0, %v9643
  %v9645 = vrcp.pop %v8805
  %v9646 = vmul.f32 %v8805, %v9645
  %v9647 = vsub.f32 1.0, %v9646
  %v9648 = vmul.f32 %v9645, %v9647
  %v9649 = vadd.f32 %v9645, %v9648
  %vm9650 = vweird.f32 %v8805
  %vm9651 = vweird.f32 %v9645
  %vm9652 = vmor %vm9650, %vm9651
  %v9653 = vsel %vm9652, %v9645, %v9649
  %v9654 = vand.u32 2147483647, %v8805
  %vm9655 = vcmp.eq.f32.partialorder %v9654, 8.507059e+37
  %v9656 = vand.u32 %v8805, 2147483648
  %v9657 = vor.u32 1.1754944e-38, %v9656
  %v9658 = vsel %vm9655, %v9657, %v9653
  %v9659 = vmul.f32 1.0, %v9658
  %v9660 = vrcp.pop %v8806
  %v9661 = vmul.f32 %v8806, %v9660
  %v9662 = vsub.f32 1.0, %v9661
  %v9663 = vmul.f32 %v9660, %v9662
  %v9664 = vadd.f32 %v9660, %v9663
  %vm9665 = vweird.f32 %v8806
  %vm9666 = vweird.f32 %v9660
  %vm9667 = vmor %vm9665, %vm9666
  %v9668 = vsel %vm9667, %v9660, %v9664
  %v9669 = vand.u32 2147483647, %v8806
  %vm9670 = vcmp.eq.f32.partialorder %v9669, 8.507059e+37
  %v9671 = vand.u32 %v8806, 2147483648
  %v9672 = vor.u32 1.1754944e-38, %v9671
  %v9673 = vsel %vm9670, %v9672, %v9668
  %v9674 = vmul.f32 1.0, %v9673
  %v9675 = vrcp.pop %v8807
  %v9676 = vmul.f32 %v8807, %v9675
  %v9677 = vsub.f32 1.0, %v9676
  %v9678 = vmul.f32 %v9675, %v9677
  %v9679 = vadd.f32 %v9675, %v9678
  %vm9680 = vweird.f32 %v8807
  %vm9681 = vweird.f32 %v9675
  %vm9682 = vmor %vm9680, %vm9681
  %v9683 = vsel %vm9682, %v9675, %v9679
  %v9684 = vand.u32 2147483647, %v8807
  %vm9685 = vcmp.eq.f32.partialorder %v9684, 8.507059e+37
  %v9686 = vand.u32 %v8807, 2147483648
  %v9687 = vor.u32 1.1754944e-38, %v9686
  %v9688 = vsel %vm9685, %v9687, %v9683
  %v9689 = vmul.f32 1.0, %v9688
  %v9690 = vrcp.pop %v8808
  %v9691 = vmul.f32 %v8808, %v9690
  %v9692 = vsub.f32 1.0, %v9691
  %v9693 = vmul.f32 %v9690, %v9692
  %v9694 = vadd.f32 %v9690, %v9693
  %vm9695 = vweird.f32 %v8808
  %vm9696 = vweird.f32 %v9690
  %vm9697 = vmor %vm9695, %vm9696
  %v9698 = vsel %vm9697, %v9690, %v9694
  %v9699 = vand.u32 2147483647, %v8808
  %vm9700 = vcmp.eq.f32.partialorder %v9699, 8.507059e+37
  %v9701 = vand.u32 %v8808, 2147483648
  %v9702 = vor.u32 1.1754944e-38, %v9701
  %v9703 = vsel %vm9700, %v9702, %v9698
  %v9704 = vmul.f32 1.0, %v9703
  %v9705 = vrcp.pop %v8809
  %v9706 = vmul.f32 %v8809, %v9705
  %v9707 = vsub.f32 1.0, %v9706
  %v9708 = vmul.f32 %v9705, %v9707
  %v9709 = vadd.f32 %v9705, %v9708
  %vm9710 = vweird.f32 %v8809
  %vm9711 = vweird.f32 %v9705
  %vm9712 = vmor %vm9710, %vm9711
  %v9713 = vsel %vm9712, %v9705, %v9709
  %v9714 = vand.u32 2147483647, %v8809
  %vm9715 = vcmp.eq.f32.partialorder %v9714, 8.507059e+37
  %v9716 = vand.u32 %v8809, 2147483648
  %v9717 = vor.u32 1.1754944e-38, %v9716
  %v9718 = vsel %vm9715, %v9717, %v9713
  %v9719 = vmul.f32 1.0, %v9718
  %v9720 = vrcp.pop %v8810
  %v9721 = vmul.f32 %v8810, %v9720
  %v9722 = vsub.f32 1.0, %v9721
  %v9723 = vmul.f32 %v9720, %v9722
  %v9724 = vadd.f32 %v9720, %v9723
  %vm9725 = vweird.f32 %v8810
  %vm9726 = vweird.f32 %v9720
  %vm9727 = vmor %vm9725, %vm9726
  %v9728 = vsel %vm9727, %v9720, %v9724
  %v9729 = vand.u32 2147483647, %v8810
  %vm9730 = vcmp.eq.f32.partialorder %v9729, 8.507059e+37
  %v9731 = vand.u32 %v8810, 2147483648
  %v9732 = vor.u32 1.1754944e-38, %v9731
  %v9733 = vsel %vm9730, %v9732, %v9728
  %v9734 = vmul.f32 1.0, %v9733
  %v9735 = vrcp.pop %v8811
  %v9736 = vmul.f32 %v8811, %v9735
  %v9737 = vsub.f32 1.0, %v9736
  %v9738 = vmul.f32 %v9735, %v9737
  %v9739 = vadd.f32 %v9735, %v9738
  %vm9740 = vweird.f32 %v8811
  %vm9741 = vweird.f32 %v9735
  %vm9742 = vmor %vm9740, %vm9741
  %v9743 = vsel %vm9742, %v9735, %v9739
  %v9744 = vand.u32 2147483647, %v8811
  %vm9745 = vcmp.eq.f32.partialorder %v9744, 8.507059e+37
  %v9746 = vand.u32 %v8811, 2147483648
  %v9747 = vor.u32 1.1754944e-38, %v9746
  %v9748 = vsel %vm9745, %v9747, %v9743
  %v9749 = vmul.f32 1.0, %v9748
  %v9750 = vrcp.pop %v8812
  %v9751 = vmul.f32 %v8812, %v9750
  %v9752 = vsub.f32 1.0, %v9751
  %v9753 = vmul.f32 %v9750, %v9752
  %v9754 = vadd.f32 %v9750, %v9753
  %vm9755 = vweird.f32 %v8812
  %vm9756 = vweird.f32 %v9750
  %vm9757 = vmor %vm9755, %vm9756
  %v9758 = vsel %vm9757, %v9750, %v9754
  %v9759 = vand.u32 2147483647, %v8812
  %vm9760 = vcmp.eq.f32.partialorder %v9759, 8.507059e+37
  %v9761 = vand.u32 %v8812, 2147483648
  %v9762 = vor.u32 1.1754944e-38, %v9761
  %v9763 = vsel %vm9760, %v9762, %v9758
  %v9764 = vmul.f32 1.0, %v9763
  %v9765 = vrcp.pop %v8813
  %v9766 = vmul.f32 %v8813, %v9765
  %v9767 = vsub.f32 1.0, %v9766
  %v9768 = vmul.f32 %v9765, %v9767
  %v9769 = vadd.f32 %v9765, %v9768
  %vm9770 = vweird.f32 %v8813
  %vm9771 = vweird.f32 %v9765
  %vm9772 = vmor %vm9770, %vm9771
  %v9773 = vsel %vm9772, %v9765, %v9769
  %v9774 = vand.u32 2147483647, %v8813
  %vm9775 = vcmp.eq.f32.partialorder %v9774, 8.507059e+37
  %v9776 = vand.u32 %v8813, 2147483648
  %v9777 = vor.u32 1.1754944e-38, %v9776
  %v9778 = vsel %vm9775, %v9777, %v9773
  %v9779 = vmul.f32 1.0, %v9778
  %v9780 = vrcp.pop %v8814
  %v9781 = vmul.f32 %v8814, %v9780
  %v9782 = vsub.f32 1.0, %v9781
  %v9783 = vmul.f32 %v9780, %v9782
  %v9784 = vadd.f32 %v9780, %v9783
  %vm9785 = vweird.f32 %v8814
  %vm9786 = vweird.f32 %v9780
  %vm9787 = vmor %vm9785, %vm9786
  %v9788 = vsel %vm9787, %v9780, %v9784
  %v9789 = vand.u32 2147483647, %v8814
  %vm9790 = vcmp.eq.f32.partialorder %v9789, 8.507059e+37
  %v9791 = vand.u32 %v8814, 2147483648
  %v9792 = vor.u32 1.1754944e-38, %v9791
  %v9793 = vsel %vm9790, %v9792, %v9788
  %v9794 = vmul.f32 1.0, %v9793
  %v9795 = vrcp.pop %v8815
  %v9796 = vmul.f32 %v8815, %v9795
  %v9797 = vsub.f32 1.0, %v9796
  %v9798 = vmul.f32 %v9795, %v9797
  %v9799 = vadd.f32 %v9795, %v9798
  %vm9800 = vweird.f32 %v8815
  %vm9801 = vweird.f32 %v9795
  %vm9802 = vmor %vm9800, %vm9801
  %v9803 = vsel %vm9802, %v9795, %v9799
  %v9804 = vand.u32 2147483647, %v8815
  %vm9805 = vcmp.eq.f32.partialorder %v9804, 8.507059e+37
  %v9806 = vand.u32 %v8815, 2147483648
  %v9807 = vor.u32 1.1754944e-38, %v9806
  %v9808 = vsel %vm9805, %v9807, %v9803
  %v9809 = vmul.f32 1.0, %v9808
  %v9810 = vrcp.pop %v8816
  %v9811 = vmul.f32 %v8816, %v9810
  %v9812 = vsub.f32 1.0, %v9811
  %v9813 = vmul.f32 %v9810, %v9812
  %v9814 = vadd.f32 %v9810, %v9813
  %vm9815 = vweird.f32 %v8816
  %vm9816 = vweird.f32 %v9810
  %vm9817 = vmor %vm9815, %vm9816
  %v9818 = vsel %vm9817, %v9810, %v9814
  %v9819 = vand.u32 2147483647, %v8816
  %vm9820 = vcmp.eq.f32.partialorder %v9819, 8.507059e+37
  %v9821 = vand.u32 %v8816, 2147483648
  %v9822 = vor.u32 1.1754944e-38, %v9821
  %v9823 = vsel %vm9820, %v9822, %v9818
  %v9824 = vmul.f32 1.0, %v9823
  %v9825 = vrcp.pop %v8817
  %v9826 = vmul.f32 %v8817, %v9825
  %v9827 = vsub.f32 1.0, %v9826
  %v9828 = vmul.f32 %v9825, %v9827
  %v9829 = vadd.f32 %v9825, %v9828
  %vm9830 = vweird.f32 %v8817
  %vm9831 = vweird.f32 %v9825
  %vm9832 = vmor %vm9830, %vm9831
  %v9833 = vsel %vm9832, %v9825, %v9829
  %v9834 = vand.u32 2147483647, %v8817
  %vm9835 = vcmp.eq.f32.partialorder %v9834, 8.507059e+37
  %v9836 = vand.u32 %v8817, 2147483648
  %v9837 = vor.u32 1.1754944e-38, %v9836
  %v9838 = vsel %vm9835, %v9837, %v9833
  %v9839 = vmul.f32 1.0, %v9838
  %v9840 = vrcp.pop %v8818
  %v9841 = vmul.f32 %v8818, %v9840
  %v9842 = vsub.f32 1.0, %v9841
  %v9843 = vmul.f32 %v9840, %v9842
  %v9844 = vadd.f32 %v9840, %v9843
  %vm9845 = vweird.f32 %v8818
  %vm9846 = vweird.f32 %v9840
  %vm9847 = vmor %vm9845, %vm9846
  %v9848 = vsel %vm9847, %v9840, %v9844
  %v9849 = vand.u32 2147483647, %v8818
  %vm9850 = vcmp.eq.f32.partialorder %v9849, 8.507059e+37
  %v9851 = vand.u32 %v8818, 2147483648
  %v9852 = vor.u32 1.1754944e-38, %v9851
  %v9853 = vsel %vm9850, %v9852, %v9848
  %v9854 = vmul.f32 1.0, %v9853
  %v9855 = vrcp.pop %v8819
  %v9856 = vmul.f32 %v8819, %v9855
  %v9857 = vsub.f32 1.0, %v9856
  %v9858 = vmul.f32 %v9855, %v9857
  %v9859 = vadd.f32 %v9855, %v9858
  %vm9860 = vweird.f32 %v8819
  %vm9861 = vweird.f32 %v9855
  %vm9862 = vmor %vm9860, %vm9861
  %v9863 = vsel %vm9862, %v9855, %v9859
  %v9864 = vand.u32 2147483647, %v8819
  %vm9865 = vcmp.eq.f32.partialorder %v9864, 8.507059e+37
  %v9866 = vand.u32 %v8819, 2147483648
  %v9867 = vor.u32 1.1754944e-38, %v9866
  %v9868 = vsel %vm9865, %v9867, %v9863
  %v9869 = vmul.f32 1.0, %v9868
  %v9870 = vrcp.pop %v8820
  %v9871 = vmul.f32 %v8820, %v9870
  %v9872 = vsub.f32 1.0, %v9871
  %v9873 = vmul.f32 %v9870, %v9872
  %v9874 = vadd.f32 %v9870, %v9873
  %vm9875 = vweird.f32 %v8820
  %vm9876 = vweird.f32 %v9870
  %vm9877 = vmor %vm9875, %vm9876
  %v9878 = vsel %vm9877, %v9870, %v9874
  %v9879 = vand.u32 2147483647, %v8820
  %vm9880 = vcmp.eq.f32.partialorder %v9879, 8.507059e+37
  %v9881 = vand.u32 %v8820, 2147483648
  %v9882 = vor.u32 1.1754944e-38, %v9881
  %v9883 = vsel %vm9880, %v9882, %v9878
  %v9884 = vmul.f32 1.0, %v9883
  %v9885 = vrcp.pop %v8821
  %v9886 = vmul.f32 %v8821, %v9885
  %v9887 = vsub.f32 1.0, %v9886
  %v9888 = vmul.f32 %v9885, %v9887
  %v9889 = vadd.f32 %v9885, %v9888
  %vm9890 = vweird.f32 %v8821
  %vm9891 = vweird.f32 %v9885
  %vm9892 = vmor %vm9890, %vm9891
  %v9893 = vsel %vm9892, %v9885, %v9889
  %v9894 = vand.u32 2147483647, %v8821
  %vm9895 = vcmp.eq.f32.partialorder %v9894, 8.507059e+37
  %v9896 = vand.u32 %v8821, 2147483648
  %v9897 = vor.u32 1.1754944e-38, %v9896
  %v9898 = vsel %vm9895, %v9897, %v9893
  %v9899 = vmul.f32 1.0, %v9898
  %v9900 = vrcp.pop %v8822
  %v9901 = vmul.f32 %v8822, %v9900
  %v9902 = vsub.f32 1.0, %v9901
  %v9903 = vmul.f32 %v9900, %v9902
  %v9904 = vadd.f32 %v9900, %v9903
  %vm9905 = vweird.f32 %v8822
  %vm9906 = vweird.f32 %v9900
  %vm9907 = vmor %vm9905, %vm9906
  %v9908 = vsel %vm9907, %v9900, %v9904
  %v9909 = vand.u32 2147483647, %v8822
  %vm9910 = vcmp.eq.f32.partialorder %v9909, 8.507059e+37
  %v9911 = vand.u32 %v8822, 2147483648
  %v9912 = vor.u32 1.1754944e-38, %v9911
  %v9913 = vsel %vm9910, %v9912, %v9908
  %v9914 = vmul.f32 1.0, %v9913
  %v9915 = vrcp.pop %v8823
  %v9916 = vmul.f32 %v8823, %v9915
  %v9917 = vsub.f32 1.0, %v9916
  %v9918 = vmul.f32 %v9915, %v9917
  %v9919 = vadd.f32 %v9915, %v9918
  %vm9920 = vweird.f32 %v8823
  %vm9921 = vweird.f32 %v9915
  %vm9922 = vmor %vm9920, %vm9921
  %v9923 = vsel %vm9922, %v9915, %v9919
  %v9924 = vand.u32 2147483647, %v8823
  %vm9925 = vcmp.eq.f32.partialorder %v9924, 8.507059e+37
  %v9926 = vand.u32 %v8823, 2147483648
  %v9927 = vor.u32 1.1754944e-38, %v9926
  %v9928 = vsel %vm9925, %v9927, %v9923
  %v9929 = vmul.f32 1.0, %v9928
  %v9930 = vrcp.pop %v8824
  %v9931 = vmul.f32 %v8824, %v9930
  %v9932 = vsub.f32 1.0, %v9931
  %v9933 = vmul.f32 %v9930, %v9932
  %v9934 = vadd.f32 %v9930, %v9933
  %vm9935 = vweird.f32 %v8824
  %vm9936 = vweird.f32 %v9930
  %vm9937 = vmor %vm9935, %vm9936
  %v9938 = vsel %vm9937, %v9930, %v9934
  %v9939 = vand.u32 2147483647, %v8824
  %vm9940 = vcmp.eq.f32.partialorder %v9939, 8.507059e+37
  %v9941 = vand.u32 %v8824, 2147483648
  %v9942 = vor.u32 1.1754944e-38, %v9941
  %v9943 = vsel %vm9940, %v9942, %v9938
  %v9944 = vmul.f32 1.0, %v9943
  %v9945 = vrcp.pop %v8825
  %v9946 = vmul.f32 %v8825, %v9945
  %v9947 = vsub.f32 1.0, %v9946
  %v9948 = vmul.f32 %v9945, %v9947
  %v9949 = vadd.f32 %v9945, %v9948
  %vm9950 = vweird.f32 %v8825
  %vm9951 = vweird.f32 %v9945
  %vm9952 = vmor %vm9950, %vm9951
  %v9953 = vsel %vm9952, %v9945, %v9949
  %v9954 = vand.u32 2147483647, %v8825
  %vm9955 = vcmp.eq.f32.partialorder %v9954, 8.507059e+37
  %v9956 = vand.u32 %v8825, 2147483648
  %v9957 = vor.u32 1.1754944e-38, %v9956
  %v9958 = vsel %vm9955, %v9957, %v9953
  %v9959 = vmul.f32 1.0, %v9958
  %v9960 = vrcp.pop %v8826
  %v9961 = vmul.f32 %v8826, %v9960
  %v9962 = vsub.f32 1.0, %v9961
  %v9963 = vmul.f32 %v9960, %v9962
  %v9964 = vadd.f32 %v9960, %v9963
  %vm9965 = vweird.f32 %v8826
  %vm9966 = vweird.f32 %v9960
  %vm9967 = vmor %vm9965, %vm9966
  %v9968 = vsel %vm9967, %v9960, %v9964
  %v9969 = vand.u32 2147483647, %v8826
  %vm9970 = vcmp.eq.f32.partialorder %v9969, 8.507059e+37
  %v9971 = vand.u32 %v8826, 2147483648
  %v9972 = vor.u32 1.1754944e-38, %v9971
  %v9973 = vsel %vm9970, %v9972, %v9968
  %v9974 = vmul.f32 1.0, %v9973
  %v9975 = vrcp.pop %v8827
  %v9976 = vmul.f32 %v8827, %v9975
  %v9977 = vsub.f32 1.0, %v9976
  %v9978 = vmul.f32 %v9975, %v9977
  %v9979 = vadd.f32 %v9975, %v9978
  %vm9980 = vweird.f32 %v8827
  %vm9981 = vweird.f32 %v9975
  %vm9982 = vmor %vm9980, %vm9981
  %v9983 = vsel %vm9982, %v9975, %v9979
  %v9984 = vand.u32 2147483647, %v8827
  %vm9985 = vcmp.eq.f32.partialorder %v9984, 8.507059e+37
  %v9986 = vand.u32 %v8827, 2147483648
  %v9987 = vor.u32 1.1754944e-38, %v9986
  %v9988 = vsel %vm9985, %v9987, %v9983
  %v9989 = vmul.f32 1.0, %v9988
  %v9990 = vrcp.pop %v8828
  %v9991 = vmul.f32 %v8828, %v9990
  %v9992 = vsub.f32 1.0, %v9991
  %v9993 = vmul.f32 %v9990, %v9992
  %v9994 = vadd.f32 %v9990, %v9993
  %vm9995 = vweird.f32 %v8828
  %vm9996 = vweird.f32 %v9990
  %vm9997 = vmor %vm9995, %vm9996
  %v9998 = vsel %vm9997, %v9990, %v9994
  %v9999 = vand.u32 2147483647, %v8828
  %vm10000 = vcmp.eq.f32.partialorder %v9999, 8.507059e+37
  %v10001 = vand.u32 %v8828, 2147483648
  %v10002 = vor.u32 1.1754944e-38, %v10001
  %v10003 = vsel %vm10000, %v10002, %v9998
  %v10004 = vmul.f32 1.0, %v10003
  %v10005 = vrcp.pop %v8829
  %v10006 = vmul.f32 %v8829, %v10005
  %v10007 = vsub.f32 1.0, %v10006
  %v10008 = vmul.f32 %v10005, %v10007
  %v10009 = vadd.f32 %v10005, %v10008
  %vm10010 = vweird.f32 %v8829
  %vm10011 = vweird.f32 %v10005
  %vm10012 = vmor %vm10010, %vm10011
  %v10013 = vsel %vm10012, %v10005, %v10009
  %v10014 = vand.u32 2147483647, %v8829
  %vm10015 = vcmp.eq.f32.partialorder %v10014, 8.507059e+37
  %v10016 = vand.u32 %v8829, 2147483648
  %v10017 = vor.u32 1.1754944e-38, %v10016
  %v10018 = vsel %vm10015, %v10017, %v10013
  %v10019 = vmul.f32 1.0, %v10018
  %v10020 = vrcp.pop %v8830
  %v10021 = vmul.f32 %v8830, %v10020
  %v10022 = vsub.f32 1.0, %v10021
  %v10023 = vmul.f32 %v10020, %v10022
  %v10024 = vadd.f32 %v10020, %v10023
  %vm10025 = vweird.f32 %v8830
  %vm10026 = vweird.f32 %v10020
  %vm10027 = vmor %vm10025, %vm10026
  %v10028 = vsel %vm10027, %v10020, %v10024
  %v10029 = vand.u32 2147483647, %v8830
  %vm10030 = vcmp.eq.f32.partialorder %v10029, 8.507059e+37
  %v10031 = vand.u32 %v8830, 2147483648
  %v10032 = vor.u32 1.1754944e-38, %v10031
  %v10033 = vsel %vm10030, %v10032, %v10028
  %v10034 = vmul.f32 1.0, %v10033
  %v10035 = vrcp.pop %v8831
  %v10036 = vmul.f32 %v8831, %v10035
  %v10037 = vsub.f32 1.0, %v10036
  %v10038 = vmul.f32 %v10035, %v10037
  %v10039 = vadd.f32 %v10035, %v10038
  %vm10040 = vweird.f32 %v8831
  %vm10041 = vweird.f32 %v10035
  %vm10042 = vmor %vm10040, %vm10041
  %v10043 = vsel %vm10042, %v10035, %v10039
  %v10044 = vand.u32 2147483647, %v8831
  %vm10045 = vcmp.eq.f32.partialorder %v10044, 8.507059e+37
  %v10046 = vand.u32 %v8831, 2147483648
  %v10047 = vor.u32 1.1754944e-38, %v10046
  %v10048 = vsel %vm10045, %v10047, %v10043
  %v10049 = vmul.f32 1.0, %v10048
  %v10050 = vrcp.pop %v8832
  %v10051 = vmul.f32 %v8832, %v10050
  %v10052 = vsub.f32 1.0, %v10051
  %v10053 = vmul.f32 %v10050, %v10052
  %v10054 = vadd.f32 %v10050, %v10053
  %vm10055 = vweird.f32 %v8832
  %vm10056 = vweird.f32 %v10050
  %vm10057 = vmor %vm10055, %vm10056
  %v10058 = vsel %vm10057, %v10050, %v10054
  %v10059 = vand.u32 2147483647, %v8832
  %vm10060 = vcmp.eq.f32.partialorder %v10059, 8.507059e+37
  %v10061 = vand.u32 %v8832, 2147483648
  %v10062 = vor.u32 1.1754944e-38, %v10061
  %v10063 = vsel %vm10060, %v10062, %v10058
  %v10064 = vmul.f32 1.0, %v10063
  %v10065 = vrcp.pop %v8833
  %v10066 = vmul.f32 %v8833, %v10065
  %v10067 = vsub.f32 1.0, %v10066
  %v10068 = vmul.f32 %v10065, %v10067
  %v10069 = vadd.f32 %v10065, %v10068
  %vm10070 = vweird.f32 %v8833
  %vm10071 = vweird.f32 %v10065
  %vm10072 = vmor %vm10070, %vm10071
  %v10073 = vsel %vm10072, %v10065, %v10069
  %v10074 = vand.u32 2147483647, %v8833
  %vm10075 = vcmp.eq.f32.partialorder %v10074, 8.507059e+37
  %v10076 = vand.u32 %v8833, 2147483648
  %v10077 = vor.u32 1.1754944e-38, %v10076
  %v10078 = vsel %vm10075, %v10077, %v10073
  %v10079 = vmul.f32 1.0, %v10078
  %v10080 = vrcp.pop %v8834
  %v10081 = vmul.f32 %v8834, %v10080
  %v10082 = vsub.f32 1.0, %v10081
  %v10083 = vmul.f32 %v10080, %v10082
  %v10084 = vadd.f32 %v10080, %v10083
  %vm10085 = vweird.f32 %v8834
  %vm10086 = vweird.f32 %v10080
  %vm10087 = vmor %vm10085, %vm10086
  %v10088 = vsel %vm10087, %v10080, %v10084
  %v10089 = vand.u32 2147483647, %v8834
  %vm10090 = vcmp.eq.f32.partialorder %v10089, 8.507059e+37
  %v10091 = vand.u32 %v8834, 2147483648
  %v10092 = vor.u32 1.1754944e-38, %v10091
  %v10093 = vsel %vm10090, %v10092, %v10088
  %v10094 = vmul.f32 1.0, %v10093
  %v10095 = vrcp.pop %v8835
  %v10096 = vmul.f32 %v8835, %v10095
  %v10097 = vsub.f32 1.0, %v10096
  %v10098 = vmul.f32 %v10095, %v10097
  %v10099 = vadd.f32 %v10095, %v10098
  %vm10100 = vweird.f32 %v8835
  %vm10101 = vweird.f32 %v10095
  %vm10102 = vmor %vm10100, %vm10101
  %v10103 = vsel %vm10102, %v10095, %v10099
  %v10104 = vand.u32 2147483647, %v8835
  %vm10105 = vcmp.eq.f32.partialorder %v10104, 8.507059e+37
  %v10106 = vand.u32 %v8835, 2147483648
  %v10107 = vor.u32 1.1754944e-38, %v10106
  %v10108 = vsel %vm10105, %v10107, %v10103
  %v10109 = vmul.f32 1.0, %v10108
  %v10110 = vrcp.pop %v8836
  %v10111 = vmul.f32 %v8836, %v10110
  %v10112 = vsub.f32 1.0, %v10111
  %v10113 = vmul.f32 %v10110, %v10112
  %v10114 = vadd.f32 %v10110, %v10113
  %vm10115 = vweird.f32 %v8836
  %vm10116 = vweird.f32 %v10110
  %vm10117 = vmor %vm10115, %vm10116
  %v10118 = vsel %vm10117, %v10110, %v10114
  %v10119 = vand.u32 2147483647, %v8836
  %vm10120 = vcmp.eq.f32.partialorder %v10119, 8.507059e+37
  %v10121 = vand.u32 %v8836, 2147483648
  %v10122 = vor.u32 1.1754944e-38, %v10121
  %v10123 = vsel %vm10120, %v10122, %v10118
  %v10124 = vmul.f32 1.0, %v10123
  %v10125 = vrcp.pop %v8837
  %v10126 = vmul.f32 %v8837, %v10125
  %v10127 = vsub.f32 1.0, %v10126
  %v10128 = vmul.f32 %v10125, %v10127
  %v10129 = vadd.f32 %v10125, %v10128
  %vm10130 = vweird.f32 %v8837
  %vm10131 = vweird.f32 %v10125
  %vm10132 = vmor %vm10130, %vm10131
  %v10133 = vsel %vm10132, %v10125, %v10129
  %v10134 = vand.u32 2147483647, %v8837
  %vm10135 = vcmp.eq.f32.partialorder %v10134, 8.507059e+37
  %v10136 = vand.u32 %v8837, 2147483648
  %v10137 = vor.u32 1.1754944e-38, %v10136
  %v10138 = vsel %vm10135, %v10137, %v10133
  %v10139 = vmul.f32 1.0, %v10138
  %v10140 = vrcp.pop %v8838
  %v10141 = vmul.f32 %v8838, %v10140
  %v10142 = vsub.f32 1.0, %v10141
  %v10143 = vmul.f32 %v10140, %v10142
  %v10144 = vadd.f32 %v10140, %v10143
  %vm10145 = vweird.f32 %v8838
  %vm10146 = vweird.f32 %v10140
  %vm10147 = vmor %vm10145, %vm10146
  %v10148 = vsel %vm10147, %v10140, %v10144
  %v10149 = vand.u32 2147483647, %v8838
  %vm10150 = vcmp.eq.f32.partialorder %v10149, 8.507059e+37
  %v10151 = vand.u32 %v8838, 2147483648
  %v10152 = vor.u32 1.1754944e-38, %v10151
  %v10153 = vsel %vm10150, %v10152, %v10148
  %v10154 = vmul.f32 1.0, %v10153
  %v10155 = vrcp.pop %v8839
  %v10156 = vmul.f32 %v8839, %v10155
  %v10157 = vsub.f32 1.0, %v10156
  %v10158 = vmul.f32 %v10155, %v10157
  %v10159 = vadd.f32 %v10155, %v10158
  %vm10160 = vweird.f32 %v8839
  %vm10161 = vweird.f32 %v10155
  %vm10162 = vmor %vm10160, %vm10161
  %v10163 = vsel %vm10162, %v10155, %v10159
  %v10164 = vand.u32 2147483647, %v8839
  %vm10165 = vcmp.eq.f32.partialorder %v10164, 8.507059e+37
  %v10166 = vand.u32 %v8839, 2147483648
  %v10167 = vor.u32 1.1754944e-38, %v10166
  %v10168 = vsel %vm10165, %v10167, %v10163
  %v10169 = vmul.f32 1.0, %v10168
  %v10170 = vrcp.pop %v8840
  %v10171 = vmul.f32 %v8840, %v10170
  %v10172 = vsub.f32 1.0, %v10171
  %v10173 = vmul.f32 %v10170, %v10172
  %v10174 = vadd.f32 %v10170, %v10173
  %vm10175 = vweird.f32 %v8840
  %vm10176 = vweird.f32 %v10170
  %vm10177 = vmor %vm10175, %vm10176
  %v10178 = vsel %vm10177, %v10170, %v10174
  %v10179 = vand.u32 2147483647, %v8840
  %vm10180 = vcmp.eq.f32.partialorder %v10179, 8.507059e+37
  %v10181 = vand.u32 %v8840, 2147483648
  %v10182 = vor.u32 1.1754944e-38, %v10181
  %v10183 = vsel %vm10180, %v10182, %v10178
  %v10184 = vmul.f32 1.0, %v10183
  %v10185 = vrcp.pop %v8841
  %v10186 = vmul.f32 %v8841, %v10185
  %v10187 = vsub.f32 1.0, %v10186
  %v10188 = vmul.f32 %v10185, %v10187
  %v10189 = vadd.f32 %v10185, %v10188
  %vm10190 = vweird.f32 %v8841
  %vm10191 = vweird.f32 %v10185
  %vm10192 = vmor %vm10190, %vm10191
  %v10193 = vsel %vm10192, %v10185, %v10189
  %v10194 = vand.u32 2147483647, %v8841
  %vm10195 = vcmp.eq.f32.partialorder %v10194, 8.507059e+37
  %v10196 = vand.u32 %v8841, 2147483648
  %v10197 = vor.u32 1.1754944e-38, %v10196
  %v10198 = vsel %vm10195, %v10197, %v10193
  %v10199 = vmul.f32 1.0, %v10198
  %v10200 = vrcp.pop %v8842
  %v10201 = vmul.f32 %v8842, %v10200
  %v10202 = vsub.f32 1.0, %v10201
  %v10203 = vmul.f32 %v10200, %v10202
  %v10204 = vadd.f32 %v10200, %v10203
  %vm10205 = vweird.f32 %v8842
  %vm10206 = vweird.f32 %v10200
  %vm10207 = vmor %vm10205, %vm10206
  %v10208 = vsel %vm10207, %v10200, %v10204
  %v10209 = vand.u32 2147483647, %v8842
  %vm10210 = vcmp.eq.f32.partialorder %v10209, 8.507059e+37
  %v10211 = vand.u32 %v8842, 2147483648
  %v10212 = vor.u32 1.1754944e-38, %v10211
  %v10213 = vsel %vm10210, %v10212, %v10208
  %v10214 = vmul.f32 1.0, %v10213
  %v10215 = vrcp.pop %v8843
  %v10216 = vmul.f32 %v8843, %v10215
  %v10217 = vsub.f32 1.0, %v10216
  %v10218 = vmul.f32 %v10215, %v10217
  %v10219 = vadd.f32 %v10215, %v10218
  %vm10220 = vweird.f32 %v8843
  %vm10221 = vweird.f32 %v10215
  %vm10222 = vmor %vm10220, %vm10221
  %v10223 = vsel %vm10222, %v10215, %v10219
  %v10224 = vand.u32 2147483647, %v8843
  %vm10225 = vcmp.eq.f32.partialorder %v10224, 8.507059e+37
  %v10226 = vand.u32 %v8843, 2147483648
  %v10227 = vor.u32 1.1754944e-38, %v10226
  %v10228 = vsel %vm10225, %v10227, %v10223
  %v10229 = vmul.f32 1.0, %v10228
  %v10230 = vrcp.pop %v8844
  %v10231 = vmul.f32 %v8844, %v10230
  %v10232 = vsub.f32 1.0, %v10231
  %v10233 = vmul.f32 %v10230, %v10232
  %v10234 = vadd.f32 %v10230, %v10233
  %vm10235 = vweird.f32 %v8844
  %vm10236 = vweird.f32 %v10230
  %vm10237 = vmor %vm10235, %vm10236
  %v10238 = vsel %vm10237, %v10230, %v10234
  %v10239 = vand.u32 2147483647, %v8844
  %vm10240 = vcmp.eq.f32.partialorder %v10239, 8.507059e+37
  %v10241 = vand.u32 %v8844, 2147483648
  %v10242 = vor.u32 1.1754944e-38, %v10241
  %v10243 = vsel %vm10240, %v10242, %v10238
  %v10244 = vmul.f32 1.0, %v10243
  %v10245 = vrcp.pop %v8845
  %v10246 = vmul.f32 %v8845, %v10245
  %v10247 = vsub.f32 1.0, %v10246
  %v10248 = vmul.f32 %v10245, %v10247
  %v10249 = vadd.f32 %v10245, %v10248
  %vm10250 = vweird.f32 %v8845
  %vm10251 = vweird.f32 %v10245
  %vm10252 = vmor %vm10250, %vm10251
  %v10253 = vsel %vm10252, %v10245, %v10249
  %v10254 = vand.u32 2147483647, %v8845
  %vm10255 = vcmp.eq.f32.partialorder %v10254, 8.507059e+37
  %v10256 = vand.u32 %v8845, 2147483648
  %v10257 = vor.u32 1.1754944e-38, %v10256
  %v10258 = vsel %vm10255, %v10257, %v10253
  %v10259 = vmul.f32 1.0, %v10258
  %v10260 = vrcp.pop %v8846
  %v10261 = vmul.f32 %v8846, %v10260
  %v10262 = vsub.f32 1.0, %v10261
  %v10263 = vmul.f32 %v10260, %v10262
  %v10264 = vadd.f32 %v10260, %v10263
  %vm10265 = vweird.f32 %v8846
  %vm10266 = vweird.f32 %v10260
  %vm10267 = vmor %vm10265, %vm10266
  %v10268 = vsel %vm10267, %v10260, %v10264
  %v10269 = vand.u32 2147483647, %v8846
  %vm10270 = vcmp.eq.f32.partialorder %v10269, 8.507059e+37
  %v10271 = vand.u32 %v8846, 2147483648
  %v10272 = vor.u32 1.1754944e-38, %v10271
  %v10273 = vsel %vm10270, %v10272, %v10268
  %v10274 = vmul.f32 1.0, %v10273
  %v10275 = vrcp.pop %v8847
  %v10276 = vmul.f32 %v8847, %v10275
  %v10277 = vsub.f32 1.0, %v10276
  %v10278 = vmul.f32 %v10275, %v10277
  %v10279 = vadd.f32 %v10275, %v10278
  %vm10280 = vweird.f32 %v8847
  %vm10281 = vweird.f32 %v10275
  %vm10282 = vmor %vm10280, %vm10281
  %v10283 = vsel %vm10282, %v10275, %v10279
  %v10284 = vand.u32 2147483647, %v8847
  %vm10285 = vcmp.eq.f32.partialorder %v10284, 8.507059e+37
  %v10286 = vand.u32 %v8847, 2147483648
  %v10287 = vor.u32 1.1754944e-38, %v10286
  %v10288 = vsel %vm10285, %v10287, %v10283
  %v10289 = vmul.f32 1.0, %v10288
  %v10290 = vrcp.pop %v8848
  %v10291 = vmul.f32 %v8848, %v10290
  %v10292 = vsub.f32 1.0, %v10291
  %v10293 = vmul.f32 %v10290, %v10292
  %v10294 = vadd.f32 %v10290, %v10293
  %vm10295 = vweird.f32 %v8848
  %vm10296 = vweird.f32 %v10290
  %vm10297 = vmor %vm10295, %vm10296
  %v10298 = vsel %vm10297, %v10290, %v10294
  %v10299 = vand.u32 2147483647, %v8848
  %vm10300 = vcmp.eq.f32.partialorder %v10299, 8.507059e+37
  %v10301 = vand.u32 %v8848, 2147483648
  %v10302 = vor.u32 1.1754944e-38, %v10301
  %v10303 = vsel %vm10300, %v10302, %v10298
  %v10304 = vmul.f32 1.0, %v10303
  %v10305 = vrcp.pop %v8849
  %v10306 = vmul.f32 %v8849, %v10305
  %v10307 = vsub.f32 1.0, %v10306
  %v10308 = vmul.f32 %v10305, %v10307
  %v10309 = vadd.f32 %v10305, %v10308
  %vm10310 = vweird.f32 %v8849
  %vm10311 = vweird.f32 %v10305
  %vm10312 = vmor %vm10310, %vm10311
  %v10313 = vsel %vm10312, %v10305, %v10309
  %v10314 = vand.u32 2147483647, %v8849
  %vm10315 = vcmp.eq.f32.partialorder %v10314, 8.507059e+37
  %v10316 = vand.u32 %v8849, 2147483648
  %v10317 = vor.u32 1.1754944e-38, %v10316
  %v10318 = vsel %vm10315, %v10317, %v10313
  %v10319 = vmul.f32 1.0, %v10318
  %v10320 = vrcp.pop %v8850
  %v10321 = vmul.f32 %v8850, %v10320
  %v10322 = vsub.f32 1.0, %v10321
  %v10323 = vmul.f32 %v10320, %v10322
  %v10324 = vadd.f32 %v10320, %v10323
  %vm10325 = vweird.f32 %v8850
  %vm10326 = vweird.f32 %v10320
  %vm10327 = vmor %vm10325, %vm10326
  %v10328 = vsel %vm10327, %v10320, %v10324
  %v10329 = vand.u32 2147483647, %v8850
  %vm10330 = vcmp.eq.f32.partialorder %v10329, 8.507059e+37
  %v10331 = vand.u32 %v8850, 2147483648
  %v10332 = vor.u32 1.1754944e-38, %v10331
  %v10333 = vsel %vm10330, %v10332, %v10328
  %v10334 = vmul.f32 1.0, %v10333
  %v10335 = vrcp.pop %v8851
  %v10336 = vmul.f32 %v8851, %v10335
  %v10337 = vsub.f32 1.0, %v10336
  %v10338 = vmul.f32 %v10335, %v10337
  %v10339 = vadd.f32 %v10335, %v10338
  %vm10340 = vweird.f32 %v8851
  %vm10341 = vweird.f32 %v10335
  %vm10342 = vmor %vm10340, %vm10341
  %v10343 = vsel %vm10342, %v10335, %v10339
  %v10344 = vand.u32 2147483647, %v8851
  %vm10345 = vcmp.eq.f32.partialorder %v10344, 8.507059e+37
  %v10346 = vand.u32 %v8851, 2147483648
  %v10347 = vor.u32 1.1754944e-38, %v10346
  %v10348 = vsel %vm10345, %v10347, %v10343
  %v10349 = vmul.f32 1.0, %v10348
  %v10350 = vrcp.pop %v8852
  %v10351 = vmul.f32 %v8852, %v10350
  %v10352 = vsub.f32 1.0, %v10351
  %v10353 = vmul.f32 %v10350, %v10352
  %v10354 = vadd.f32 %v10350, %v10353
  %vm10355 = vweird.f32 %v8852
  %vm10356 = vweird.f32 %v10350
  %vm10357 = vmor %vm10355, %vm10356
  %v10358 = vsel %vm10357, %v10350, %v10354
  %v10359 = vand.u32 2147483647, %v8852
  %vm10360 = vcmp.eq.f32.partialorder %v10359, 8.507059e+37
  %v10361 = vand.u32 %v8852, 2147483648
  %v10362 = vor.u32 1.1754944e-38, %v10361
  %v10363 = vsel %vm10360, %v10362, %v10358
  %v10364 = vmul.f32 1.0, %v10363
  %v10365 = vrcp.pop %v8853
  %v10366 = vmul.f32 %v8853, %v10365
  %v10367 = vsub.f32 1.0, %v10366
  %v10368 = vmul.f32 %v10365, %v10367
  %v10369 = vadd.f32 %v10365, %v10368
  %vm10370 = vweird.f32 %v8853
  %vm10371 = vweird.f32 %v10365
  %vm10372 = vmor %vm10370, %vm10371
  %v10373 = vsel %vm10372, %v10365, %v10369
  %v10374 = vand.u32 2147483647, %v8853
  %vm10375 = vcmp.eq.f32.partialorder %v10374, 8.507059e+37
  %v10376 = vand.u32 %v8853, 2147483648
  %v10377 = vor.u32 1.1754944e-38, %v10376
  %v10378 = vsel %vm10375, %v10377, %v10373
  %v10379 = vmul.f32 1.0, %v10378
  %v10380 = vrcp.pop %v8854
  %v10381 = vmul.f32 %v8854, %v10380
  %v10382 = vsub.f32 1.0, %v10381
  %v10383 = vmul.f32 %v10380, %v10382
  %v10384 = vadd.f32 %v10380, %v10383
  %vm10385 = vweird.f32 %v8854
  %vm10386 = vweird.f32 %v10380
  %vm10387 = vmor %vm10385, %vm10386
  %v10388 = vsel %vm10387, %v10380, %v10384
  %v10389 = vand.u32 2147483647, %v8854
  %vm10390 = vcmp.eq.f32.partialorder %v10389, 8.507059e+37
  %v10391 = vand.u32 %v8854, 2147483648
  %v10392 = vor.u32 1.1754944e-38, %v10391
  %v10393 = vsel %vm10390, %v10392, %v10388
  %v10394 = vmul.f32 1.0, %v10393
  %v10395 = vrcp.pop %v8855
  %v10396 = vmul.f32 %v8855, %v10395
  %v10397 = vsub.f32 1.0, %v10396
  %v10398 = vmul.f32 %v10395, %v10397
  %v10399 = vadd.f32 %v10395, %v10398
  %vm10400 = vweird.f32 %v8855
  %vm10401 = vweird.f32 %v10395
  %vm10402 = vmor %vm10400, %vm10401
  %v10403 = vsel %vm10402, %v10395, %v10399
  %v10404 = vand.u32 2147483647, %v8855
  %vm10405 = vcmp.eq.f32.partialorder %v10404, 8.507059e+37
  %v10406 = vand.u32 %v8855, 2147483648
  %v10407 = vor.u32 1.1754944e-38, %v10406
  %v10408 = vsel %vm10405, %v10407, %v10403
  %v10409 = vmul.f32 1.0, %v10408
  %v10410 = vrcp.pop %v8856
  %v10411 = vmul.f32 %v8856, %v10410
  %v10412 = vsub.f32 1.0, %v10411
  %v10413 = vmul.f32 %v10410, %v10412
  %v10414 = vadd.f32 %v10410, %v10413
  %vm10415 = vweird.f32 %v8856
  %vm10416 = vweird.f32 %v10410
  %vm10417 = vmor %vm10415, %vm10416
  %v10418 = vsel %vm10417, %v10410, %v10414
  %v10419 = vand.u32 2147483647, %v8856
  %vm10420 = vcmp.eq.f32.partialorder %v10419, 8.507059e+37
  %v10421 = vand.u32 %v8856, 2147483648
  %v10422 = vor.u32 1.1754944e-38, %v10421
  %v10423 = vsel %vm10420, %v10422, %v10418
  %v10424 = vmul.f32 1.0, %v10423
  %v10425 = vrcp.pop %v8857
  %v10426 = vmul.f32 %v8857, %v10425
  %v10427 = vsub.f32 1.0, %v10426
  %v10428 = vmul.f32 %v10425, %v10427
  %v10429 = vadd.f32 %v10425, %v10428
  %vm10430 = vweird.f32 %v8857
  %vm10431 = vweird.f32 %v10425
  %vm10432 = vmor %vm10430, %vm10431
  %v10433 = vsel %vm10432, %v10425, %v10429
  %v10434 = vand.u32 2147483647, %v8857
  %vm10435 = vcmp.eq.f32.partialorder %v10434, 8.507059e+37
  %v10436 = vand.u32 %v8857, 2147483648
  %v10437 = vor.u32 1.1754944e-38, %v10436
  %v10438 = vsel %vm10435, %v10437, %v10433
  %v10439 = vmul.f32 1.0, %v10438
  %v10440 = vrcp.pop %v8858
  %v10441 = vmul.f32 %v8858, %v10440
  %v10442 = vsub.f32 1.0, %v10441
  %v10443 = vmul.f32 %v10440, %v10442
  %v10444 = vadd.f32 %v10440, %v10443
  %vm10445 = vweird.f32 %v8858
  %vm10446 = vweird.f32 %v10440
  %vm10447 = vmor %vm10445, %vm10446
  %v10448 = vsel %vm10447, %v10440, %v10444
  %v10449 = vand.u32 2147483647, %v8858
  %vm10450 = vcmp.eq.f32.partialorder %v10449, 8.507059e+37
  %v10451 = vand.u32 %v8858, 2147483648
  %v10452 = vor.u32 1.1754944e-38, %v10451
  %v10453 = vsel %vm10450, %v10452, %v10448
  %v10454 = vmul.f32 1.0, %v10453
  %v10455 = vrcp.pop %v8859
  %v10456 = vmul.f32 %v8859, %v10455
  %v10457 = vsub.f32 1.0, %v10456
  %v10458 = vmul.f32 %v10455, %v10457
  %v10459 = vadd.f32 %v10455, %v10458
  %vm10460 = vweird.f32 %v8859
  %vm10461 = vweird.f32 %v10455
  %vm10462 = vmor %vm10460, %vm10461
  %v10463 = vsel %vm10462, %v10455, %v10459
  %v10464 = vand.u32 2147483647, %v8859
  %vm10465 = vcmp.eq.f32.partialorder %v10464, 8.507059e+37
  %v10466 = vand.u32 %v8859, 2147483648
  %v10467 = vor.u32 1.1754944e-38, %v10466
  %v10468 = vsel %vm10465, %v10467, %v10463
  %v10469 = vmul.f32 1.0, %v10468
  %v10470 = vrcp.pop %v8860
  %v10471 = vmul.f32 %v8860, %v10470
  %v10472 = vsub.f32 1.0, %v10471
  %v10473 = vmul.f32 %v10470, %v10472
  %v10474 = vadd.f32 %v10470, %v10473
  %vm10475 = vweird.f32 %v8860
  %vm10476 = vweird.f32 %v10470
  %vm10477 = vmor %vm10475, %vm10476
  %v10478 = vsel %vm10477, %v10470, %v10474
  %v10479 = vand.u32 2147483647, %v8860
  %vm10480 = vcmp.eq.f32.partialorder %v10479, 8.507059e+37
  %v10481 = vand.u32 %v8860, 2147483648
  %v10482 = vor.u32 1.1754944e-38, %v10481
  %v10483 = vsel %vm10480, %v10482, %v10478
  %v10484 = vmul.f32 1.0, %v10483
  %v10485 = vrcp.pop %v8861
  %v10486 = vmul.f32 %v8861, %v10485
  %v10487 = vsub.f32 1.0, %v10486
  %v10488 = vmul.f32 %v10485, %v10487
  %v10489 = vadd.f32 %v10485, %v10488
  %vm10490 = vweird.f32 %v8861
  %vm10491 = vweird.f32 %v10485
  %vm10492 = vmor %vm10490, %vm10491
  %v10493 = vsel %vm10492, %v10485, %v10489
  %v10494 = vand.u32 2147483647, %v8861
  %vm10495 = vcmp.eq.f32.partialorder %v10494, 8.507059e+37
  %v10496 = vand.u32 %v8861, 2147483648
  %v10497 = vor.u32 1.1754944e-38, %v10496
  %v10498 = vsel %vm10495, %v10497, %v10493
  %v10499 = vmul.f32 1.0, %v10498
  %v10500 = vrcp.pop %v8862
  %v10501 = vmul.f32 %v8862, %v10500
  %v10502 = vsub.f32 1.0, %v10501
  %v10503 = vmul.f32 %v10500, %v10502
  %v10504 = vadd.f32 %v10500, %v10503
  %vm10505 = vweird.f32 %v8862
  %vm10506 = vweird.f32 %v10500
  %vm10507 = vmor %vm10505, %vm10506
  %v10508 = vsel %vm10507, %v10500, %v10504
  %v10509 = vand.u32 2147483647, %v8862
  %vm10510 = vcmp.eq.f32.partialorder %v10509, 8.507059e+37
  %v10511 = vand.u32 %v8862, 2147483648
  %v10512 = vor.u32 1.1754944e-38, %v10511
  %v10513 = vsel %vm10510, %v10512, %v10508
  %v10514 = vmul.f32 1.0, %v10513
  %v10515 = vrcp.pop %v8863
  %v10516 = vmul.f32 %v8863, %v10515
  %v10517 = vsub.f32 1.0, %v10516
  %v10518 = vmul.f32 %v10515, %v10517
  %v10519 = vadd.f32 %v10515, %v10518
  %vm10520 = vweird.f32 %v8863
  %vm10521 = vweird.f32 %v10515
  %vm10522 = vmor %vm10520, %vm10521
  %v10523 = vsel %vm10522, %v10515, %v10519
  %v10524 = vand.u32 2147483647, %v8863
  %vm10525 = vcmp.eq.f32.partialorder %v10524, 8.507059e+37
  %v10526 = vand.u32 %v8863, 2147483648
  %v10527 = vor.u32 1.1754944e-38, %v10526
  %v10528 = vsel %vm10525, %v10527, %v10523
  %v10529 = vmul.f32 1.0, %v10528
  %v10530 = vrcp.pop %v8864
  %v10531 = vmul.f32 %v8864, %v10530
  %v10532 = vsub.f32 1.0, %v10531
  %v10533 = vmul.f32 %v10530, %v10532
  %v10534 = vadd.f32 %v10530, %v10533
  %vm10535 = vweird.f32 %v8864
  %vm10536 = vweird.f32 %v10530
  %vm10537 = vmor %vm10535, %vm10536
  %v10538 = vsel %vm10537, %v10530, %v10534
  %v10539 = vand.u32 2147483647, %v8864
  %vm10540 = vcmp.eq.f32.partialorder %v10539, 8.507059e+37
  %v10541 = vand.u32 %v8864, 2147483648
  %v10542 = vor.u32 1.1754944e-38, %v10541
  %v10543 = vsel %vm10540, %v10542, %v10538
  %v10544 = vmul.f32 1.0, %v10543
  %v10545 = vrcp.pop %v8865
  %v10546 = vmul.f32 %v8865, %v10545
  %v10547 = vsub.f32 1.0, %v10546
  %v10548 = vmul.f32 %v10545, %v10547
  %v10549 = vadd.f32 %v10545, %v10548
  %vm10550 = vweird.f32 %v8865
  %vm10551 = vweird.f32 %v10545
  %vm10552 = vmor %vm10550, %vm10551
  %v10553 = vsel %vm10552, %v10545, %v10549
  %v10554 = vand.u32 2147483647, %v8865
  %vm10555 = vcmp.eq.f32.partialorder %v10554, 8.507059e+37
  %v10556 = vand.u32 %v8865, 2147483648
  %v10557 = vor.u32 1.1754944e-38, %v10556
  %v10558 = vsel %vm10555, %v10557, %v10553
  %v10559 = vmul.f32 1.0, %v10558
  %v10560 = vrcp.pop %v8866
  %v10561 = vmul.f32 %v8866, %v10560
  %v10562 = vsub.f32 1.0, %v10561
  %v10563 = vmul.f32 %v10560, %v10562
  %v10564 = vadd.f32 %v10560, %v10563
  %vm10565 = vweird.f32 %v8866
  %vm10566 = vweird.f32 %v10560
  %vm10567 = vmor %vm10565, %vm10566
  %v10568 = vsel %vm10567, %v10560, %v10564
  %v10569 = vand.u32 2147483647, %v8866
  %vm10570 = vcmp.eq.f32.partialorder %v10569, 8.507059e+37
  %v10571 = vand.u32 %v8866, 2147483648
  %v10572 = vor.u32 1.1754944e-38, %v10571
  %v10573 = vsel %vm10570, %v10572, %v10568
  %v10574 = vmul.f32 1.0, %v10573
  %v10575 = vrcp.pop %v8867
  %v10576 = vmul.f32 %v8867, %v10575
  %v10577 = vsub.f32 1.0, %v10576
  %v10578 = vmul.f32 %v10575, %v10577
  %v10579 = vadd.f32 %v10575, %v10578
  %vm10580 = vweird.f32 %v8867
  %vm10581 = vweird.f32 %v10575
  %vm10582 = vmor %vm10580, %vm10581
  %v10583 = vsel %vm10582, %v10575, %v10579
  %v10584 = vand.u32 2147483647, %v8867
  %vm10585 = vcmp.eq.f32.partialorder %v10584, 8.507059e+37
  %v10586 = vand.u32 %v8867, 2147483648
  %v10587 = vor.u32 1.1754944e-38, %v10586
  %v10588 = vsel %vm10585, %v10587, %v10583
  %v10589 = vmul.f32 1.0, %v10588
  %v10590 = vrcp.pop %v8868
  %v10591 = vmul.f32 %v8868, %v10590
  %v10592 = vsub.f32 1.0, %v10591
  %v10593 = vmul.f32 %v10590, %v10592
  %v10594 = vadd.f32 %v10590, %v10593
  %vm10595 = vweird.f32 %v8868
  %vm10596 = vweird.f32 %v10590
  %vm10597 = vmor %vm10595, %vm10596
  %v10598 = vsel %vm10597, %v10590, %v10594
  %v10599 = vand.u32 2147483647, %v8868
  %vm10600 = vcmp.eq.f32.partialorder %v10599, 8.507059e+37
  %v10601 = vand.u32 %v8868, 2147483648
  %v10602 = vor.u32 1.1754944e-38, %v10601
  %v10603 = vsel %vm10600, %v10602, %v10598
  %v10604 = vmul.f32 1.0, %v10603
  %v10605 = vrcp.pop %v8869
  %v10606 = vmul.f32 %v8869, %v10605
  %v10607 = vsub.f32 1.0, %v10606
  %v10608 = vmul.f32 %v10605, %v10607
  %v10609 = vadd.f32 %v10605, %v10608
  %vm10610 = vweird.f32 %v8869
  %vm10611 = vweird.f32 %v10605
  %vm10612 = vmor %vm10610, %vm10611
  %v10613 = vsel %vm10612, %v10605, %v10609
  %v10614 = vand.u32 2147483647, %v8869
  %vm10615 = vcmp.eq.f32.partialorder %v10614, 8.507059e+37
  %v10616 = vand.u32 %v8869, 2147483648
  %v10617 = vor.u32 1.1754944e-38, %v10616
  %v10618 = vsel %vm10615, %v10617, %v10613
  %v10619 = vmul.f32 1.0, %v10618
  %v10620 = vrcp.pop %v8870
  %v10621 = vmul.f32 %v8870, %v10620
  %v10622 = vsub.f32 1.0, %v10621
  %v10623 = vmul.f32 %v10620, %v10622
  %v10624 = vadd.f32 %v10620, %v10623
  %vm10625 = vweird.f32 %v8870
  %vm10626 = vweird.f32 %v10620
  %vm10627 = vmor %vm10625, %vm10626
  %v10628 = vsel %vm10627, %v10620, %v10624
  %v10629 = vand.u32 2147483647, %v8870
  %vm10630 = vcmp.eq.f32.partialorder %v10629, 8.507059e+37
  %v10631 = vand.u32 %v8870, 2147483648
  %v10632 = vor.u32 1.1754944e-38, %v10631
  %v10633 = vsel %vm10630, %v10632, %v10628
  %v10634 = vmul.f32 1.0, %v10633
  %v10635 = vrcp.pop %v8871
  %v10636 = vmul.f32 %v8871, %v10635
  %v10637 = vsub.f32 1.0, %v10636
  %v10638 = vmul.f32 %v10635, %v10637
  %v10639 = vadd.f32 %v10635, %v10638
  %vm10640 = vweird.f32 %v8871
  %vm10641 = vweird.f32 %v10635
  %vm10642 = vmor %vm10640, %vm10641
  %v10643 = vsel %vm10642, %v10635, %v10639
  %v10644 = vand.u32 2147483647, %v8871
  %vm10645 = vcmp.eq.f32.partialorder %v10644, 8.507059e+37
  %v10646 = vand.u32 %v8871, 2147483648
  %v10647 = vor.u32 1.1754944e-38, %v10646
  %v10648 = vsel %vm10645, %v10647, %v10643
  %v10649 = vmul.f32 1.0, %v10648
  %v10650 = vrcp.pop %v8872
  %v10651 = vmul.f32 %v8872, %v10650
  %v10652 = vsub.f32 1.0, %v10651
  %v10653 = vmul.f32 %v10650, %v10652
  %v10654 = vadd.f32 %v10650, %v10653
  %vm10655 = vweird.f32 %v8872
  %vm10656 = vweird.f32 %v10650
  %vm10657 = vmor %vm10655, %vm10656
  %v10658 = vsel %vm10657, %v10650, %v10654
  %v10659 = vand.u32 2147483647, %v8872
  %vm10660 = vcmp.eq.f32.partialorder %v10659, 8.507059e+37
  %v10661 = vand.u32 %v8872, 2147483648
  %v10662 = vor.u32 1.1754944e-38, %v10661
  %v10663 = vsel %vm10660, %v10662, %v10658
  %v10664 = vmul.f32 1.0, %v10663
  %v10665 = vrcp.pop %v8873
  %v10666 = vmul.f32 %v8873, %v10665
  %v10667 = vsub.f32 1.0, %v10666
  %v10668 = vmul.f32 %v10665, %v10667
  %v10669 = vadd.f32 %v10665, %v10668
  %vm10670 = vweird.f32 %v8873
  %vm10671 = vweird.f32 %v10665
  %vm10672 = vmor %vm10670, %vm10671
  %v10673 = vsel %vm10672, %v10665, %v10669
  %v10674 = vand.u32 2147483647, %v8873
  %vm10675 = vcmp.eq.f32.partialorder %v10674, 8.507059e+37
  %v10676 = vand.u32 %v8873, 2147483648
  %v10677 = vor.u32 1.1754944e-38, %v10676
  %v10678 = vsel %vm10675, %v10677, %v10673
  %v10679 = vmul.f32 1.0, %v10678
  %v10680 = vrcp.pop %v8874
  %v10681 = vmul.f32 %v8874, %v10680
  %v10682 = vsub.f32 1.0, %v10681
  %v10683 = vmul.f32 %v10680, %v10682
  %v10684 = vadd.f32 %v10680, %v10683
  %vm10685 = vweird.f32 %v8874
  %vm10686 = vweird.f32 %v10680
  %vm10687 = vmor %vm10685, %vm10686
  %v10688 = vsel %vm10687, %v10680, %v10684
  %v10689 = vand.u32 2147483647, %v8874
  %vm10690 = vcmp.eq.f32.partialorder %v10689, 8.507059e+37
  %v10691 = vand.u32 %v8874, 2147483648
  %v10692 = vor.u32 1.1754944e-38, %v10691
  %v10693 = vsel %vm10690, %v10692, %v10688
  %v10694 = vmul.f32 1.0, %v10693
  %v10695 = vrcp.pop %v8875
  %v10696 = vmul.f32 %v8875, %v10695
  %v10697 = vsub.f32 1.0, %v10696
  %v10698 = vmul.f32 %v10695, %v10697
  %v10699 = vadd.f32 %v10695, %v10698
  %vm10700 = vweird.f32 %v8875
  %vm10701 = vweird.f32 %v10695
  %vm10702 = vmor %vm10700, %vm10701
  %v10703 = vsel %vm10702, %v10695, %v10699
  %v10704 = vand.u32 2147483647, %v8875
  %vm10705 = vcmp.eq.f32.partialorder %v10704, 8.507059e+37
  %v10706 = vand.u32 %v8875, 2147483648
  %v10707 = vor.u32 1.1754944e-38, %v10706
  %v10708 = vsel %vm10705, %v10707, %v10703
  %v10709 = vmul.f32 1.0, %v10708
  %v10710 = vrcp.pop %v8876
  %v10711 = vmul.f32 %v8876, %v10710
  %v10712 = vsub.f32 1.0, %v10711
  %v10713 = vmul.f32 %v10710, %v10712
  %v10714 = vadd.f32 %v10710, %v10713
  %vm10715 = vweird.f32 %v8876
  %vm10716 = vweird.f32 %v10710
  %vm10717 = vmor %vm10715, %vm10716
  %v10718 = vsel %vm10717, %v10710, %v10714
  %v10719 = vand.u32 2147483647, %v8876
  %vm10720 = vcmp.eq.f32.partialorder %v10719, 8.507059e+37
  %v10721 = vand.u32 %v8876, 2147483648
  %v10722 = vor.u32 1.1754944e-38, %v10721
  %v10723 = vsel %vm10720, %v10722, %v10718
  %v10724 = vmul.f32 1.0, %v10723
  %v10725 = vrcp.pop %v8877
  %v10726 = vmul.f32 %v8877, %v10725
  %v10727 = vsub.f32 1.0, %v10726
  %v10728 = vmul.f32 %v10725, %v10727
  %v10729 = vadd.f32 %v10725, %v10728
  %vm10730 = vweird.f32 %v8877
  %vm10731 = vweird.f32 %v10725
  %vm10732 = vmor %vm10730, %vm10731
  %v10733 = vsel %vm10732, %v10725, %v10729
  %v10734 = vand.u32 2147483647, %v8877
  %vm10735 = vcmp.eq.f32.partialorder %v10734, 8.507059e+37
  %v10736 = vand.u32 %v8877, 2147483648
  %v10737 = vor.u32 1.1754944e-38, %v10736
  %v10738 = vsel %vm10735, %v10737, %v10733
  %v10739 = vmul.f32 1.0, %v10738
  %v10740 = vrcp.pop %v8878
  %v10741 = vmul.f32 %v8878, %v10740
  %v10742 = vsub.f32 1.0, %v10741
  %v10743 = vmul.f32 %v10740, %v10742
  %v10744 = vadd.f32 %v10740, %v10743
  %vm10745 = vweird.f32 %v8878
  %vm10746 = vweird.f32 %v10740
  %vm10747 = vmor %vm10745, %vm10746
  %v10748 = vsel %vm10747, %v10740, %v10744
  %v10749 = vand.u32 2147483647, %v8878
  %vm10750 = vcmp.eq.f32.partialorder %v10749, 8.507059e+37
  %v10751 = vand.u32 %v8878, 2147483648
  %v10752 = vor.u32 1.1754944e-38, %v10751
  %v10753 = vsel %vm10750, %v10752, %v10748
  %v10754 = vmul.f32 1.0, %v10753
  %v10755 = vrcp.pop %v8879
  %v10756 = vmul.f32 %v8879, %v10755
  %v10757 = vsub.f32 1.0, %v10756
  %v10758 = vmul.f32 %v10755, %v10757
  %v10759 = vadd.f32 %v10755, %v10758
  %vm10760 = vweird.f32 %v8879
  %vm10761 = vweird.f32 %v10755
  %vm10762 = vmor %vm10760, %vm10761
  %v10763 = vsel %vm10762, %v10755, %v10759
  %v10764 = vand.u32 2147483647, %v8879
  %vm10765 = vcmp.eq.f32.partialorder %v10764, 8.507059e+37
  %v10766 = vand.u32 %v8879, 2147483648
  %v10767 = vor.u32 1.1754944e-38, %v10766
  %v10768 = vsel %vm10765, %v10767, %v10763
  %v10769 = vmul.f32 1.0, %v10768
  %v10770 = vrcp.pop %v8880
  %v10771 = vmul.f32 %v8880, %v10770
  %v10772 = vsub.f32 1.0, %v10771
  %v10773 = vmul.f32 %v10770, %v10772
  %v10774 = vadd.f32 %v10770, %v10773
  %vm10775 = vweird.f32 %v8880
  %vm10776 = vweird.f32 %v10770
  %vm10777 = vmor %vm10775, %vm10776
  %v10778 = vsel %vm10777, %v10770, %v10774
  %v10779 = vand.u32 2147483647, %v8880
  %vm10780 = vcmp.eq.f32.partialorder %v10779, 8.507059e+37
  %v10781 = vand.u32 %v8880, 2147483648
  %v10782 = vor.u32 1.1754944e-38, %v10781
  %v10783 = vsel %vm10780, %v10782, %v10778
  %v10784 = vmul.f32 1.0, %v10783
  %v10785 = vrcp.pop %v8881
  %v10786 = vmul.f32 %v8881, %v10785
  %v10787 = vsub.f32 1.0, %v10786
  %v10788 = vmul.f32 %v10785, %v10787
  %v10789 = vadd.f32 %v10785, %v10788
  %vm10790 = vweird.f32 %v8881
  %vm10791 = vweird.f32 %v10785
  %vm10792 = vmor %vm10790, %vm10791
  %v10793 = vsel %vm10792, %v10785, %v10789
  %v10794 = vand.u32 2147483647, %v8881
  %vm10795 = vcmp.eq.f32.partialorder %v10794, 8.507059e+37
  %v10796 = vand.u32 %v8881, 2147483648
  %v10797 = vor.u32 1.1754944e-38, %v10796
  %v10798 = vsel %vm10795, %v10797, %v10793
  %v10799 = vmul.f32 1.0, %v10798
  %v10800 = vrcp.pop %v8882
  %v10801 = vmul.f32 %v8882, %v10800
  %v10802 = vsub.f32 1.0, %v10801
  %v10803 = vmul.f32 %v10800, %v10802
  %v10804 = vadd.f32 %v10800, %v10803
  %vm10805 = vweird.f32 %v8882
  %vm10806 = vweird.f32 %v10800
  %vm10807 = vmor %vm10805, %vm10806
  %v10808 = vsel %vm10807, %v10800, %v10804
  %v10809 = vand.u32 2147483647, %v8882
  %vm10810 = vcmp.eq.f32.partialorder %v10809, 8.507059e+37
  %v10811 = vand.u32 %v8882, 2147483648
  %v10812 = vor.u32 1.1754944e-38, %v10811
  %v10813 = vsel %vm10810, %v10812, %v10808
  %v10814 = vmul.f32 1.0, %v10813
  %v10815 = vrcp.pop %v8883
  %v10816 = vmul.f32 %v8883, %v10815
  %v10817 = vsub.f32 1.0, %v10816
  %v10818 = vmul.f32 %v10815, %v10817
  %v10819 = vadd.f32 %v10815, %v10818
  %vm10820 = vweird.f32 %v8883
  %vm10821 = vweird.f32 %v10815
  %vm10822 = vmor %vm10820, %vm10821
  %v10823 = vsel %vm10822, %v10815, %v10819
  %v10824 = vand.u32 2147483647, %v8883
  %vm10825 = vcmp.eq.f32.partialorder %v10824, 8.507059e+37
  %v10826 = vand.u32 %v8883, 2147483648
  %v10827 = vor.u32 1.1754944e-38, %v10826
  %v10828 = vsel %vm10825, %v10827, %v10823
  %v10829 = vmul.f32 1.0, %v10828
  %v10830 = vrcp.pop %v8884
  %v10831 = vmul.f32 %v8884, %v10830
  %v10832 = vsub.f32 1.0, %v10831
  %v10833 = vmul.f32 %v10830, %v10832
  %v10834 = vadd.f32 %v10830, %v10833
  %vm10835 = vweird.f32 %v8884
  %vm10836 = vweird.f32 %v10830
  %vm10837 = vmor %vm10835, %vm10836
  %v10838 = vsel %vm10837, %v10830, %v10834
  %v10839 = vand.u32 2147483647, %v8884
  %vm10840 = vcmp.eq.f32.partialorder %v10839, 8.507059e+37
  %v10841 = vand.u32 %v8884, 2147483648
  %v10842 = vor.u32 1.1754944e-38, %v10841
  %v10843 = vsel %vm10840, %v10842, %v10838
  %v10844 = vmul.f32 1.0, %v10843
  %v10845 = vrcp.pop %v8885
  %v10846 = vmul.f32 %v8885, %v10845
  %v10847 = vsub.f32 1.0, %v10846
  %v10848 = vmul.f32 %v10845, %v10847
  %v10849 = vadd.f32 %v10845, %v10848
  %vm10850 = vweird.f32 %v8885
  %vm10851 = vweird.f32 %v10845
  %vm10852 = vmor %vm10850, %vm10851
  %v10853 = vsel %vm10852, %v10845, %v10849
  %v10854 = vand.u32 2147483647, %v8885
  %vm10855 = vcmp.eq.f32.partialorder %v10854, 8.507059e+37
  %v10856 = vand.u32 %v8885, 2147483648
  %v10857 = vor.u32 1.1754944e-38, %v10856
  %v10858 = vsel %vm10855, %v10857, %v10853
  %v10859 = vmul.f32 1.0, %v10858
  %v10860 = vrcp.pop %v8886
  %v10861 = vmul.f32 %v8886, %v10860
  %v10862 = vsub.f32 1.0, %v10861
  %v10863 = vmul.f32 %v10860, %v10862
  %v10864 = vadd.f32 %v10860, %v10863
  %vm10865 = vweird.f32 %v8886
  %vm10866 = vweird.f32 %v10860
  %vm10867 = vmor %vm10865, %vm10866
  %v10868 = vsel %vm10867, %v10860, %v10864
  %v10869 = vand.u32 2147483647, %v8886
  %vm10870 = vcmp.eq.f32.partialorder %v10869, 8.507059e+37
  %v10871 = vand.u32 %v8886, 2147483648
  %v10872 = vor.u32 1.1754944e-38, %v10871
  %v10873 = vsel %vm10870, %v10872, %v10868
  %v10874 = vmul.f32 1.0, %v10873
  %v10875 = vrcp.pop %v8887
  %v10876 = vmul.f32 %v8887, %v10875
  %v10877 = vsub.f32 1.0, %v10876
  %v10878 = vmul.f32 %v10875, %v10877
  %v10879 = vadd.f32 %v10875, %v10878
  %vm10880 = vweird.f32 %v8887
  %vm10881 = vweird.f32 %v10875
  %vm10882 = vmor %vm10880, %vm10881
  %v10883 = vsel %vm10882, %v10875, %v10879
  %v10884 = vand.u32 2147483647, %v8887
  %vm10885 = vcmp.eq.f32.partialorder %v10884, 8.507059e+37
  %v10886 = vand.u32 %v8887, 2147483648
  %v10887 = vor.u32 1.1754944e-38, %v10886
  %v10888 = vsel %vm10885, %v10887, %v10883
  %v10889 = vmul.f32 1.0, %v10888
  %v10890 = vrcp.pop %v8888
  %v10891 = vmul.f32 %v8888, %v10890
  %v10892 = vsub.f32 1.0, %v10891
  %v10893 = vmul.f32 %v10890, %v10892
  %v10894 = vadd.f32 %v10890, %v10893
  %vm10895 = vweird.f32 %v8888
  %vm10896 = vweird.f32 %v10890
  %vm10897 = vmor %vm10895, %vm10896
  %v10898 = vsel %vm10897, %v10890, %v10894
  %v10899 = vand.u32 2147483647, %v8888
  %vm10900 = vcmp.eq.f32.partialorder %v10899, 8.507059e+37
  %v10901 = vand.u32 %v8888, 2147483648
  %v10902 = vor.u32 1.1754944e-38, %v10901
  %v10903 = vsel %vm10900, %v10902, %v10898
  %v10904 = vmul.f32 1.0, %v10903
  %v10905 = vrcp.pop %v8889
  %v10906 = vmul.f32 %v8889, %v10905
  %v10907 = vsub.f32 1.0, %v10906
  %v10908 = vmul.f32 %v10905, %v10907
  %v10909 = vadd.f32 %v10905, %v10908
  %vm10910 = vweird.f32 %v8889
  %vm10911 = vweird.f32 %v10905
  %vm10912 = vmor %vm10910, %vm10911
  %v10913 = vsel %vm10912, %v10905, %v10909
  %v10914 = vand.u32 2147483647, %v8889
  %vm10915 = vcmp.eq.f32.partialorder %v10914, 8.507059e+37
  %v10916 = vand.u32 %v8889, 2147483648
  %v10917 = vor.u32 1.1754944e-38, %v10916
  %v10918 = vsel %vm10915, %v10917, %v10913
  %v10919 = vmul.f32 1.0, %v10918
  %v10920 = vrcp.pop %v8890
  %v10921 = vmul.f32 %v8890, %v10920
  %v10922 = vsub.f32 1.0, %v10921
  %v10923 = vmul.f32 %v10920, %v10922
  %v10924 = vadd.f32 %v10920, %v10923
  %vm10925 = vweird.f32 %v8890
  %vm10926 = vweird.f32 %v10920
  %vm10927 = vmor %vm10925, %vm10926
  %v10928 = vsel %vm10927, %v10920, %v10924
  %v10929 = vand.u32 2147483647, %v8890
  %vm10930 = vcmp.eq.f32.partialorder %v10929, 8.507059e+37
  %v10931 = vand.u32 %v8890, 2147483648
  %v10932 = vor.u32 1.1754944e-38, %v10931
  %v10933 = vsel %vm10930, %v10932, %v10928
  %v10934 = vmul.f32 1.0, %v10933
  %v10935 = vrcp.pop %v8891
  %v10936 = vmul.f32 %v8891, %v10935
  %v10937 = vsub.f32 1.0, %v10936
  %v10938 = vmul.f32 %v10935, %v10937
  %v10939 = vadd.f32 %v10935, %v10938
  %vm10940 = vweird.f32 %v8891
  %vm10941 = vweird.f32 %v10935
  %vm10942 = vmor %vm10940, %vm10941
  %v10943 = vsel %vm10942, %v10935, %v10939
  %v10944 = vand.u32 2147483647, %v8891
  %vm10945 = vcmp.eq.f32.partialorder %v10944, 8.507059e+37
  %v10946 = vand.u32 %v8891, 2147483648
  %v10947 = vor.u32 1.1754944e-38, %v10946
  %v10948 = vsel %vm10945, %v10947, %v10943
  %v10949 = vmul.f32 1.0, %v10948
  %v10950 = vrcp.pop %v8892
  %v10951 = vmul.f32 %v8892, %v10950
  %v10952 = vsub.f32 1.0, %v10951
  %v10953 = vmul.f32 %v10950, %v10952
  %v10954 = vadd.f32 %v10950, %v10953
  %vm10955 = vweird.f32 %v8892
  %vm10956 = vweird.f32 %v10950
  %vm10957 = vmor %vm10955, %vm10956
  %v10958 = vsel %vm10957, %v10950, %v10954
  %v10959 = vand.u32 2147483647, %v8892
  %vm10960 = vcmp.eq.f32.partialorder %v10959, 8.507059e+37
  %v10961 = vand.u32 %v8892, 2147483648
  %v10962 = vor.u32 1.1754944e-38, %v10961
  %v10963 = vsel %vm10960, %v10962, %v10958
  %v10964 = vmul.f32 1.0, %v10963
  %v10965 = vrcp.pop %v8893
  %v10966 = vmul.f32 %v8893, %v10965
  %v10967 = vsub.f32 1.0, %v10966
  %v10968 = vmul.f32 %v10965, %v10967
  %v10969 = vadd.f32 %v10965, %v10968
  %vm10970 = vweird.f32 %v8893
  %vm10971 = vweird.f32 %v10965
  %vm10972 = vmor %vm10970, %vm10971
  %v10973 = vsel %vm10972, %v10965, %v10969
  %v10974 = vand.u32 2147483647, %v8893
  %vm10975 = vcmp.eq.f32.partialorder %v10974, 8.507059e+37
  %v10976 = vand.u32 %v8893, 2147483648
  %v10977 = vor.u32 1.1754944e-38, %v10976
  %v10978 = vsel %vm10975, %v10977, %v10973
  %v10979 = vmul.f32 1.0, %v10978
  %v10980 = vrcp.pop %v8894
  %v10981 = vmul.f32 %v8894, %v10980
  %v10982 = vsub.f32 1.0, %v10981
  %v10983 = vmul.f32 %v10980, %v10982
  %v10984 = vadd.f32 %v10980, %v10983
  %vm10985 = vweird.f32 %v8894
  %vm10986 = vweird.f32 %v10980
  %vm10987 = vmor %vm10985, %vm10986
  %v10988 = vsel %vm10987, %v10980, %v10984
  %v10989 = vand.u32 2147483647, %v8894
  %vm10990 = vcmp.eq.f32.partialorder %v10989, 8.507059e+37
  %v10991 = vand.u32 %v8894, 2147483648
  %v10992 = vor.u32 1.1754944e-38, %v10991
  %v10993 = vsel %vm10990, %v10992, %v10988
  %v10994 = vmul.f32 1.0, %v10993
  %v10995 = vrcp.pop %v8895
  %v10996 = vmul.f32 %v8895, %v10995
  %v10997 = vsub.f32 1.0, %v10996
  %v10998 = vmul.f32 %v10995, %v10997
  %v10999 = vadd.f32 %v10995, %v10998
  %vm11000 = vweird.f32 %v8895
  %vm11001 = vweird.f32 %v10995
  %vm11002 = vmor %vm11000, %vm11001
  %v11003 = vsel %vm11002, %v10995, %v10999
  %v11004 = vand.u32 2147483647, %v8895
  %vm11005 = vcmp.eq.f32.partialorder %v11004, 8.507059e+37
  %v11006 = vand.u32 %v8895, 2147483648
  %v11007 = vor.u32 1.1754944e-38, %v11006
  %v11008 = vsel %vm11005, %v11007, %v11003
  %v11009 = vmul.f32 1.0, %v11008
  %v11010 = vrcp.pop %v8896
  %v11011 = vmul.f32 %v8896, %v11010
  %v11012 = vsub.f32 1.0, %v11011
  %v11013 = vmul.f32 %v11010, %v11012
  %v11014 = vadd.f32 %v11010, %v11013
  %vm11015 = vweird.f32 %v8896
  %vm11016 = vweird.f32 %v11010
  %vm11017 = vmor %vm11015, %vm11016
  %v11018 = vsel %vm11017, %v11010, %v11014
  %v11019 = vand.u32 2147483647, %v8896
  %vm11020 = vcmp.eq.f32.partialorder %v11019, 8.507059e+37
  %v11021 = vand.u32 %v8896, 2147483648
  %v11022 = vor.u32 1.1754944e-38, %v11021
  %v11023 = vsel %vm11020, %v11022, %v11018
  %v11024 = vmul.f32 1.0, %v11023
  %v11025 = vrcp.pop %v8897
  %v11026 = vmul.f32 %v8897, %v11025
  %v11027 = vsub.f32 1.0, %v11026
  %v11028 = vmul.f32 %v11025, %v11027
  %v11029 = vadd.f32 %v11025, %v11028
  %vm11030 = vweird.f32 %v8897
  %vm11031 = vweird.f32 %v11025
  %vm11032 = vmor %vm11030, %vm11031
  %v11033 = vsel %vm11032, %v11025, %v11029
  %v11034 = vand.u32 2147483647, %v8897
  %vm11035 = vcmp.eq.f32.partialorder %v11034, 8.507059e+37
  %v11036 = vand.u32 %v8897, 2147483648
  %v11037 = vor.u32 1.1754944e-38, %v11036
  %v11038 = vsel %vm11035, %v11037, %v11033
  %v11039 = vmul.f32 1.0, %v11038
  %v11040 = vrcp.pop %v8898
  %v11041 = vmul.f32 %v8898, %v11040
  %v11042 = vsub.f32 1.0, %v11041
  %v11043 = vmul.f32 %v11040, %v11042
  %v11044 = vadd.f32 %v11040, %v11043
  %vm11045 = vweird.f32 %v8898
  %vm11046 = vweird.f32 %v11040
  %vm11047 = vmor %vm11045, %vm11046
  %v11048 = vsel %vm11047, %v11040, %v11044
  %v11049 = vand.u32 2147483647, %v8898
  %vm11050 = vcmp.eq.f32.partialorder %v11049, 8.507059e+37
  %v11051 = vand.u32 %v8898, 2147483648
  %v11052 = vor.u32 1.1754944e-38, %v11051
  %v11053 = vsel %vm11050, %v11052, %v11048
  %v11054 = vmul.f32 1.0, %v11053
  %v11055 = vrcp.pop %v8899
  %v11056 = vmul.f32 %v8899, %v11055
  %v11057 = vsub.f32 1.0, %v11056
  %v11058 = vmul.f32 %v11055, %v11057
  %v11059 = vadd.f32 %v11055, %v11058
  %vm11060 = vweird.f32 %v8899
  %vm11061 = vweird.f32 %v11055
  %vm11062 = vmor %vm11060, %vm11061
  %v11063 = vsel %vm11062, %v11055, %v11059
  %v11064 = vand.u32 2147483647, %v8899
  %vm11065 = vcmp.eq.f32.partialorder %v11064, 8.507059e+37
  %v11066 = vand.u32 %v8899, 2147483648
  %v11067 = vor.u32 1.1754944e-38, %v11066
  %v11068 = vsel %vm11065, %v11067, %v11063
  %v11069 = vmul.f32 1.0, %v11068
  %v11070 = vrcp.pop %v8900
  %v11071 = vmul.f32 %v8900, %v11070
  %v11072 = vsub.f32 1.0, %v11071
  %v11073 = vmul.f32 %v11070, %v11072
  %v11074 = vadd.f32 %v11070, %v11073
  %vm11075 = vweird.f32 %v8900
  %vm11076 = vweird.f32 %v11070
  %vm11077 = vmor %vm11075, %vm11076
  %v11078 = vsel %vm11077, %v11070, %v11074
  %v11079 = vand.u32 2147483647, %v8900
  %vm11080 = vcmp.eq.f32.partialorder %v11079, 8.507059e+37
  %v11081 = vand.u32 %v8900, 2147483648
  %v11082 = vor.u32 1.1754944e-38, %v11081
  %v11083 = vsel %vm11080, %v11082, %v11078
  %v11084 = vmul.f32 1.0, %v11083
  %v11085 = vrcp.pop %v8901
  %v11086 = vmul.f32 %v8901, %v11085
  %v11087 = vsub.f32 1.0, %v11086
  %v11088 = vmul.f32 %v11085, %v11087
  %v11089 = vadd.f32 %v11085, %v11088
  %vm11090 = vweird.f32 %v8901
  %vm11091 = vweird.f32 %v11085
  %vm11092 = vmor %vm11090, %vm11091
  %v11093 = vsel %vm11092, %v11085, %v11089
  %v11094 = vand.u32 2147483647, %v8901
  %vm11095 = vcmp.eq.f32.partialorder %v11094, 8.507059e+37
  %v11096 = vand.u32 %v8901, 2147483648
  %v11097 = vor.u32 1.1754944e-38, %v11096
  %v11098 = vsel %vm11095, %v11097, %v11093
  %v11099 = vmul.f32 1.0, %v11098
  %v11100 = vrcp.pop %v8902
  %v11101 = vmul.f32 %v8902, %v11100
  %v11102 = vsub.f32 1.0, %v11101
  %v11103 = vmul.f32 %v11100, %v11102
  %v11104 = vadd.f32 %v11100, %v11103
  %vm11105 = vweird.f32 %v8902
  %vm11106 = vweird.f32 %v11100
  %vm11107 = vmor %vm11105, %vm11106
  %v11108 = vsel %vm11107, %v11100, %v11104
  %v11109 = vand.u32 2147483647, %v8902
  %vm11110 = vcmp.eq.f32.partialorder %v11109, 8.507059e+37
  %v11111 = vand.u32 %v8902, 2147483648
  %v11112 = vor.u32 1.1754944e-38, %v11111
  %v11113 = vsel %vm11110, %v11112, %v11108
  %v11114 = vmul.f32 1.0, %v11113
  %v11115 = vrcp.pop %v8903
  %v11116 = vmul.f32 %v8903, %v11115
  %v11117 = vsub.f32 1.0, %v11116
  %v11118 = vmul.f32 %v11115, %v11117
  %v11119 = vadd.f32 %v11115, %v11118
  %vm11120 = vweird.f32 %v8903
  %vm11121 = vweird.f32 %v11115
  %vm11122 = vmor %vm11120, %vm11121
  %v11123 = vsel %vm11122, %v11115, %v11119
  %v11124 = vand.u32 2147483647, %v8903
  %vm11125 = vcmp.eq.f32.partialorder %v11124, 8.507059e+37
  %v11126 = vand.u32 %v8903, 2147483648
  %v11127 = vor.u32 1.1754944e-38, %v11126
  %v11128 = vsel %vm11125, %v11127, %v11123
  %v11129 = vmul.f32 1.0, %v11128
  %v11130 = vrcp.pop %v8904
  %v11131 = vmul.f32 %v8904, %v11130
  %v11132 = vsub.f32 1.0, %v11131
  %v11133 = vmul.f32 %v11130, %v11132
  %v11134 = vadd.f32 %v11130, %v11133
  %vm11135 = vweird.f32 %v8904
  %vm11136 = vweird.f32 %v11130
  %vm11137 = vmor %vm11135, %vm11136
  %v11138 = vsel %vm11137, %v11130, %v11134
  %v11139 = vand.u32 2147483647, %v8904
  %vm11140 = vcmp.eq.f32.partialorder %v11139, 8.507059e+37
  %v11141 = vand.u32 %v8904, 2147483648
  %v11142 = vor.u32 1.1754944e-38, %v11141
  %v11143 = vsel %vm11140, %v11142, %v11138
  %v11144 = vmul.f32 1.0, %v11143
  %v11145 = vrcp.pop %v8905
  %v11146 = vmul.f32 %v8905, %v11145
  %v11147 = vsub.f32 1.0, %v11146
  %v11148 = vmul.f32 %v11145, %v11147
  %v11149 = vadd.f32 %v11145, %v11148
  %vm11150 = vweird.f32 %v8905
  %vm11151 = vweird.f32 %v11145
  %vm11152 = vmor %vm11150, %vm11151
  %v11153 = vsel %vm11152, %v11145, %v11149
  %v11154 = vand.u32 2147483647, %v8905
  %vm11155 = vcmp.eq.f32.partialorder %v11154, 8.507059e+37
  %v11156 = vand.u32 %v8905, 2147483648
  %v11157 = vor.u32 1.1754944e-38, %v11156
  %v11158 = vsel %vm11155, %v11157, %v11153
  %v11159 = vmul.f32 1.0, %v11158
  %v11160 = vrcp.pop %v8906
  %v11161 = vmul.f32 %v8906, %v11160
  %v11162 = vsub.f32 1.0, %v11161
  %v11163 = vmul.f32 %v11160, %v11162
  %v11164 = vadd.f32 %v11160, %v11163
  %vm11165 = vweird.f32 %v8906
  %vm11166 = vweird.f32 %v11160
  %vm11167 = vmor %vm11165, %vm11166
  %v11168 = vsel %vm11167, %v11160, %v11164
  %v11169 = vand.u32 2147483647, %v8906
  %vm11170 = vcmp.eq.f32.partialorder %v11169, 8.507059e+37
  %v11171 = vand.u32 %v8906, 2147483648
  %v11172 = vor.u32 1.1754944e-38, %v11171
  %v11173 = vsel %vm11170, %v11172, %v11168
  %v11174 = vmul.f32 1.0, %v11173
  %v11175 = vrcp.pop %v8907
  %v11176 = vmul.f32 %v8907, %v11175
  %v11177 = vsub.f32 1.0, %v11176
  %v11178 = vmul.f32 %v11175, %v11177
  %v11179 = vadd.f32 %v11175, %v11178
  %vm11180 = vweird.f32 %v8907
  %vm11181 = vweird.f32 %v11175
  %vm11182 = vmor %vm11180, %vm11181
  %v11183 = vsel %vm11182, %v11175, %v11179
  %v11184 = vand.u32 2147483647, %v8907
  %vm11185 = vcmp.eq.f32.partialorder %v11184, 8.507059e+37
  %v11186 = vand.u32 %v8907, 2147483648
  %v11187 = vor.u32 1.1754944e-38, %v11186
  %v11188 = vsel %vm11185, %v11187, %v11183
  %v11189 = vmul.f32 1.0, %v11188
  %v11190 = vrcp.pop %v8908
  %v11191 = vmul.f32 %v8908, %v11190
  %v11192 = vsub.f32 1.0, %v11191
  %v11193 = vmul.f32 %v11190, %v11192
  %v11194 = vadd.f32 %v11190, %v11193
  %vm11195 = vweird.f32 %v8908
  %vm11196 = vweird.f32 %v11190
  %vm11197 = vmor %vm11195, %vm11196
  %v11198 = vsel %vm11197, %v11190, %v11194
  %v11199 = vand.u32 2147483647, %v8908
  %vm11200 = vcmp.eq.f32.partialorder %v11199, 8.507059e+37
  %v11201 = vand.u32 %v8908, 2147483648
  %v11202 = vor.u32 1.1754944e-38, %v11201
  %v11203 = vsel %vm11200, %v11202, %v11198
  %v11204 = vmul.f32 1.0, %v11203
  %v11205 = vrcp.pop %v8909
  %v11206 = vmul.f32 %v8909, %v11205
  %v11207 = vsub.f32 1.0, %v11206
  %v11208 = vmul.f32 %v11205, %v11207
  %v11209 = vadd.f32 %v11205, %v11208
  %vm11210 = vweird.f32 %v8909
  %vm11211 = vweird.f32 %v11205
  %vm11212 = vmor %vm11210, %vm11211
  %v11213 = vsel %vm11212, %v11205, %v11209
  %v11214 = vand.u32 2147483647, %v8909
  %vm11215 = vcmp.eq.f32.partialorder %v11214, 8.507059e+37
  %v11216 = vand.u32 %v8909, 2147483648
  %v11217 = vor.u32 1.1754944e-38, %v11216
  %v11218 = vsel %vm11215, %v11217, %v11213
  %v11219 = vmul.f32 1.0, %v11218
  %v11220 = vrcp.pop %v8910
  %v11221 = vmul.f32 %v8910, %v11220
  %v11222 = vsub.f32 1.0, %v11221
  %v11223 = vmul.f32 %v11220, %v11222
  %v11224 = vadd.f32 %v11220, %v11223
  %vm11225 = vweird.f32 %v8910
  %vm11226 = vweird.f32 %v11220
  %vm11227 = vmor %vm11225, %vm11226
  %v11228 = vsel %vm11227, %v11220, %v11224
  %v11229 = vand.u32 2147483647, %v8910
  %vm11230 = vcmp.eq.f32.partialorder %v11229, 8.507059e+37
  %v11231 = vand.u32 %v8910, 2147483648
  %v11232 = vor.u32 1.1754944e-38, %v11231
  %v11233 = vsel %vm11230, %v11232, %v11228
  %v11234 = vmul.f32 1.0, %v11233
  %v11235 = vrcp.pop %v8911
  %v11236 = vmul.f32 %v8911, %v11235
  %v11237 = vsub.f32 1.0, %v11236
  %v11238 = vmul.f32 %v11235, %v11237
  %v11239 = vadd.f32 %v11235, %v11238
  %vm11240 = vweird.f32 %v8911
  %vm11241 = vweird.f32 %v11235
  %vm11242 = vmor %vm11240, %vm11241
  %v11243 = vsel %vm11242, %v11235, %v11239
  %v11244 = vand.u32 2147483647, %v8911
  %vm11245 = vcmp.eq.f32.partialorder %v11244, 8.507059e+37
  %v11246 = vand.u32 %v8911, 2147483648
  %v11247 = vor.u32 1.1754944e-38, %v11246
  %v11248 = vsel %vm11245, %v11247, %v11243
  %v11249 = vmul.f32 1.0, %v11248
  %v11250 = vrcp.pop %v8912
  %v11251 = vmul.f32 %v8912, %v11250
  %v11252 = vsub.f32 1.0, %v11251
  %v11253 = vmul.f32 %v11250, %v11252
  %v11254 = vadd.f32 %v11250, %v11253
  %vm11255 = vweird.f32 %v8912
  %vm11256 = vweird.f32 %v11250
  %vm11257 = vmor %vm11255, %vm11256
  %v11258 = vsel %vm11257, %v11250, %v11254
  %v11259 = vand.u32 2147483647, %v8912
  %vm11260 = vcmp.eq.f32.partialorder %v11259, 8.507059e+37
  %v11261 = vand.u32 %v8912, 2147483648
  %v11262 = vor.u32 1.1754944e-38, %v11261
  %v11263 = vsel %vm11260, %v11262, %v11258
  %v11264 = vmul.f32 1.0, %v11263
  %v11265 = vrcp.pop %v8913
  %v11266 = vmul.f32 %v8913, %v11265
  %v11267 = vsub.f32 1.0, %v11266
  %v11268 = vmul.f32 %v11265, %v11267
  %v11269 = vadd.f32 %v11265, %v11268
  %vm11270 = vweird.f32 %v8913
  %vm11271 = vweird.f32 %v11265
  %vm11272 = vmor %vm11270, %vm11271
  %v11273 = vsel %vm11272, %v11265, %v11269
  %v11274 = vand.u32 2147483647, %v8913
  %vm11275 = vcmp.eq.f32.partialorder %v11274, 8.507059e+37
  %v11276 = vand.u32 %v8913, 2147483648
  %v11277 = vor.u32 1.1754944e-38, %v11276
  %v11278 = vsel %vm11275, %v11277, %v11273
  %v11279 = vmul.f32 1.0, %v11278
  %v11280 = vrcp.pop %v8914
  %v11281 = vmul.f32 %v8914, %v11280
  %v11282 = vsub.f32 1.0, %v11281
  %v11283 = vmul.f32 %v11280, %v11282
  %v11284 = vadd.f32 %v11280, %v11283
  %vm11285 = vweird.f32 %v8914
  %vm11286 = vweird.f32 %v11280
  %vm11287 = vmor %vm11285, %vm11286
  %v11288 = vsel %vm11287, %v11280, %v11284
  %v11289 = vand.u32 2147483647, %v8914
  %vm11290 = vcmp.eq.f32.partialorder %v11289, 8.507059e+37
  %v11291 = vand.u32 %v8914, 2147483648
  %v11292 = vor.u32 1.1754944e-38, %v11291
  %v11293 = vsel %vm11290, %v11292, %v11288
  %v11294 = vmul.f32 1.0, %v11293
  %v11295 = vrcp.pop %v8915
  %v11296 = vmul.f32 %v8915, %v11295
  %v11297 = vsub.f32 1.0, %v11296
  %v11298 = vmul.f32 %v11295, %v11297
  %v11299 = vadd.f32 %v11295, %v11298
  %vm11300 = vweird.f32 %v8915
  %vm11301 = vweird.f32 %v11295
  %vm11302 = vmor %vm11300, %vm11301
  %v11303 = vsel %vm11302, %v11295, %v11299
  %v11304 = vand.u32 2147483647, %v8915
  %vm11305 = vcmp.eq.f32.partialorder %v11304, 8.507059e+37
  %v11306 = vand.u32 %v8915, 2147483648
  %v11307 = vor.u32 1.1754944e-38, %v11306
  %v11308 = vsel %vm11305, %v11307, %v11303
  %v11309 = vmul.f32 1.0, %v11308
  %v11310 = vrcp.pop %v8916
  %v11311 = vmul.f32 %v8916, %v11310
  %v11312 = vsub.f32 1.0, %v11311
  %v11313 = vmul.f32 %v11310, %v11312
  %v11314 = vadd.f32 %v11310, %v11313
  %vm11315 = vweird.f32 %v8916
  %vm11316 = vweird.f32 %v11310
  %vm11317 = vmor %vm11315, %vm11316
  %v11318 = vsel %vm11317, %v11310, %v11314
  %v11319 = vand.u32 2147483647, %v8916
  %vm11320 = vcmp.eq.f32.partialorder %v11319, 8.507059e+37
  %v11321 = vand.u32 %v8916, 2147483648
  %v11322 = vor.u32 1.1754944e-38, %v11321
  %v11323 = vsel %vm11320, %v11322, %v11318
  %v11324 = vmul.f32 1.0, %v11323
  %v11325 = vrcp.pop %v8917
  %v11326 = vmul.f32 %v8917, %v11325
  %v11327 = vsub.f32 1.0, %v11326
  %v11328 = vmul.f32 %v11325, %v11327
  %v11329 = vadd.f32 %v11325, %v11328
  %vm11330 = vweird.f32 %v8917
  %vm11331 = vweird.f32 %v11325
  %vm11332 = vmor %vm11330, %vm11331
  %v11333 = vsel %vm11332, %v11325, %v11329
  %v11334 = vand.u32 2147483647, %v8917
  %vm11335 = vcmp.eq.f32.partialorder %v11334, 8.507059e+37
  %v11336 = vand.u32 %v8917, 2147483648
  %v11337 = vor.u32 1.1754944e-38, %v11336
  %v11338 = vsel %vm11335, %v11337, %v11333
  %v11339 = vmul.f32 1.0, %v11338
  %v11340 = vrcp.pop %v8918
  %v11341 = vmul.f32 %v8918, %v11340
  %v11342 = vsub.f32 1.0, %v11341
  %v11343 = vmul.f32 %v11340, %v11342
  %v11344 = vadd.f32 %v11340, %v11343
  %vm11345 = vweird.f32 %v8918
  %vm11346 = vweird.f32 %v11340
  %vm11347 = vmor %vm11345, %vm11346
  %v11348 = vsel %vm11347, %v11340, %v11344
  %v11349 = vand.u32 2147483647, %v8918
  %vm11350 = vcmp.eq.f32.partialorder %v11349, 8.507059e+37
  %v11351 = vand.u32 %v8918, 2147483648
  %v11352 = vor.u32 1.1754944e-38, %v11351
  %v11353 = vsel %vm11350, %v11352, %v11348
  %v11354 = vmul.f32 1.0, %v11353
  %v11355 = vrcp.pop %v8919
  %v11356 = vmul.f32 %v8919, %v11355
  %v11357 = vsub.f32 1.0, %v11356
  %v11358 = vmul.f32 %v11355, %v11357
  %v11359 = vadd.f32 %v11355, %v11358
  %vm11360 = vweird.f32 %v8919
  %vm11361 = vweird.f32 %v11355
  %vm11362 = vmor %vm11360, %vm11361
  %v11363 = vsel %vm11362, %v11355, %v11359
  %v11364 = vand.u32 2147483647, %v8919
  %vm11365 = vcmp.eq.f32.partialorder %v11364, 8.507059e+37
  %v11366 = vand.u32 %v8919, 2147483648
  %v11367 = vor.u32 1.1754944e-38, %v11366
  %v11368 = vsel %vm11365, %v11367, %v11363
  %v11369 = vmul.f32 1.0, %v11368
  %v11370 = vrcp.pop %v8920
  %v11371 = vmul.f32 %v8920, %v11370
  %v11372 = vsub.f32 1.0, %v11371
  %v11373 = vmul.f32 %v11370, %v11372
  %v11374 = vadd.f32 %v11370, %v11373
  %vm11375 = vweird.f32 %v8920
  %vm11376 = vweird.f32 %v11370
  %vm11377 = vmor %vm11375, %vm11376
  %v11378 = vsel %vm11377, %v11370, %v11374
  %v11379 = vand.u32 2147483647, %v8920
  %vm11380 = vcmp.eq.f32.partialorder %v11379, 8.507059e+37
  %v11381 = vand.u32 %v8920, 2147483648
  %v11382 = vor.u32 1.1754944e-38, %v11381
  %v11383 = vsel %vm11380, %v11382, %v11378
  %v11384 = vmul.f32 1.0, %v11383
  %v11385 = vrcp.pop %v8921
  %v11386 = vmul.f32 %v8921, %v11385
  %v11387 = vsub.f32 1.0, %v11386
  %v11388 = vmul.f32 %v11385, %v11387
  %v11389 = vadd.f32 %v11385, %v11388
  %vm11390 = vweird.f32 %v8921
  %vm11391 = vweird.f32 %v11385
  %vm11392 = vmor %vm11390, %vm11391
  %v11393 = vsel %vm11392, %v11385, %v11389
  %v11394 = vand.u32 2147483647, %v8921
  %vm11395 = vcmp.eq.f32.partialorder %v11394, 8.507059e+37
  %v11396 = vand.u32 %v8921, 2147483648
  %v11397 = vor.u32 1.1754944e-38, %v11396
  %v11398 = vsel %vm11395, %v11397, %v11393
  %v11399 = vmul.f32 1.0, %v11398
  %v11400 = vrcp.pop %v8922
  %v11401 = vmul.f32 %v8922, %v11400
  %v11402 = vsub.f32 1.0, %v11401
  %v11403 = vmul.f32 %v11400, %v11402
  %v11404 = vadd.f32 %v11400, %v11403
  %vm11405 = vweird.f32 %v8922
  %vm11406 = vweird.f32 %v11400
  %vm11407 = vmor %vm11405, %vm11406
  %v11408 = vsel %vm11407, %v11400, %v11404
  %v11409 = vand.u32 2147483647, %v8922
  %vm11410 = vcmp.eq.f32.partialorder %v11409, 8.507059e+37
  %v11411 = vand.u32 %v8922, 2147483648
  %v11412 = vor.u32 1.1754944e-38, %v11411
  %v11413 = vsel %vm11410, %v11412, %v11408
  %v11414 = vmul.f32 1.0, %v11413
  %v11415 = vrcp.pop %v8923
  %v11416 = vmul.f32 %v8923, %v11415
  %v11417 = vsub.f32 1.0, %v11416
  %v11418 = vmul.f32 %v11415, %v11417
  %v11419 = vadd.f32 %v11415, %v11418
  %vm11420 = vweird.f32 %v8923
  %vm11421 = vweird.f32 %v11415
  %vm11422 = vmor %vm11420, %vm11421
  %v11423 = vsel %vm11422, %v11415, %v11419
  %v11424 = vand.u32 2147483647, %v8923
  %vm11425 = vcmp.eq.f32.partialorder %v11424, 8.507059e+37
  %v11426 = vand.u32 %v8923, 2147483648
  %v11427 = vor.u32 1.1754944e-38, %v11426
  %v11428 = vsel %vm11425, %v11427, %v11423
  %v11429 = vmul.f32 1.0, %v11428
  %v11430 = vrcp.pop %v8924
  %v11431 = vmul.f32 %v8924, %v11430
  %v11432 = vsub.f32 1.0, %v11431
  %v11433 = vmul.f32 %v11430, %v11432
  %v11434 = vadd.f32 %v11430, %v11433
  %vm11435 = vweird.f32 %v8924
  %vm11436 = vweird.f32 %v11430
  %vm11437 = vmor %vm11435, %vm11436
  %v11438 = vsel %vm11437, %v11430, %v11434
  %v11439 = vand.u32 2147483647, %v8924
  %vm11440 = vcmp.eq.f32.partialorder %v11439, 8.507059e+37
  %v11441 = vand.u32 %v8924, 2147483648
  %v11442 = vor.u32 1.1754944e-38, %v11441
  %v11443 = vsel %vm11440, %v11442, %v11438
  %v11444 = vmul.f32 1.0, %v11443
  %v11445 = vrcp.pop %v8925
  %v11446 = vmul.f32 %v8925, %v11445
  %v11447 = vsub.f32 1.0, %v11446
  %v11448 = vmul.f32 %v11445, %v11447
  %v11449 = vadd.f32 %v11445, %v11448
  %vm11450 = vweird.f32 %v8925
  %vm11451 = vweird.f32 %v11445
  %vm11452 = vmor %vm11450, %vm11451
  %v11453 = vsel %vm11452, %v11445, %v11449
  %v11454 = vand.u32 2147483647, %v8925
  %vm11455 = vcmp.eq.f32.partialorder %v11454, 8.507059e+37
  %v11456 = vand.u32 %v8925, 2147483648
  %v11457 = vor.u32 1.1754944e-38, %v11456
  %v11458 = vsel %vm11455, %v11457, %v11453
  %v11459 = vmul.f32 1.0, %v11458
  %v11460 = vrcp.pop %v8926
  %v11461 = vmul.f32 %v8926, %v11460
  %v11462 = vsub.f32 1.0, %v11461
  %v11463 = vmul.f32 %v11460, %v11462
  %v11464 = vadd.f32 %v11460, %v11463
  %vm11465 = vweird.f32 %v8926
  %vm11466 = vweird.f32 %v11460
  %vm11467 = vmor %vm11465, %vm11466
  %v11468 = vsel %vm11467, %v11460, %v11464
  %v11469 = vand.u32 2147483647, %v8926
  %vm11470 = vcmp.eq.f32.partialorder %v11469, 8.507059e+37
  %v11471 = vand.u32 %v8926, 2147483648
  %v11472 = vor.u32 1.1754944e-38, %v11471
  %v11473 = vsel %vm11470, %v11472, %v11468
  %v11474 = vmul.f32 1.0, %v11473
  %v11475 = vrcp.pop %v8927
  %v11476 = vmul.f32 %v8927, %v11475
  %v11477 = vsub.f32 1.0, %v11476
  %v11478 = vmul.f32 %v11475, %v11477
  %v11479 = vadd.f32 %v11475, %v11478
  %vm11480 = vweird.f32 %v8927
  %vm11481 = vweird.f32 %v11475
  %vm11482 = vmor %vm11480, %vm11481
  %v11483 = vsel %vm11482, %v11475, %v11479
  %v11484 = vand.u32 2147483647, %v8927
  %vm11485 = vcmp.eq.f32.partialorder %v11484, 8.507059e+37
  %v11486 = vand.u32 %v8927, 2147483648
  %v11487 = vor.u32 1.1754944e-38, %v11486
  %v11488 = vsel %vm11485, %v11487, %v11483
  %v11489 = vmul.f32 1.0, %v11488
  %v11490 = vrcp.pop %v8928
  %v11491 = vmul.f32 %v8928, %v11490
  %v11492 = vsub.f32 1.0, %v11491
  %v11493 = vmul.f32 %v11490, %v11492
  %v11494 = vadd.f32 %v11490, %v11493
  %vm11495 = vweird.f32 %v8928
  %vm11496 = vweird.f32 %v11490
  %vm11497 = vmor %vm11495, %vm11496
  %v11498 = vsel %vm11497, %v11490, %v11494
  %v11499 = vand.u32 2147483647, %v8928
  %vm11500 = vcmp.eq.f32.partialorder %v11499, 8.507059e+37
  %v11501 = vand.u32 %v8928, 2147483648
  %v11502 = vor.u32 1.1754944e-38, %v11501
  %v11503 = vsel %vm11500, %v11502, %v11498
  %v11504 = vmul.f32 1.0, %v11503
  %v11505 = vrcp.pop %v8929
  %v11506 = vmul.f32 %v8929, %v11505
  %v11507 = vsub.f32 1.0, %v11506
  %v11508 = vmul.f32 %v11505, %v11507
  %v11509 = vadd.f32 %v11505, %v11508
  %vm11510 = vweird.f32 %v8929
  %vm11511 = vweird.f32 %v11505
  %vm11512 = vmor %vm11510, %vm11511
  %v11513 = vsel %vm11512, %v11505, %v11509
  %v11514 = vand.u32 2147483647, %v8929
  %vm11515 = vcmp.eq.f32.partialorder %v11514, 8.507059e+37
  %v11516 = vand.u32 %v8929, 2147483648
  %v11517 = vor.u32 1.1754944e-38, %v11516
  %v11518 = vsel %vm11515, %v11517, %v11513
  %v11519 = vmul.f32 1.0, %v11518
  %v11520 = vrcp.pop %v8930
  %v11521 = vmul.f32 %v8930, %v11520
  %v11522 = vsub.f32 1.0, %v11521
  %v11523 = vmul.f32 %v11520, %v11522
  %v11524 = vadd.f32 %v11520, %v11523
  %vm11525 = vweird.f32 %v8930
  %vm11526 = vweird.f32 %v11520
  %vm11527 = vmor %vm11525, %vm11526
  %v11528 = vsel %vm11527, %v11520, %v11524
  %v11529 = vand.u32 2147483647, %v8930
  %vm11530 = vcmp.eq.f32.partialorder %v11529, 8.507059e+37
  %v11531 = vand.u32 %v8930, 2147483648
  %v11532 = vor.u32 1.1754944e-38, %v11531
  %v11533 = vsel %vm11530, %v11532, %v11528
  %v11534 = vmul.f32 1.0, %v11533
  %v11535 = vrcp.pop %v8931
  %v11536 = vmul.f32 %v8931, %v11535
  %v11537 = vsub.f32 1.0, %v11536
  %v11538 = vmul.f32 %v11535, %v11537
  %v11539 = vadd.f32 %v11535, %v11538
  %vm11540 = vweird.f32 %v8931
  %vm11541 = vweird.f32 %v11535
  %vm11542 = vmor %vm11540, %vm11541
  %v11543 = vsel %vm11542, %v11535, %v11539
  %v11544 = vand.u32 2147483647, %v8931
  %vm11545 = vcmp.eq.f32.partialorder %v11544, 8.507059e+37
  %v11546 = vand.u32 %v8931, 2147483648
  %v11547 = vor.u32 1.1754944e-38, %v11546
  %v11548 = vsel %vm11545, %v11547, %v11543
  %v11549 = vmul.f32 1.0, %v11548
  %v11550 = vrcp.pop %v8932
  %v11551 = vmul.f32 %v8932, %v11550
  %v11552 = vsub.f32 1.0, %v11551
  %v11553 = vmul.f32 %v11550, %v11552
  %v11554 = vadd.f32 %v11550, %v11553
  %vm11555 = vweird.f32 %v8932
  %vm11556 = vweird.f32 %v11550
  %vm11557 = vmor %vm11555, %vm11556
  %v11558 = vsel %vm11557, %v11550, %v11554
  %v11559 = vand.u32 2147483647, %v8932
  %vm11560 = vcmp.eq.f32.partialorder %v11559, 8.507059e+37
  %v11561 = vand.u32 %v8932, 2147483648
  %v11562 = vor.u32 1.1754944e-38, %v11561
  %v11563 = vsel %vm11560, %v11562, %v11558
  %v11564 = vmul.f32 1.0, %v11563
  %v11565 = vrcp.pop %v8933
  %v11566 = vmul.f32 %v8933, %v11565
  %v11567 = vsub.f32 1.0, %v11566
  %v11568 = vmul.f32 %v11565, %v11567
  %v11569 = vadd.f32 %v11565, %v11568
  %vm11570 = vweird.f32 %v8933
  %vm11571 = vweird.f32 %v11565
  %vm11572 = vmor %vm11570, %vm11571
  %v11573 = vsel %vm11572, %v11565, %v11569
  %v11574 = vand.u32 2147483647, %v8933
  %vm11575 = vcmp.eq.f32.partialorder %v11574, 8.507059e+37
  %v11576 = vand.u32 %v8933, 2147483648
  %v11577 = vor.u32 1.1754944e-38, %v11576
  %v11578 = vsel %vm11575, %v11577, %v11573
  %v11579 = vmul.f32 1.0, %v11578
  %v11580 = vrcp.pop %v8934
  %v11581 = vmul.f32 %v8934, %v11580
  %v11582 = vsub.f32 1.0, %v11581
  %v11583 = vmul.f32 %v11580, %v11582
  %v11584 = vadd.f32 %v11580, %v11583
  %vm11585 = vweird.f32 %v8934
  %vm11586 = vweird.f32 %v11580
  %vm11587 = vmor %vm11585, %vm11586
  %v11588 = vsel %vm11587, %v11580, %v11584
  %v11589 = vand.u32 2147483647, %v8934
  %vm11590 = vcmp.eq.f32.partialorder %v11589, 8.507059e+37
  %v11591 = vand.u32 %v8934, 2147483648
  %v11592 = vor.u32 1.1754944e-38, %v11591
  %v11593 = vsel %vm11590, %v11592, %v11588
  %v11594 = vmul.f32 1.0, %v11593
  %v11595 = vrcp.pop %v8935
  %v11596 = vmul.f32 %v8935, %v11595
  %v11597 = vsub.f32 1.0, %v11596
  %v11598 = vmul.f32 %v11595, %v11597
  %v11599 = vadd.f32 %v11595, %v11598
  %vm11600 = vweird.f32 %v8935
  %vm11601 = vweird.f32 %v11595
  %vm11602 = vmor %vm11600, %vm11601
  %v11603 = vsel %vm11602, %v11595, %v11599
  %v11604 = vand.u32 2147483647, %v8935
  %vm11605 = vcmp.eq.f32.partialorder %v11604, 8.507059e+37
  %v11606 = vand.u32 %v8935, 2147483648
  %v11607 = vor.u32 1.1754944e-38, %v11606
  %v11608 = vsel %vm11605, %v11607, %v11603
  %v11609 = vmul.f32 1.0, %v11608
  %v11610 = vrcp.pop %v8936
  %v11611 = vmul.f32 %v8936, %v11610
  %v11612 = vsub.f32 1.0, %v11611
  %v11613 = vmul.f32 %v11610, %v11612
  %v11614 = vadd.f32 %v11610, %v11613
  %vm11615 = vweird.f32 %v8936
  %vm11616 = vweird.f32 %v11610
  %vm11617 = vmor %vm11615, %vm11616
  %v11618 = vsel %vm11617, %v11610, %v11614
  %v11619 = vand.u32 2147483647, %v8936
  %vm11620 = vcmp.eq.f32.partialorder %v11619, 8.507059e+37
  %v11621 = vand.u32 %v8936, 2147483648
  %v11622 = vor.u32 1.1754944e-38, %v11621
  %v11623 = vsel %vm11620, %v11622, %v11618
  %v11624 = vmul.f32 1.0, %v11623
  %v11625 = vrcp.pop %v8937
  %v11626 = vmul.f32 %v8937, %v11625
  %v11627 = vsub.f32 1.0, %v11626
  %v11628 = vmul.f32 %v11625, %v11627
  %v11629 = vadd.f32 %v11625, %v11628
  %vm11630 = vweird.f32 %v8937
  %vm11631 = vweird.f32 %v11625
  %vm11632 = vmor %vm11630, %vm11631
  %v11633 = vsel %vm11632, %v11625, %v11629
  %v11634 = vand.u32 2147483647, %v8937
  %vm11635 = vcmp.eq.f32.partialorder %v11634, 8.507059e+37
  %v11636 = vand.u32 %v8937, 2147483648
  %v11637 = vor.u32 1.1754944e-38, %v11636
  %v11638 = vsel %vm11635, %v11637, %v11633
  %v11639 = vmul.f32 1.0, %v11638
  %v11640 = vrcp.pop %v8938
  %v11641 = vmul.f32 %v8938, %v11640
  %v11642 = vsub.f32 1.0, %v11641
  %v11643 = vmul.f32 %v11640, %v11642
  %v11644 = vadd.f32 %v11640, %v11643
  %vm11645 = vweird.f32 %v8938
  %vm11646 = vweird.f32 %v11640
  %vm11647 = vmor %vm11645, %vm11646
  %v11648 = vsel %vm11647, %v11640, %v11644
  %v11649 = vand.u32 2147483647, %v8938
  %vm11650 = vcmp.eq.f32.partialorder %v11649, 8.507059e+37
  %v11651 = vand.u32 %v8938, 2147483648
  %v11652 = vor.u32 1.1754944e-38, %v11651
  %v11653 = vsel %vm11650, %v11652, %v11648
  %v11654 = vmul.f32 1.0, %v11653
  %v11655 = vrcp.pop %v8939
  %v11656 = vmul.f32 %v8939, %v11655
  %v11657 = vsub.f32 1.0, %v11656
  %v11658 = vmul.f32 %v11655, %v11657
  %v11659 = vadd.f32 %v11655, %v11658
  %vm11660 = vweird.f32 %v8939
  %vm11661 = vweird.f32 %v11655
  %vm11662 = vmor %vm11660, %vm11661
  %v11663 = vsel %vm11662, %v11655, %v11659
  %v11664 = vand.u32 2147483647, %v8939
  %vm11665 = vcmp.eq.f32.partialorder %v11664, 8.507059e+37
  %v11666 = vand.u32 %v8939, 2147483648
  %v11667 = vor.u32 1.1754944e-38, %v11666
  %v11668 = vsel %vm11665, %v11667, %v11663
  %v11669 = vmul.f32 1.0, %v11668
  %v11670 = vrcp.pop %v8940
  %v11671 = vmul.f32 %v8940, %v11670
  %v11672 = vsub.f32 1.0, %v11671
  %v11673 = vmul.f32 %v11670, %v11672
  %v11674 = vadd.f32 %v11670, %v11673
  %vm11675 = vweird.f32 %v8940
  %vm11676 = vweird.f32 %v11670
  %vm11677 = vmor %vm11675, %vm11676
  %v11678 = vsel %vm11677, %v11670, %v11674
  %v11679 = vand.u32 2147483647, %v8940
  %vm11680 = vcmp.eq.f32.partialorder %v11679, 8.507059e+37
  %v11681 = vand.u32 %v8940, 2147483648
  %v11682 = vor.u32 1.1754944e-38, %v11681
  %v11683 = vsel %vm11680, %v11682, %v11678
  %v11684 = vmul.f32 1.0, %v11683
  %v11685 = vrcp.pop %v8941
  %v11686 = vmul.f32 %v8941, %v11685
  %v11687 = vsub.f32 1.0, %v11686
  %v11688 = vmul.f32 %v11685, %v11687
  %v11689 = vadd.f32 %v11685, %v11688
  %vm11690 = vweird.f32 %v8941
  %vm11691 = vweird.f32 %v11685
  %vm11692 = vmor %vm11690, %vm11691
  %v11693 = vsel %vm11692, %v11685, %v11689
  %v11694 = vand.u32 2147483647, %v8941
  %vm11695 = vcmp.eq.f32.partialorder %v11694, 8.507059e+37
  %v11696 = vand.u32 %v8941, 2147483648
  %v11697 = vor.u32 1.1754944e-38, %v11696
  %v11698 = vsel %vm11695, %v11697, %v11693
  %v11699 = vmul.f32 1.0, %v11698
  %v11700 = vrcp.pop %v8942
  %v11701 = vmul.f32 %v8942, %v11700
  %v11702 = vsub.f32 1.0, %v11701
  %v11703 = vmul.f32 %v11700, %v11702
  %v11704 = vadd.f32 %v11700, %v11703
  %vm11705 = vweird.f32 %v8942
  %vm11706 = vweird.f32 %v11700
  %vm11707 = vmor %vm11705, %vm11706
  %v11708 = vsel %vm11707, %v11700, %v11704
  %v11709 = vand.u32 2147483647, %v8942
  %vm11710 = vcmp.eq.f32.partialorder %v11709, 8.507059e+37
  %v11711 = vand.u32 %v8942, 2147483648
  %v11712 = vor.u32 1.1754944e-38, %v11711
  %v11713 = vsel %vm11710, %v11712, %v11708
  %v11714 = vmul.f32 1.0, %v11713
  %v11715 = vrcp.pop %v8943
  %v11716 = vmul.f32 %v8943, %v11715
  %v11717 = vsub.f32 1.0, %v11716
  %v11718 = vmul.f32 %v11715, %v11717
  %v11719 = vadd.f32 %v11715, %v11718
  %vm11720 = vweird.f32 %v8943
  %vm11721 = vweird.f32 %v11715
  %vm11722 = vmor %vm11720, %vm11721
  %v11723 = vsel %vm11722, %v11715, %v11719
  %v11724 = vand.u32 2147483647, %v8943
  %vm11725 = vcmp.eq.f32.partialorder %v11724, 8.507059e+37
  %v11726 = vand.u32 %v8943, 2147483648
  %v11727 = vor.u32 1.1754944e-38, %v11726
  %v11728 = vsel %vm11725, %v11727, %v11723
  %v11729 = vmul.f32 1.0, %v11728
  %v11730 = vrcp.pop %v8944
  %v11731 = vmul.f32 %v8944, %v11730
  %v11732 = vsub.f32 1.0, %v11731
  %v11733 = vmul.f32 %v11730, %v11732
  %v11734 = vadd.f32 %v11730, %v11733
  %vm11735 = vweird.f32 %v8944
  %vm11736 = vweird.f32 %v11730
  %vm11737 = vmor %vm11735, %vm11736
  %v11738 = vsel %vm11737, %v11730, %v11734
  %v11739 = vand.u32 2147483647, %v8944
  %vm11740 = vcmp.eq.f32.partialorder %v11739, 8.507059e+37
  %v11741 = vand.u32 %v8944, 2147483648
  %v11742 = vor.u32 1.1754944e-38, %v11741
  %v11743 = vsel %vm11740, %v11742, %v11738
  %v11744 = vmul.f32 1.0, %v11743
  %v11745 = vrcp.pop %v8945
  %v11746 = vmul.f32 %v8945, %v11745
  %v11747 = vsub.f32 1.0, %v11746
  %v11748 = vmul.f32 %v11745, %v11747
  %v11749 = vadd.f32 %v11745, %v11748
  %vm11750 = vweird.f32 %v8945
  %vm11751 = vweird.f32 %v11745
  %vm11752 = vmor %vm11750, %vm11751
  %v11753 = vsel %vm11752, %v11745, %v11749
  %v11754 = vand.u32 2147483647, %v8945
  %vm11755 = vcmp.eq.f32.partialorder %v11754, 8.507059e+37
  %v11756 = vand.u32 %v8945, 2147483648
  %v11757 = vor.u32 1.1754944e-38, %v11756
  %v11758 = vsel %vm11755, %v11757, %v11753
  %v11759 = vmul.f32 1.0, %v11758
  %v11760 = vrcp.pop %v8946
  %v11761 = vmul.f32 %v8946, %v11760
  %v11762 = vsub.f32 1.0, %v11761
  %v11763 = vmul.f32 %v11760, %v11762
  %v11764 = vadd.f32 %v11760, %v11763
  %vm11765 = vweird.f32 %v8946
  %vm11766 = vweird.f32 %v11760
  %vm11767 = vmor %vm11765, %vm11766
  %v11768 = vsel %vm11767, %v11760, %v11764
  %v11769 = vand.u32 2147483647, %v8946
  %vm11770 = vcmp.eq.f32.partialorder %v11769, 8.507059e+37
  %v11771 = vand.u32 %v8946, 2147483648
  %v11772 = vor.u32 1.1754944e-38, %v11771
  %v11773 = vsel %vm11770, %v11772, %v11768
  %v11774 = vmul.f32 1.0, %v11773
  %v11775 = vrcp.pop %v8947
  %v11776 = vmul.f32 %v8947, %v11775
  %v11777 = vsub.f32 1.0, %v11776
  %v11778 = vmul.f32 %v11775, %v11777
  %v11779 = vadd.f32 %v11775, %v11778
  %vm11780 = vweird.f32 %v8947
  %vm11781 = vweird.f32 %v11775
  %vm11782 = vmor %vm11780, %vm11781
  %v11783 = vsel %vm11782, %v11775, %v11779
  %v11784 = vand.u32 2147483647, %v8947
  %vm11785 = vcmp.eq.f32.partialorder %v11784, 8.507059e+37
  %v11786 = vand.u32 %v8947, 2147483648
  %v11787 = vor.u32 1.1754944e-38, %v11786
  %v11788 = vsel %vm11785, %v11787, %v11783
  %v11789 = vmul.f32 1.0, %v11788
  %v11790 = vrcp.pop %v8948
  %v11791 = vmul.f32 %v8948, %v11790
  %v11792 = vsub.f32 1.0, %v11791
  %v11793 = vmul.f32 %v11790, %v11792
  %v11794 = vadd.f32 %v11790, %v11793
  %vm11795 = vweird.f32 %v8948
  %vm11796 = vweird.f32 %v11790
  %vm11797 = vmor %vm11795, %vm11796
  %v11798 = vsel %vm11797, %v11790, %v11794
  %v11799 = vand.u32 2147483647, %v8948
  %vm11800 = vcmp.eq.f32.partialorder %v11799, 8.507059e+37
  %v11801 = vand.u32 %v8948, 2147483648
  %v11802 = vor.u32 1.1754944e-38, %v11801
  %v11803 = vsel %vm11800, %v11802, %v11798
  %v11804 = vmul.f32 1.0, %v11803
  %v11805 = vrcp.pop %v8949
  %v11806 = vmul.f32 %v8949, %v11805
  %v11807 = vsub.f32 1.0, %v11806
  %v11808 = vmul.f32 %v11805, %v11807
  %v11809 = vadd.f32 %v11805, %v11808
  %vm11810 = vweird.f32 %v8949
  %vm11811 = vweird.f32 %v11805
  %vm11812 = vmor %vm11810, %vm11811
  %v11813 = vsel %vm11812, %v11805, %v11809
  %v11814 = vand.u32 2147483647, %v8949
  %vm11815 = vcmp.eq.f32.partialorder %v11814, 8.507059e+37
  %v11816 = vand.u32 %v8949, 2147483648
  %v11817 = vor.u32 1.1754944e-38, %v11816
  %v11818 = vsel %vm11815, %v11817, %v11813
  %v11819 = vmul.f32 1.0, %v11818
  %v11820 = vrcp.pop %v8950
  %v11821 = vmul.f32 %v8950, %v11820
  %v11822 = vsub.f32 1.0, %v11821
  %v11823 = vmul.f32 %v11820, %v11822
  %v11824 = vadd.f32 %v11820, %v11823
  %vm11825 = vweird.f32 %v8950
  %vm11826 = vweird.f32 %v11820
  %vm11827 = vmor %vm11825, %vm11826
  %v11828 = vsel %vm11827, %v11820, %v11824
  %v11829 = vand.u32 2147483647, %v8950
  %vm11830 = vcmp.eq.f32.partialorder %v11829, 8.507059e+37
  %v11831 = vand.u32 %v8950, 2147483648
  %v11832 = vor.u32 1.1754944e-38, %v11831
  %v11833 = vsel %vm11830, %v11832, %v11828
  %v11834 = vmul.f32 1.0, %v11833
  %v11835 = vrcp.pop %v8951
  %v11836 = vmul.f32 %v8951, %v11835
  %v11837 = vsub.f32 1.0, %v11836
  %v11838 = vmul.f32 %v11835, %v11837
  %v11839 = vadd.f32 %v11835, %v11838
  %vm11840 = vweird.f32 %v8951
  %vm11841 = vweird.f32 %v11835
  %vm11842 = vmor %vm11840, %vm11841
  %v11843 = vsel %vm11842, %v11835, %v11839
  %v11844 = vand.u32 2147483647, %v8951
  %vm11845 = vcmp.eq.f32.partialorder %v11844, 8.507059e+37
  %v11846 = vand.u32 %v8951, 2147483648
  %v11847 = vor.u32 1.1754944e-38, %v11846
  %v11848 = vsel %vm11845, %v11847, %v11843
  %v11849 = vmul.f32 1.0, %v11848
  %v11850 = vrcp.pop %v8952
  %v11851 = vmul.f32 %v8952, %v11850
  %v11852 = vsub.f32 1.0, %v11851
  %v11853 = vmul.f32 %v11850, %v11852
  %v11854 = vadd.f32 %v11850, %v11853
  %vm11855 = vweird.f32 %v8952
  %vm11856 = vweird.f32 %v11850
  %vm11857 = vmor %vm11855, %vm11856
  %v11858 = vsel %vm11857, %v11850, %v11854
  %v11859 = vand.u32 2147483647, %v8952
  %vm11860 = vcmp.eq.f32.partialorder %v11859, 8.507059e+37
  %v11861 = vand.u32 %v8952, 2147483648
  %v11862 = vor.u32 1.1754944e-38, %v11861
  %v11863 = vsel %vm11860, %v11862, %v11858
  %v11864 = vmul.f32 1.0, %v11863
  %v11865 = vrcp.pop %v8953
  %v11866 = vmul.f32 %v8953, %v11865
  %v11867 = vsub.f32 1.0, %v11866
  %v11868 = vmul.f32 %v11865, %v11867
  %v11869 = vadd.f32 %v11865, %v11868
  %vm11870 = vweird.f32 %v8953
  %vm11871 = vweird.f32 %v11865
  %vm11872 = vmor %vm11870, %vm11871
  %v11873 = vsel %vm11872, %v11865, %v11869
  %v11874 = vand.u32 2147483647, %v8953
  %vm11875 = vcmp.eq.f32.partialorder %v11874, 8.507059e+37
  %v11876 = vand.u32 %v8953, 2147483648
  %v11877 = vor.u32 1.1754944e-38, %v11876
  %v11878 = vsel %vm11875, %v11877, %v11873
  %v11879 = vmul.f32 1.0, %v11878
  %v11880 = vrcp.pop %v8954
  %v11881 = vmul.f32 %v8954, %v11880
  %v11882 = vsub.f32 1.0, %v11881
  %v11883 = vmul.f32 %v11880, %v11882
  %v11884 = vadd.f32 %v11880, %v11883
  %vm11885 = vweird.f32 %v8954
  %vm11886 = vweird.f32 %v11880
  %vm11887 = vmor %vm11885, %vm11886
  %v11888 = vsel %vm11887, %v11880, %v11884
  %v11889 = vand.u32 2147483647, %v8954
  %vm11890 = vcmp.eq.f32.partialorder %v11889, 8.507059e+37
  %v11891 = vand.u32 %v8954, 2147483648
  %v11892 = vor.u32 1.1754944e-38, %v11891
  %v11893 = vsel %vm11890, %v11892, %v11888
  %v11894 = vmul.f32 1.0, %v11893
  %v11895 = vrcp.pop %v8955
  %v11896 = vmul.f32 %v8955, %v11895
  %v11897 = vsub.f32 1.0, %v11896
  %v11898 = vmul.f32 %v11895, %v11897
  %v11899 = vadd.f32 %v11895, %v11898
  %vm11900 = vweird.f32 %v8955
  %vm11901 = vweird.f32 %v11895
  %vm11902 = vmor %vm11900, %vm11901
  %v11903 = vsel %vm11902, %v11895, %v11899
  %v11904 = vand.u32 2147483647, %v8955
  %vm11905 = vcmp.eq.f32.partialorder %v11904, 8.507059e+37
  %v11906 = vand.u32 %v8955, 2147483648
  %v11907 = vor.u32 1.1754944e-38, %v11906
  %v11908 = vsel %vm11905, %v11907, %v11903
  %v11909 = vmul.f32 1.0, %v11908
  %v11910 = vrcp.pop %v8956
  %v11911 = vmul.f32 %v8956, %v11910
  %v11912 = vsub.f32 1.0, %v11911
  %v11913 = vmul.f32 %v11910, %v11912
  %v11914 = vadd.f32 %v11910, %v11913
  %vm11915 = vweird.f32 %v8956
  %vm11916 = vweird.f32 %v11910
  %vm11917 = vmor %vm11915, %vm11916
  %v11918 = vsel %vm11917, %v11910, %v11914
  %v11919 = vand.u32 2147483647, %v8956
  %vm11920 = vcmp.eq.f32.partialorder %v11919, 8.507059e+37
  %v11921 = vand.u32 %v8956, 2147483648
  %v11922 = vor.u32 1.1754944e-38, %v11921
  %v11923 = vsel %vm11920, %v11922, %v11918
  %v11924 = vmul.f32 1.0, %v11923
  %v11925 = vrcp.pop %v8957
  %v11926 = vmul.f32 %v8957, %v11925
  %v11927 = vsub.f32 1.0, %v11926
  %v11928 = vmul.f32 %v11925, %v11927
  %v11929 = vadd.f32 %v11925, %v11928
  %vm11930 = vweird.f32 %v8957
  %vm11931 = vweird.f32 %v11925
  %vm11932 = vmor %vm11930, %vm11931
  %v11933 = vsel %vm11932, %v11925, %v11929
  %v11934 = vand.u32 2147483647, %v8957
  %vm11935 = vcmp.eq.f32.partialorder %v11934, 8.507059e+37
  %v11936 = vand.u32 %v8957, 2147483648
  %v11937 = vor.u32 1.1754944e-38, %v11936
  %v11938 = vsel %vm11935, %v11937, %v11933
  %v11939 = vmul.f32 1.0, %v11938
  %v11940 = vrcp.pop %v8958
  %v11941 = vmul.f32 %v8958, %v11940
  %v11942 = vsub.f32 1.0, %v11941
  %v11943 = vmul.f32 %v11940, %v11942
  %v11944 = vadd.f32 %v11940, %v11943
  %vm11945 = vweird.f32 %v8958
  %vm11946 = vweird.f32 %v11940
  %vm11947 = vmor %vm11945, %vm11946
  %v11948 = vsel %vm11947, %v11940, %v11944
  %v11949 = vand.u32 2147483647, %v8958
  %vm11950 = vcmp.eq.f32.partialorder %v11949, 8.507059e+37
  %v11951 = vand.u32 %v8958, 2147483648
  %v11952 = vor.u32 1.1754944e-38, %v11951
  %v11953 = vsel %vm11950, %v11952, %v11948
  %v11954 = vmul.f32 1.0, %v11953
  %v11955 = vrcp.pop %v8959
  %v11956 = vmul.f32 %v8959, %v11955
  %v11957 = vsub.f32 1.0, %v11956
  %v11958 = vmul.f32 %v11955, %v11957
  %v11959 = vadd.f32 %v11955, %v11958
  %vm11960 = vweird.f32 %v8959
  %vm11961 = vweird.f32 %v11955
  %vm11962 = vmor %vm11960, %vm11961
  %v11963 = vsel %vm11962, %v11955, %v11959
  %v11964 = vand.u32 2147483647, %v8959
  %vm11965 = vcmp.eq.f32.partialorder %v11964, 8.507059e+37
  %v11966 = vand.u32 %v8959, 2147483648
  %v11967 = vor.u32 1.1754944e-38, %v11966
  %v11968 = vsel %vm11965, %v11967, %v11963
  %v11969 = vmul.f32 1.0, %v11968
  %v11970 = vrcp.pop %v8960
  %v11971 = vmul.f32 %v8960, %v11970
  %v11972 = vsub.f32 1.0, %v11971
  %v11973 = vmul.f32 %v11970, %v11972
  %v11974 = vadd.f32 %v11970, %v11973
  %vm11975 = vweird.f32 %v8960
  %vm11976 = vweird.f32 %v11970
  %vm11977 = vmor %vm11975, %vm11976
  %v11978 = vsel %vm11977, %v11970, %v11974
  %v11979 = vand.u32 2147483647, %v8960
  %vm11980 = vcmp.eq.f32.partialorder %v11979, 8.507059e+37
  %v11981 = vand.u32 %v8960, 2147483648
  %v11982 = vor.u32 1.1754944e-38, %v11981
  %v11983 = vsel %vm11980, %v11982, %v11978
  %v11984 = vmul.f32 1.0, %v11983
  %v11985 = vrcp.pop %v8961
  %v11986 = vmul.f32 %v8961, %v11985
  %v11987 = vsub.f32 1.0, %v11986
  %v11988 = vmul.f32 %v11985, %v11987
  %v11989 = vadd.f32 %v11985, %v11988
  %vm11990 = vweird.f32 %v8961
  %vm11991 = vweird.f32 %v11985
  %vm11992 = vmor %vm11990, %vm11991
  %v11993 = vsel %vm11992, %v11985, %v11989
  %v11994 = vand.u32 2147483647, %v8961
  %vm11995 = vcmp.eq.f32.partialorder %v11994, 8.507059e+37
  %v11996 = vand.u32 %v8961, 2147483648
  %v11997 = vor.u32 1.1754944e-38, %v11996
  %v11998 = vsel %vm11995, %v11997, %v11993
  %v11999 = vmul.f32 1.0, %v11998
  %v12000 = vrcp.pop %v8962
  %v12001 = vmul.f32 %v8962, %v12000
  %v12002 = vsub.f32 1.0, %v12001
  %v12003 = vmul.f32 %v12000, %v12002
  %v12004 = vadd.f32 %v12000, %v12003
  %vm12005 = vweird.f32 %v8962
  %vm12006 = vweird.f32 %v12000
  %vm12007 = vmor %vm12005, %vm12006
  %v12008 = vsel %vm12007, %v12000, %v12004
  %v12009 = vand.u32 2147483647, %v8962
  %vm12010 = vcmp.eq.f32.partialorder %v12009, 8.507059e+37
  %v12011 = vand.u32 %v8962, 2147483648
  %v12012 = vor.u32 1.1754944e-38, %v12011
  %v12013 = vsel %vm12010, %v12012, %v12008
  %v12014 = vmul.f32 1.0, %v12013
  %v12015 = vrcp.pop %v8963
  %v12016 = vmul.f32 %v8963, %v12015
  %v12017 = vsub.f32 1.0, %v12016
  %v12018 = vmul.f32 %v12015, %v12017
  %v12019 = vadd.f32 %v12015, %v12018
  %vm12020 = vweird.f32 %v8963
  %vm12021 = vweird.f32 %v12015
  %vm12022 = vmor %vm12020, %vm12021
  %v12023 = vsel %vm12022, %v12015, %v12019
  %v12024 = vand.u32 2147483647, %v8963
  %vm12025 = vcmp.eq.f32.partialorder %v12024, 8.507059e+37
  %v12026 = vand.u32 %v8963, 2147483648
  %v12027 = vor.u32 1.1754944e-38, %v12026
  %v12028 = vsel %vm12025, %v12027, %v12023
  %v12029 = vmul.f32 1.0, %v12028
  %v12030 = vrcp.pop %v8964
  %v12031 = vmul.f32 %v8964, %v12030
  %v12032 = vsub.f32 1.0, %v12031
  %v12033 = vmul.f32 %v12030, %v12032
  %v12034 = vadd.f32 %v12030, %v12033
  %vm12035 = vweird.f32 %v8964
  %vm12036 = vweird.f32 %v12030
  %vm12037 = vmor %vm12035, %vm12036
  %v12038 = vsel %vm12037, %v12030, %v12034
  %v12039 = vand.u32 2147483647, %v8964
  %vm12040 = vcmp.eq.f32.partialorder %v12039, 8.507059e+37
  %v12041 = vand.u32 %v8964, 2147483648
  %v12042 = vor.u32 1.1754944e-38, %v12041
  %v12043 = vsel %vm12040, %v12042, %v12038
  %v12044 = vmul.f32 1.0, %v12043
  %v12045 = vrcp.pop %v8965
  %v12046 = vmul.f32 %v8965, %v12045
  %v12047 = vsub.f32 1.0, %v12046
  %v12048 = vmul.f32 %v12045, %v12047
  %v12049 = vadd.f32 %v12045, %v12048
  %vm12050 = vweird.f32 %v8965
  %vm12051 = vweird.f32 %v12045
  %vm12052 = vmor %vm12050, %vm12051
  %v12053 = vsel %vm12052, %v12045, %v12049
  %v12054 = vand.u32 2147483647, %v8965
  %vm12055 = vcmp.eq.f32.partialorder %v12054, 8.507059e+37
  %v12056 = vand.u32 %v8965, 2147483648
  %v12057 = vor.u32 1.1754944e-38, %v12056
  %v12058 = vsel %vm12055, %v12057, %v12053
  %v12059 = vmul.f32 1.0, %v12058
  %v12060 = vrcp.pop %v8966
  %v12061 = vmul.f32 %v8966, %v12060
  %v12062 = vsub.f32 1.0, %v12061
  %v12063 = vmul.f32 %v12060, %v12062
  %v12064 = vadd.f32 %v12060, %v12063
  %vm12065 = vweird.f32 %v8966
  %vm12066 = vweird.f32 %v12060
  %vm12067 = vmor %vm12065, %vm12066
  %v12068 = vsel %vm12067, %v12060, %v12064
  %v12069 = vand.u32 2147483647, %v8966
  %vm12070 = vcmp.eq.f32.partialorder %v12069, 8.507059e+37
  %v12071 = vand.u32 %v8966, 2147483648
  %v12072 = vor.u32 1.1754944e-38, %v12071
  %v12073 = vsel %vm12070, %v12072, %v12068
  %v12074 = vmul.f32 1.0, %v12073
  %v12075 = vrcp.pop %v8967
  %v12076 = vmul.f32 %v8967, %v12075
  %v12077 = vsub.f32 1.0, %v12076
  %v12078 = vmul.f32 %v12075, %v12077
  %v12079 = vadd.f32 %v12075, %v12078
  %vm12080 = vweird.f32 %v8967
  %vm12081 = vweird.f32 %v12075
  %vm12082 = vmor %vm12080, %vm12081
  %v12083 = vsel %vm12082, %v12075, %v12079
  %v12084 = vand.u32 2147483647, %v8967
  %vm12085 = vcmp.eq.f32.partialorder %v12084, 8.507059e+37
  %v12086 = vand.u32 %v8967, 2147483648
  %v12087 = vor.u32 1.1754944e-38, %v12086
  %v12088 = vsel %vm12085, %v12087, %v12083
  %v12089 = vmul.f32 1.0, %v12088
  %v12090 = vrcp.pop %v8968
  %v12091 = vmul.f32 %v8968, %v12090
  %v12092 = vsub.f32 1.0, %v12091
  %v12093 = vmul.f32 %v12090, %v12092
  %v12094 = vadd.f32 %v12090, %v12093
  %vm12095 = vweird.f32 %v8968
  %vm12096 = vweird.f32 %v12090
  %vm12097 = vmor %vm12095, %vm12096
  %v12098 = vsel %vm12097, %v12090, %v12094
  %v12099 = vand.u32 2147483647, %v8968
  %vm12100 = vcmp.eq.f32.partialorder %v12099, 8.507059e+37
  %v12101 = vand.u32 %v8968, 2147483648
  %v12102 = vor.u32 1.1754944e-38, %v12101
  %v12103 = vsel %vm12100, %v12102, %v12098
  %v12104 = vmul.f32 1.0, %v12103
  %v12105 = vrcp.pop %v8969
  %v12106 = vmul.f32 %v8969, %v12105
  %v12107 = vsub.f32 1.0, %v12106
  %v12108 = vmul.f32 %v12105, %v12107
  %v12109 = vadd.f32 %v12105, %v12108
  %vm12110 = vweird.f32 %v8969
  %vm12111 = vweird.f32 %v12105
  %vm12112 = vmor %vm12110, %vm12111
  %v12113 = vsel %vm12112, %v12105, %v12109
  %v12114 = vand.u32 2147483647, %v8969
  %vm12115 = vcmp.eq.f32.partialorder %v12114, 8.507059e+37
  %v12116 = vand.u32 %v8969, 2147483648
  %v12117 = vor.u32 1.1754944e-38, %v12116
  %v12118 = vsel %vm12115, %v12117, %v12113
  %v12119 = vmul.f32 1.0, %v12118
  %v12120 = vrcp.pop %v8970
  %v12121 = vmul.f32 %v8970, %v12120
  %v12122 = vsub.f32 1.0, %v12121
  %v12123 = vmul.f32 %v12120, %v12122
  %v12124 = vadd.f32 %v12120, %v12123
  %vm12125 = vweird.f32 %v8970
  %vm12126 = vweird.f32 %v12120
  %vm12127 = vmor %vm12125, %vm12126
  %v12128 = vsel %vm12127, %v12120, %v12124
  %v12129 = vand.u32 2147483647, %v8970
  %vm12130 = vcmp.eq.f32.partialorder %v12129, 8.507059e+37
  %v12131 = vand.u32 %v8970, 2147483648
  %v12132 = vor.u32 1.1754944e-38, %v12131
  %v12133 = vsel %vm12130, %v12132, %v12128
  %v12134 = vmul.f32 1.0, %v12133
  %v12135 = vrcp.pop %v8971
  %v12136 = vmul.f32 %v8971, %v12135
  %v12137 = vsub.f32 1.0, %v12136
  %v12138 = vmul.f32 %v12135, %v12137
  %v12139 = vadd.f32 %v12135, %v12138
  %vm12140 = vweird.f32 %v8971
  %vm12141 = vweird.f32 %v12135
  %vm12142 = vmor %vm12140, %vm12141
  %v12143 = vsel %vm12142, %v12135, %v12139
  %v12144 = vand.u32 2147483647, %v8971
  %vm12145 = vcmp.eq.f32.partialorder %v12144, 8.507059e+37
  %v12146 = vand.u32 %v8971, 2147483648
  %v12147 = vor.u32 1.1754944e-38, %v12146
  %v12148 = vsel %vm12145, %v12147, %v12143
  %v12149 = vmul.f32 1.0, %v12148
  %v12150 = vrcp.pop %v8972
  %v12151 = vmul.f32 %v8972, %v12150
  %v12152 = vsub.f32 1.0, %v12151
  %v12153 = vmul.f32 %v12150, %v12152
  %v12154 = vadd.f32 %v12150, %v12153
  %vm12155 = vweird.f32 %v8972
  %vm12156 = vweird.f32 %v12150
  %vm12157 = vmor %vm12155, %vm12156
  %v12158 = vsel %vm12157, %v12150, %v12154
  %v12159 = vand.u32 2147483647, %v8972
  %vm12160 = vcmp.eq.f32.partialorder %v12159, 8.507059e+37
  %v12161 = vand.u32 %v8972, 2147483648
  %v12162 = vor.u32 1.1754944e-38, %v12161
  %v12163 = vsel %vm12160, %v12162, %v12158
  %v12164 = vmul.f32 1.0, %v12163
  %v12165 = vrcp.pop %v8973
  %v12166 = vmul.f32 %v8973, %v12165
  %v12167 = vsub.f32 1.0, %v12166
  %v12168 = vmul.f32 %v12165, %v12167
  %v12169 = vadd.f32 %v12165, %v12168
  %vm12170 = vweird.f32 %v8973
  %vm12171 = vweird.f32 %v12165
  %vm12172 = vmor %vm12170, %vm12171
  %v12173 = vsel %vm12172, %v12165, %v12169
  %v12174 = vand.u32 2147483647, %v8973
  %vm12175 = vcmp.eq.f32.partialorder %v12174, 8.507059e+37
  %v12176 = vand.u32 %v8973, 2147483648
  %v12177 = vor.u32 1.1754944e-38, %v12176
  %v12178 = vsel %vm12175, %v12177, %v12173
  %v12179 = vmul.f32 1.0, %v12178
  %v12180 = vrcp.pop %v8974
  %v12181 = vmul.f32 %v8974, %v12180
  %v12182 = vsub.f32 1.0, %v12181
  %v12183 = vmul.f32 %v12180, %v12182
  %v12184 = vadd.f32 %v12180, %v12183
  %vm12185 = vweird.f32 %v8974
  %vm12186 = vweird.f32 %v12180
  %vm12187 = vmor %vm12185, %vm12186
  %v12188 = vsel %vm12187, %v12180, %v12184
  %v12189 = vand.u32 2147483647, %v8974
  %vm12190 = vcmp.eq.f32.partialorder %v12189, 8.507059e+37
  %v12191 = vand.u32 %v8974, 2147483648
  %v12192 = vor.u32 1.1754944e-38, %v12191
  %v12193 = vsel %vm12190, %v12192, %v12188
  %v12194 = vmul.f32 1.0, %v12193
  %v12195 = vrcp.pop %v8975
  %v12196 = vmul.f32 %v8975, %v12195
  %v12197 = vsub.f32 1.0, %v12196
  %v12198 = vmul.f32 %v12195, %v12197
  %v12199 = vadd.f32 %v12195, %v12198
  %vm12200 = vweird.f32 %v8975
  %vm12201 = vweird.f32 %v12195
  %vm12202 = vmor %vm12200, %vm12201
  %v12203 = vsel %vm12202, %v12195, %v12199
  %v12204 = vand.u32 2147483647, %v8975
  %vm12205 = vcmp.eq.f32.partialorder %v12204, 8.507059e+37
  %v12206 = vand.u32 %v8975, 2147483648
  %v12207 = vor.u32 1.1754944e-38, %v12206
  %v12208 = vsel %vm12205, %v12207, %v12203
  %v12209 = vmul.f32 1.0, %v12208
  %v12210 = vrcp.pop %v8976
  %v12211 = vmul.f32 %v8976, %v12210
  %v12212 = vsub.f32 1.0, %v12211
  %v12213 = vmul.f32 %v12210, %v12212
  %v12214 = vadd.f32 %v12210, %v12213
  %vm12215 = vweird.f32 %v8976
  %vm12216 = vweird.f32 %v12210
  %vm12217 = vmor %vm12215, %vm12216
  %v12218 = vsel %vm12217, %v12210, %v12214
  %v12219 = vand.u32 2147483647, %v8976
  %vm12220 = vcmp.eq.f32.partialorder %v12219, 8.507059e+37
  %v12221 = vand.u32 %v8976, 2147483648
  %v12222 = vor.u32 1.1754944e-38, %v12221
  %v12223 = vsel %vm12220, %v12222, %v12218
  %v12224 = vmul.f32 1.0, %v12223
  %v12225 = vrcp.pop %v8977
  %v12226 = vmul.f32 %v8977, %v12225
  %v12227 = vsub.f32 1.0, %v12226
  %v12228 = vmul.f32 %v12225, %v12227
  %v12229 = vadd.f32 %v12225, %v12228
  %vm12230 = vweird.f32 %v8977
  %vm12231 = vweird.f32 %v12225
  %vm12232 = vmor %vm12230, %vm12231
  %v12233 = vsel %vm12232, %v12225, %v12229
  %v12234 = vand.u32 2147483647, %v8977
  %vm12235 = vcmp.eq.f32.partialorder %v12234, 8.507059e+37
  %v12236 = vand.u32 %v8977, 2147483648
  %v12237 = vor.u32 1.1754944e-38, %v12236
  %v12238 = vsel %vm12235, %v12237, %v12233
  %v12239 = vmul.f32 1.0, %v12238
  %v12240 = vrcp.pop %v8978
  %v12241 = vmul.f32 %v8978, %v12240
  %v12242 = vsub.f32 1.0, %v12241
  %v12243 = vmul.f32 %v12240, %v12242
  %v12244 = vadd.f32 %v12240, %v12243
  %vm12245 = vweird.f32 %v8978
  %vm12246 = vweird.f32 %v12240
  %vm12247 = vmor %vm12245, %vm12246
  %v12248 = vsel %vm12247, %v12240, %v12244
  %v12249 = vand.u32 2147483647, %v8978
  %vm12250 = vcmp.eq.f32.partialorder %v12249, 8.507059e+37
  %v12251 = vand.u32 %v8978, 2147483648
  %v12252 = vor.u32 1.1754944e-38, %v12251
  %v12253 = vsel %vm12250, %v12252, %v12248
  %v12254 = vmul.f32 1.0, %v12253
  %v12255 = vrcp.pop %v8979
  %v12256 = vmul.f32 %v8979, %v12255
  %v12257 = vsub.f32 1.0, %v12256
  %v12258 = vmul.f32 %v12255, %v12257
  %v12259 = vadd.f32 %v12255, %v12258
  %vm12260 = vweird.f32 %v8979
  %vm12261 = vweird.f32 %v12255
  %vm12262 = vmor %vm12260, %vm12261
  %v12263 = vsel %vm12262, %v12255, %v12259
  %v12264 = vand.u32 2147483647, %v8979
  %vm12265 = vcmp.eq.f32.partialorder %v12264, 8.507059e+37
  %v12266 = vand.u32 %v8979, 2147483648
  %v12267 = vor.u32 1.1754944e-38, %v12266
  %v12268 = vsel %vm12265, %v12267, %v12263
  %v12269 = vmul.f32 1.0, %v12268
  %v12270 = vrcp.pop %v8980
  %v12271 = vmul.f32 %v8980, %v12270
  %v12272 = vsub.f32 1.0, %v12271
  %v12273 = vmul.f32 %v12270, %v12272
  %v12274 = vadd.f32 %v12270, %v12273
  %vm12275 = vweird.f32 %v8980
  %vm12276 = vweird.f32 %v12270
  %vm12277 = vmor %vm12275, %vm12276
  %v12278 = vsel %vm12277, %v12270, %v12274
  %v12279 = vand.u32 2147483647, %v8980
  %vm12280 = vcmp.eq.f32.partialorder %v12279, 8.507059e+37
  %v12281 = vand.u32 %v8980, 2147483648
  %v12282 = vor.u32 1.1754944e-38, %v12281
  %v12283 = vsel %vm12280, %v12282, %v12278
  %v12284 = vmul.f32 1.0, %v12283
  %v12285 = vrcp.pop %v8981
  %v12286 = vmul.f32 %v8981, %v12285
  %v12287 = vsub.f32 1.0, %v12286
  %v12288 = vmul.f32 %v12285, %v12287
  %v12289 = vadd.f32 %v12285, %v12288
  %vm12290 = vweird.f32 %v8981
  %vm12291 = vweird.f32 %v12285
  %vm12292 = vmor %vm12290, %vm12291
  %v12293 = vsel %vm12292, %v12285, %v12289
  %v12294 = vand.u32 2147483647, %v8981
  %vm12295 = vcmp.eq.f32.partialorder %v12294, 8.507059e+37
  %v12296 = vand.u32 %v8981, 2147483648
  %v12297 = vor.u32 1.1754944e-38, %v12296
  %v12298 = vsel %vm12295, %v12297, %v12293
  %v12299 = vmul.f32 1.0, %v12298
  %v12300 = vrcp.pop %v8982
  %v12301 = vmul.f32 %v8982, %v12300
  %v12302 = vsub.f32 1.0, %v12301
  %v12303 = vmul.f32 %v12300, %v12302
  %v12304 = vadd.f32 %v12300, %v12303
  %vm12305 = vweird.f32 %v8982
  %vm12306 = vweird.f32 %v12300
  %vm12307 = vmor %vm12305, %vm12306
  %v12308 = vsel %vm12307, %v12300, %v12304
  %v12309 = vand.u32 2147483647, %v8982
  %vm12310 = vcmp.eq.f32.partialorder %v12309, 8.507059e+37
  %v12311 = vand.u32 %v8982, 2147483648
  %v12312 = vor.u32 1.1754944e-38, %v12311
  %v12313 = vsel %vm12310, %v12312, %v12308
  %v12314 = vmul.f32 1.0, %v12313
  %v12315 = vrcp.pop %v8983
  %v12316 = vmul.f32 %v8983, %v12315
  %v12317 = vsub.f32 1.0, %v12316
  %v12318 = vmul.f32 %v12315, %v12317
  %v12319 = vadd.f32 %v12315, %v12318
  %vm12320 = vweird.f32 %v8983
  %vm12321 = vweird.f32 %v12315
  %vm12322 = vmor %vm12320, %vm12321
  %v12323 = vsel %vm12322, %v12315, %v12319
  %v12324 = vand.u32 2147483647, %v8983
  %vm12325 = vcmp.eq.f32.partialorder %v12324, 8.507059e+37
  %v12326 = vand.u32 %v8983, 2147483648
  %v12327 = vor.u32 1.1754944e-38, %v12326
  %v12328 = vsel %vm12325, %v12327, %v12323
  %v12329 = vmul.f32 1.0, %v12328
  %v12330 = vrcp.pop %v8984
  %v12331 = vmul.f32 %v8984, %v12330
  %v12332 = vsub.f32 1.0, %v12331
  %v12333 = vmul.f32 %v12330, %v12332
  %v12334 = vadd.f32 %v12330, %v12333
  %vm12335 = vweird.f32 %v8984
  %vm12336 = vweird.f32 %v12330
  %vm12337 = vmor %vm12335, %vm12336
  %v12338 = vsel %vm12337, %v12330, %v12334
  %v12339 = vand.u32 2147483647, %v8984
  %vm12340 = vcmp.eq.f32.partialorder %v12339, 8.507059e+37
  %v12341 = vand.u32 %v8984, 2147483648
  %v12342 = vor.u32 1.1754944e-38, %v12341
  %v12343 = vsel %vm12340, %v12342, %v12338
  %v12344 = vmul.f32 1.0, %v12343
  %v12345 = vpack.c.bf16 %v9014, %v8999
  %v12346 = vpack.c.bf16 %v9044, %v9029
  %v12347 = vpack.c.bf16 %v9074, %v9059
  %v12348 = vpack.c.bf16 %v9089, %v9089
  %v12349 = vpack.c.bf16 %v9119, %v9104
  %v12350 = vpack.c.bf16 %v9149, %v9134
  %v12351 = vpack.c.bf16 %v9179, %v9164
  %v12352 = vpack.c.bf16 %v9194, %v9194
  %v12353 = vpack.c.bf16 %v9224, %v9209
  %v12354 = vpack.c.bf16 %v9254, %v9239
  %v12355 = vpack.c.bf16 %v9284, %v9269
  %v12356 = vpack.c.bf16 %v9299, %v9299
  %v12357 = vpack.c.bf16 %v9329, %v9314
  %v12358 = vpack.c.bf16 %v9359, %v9344
  %v12359 = vpack.c.bf16 %v9389, %v9374
  %v12360 = vpack.c.bf16 %v9404, %v9404
  %v12361 = vpack.c.bf16 %v9434, %v9419
  %v12362 = vpack.c.bf16 %v9464, %v9449
  %v12363 = vpack.c.bf16 %v9494, %v9479
  %v12364 = vpack.c.bf16 %v9509, %v9509
  %v12365 = vpack.c.bf16 %v9539, %v9524
  %v12366 = vpack.c.bf16 %v9569, %v9554
  %v12367 = vpack.c.bf16 %v9599, %v9584
  %v12368 = vpack.c.bf16 %v9614, %v9614
  %v12369 = vpack.c.bf16 %v9644, %v9629
  %v12370 = vpack.c.bf16 %v9674, %v9659
  %v12371 = vpack.c.bf16 %v9704, %v9689
  %v12372 = vpack.c.bf16 %v9719, %v9719
  %v12373 = vpack.c.bf16 %v9749, %v9734
  %v12374 = vpack.c.bf16 %v9779, %v9764
  %v12375 = vpack.c.bf16 %v9809, %v9794
  %v12376 = vpack.c.bf16 %v9824, %v9824
  %v12377 = vpack.c.bf16 %v9854, %v9839
  %v12378 = vpack.c.bf16 %v9884, %v9869
  %v12379 = vpack.c.bf16 %v9914, %v9899
  %v12380 = vpack.c.bf16 %v9929, %v9929
  %v12381 = vpack.c.bf16 %v9959, %v9944
  %v12382 = vpack.c.bf16 %v9989, %v9974
  %v12383 = vpack.c.bf16 %v10019, %v10004
  %v12384 = vpack.c.bf16 %v10034, %v10034
  %v12385 = vpack.c.bf16 %v10064, %v10049
  %v12386 = vpack.c.bf16 %v10094, %v10079
  %v12387 = vpack.c.bf16 %v10124, %v10109
  %v12388 = vpack.c.bf16 %v10139, %v10139
  %v12389 = vpack.c.bf16 %v10169, %v10154
  %v12390 = vpack.c.bf16 %v10199, %v10184
  %v12391 = vpack.c.bf16 %v10229, %v10214
  %v12392 = vpack.c.bf16 %v10244, %v10244
  %v12393 = vpack.c.bf16 %v10274, %v10259
  %v12394 = vpack.c.bf16 %v10304, %v10289
  %v12395 = vpack.c.bf16 %v10334, %v10319
  %v12396 = vpack.c.bf16 %v10349, %v10349
  %v12397 = vpack.c.bf16 %v10379, %v10364
  %v12398 = vpack.c.bf16 %v10409, %v10394
  %v12399 = vpack.c.bf16 %v10439, %v10424
  %v12400 = vpack.c.bf16 %v10454, %v10454
  %v12401 = vpack.c.bf16 %v10484, %v10469
  %v12402 = vpack.c.bf16 %v10514, %v10499
  %v12403 = vpack.c.bf16 %v10544, %v10529
  %v12404 = vpack.c.bf16 %v10559, %v10559
  %v12405 = vpack.c.bf16 %v10589, %v10574
  %v12406 = vpack.c.bf16 %v10619, %v10604
  %v12407 = vpack.c.bf16 %v10649, %v10634
  %v12408 = vpack.c.bf16 %v10664, %v10664
  %v12409 = vpack.c.bf16 %v10694, %v10679
  %v12410 = vpack.c.bf16 %v10724, %v10709
  %v12411 = vpack.c.bf16 %v10754, %v10739
  %v12412 = vpack.c.bf16 %v10769, %v10769
  %v12413 = vpack.c.bf16 %v10799, %v10784
  %v12414 = vpack.c.bf16 %v10829, %v10814
  %v12415 = vpack.c.bf16 %v10859, %v10844
  %v12416 = vpack.c.bf16 %v10874, %v10874
  %v12417 = vpack.c.bf16 %v10904, %v10889
  %v12418 = vpack.c.bf16 %v10934, %v10919
  %v12419 = vpack.c.bf16 %v10964, %v10949
  %v12420 = vpack.c.bf16 %v10979, %v10979
  %v12421 = vpack.c.bf16 %v11009, %v10994
  %v12422 = vpack.c.bf16 %v11039, %v11024
  %v12423 = vpack.c.bf16 %v11069, %v11054
  %v12424 = vpack.c.bf16 %v11084, %v11084
  %v12425 = vpack.c.bf16 %v11114, %v11099
  %v12426 = vpack.c.bf16 %v11144, %v11129
  %v12427 = vpack.c.bf16 %v11174, %v11159
  %v12428 = vpack.c.bf16 %v11189, %v11189
  %v12429 = vpack.c.bf16 %v11219, %v11204
  %v12430 = vpack.c.bf16 %v11249, %v11234
  %v12431 = vpack.c.bf16 %v11279, %v11264
  %v12432 = vpack.c.bf16 %v11294, %v11294
  %v12433 = vpack.c.bf16 %v11324, %v11309
  %v12434 = vpack.c.bf16 %v11354, %v11339
  %v12435 = vpack.c.bf16 %v11384, %v11369
  %v12436 = vpack.c.bf16 %v11399, %v11399
  %v12437 = vpack.c.bf16 %v11429, %v11414
  %v12438 = vpack.c.bf16 %v11459, %v11444
  %v12439 = vpack.c.bf16 %v11489, %v11474
  %v12440 = vpack.c.bf16 %v11504, %v11504
  %v12441 = vpack.c.bf16 %v11534, %v11519
  %v12442 = vpack.c.bf16 %v11564, %v11549
  %v12443 = vpack.c.bf16 %v11594, %v11579
  %v12444 = vpack.c.bf16 %v11609, %v11609
  %v12445 = vpack.c.bf16 %v11639, %v11624
  %v12446 = vpack.c.bf16 %v11669, %v11654
  %v12447 = vpack.c.bf16 %v11699, %v11684
  %v12448 = vpack.c.bf16 %v11714, %v11714
  %v12449 = vpack.c.bf16 %v11744, %v11729
  %v12450 = vpack.c.bf16 %v11774, %v11759
  %v12451 = vpack.c.bf16 %v11804, %v11789
  %v12452 = vpack.c.bf16 %v11819, %v11819
  %v12453 = vpack.c.bf16 %v11849, %v11834
  %v12454 = vpack.c.bf16 %v11879, %v11864
  %v12455 = vpack.c.bf16 %v11909, %v11894
  %v12456 = vpack.c.bf16 %v11924, %v11924
  %v12457 = vpack.c.bf16 %v11954, %v11939
  %v12458 = vpack.c.bf16 %v11984, %v11969
  %v12459 = vpack.c.bf16 %v12014, %v11999
  %v12460 = vpack.c.bf16 %v12029, %v12029
  %v12461 = vpack.c.bf16 %v12059, %v12044
  %v12462 = vpack.c.bf16 %v12089, %v12074
  %v12463 = vpack.c.bf16 %v12119, %v12104
  %v12464 = vpack.c.bf16 %v12134, %v12134
  %v12465 = vpack.c.bf16 %v12164, %v12149
  %v12466 = vpack.c.bf16 %v12194, %v12179
  %v12467 = vpack.c.bf16 %v12224, %v12209
  %v12468 = vpack.c.bf16 %v12239, %v12239
  %v12469 = vpack.c.bf16 %v12269, %v12254
  %v12470 = vpack.c.bf16 %v12299, %v12284
  %v12471 = vpack.c.bf16 %v12329, %v12314
  %v12472 = vpack.c.bf16 %v12344, %v12344
  %12473 = vst [vmem:[%s11] sm:$0xff] %v12345
  %12474 = vst [vmem:[%s11 + $0x8] sm:$0xff] %v12346
  %12475 = vst [vmem:[%s11 + $0x10] sm:$0xff] %v12347
  %vm12476 = vcmask 125952
  %12477 = vst.msk [vmem:[%s11 + $0x18] sm:$0xf] %vm12476, %v12348
  %12478 = vst [vmem:[%s11 + $0x1c] sm:$0xff] %v12349
  %12479 = vst [vmem:[%s11 + $0x24] sm:$0xff] %v12350
  %12480 = vst [vmem:[%s11 + $0x2c] sm:$0xff] %v12351
  %12481 = vst.msk [vmem:[%s11 + $0x34] sm:$0xf] %vm12476, %v12352
  %12482 = vst [vmem:[%s11 + $0x38] sm:$0xff] %v12353
  %12483 = vst [vmem:[%s11 + $0x40] sm:$0xff] %v12354
  %12484 = vst [vmem:[%s11 + $0x48] sm:$0xff] %v12355
  %12485 = vst.msk [vmem:[%s11 + $0x50] sm:$0xf] %vm12476, %v12356
  %12486 = vst [vmem:[%s11 + $0x54] sm:$0xff] %v12357
  %12487 = vst [vmem:[%s11 + $0x5c] sm:$0xff] %v12358
  %12488 = vst [vmem:[%s11 + $0x64] sm:$0xff] %v12359
  %12489 = vst.msk [vmem:[%s11 + $0x6c] sm:$0xf] %vm12476, %v12360
  %12490 = vst [vmem:[%s11 + $0x70] sm:$0xff] %v12361
  %12491 = vst [vmem:[%s11 + $0x78] sm:$0xff] %v12362
  %12492 = vst [vmem:[%s11 + $0x80] sm:$0xff] %v12363
  %12493 = vst.msk [vmem:[%s11 + $0x88] sm:$0xf] %vm12476, %v12364
  %12494 = vst [vmem:[%s11 + $0x8c] sm:$0xff] %v12365
  %12495 = vst [vmem:[%s11 + $0x94] sm:$0xff] %v12366
  %12496 = vst [vmem:[%s11 + $0x9c] sm:$0xff] %v12367
  %12497 = vst.msk [vmem:[%s11 + $0xa4] sm:$0xf] %vm12476, %v12368
  %12498 = vst [vmem:[%s11 + $0xa8] sm:$0xff] %v12369
  %12499 = vst [vmem:[%s11 + $0xb0] sm:$0xff] %v12370
  %12500 = vst [vmem:[%s11 + $0xb8] sm:$0xff] %v12371
  %12501 = vst.msk [vmem:[%s11 + $0xc0] sm:$0xf] %vm12476, %v12372
  %12502 = vst [vmem:[%s11 + $0xc4] sm:$0xff] %v12373
  %12503 = vst [vmem:[%s11 + $0xcc] sm:$0xff] %v12374
  %12504 = vst [vmem:[%s11 + $0xd4] sm:$0xff] %v12375
  %12505 = vst.msk [vmem:[%s11 + $0xdc] sm:$0xf] %vm12476, %v12376
  %12506 = vst [vmem:[%s11 + $0xe0] sm:$0xff] %v12377
  %12507 = vst [vmem:[%s11 + $0xe8] sm:$0xff] %v12378
  %12508 = vst [vmem:[%s11 + $0xf0] sm:$0xff] %v12379
  %12509 = vst.msk [vmem:[%s11 + $0xf8] sm:$0xf] %vm12476, %v12380
  %12510 = vst [vmem:[%s11 + $0xfc] sm:$0xff] %v12381
  %12511 = vst [vmem:[%s11 + $0x104] sm:$0xff] %v12382
  %12512 = vst [vmem:[%s11 + $0x10c] sm:$0xff] %v12383
  %12513 = vst.msk [vmem:[%s11 + $0x114] sm:$0xf] %vm12476, %v12384
  %12514 = vst [vmem:[%s11 + $0x118] sm:$0xff] %v12385
  %12515 = vst [vmem:[%s11 + $0x120] sm:$0xff] %v12386
  %12516 = vst [vmem:[%s11 + $0x128] sm:$0xff] %v12387
  %12517 = vst.msk [vmem:[%s11 + $0x130] sm:$0xf] %vm12476, %v12388
  %12518 = vst [vmem:[%s11 + $0x134] sm:$0xff] %v12389
  %12519 = vst [vmem:[%s11 + $0x13c] sm:$0xff] %v12390
  %12520 = vst [vmem:[%s11 + $0x144] sm:$0xff] %v12391
  %12521 = vst.msk [vmem:[%s11 + $0x14c] sm:$0xf] %vm12476, %v12392
  %12522 = vst [vmem:[%s11 + $0x150] sm:$0xff] %v12393
  %12523 = vst [vmem:[%s11 + $0x158] sm:$0xff] %v12394
  %12524 = vst [vmem:[%s11 + $0x160] sm:$0xff] %v12395
  %12525 = vst.msk [vmem:[%s11 + $0x168] sm:$0xf] %vm12476, %v12396
  %12526 = vst [vmem:[%s11 + $0x16c] sm:$0xff] %v12397
  %12527 = vst [vmem:[%s11 + $0x174] sm:$0xff] %v12398
  %12528 = vst [vmem:[%s11 + $0x17c] sm:$0xff] %v12399
  %12529 = vst.msk [vmem:[%s11 + $0x184] sm:$0xf] %vm12476, %v12400
  %12530 = vst [vmem:[%s11 + $0x188] sm:$0xff] %v12401
  %12531 = vst [vmem:[%s11 + $0x190] sm:$0xff] %v12402
  %12532 = vst [vmem:[%s11 + $0x198] sm:$0xff] %v12403
  %12533 = vst.msk [vmem:[%s11 + $0x1a0] sm:$0xf] %vm12476, %v12404
  %12534 = vst [vmem:[%s11 + $0x1a4] sm:$0xff] %v12405
  %12535 = vst [vmem:[%s11 + $0x1ac] sm:$0xff] %v12406
  %12536 = vst [vmem:[%s11 + $0x1b4] sm:$0xff] %v12407
  %12537 = vst.msk [vmem:[%s11 + $0x1bc] sm:$0xf] %vm12476, %v12408
  %12538 = vst [vmem:[%s11 + $0x1c0] sm:$0xff] %v12409
  %12539 = vst [vmem:[%s11 + $0x1c8] sm:$0xff] %v12410
  %12540 = vst [vmem:[%s11 + $0x1d0] sm:$0xff] %v12411
  %12541 = vst.msk [vmem:[%s11 + $0x1d8] sm:$0xf] %vm12476, %v12412
  %12542 = vst [vmem:[%s11 + $0x1dc] sm:$0xff] %v12413
  %12543 = vst [vmem:[%s11 + $0x1e4] sm:$0xff] %v12414
  %12544 = vst [vmem:[%s11 + $0x1ec] sm:$0xff] %v12415
  %12545 = vst.msk [vmem:[%s11 + $0x1f4] sm:$0xf] %vm12476, %v12416
  %12546 = vst [vmem:[%s11 + $0x1f8] sm:$0xff] %v12417
  %12547 = vst [vmem:[%s11 + $0x200] sm:$0xff] %v12418
  %12548 = vst [vmem:[%s11 + $0x208] sm:$0xff] %v12419
  %12549 = vst.msk [vmem:[%s11 + $0x210] sm:$0xf] %vm12476, %v12420
  %12550 = vst [vmem:[%s11 + $0x214] sm:$0xff] %v12421
  %12551 = vst [vmem:[%s11 + $0x21c] sm:$0xff] %v12422
  %12552 = vst [vmem:[%s11 + $0x224] sm:$0xff] %v12423
  %12553 = vst.msk [vmem:[%s11 + $0x22c] sm:$0xf] %vm12476, %v12424
  %12554 = vst [vmem:[%s11 + $0x230] sm:$0xff] %v12425
  %12555 = vst [vmem:[%s11 + $0x238] sm:$0xff] %v12426
  %12556 = vst [vmem:[%s11 + $0x240] sm:$0xff] %v12427
  %12557 = vst.msk [vmem:[%s11 + $0x248] sm:$0xf] %vm12476, %v12428
  %12558 = vst [vmem:[%s11 + $0x24c] sm:$0xff] %v12429
  %12559 = vst [vmem:[%s11 + $0x254] sm:$0xff] %v12430
  %12560 = vst [vmem:[%s11 + $0x25c] sm:$0xff] %v12431
  %12561 = vst.msk [vmem:[%s11 + $0x264] sm:$0xf] %vm12476, %v12432
  %12562 = vst [vmem:[%s11 + $0x268] sm:$0xff] %v12433
  %12563 = vst [vmem:[%s11 + $0x270] sm:$0xff] %v12434
  %12564 = vst [vmem:[%s11 + $0x278] sm:$0xff] %v12435
  %12565 = vst.msk [vmem:[%s11 + $0x280] sm:$0xf] %vm12476, %v12436
  %12566 = vst [vmem:[%s11 + $0x284] sm:$0xff] %v12437
  %12567 = vst [vmem:[%s11 + $0x28c] sm:$0xff] %v12438
  %12568 = vst [vmem:[%s11 + $0x294] sm:$0xff] %v12439
  %12569 = vst.msk [vmem:[%s11 + $0x29c] sm:$0xf] %vm12476, %v12440
  %12570 = vst [vmem:[%s11 + $0x2a0] sm:$0xff] %v12441
  %12571 = vst [vmem:[%s11 + $0x2a8] sm:$0xff] %v12442
  %12572 = vst [vmem:[%s11 + $0x2b0] sm:$0xff] %v12443
  %12573 = vst.msk [vmem:[%s11 + $0x2b8] sm:$0xf] %vm12476, %v12444
  %12574 = vst [vmem:[%s11 + $0x2bc] sm:$0xff] %v12445
  %12575 = vst [vmem:[%s11 + $0x2c4] sm:$0xff] %v12446
  %12576 = vst [vmem:[%s11 + $0x2cc] sm:$0xff] %v12447
  %12577 = vst.msk [vmem:[%s11 + $0x2d4] sm:$0xf] %vm12476, %v12448
  %12578 = vst [vmem:[%s11 + $0x2d8] sm:$0xff] %v12449
  %12579 = vst [vmem:[%s11 + $0x2e0] sm:$0xff] %v12450
  %12580 = vst [vmem:[%s11 + $0x2e8] sm:$0xff] %v12451
  %12581 = vst.msk [vmem:[%s11 + $0x2f0] sm:$0xf] %vm12476, %v12452
  %12582 = vst [vmem:[%s11 + $0x2f4] sm:$0xff] %v12453
  %12583 = vst [vmem:[%s11 + $0x2fc] sm:$0xff] %v12454
  %12584 = vst [vmem:[%s11 + $0x304] sm:$0xff] %v12455
  %12585 = vst.msk [vmem:[%s11 + $0x30c] sm:$0xf] %vm12476, %v12456
  %12586 = vst [vmem:[%s11 + $0x310] sm:$0xff] %v12457
  %12587 = vst [vmem:[%s11 + $0x318] sm:$0xff] %v12458
  %12588 = vst [vmem:[%s11 + $0x320] sm:$0xff] %v12459
  %12589 = vst.msk [vmem:[%s11 + $0x328] sm:$0xf] %vm12476, %v12460
  %12590 = vst [vmem:[%s11 + $0x32c] sm:$0xff] %v12461
  %12591 = vst [vmem:[%s11 + $0x334] sm:$0xff] %v12462
  %12592 = vst [vmem:[%s11 + $0x33c] sm:$0xff] %v12463
  %12593 = vst.msk [vmem:[%s11 + $0x344] sm:$0xf] %vm12476, %v12464
  %12594 = vst [vmem:[%s11 + $0x348] sm:$0xff] %v12465
  %12595 = vst [vmem:[%s11 + $0x350] sm:$0xff] %v12466
  %12596 = vst [vmem:[%s11 + $0x358] sm:$0xff] %v12467
  %12597 = vst.msk [vmem:[%s11 + $0x360] sm:$0xf] %vm12476, %v12468
  %12598 = vst [vmem:[%s11 + $0x364] sm:$0xff] %v12469
  %12599 = vst [vmem:[%s11 + $0x36c] sm:$0xff] %v12470
  %12600 = vst [vmem:[%s11 + $0x374] sm:$0xff] %v12471
  %12601 = vst.msk [vmem:[%s11 + $0x37c] sm:$0xf] %vm12476, %v12472
  // Predicated region
  $region42: #{autoencoder_forward.1} parent=0 // pred_check
    _
  $region43: #{autoencoder_forward.1} parent=0 // pred_check_branch
    %12603 = sbr.rel (0) target = $region45
  $region44: #{autoencoder_forward.1} parent=0 // pred_region
    _
  $region45: #{autoencoder_forward.1} parent=0 // pred_fallthru
    _
  // Predicated region
  $region46: #{autoencoder_forward.1} parent=0 // pred_check
    _
  $region47: #{autoencoder_forward.1} parent=0 // pred_check_branch
    %12605 = sbr.rel (0) target = $region49
  $region48: #{autoencoder_forward.1} parent=0 // pred_region
    _
  $region49: #{autoencoder_forward.1} parent=0 // pred_fallthru
    _
  // Predicated region
  $region50: #{autoencoder_forward.1} parent=0 // pred_check
    _
  $region51: #{autoencoder_forward.1} parent=0 // pred_check_branch
    %12607 = sbr.rel (0) target = $region53
  $region52: #{autoencoder_forward.1} parent=0 // pred_region
    _
  $region53: #{autoencoder_forward.1} parent=0 // pred_fallthru
    _
  // Predicated region
  $region54: #{autoencoder_forward.1} parent=0 // pred_check
    _
  $region55: #{autoencoder_forward.1} parent=0 // pred_check_branch
    %12609 = sbr.rel (0) target = $region57
  $region56: #{autoencoder_forward.1} parent=0 // pred_region
    _
  $region57: #{autoencoder_forward.1} parent=0 // pred_fallthru
    _

</llo_original>
